<compile_context>
chip_gen: v6e
topology: v6e:2x2x1
jax: 0.10.0
libtpu: 0.0.40
codegen_flags: <defaults>
</compile_context>

<pallas_src>
import functools

import jax
import jax.numpy as jnp
from jax.experimental import pallas as pl
from jax.experimental.pallas import tpu as pltpu

BN_EPS = 1e-5


# ----------------------------------------------------------------------------
# Fused DecoderMulti kernel (entire forward pass in one pallas_call)
# ----------------------------------------------------------------------------
def _decoder_multi_kernel(
    # runtime data
    last_pos_ref, last_pos_rel_ref, h0_ref, c0_ref,
    # DecoderMulti.spatial_embedding / hidden2pos / LSTM
    sp_w_ref, sp_b_ref,
    h2p_w_ref, h2p_b_ref,
    lstm_wih_ref, lstm_whh_ref, lstm_b_ref,
    # PoolHiddenNet
    pn_sp_w_ref, pn_sp_b_ref,
    pn1_we_ref, pn1_wh_ref, pn1_b_ref, pn1_g_ref, pn1_bt_ref,
    pn2_w_ref, pn2_b_ref, pn2_g_ref, pn2_bt_ref,
    # DecoderMulti.mlp
    m1_wh_ref, m1_wp_ref, m1_b_ref, m1_g_ref, m1_bt_ref,
    m2_w_ref, m2_b_ref, m2_g_ref, m2_bt_ref,
    # outputs
    pred_ref, hfin_ref,
    # scratch
    pool_scr,
    *, seq_len, seq_start_end, h_dim):
    f32 = jnp.float32
    H = h_dim

    # ---- load everything once; weights stay resident in VMEM/vregs for all steps
    last_pos = last_pos_ref[...]
    h = h0_ref[...]
    c = c0_ref[...]

    sp_w, sp_b = sp_w_ref[...], sp_b_ref[...]
    h2p_w, h2p_b = h2p_w_ref[...], h2p_b_ref[...]
    w_ih, w_hh, lstm_b = lstm_wih_ref[...], lstm_whh_ref[...], lstm_b_ref[...]
    pn_sp_w, pn_sp_b = pn_sp_w_ref[...], pn_sp_b_ref[...]
    pn1_we, pn1_wh = pn1_we_ref[...], pn1_wh_ref[...]
    pn1_b, pn1_g, pn1_bt = pn1_b_ref[...], pn1_g_ref[...], pn1_bt_ref[...]
    pn2_w, pn2_b = pn2_w_ref[...], pn2_b_ref[...]
    pn2_g, pn2_bt = pn2_g_ref[...], pn2_bt_ref[...]
    m1_wh, m1_wp = m1_wh_ref[...], m1_wp_ref[...]
    m1_b, m1_g, m1_bt = m1_b_ref[...], m1_g_ref[...], m1_bt_ref[...]
    m2_w, m2_b, m2_g, m2_bt = m2_w_ref[...], m2_b_ref[...], m2_g_ref[...], m2_bt_ref[...]

    def linear_k2(x2, w, b):
        # (R, 2) @ (2, N) + b computed on the VPU (a K=2 contraction is pure
        # push/pop latency on the MXU).
        return x2[:, 0:1] * w[0:1, :] + x2[:, 1:2] * w[1:2, :] + b

    def bn_relu(y, g, beta):
        # BatchNorm1d, training-mode batch statistics (biased variance) + ReLU.
        mean = jnp.mean(y, axis=0, keepdims=True)
        var = jnp.mean((y - mean) ** 2, axis=0, keepdims=True)
        return jnp.maximum((y - mean) * jax.lax.rsqrt(var + BN_EPS) * g + beta, 0.0)

    decoder_input = linear_k2(last_pos_rel_ref[...], sp_w, sp_b)     # (B, E)

    # seq_len is small and static -> unrolled straight-line code.
    for t in range(seq_len):
        # -------- LSTM cell (gate order i, f, g, o; b = b_ih + b_hh) ----------
        gates = (jnp.dot(decoder_input, w_ih, preferred_element_type=f32)
                 + jnp.dot(h, w_hh, preferred_element_type=f32)
                 + lstm_b)                                           # (B, 4H)
        i_g = jax.nn.sigmoid(gates[:, 0 * H:1 * H])
        f_g = jax.nn.sigmoid(gates[:, 1 * H:2 * H])
        g_g = jnp.tanh(gates[:, 2 * H:3 * H])
        o_g = jax.nn.sigmoid(gates[:, 3 * H:4 * H])
        c = f_g * c + i_g * g_g
        output = o_g * jnp.tanh(c)                                   # (B, H)

        # -------- hidden2pos ---------------------------------------------------
        rel_pos = jnp.dot(output, h2p_w, preferred_element_type=f32) + h2p_b  # (B,2)
        curr_pos = rel_pos + last_pos

        # -------- PoolHiddenNet (num_layers == 1 => hidden_state == output) ----
        for (start, end) in seq_start_end:       # static Python group loop
            P = end - start
            n = P * P
            hid = output[start:end, :]            # (P, H)
            pos = curr_pos[start:end, :]          # (P, 2)
            # hidden part of the first pre-pool Linear is independent of the
            # anchor pedestrian i (curr_hidden_1[i*P+j] == hidden[j]).
            hid_proj = jnp.dot(hid, pn1_wh, preferred_element_type=f32)  # (P,128)

            # first Linear of mlp_pre_pool, one (P, 128) block per anchor i;
            # split-weight matmul == Linear(concat([rel_emb, hidden_1])).
            blocks1 = []
            for i in range(P):
                rel_i = pos - pos[i:i + 1, :]                        # pos[j]-pos[i]
                emb_i = linear_k2(rel_i, pn_sp_w, pn_sp_b)           # (P, E)
                blocks1.append(
                    jnp.dot(emb_i, pn1_we, preferred_element_type=f32)
                    + hid_proj + pn1_b)
            # BatchNorm over all P*P rows of this group (training-mode stats).
            mean1 = sum(jnp.sum(b, axis=0, keepdims=True) for b in blocks1) / n
            var1 = sum(jnp.sum((b - mean1) ** 2, axis=0, keepdims=True)
                       for b in blocks1) / n
            inv1 = jax.lax.rsqrt(var1 + BN_EPS)

            blocks2 = []
            for b in blocks1:
                a = jnp.maximum((b - mean1) * inv1 * pn1_g + pn1_bt, 0.0)
                blocks2.append(
                    jnp.dot(a, pn2_w, preferred_element_type=f32) + pn2_b)
            mean2 = sum(jnp.sum(b, axis=0, keepdims=True) for b in blocks2) / n
            var2 = sum(jnp.sum((b - mean2) ** 2, axis=0, keepdims=True)
                       for b in blocks2) / n
            inv2 = jax.lax.rsqrt(var2 + BN_EPS)

            for i, b in enumerate(blocks2):
                a = jnp.maximum((b - mean2) * inv2 * pn2_g + pn2_bt, 0.0)
                # pooled feature for pedestrian (start+i): max over neighbours j
                pool_scr[start + i:start + i + 1, :] = jnp.max(
                    a, axis=0, keepdims=True)

        pool_h = pool_scr[...]                                       # (B, bneck)

        # -------- decoder MLP (split-weight == Linear(concat([output, pool_h])))
        d1 = (jnp.dot(output, m1_wh, preferred_element_type=f32)
              + jnp.dot(pool_h, m1_wp, preferred_element_type=f32)
              + m1_b)
        d1 = bn_relu(d1, m1_g, m1_bt)
        d2 = jnp.dot(d1, m2_w, preferred_element_type=f32) + m2_b
        h = bn_relu(d2, m2_g, m2_bt)              # new state_tuple[0] (decoder_h)

        # next-step embedding input and outputs
        decoder_input = linear_k2(rel_pos, sp_w, sp_b)
        pred_ref[t, :, :] = rel_pos
        last_pos = curr_pos

    hfin_ref[...] = h


# ----------------------------------------------------------------------------
# Parameters (deterministic synthetic init; shapes follow the PyTorch __init__)
# ----------------------------------------------------------------------------
def init_params(key, embedding_dim, h_dim, mlp_dim, bottleneck_dim):
    keys = jax.random.split(key, 16)

    def lin(k, din, dout):
        kw, kb = jax.random.split(k)
        w = jax.random.normal(kw, (din, dout), jnp.float32) / jnp.sqrt(float(din))
        b = 0.01 * jax.random.normal(kb, (dout,), jnp.float32)
        return w, b

    p = {}
    # DecoderMulti.spatial_embedding : Linear(2, embedding_dim)
    p["spatial_w"], p["spatial_b"] = lin(keys[0], 2, embedding_dim)
    # DecoderMulti.hidden2pos : Linear(h_dim, 2)
    p["h2p_w"], p["h2p_b"] = lin(keys[1], h_dim, 2)
    # DecoderMulti.decoder : LSTM(embedding_dim, h_dim, 1)
    w_ih, b_ih = lin(keys[2], embedding_dim, 4 * h_dim)
    w_hh, b_hh = lin(keys[3], h_dim, 4 * h_dim)
    p["lstm_wih"], p["lstm_whh"], p["lstm_b"] = w_ih, w_hh, b_ih + b_hh
    # PoolHiddenNet.spatial_embedding : Linear(2, embedding_dim)
    p["pn_spatial_w"], p["pn_spatial_b"] = lin(keys[4], 2, embedding_dim)
    # PoolHiddenNet.mlp_pre_pool : [embedding_dim + h_dim, 128, bottleneck_dim]
    p["pn_l1_w"], p["pn_l1_b"] = lin(keys[5], embedding_dim + h_dim, 128)
    p["pn_l1_g"] = jnp.ones((128,), jnp.float32)
    p["pn_l1_beta"] = jnp.zeros((128,), jnp.float32)
    p["pn_l2_w"], p["pn_l2_b"] = lin(keys[6], 128, bottleneck_dim)
    p["pn_l2_g"] = jnp.ones((bottleneck_dim,), jnp.float32)
    p["pn_l2_beta"] = jnp.zeros((bottleneck_dim,), jnp.float32)
    # DecoderMulti.mlp : [h_dim + bottleneck_dim, mlp_dim, h_dim]
    p["mlp1_w"], p["mlp1_b"] = lin(keys[7], h_dim + bottleneck_dim, mlp_dim)
    p["mlp1_g"] = jnp.ones((mlp_dim,), jnp.float32)
    p["mlp1_beta"] = jnp.zeros((mlp_dim,), jnp.float32)
    p["mlp2_w"], p["mlp2_b"] = lin(keys[8], mlp_dim, h_dim)
    p["mlp2_g"] = jnp.ones((h_dim,), jnp.float32)
    p["mlp2_beta"] = jnp.zeros((h_dim,), jnp.float32)
    return p


# ----------------------------------------------------------------------------
# DecoderMulti forward: single fused pallas_call (one launch for the whole seq)
# ----------------------------------------------------------------------------
@functools.partial(
    jax.jit,
    static_argnames=("seq_start_end", "seq_len", "embedding_dim", "h_dim"))
def decoder_multi_forward(params, hidden_state, last_pos, last_pos_rel,
                          state_tuple, *, seq_start_end, seq_len,
                          embedding_dim, h_dim):
    # hidden_state is unused for num_layers == 1 (torch.cat([hidden_state[1:],
    # output]) replaces it with `output` before it is ever read).
    del hidden_state

    p = params
    batch = last_pos.shape[0]
    E, H = embedding_dim, h_dim
    bneck = p["pn_l2_w"].shape[1]
    h0 = state_tuple[0][0]
    c0 = state_tuple[1][0]

    row = lambda v: v.reshape(1, -1)
    sse = tuple((int(s), int(e)) for (s, e) in seq_start_end)

    kernel = functools.partial(
        _decoder_multi_kernel, seq_len=seq_len, seq_start_end=sse, h_dim=H)

    vmem_spec = pl.BlockSpec(memory_space=pltpu.MemorySpace.VMEM)

    inputs = (
        last_pos, last_pos_rel, h0, c0,
        p["spatial_w"], row(p["spatial_b"]),
        p["h2p_w"], row(p["h2p_b"]),
        p["lstm_wih"], p["lstm_whh"], row(p["lstm_b"]),
        p["pn_spatial_w"], row(p["pn_spatial_b"]),
        p["pn_l1_w"][:E], p["pn_l1_w"][E:],
        row(p["pn_l1_b"]), row(p["pn_l1_g"]), row(p["pn_l1_beta"]),
        p["pn_l2_w"], row(p["pn_l2_b"]), row(p["pn_l2_g"]), row(p["pn_l2_beta"]),
        p["mlp1_w"][:H], p["mlp1_w"][H:],
        row(p["mlp1_b"]), row(p["mlp1_g"]), row(p["mlp1_beta"]),
        p["mlp2_w"], row(p["mlp2_b"]), row(p["mlp2_g"]), row(p["mlp2_beta"]),
    )

    pred, h_fin = pl.pallas_call(
        kernel,
        out_shape=(
            jax.ShapeDtypeStruct((seq_len, batch, 2), jnp.float32),
            jax.ShapeDtypeStruct((batch, H), jnp.float32),
        ),
        in_specs=[vmem_spec] * len(inputs),
        out_specs=(vmem_spec, vmem_spec),
        scratch_shapes=[pltpu.VMEM((batch, bneck), jnp.float32)],
    )(*inputs)

    return pred, h_fin[None]                      # (seq_len, B, 2), (1, B, H)


# ----------------------------------------------------------------------------
if __name__ == "__main__":
    # small dims consistent with the module interface
    embedding_dim = 16
    h_dim = 32
    mlp_dim = 64
    bottleneck_dim = 64
    num_layers = 1
    batch = 6
    seq_len = 3
    seq_start_end = ((0, 3), (3, 6))   # static tuple of (start, end) pairs

    key = jax.random.PRNGKey(0)
    kp, k1, k2, k3, k4, k5 = jax.random.split(key, 6)
    params = init_params(kp, embedding_dim, h_dim, mlp_dim, bottleneck_dim)

    hidden_state = jax.random.normal(k1, (num_layers, batch, h_dim), jnp.float32)
    last_pos = jax.random.normal(k2, (batch, 2), jnp.float32)
    last_pos_rel = 0.1 * jax.random.normal(k3, (batch, 2), jnp.float32)
    hh = jax.random.normal(k4, (num_layers, batch, h_dim), jnp.float32)
    ch = jax.random.normal(k5, (num_layers, batch, h_dim), jnp.float32)

    pred_traj_fake_rel, final_h = decoder_multi_forward(
        params, hidden_state, last_pos, last_pos_rel, (hh, ch),
        seq_start_end=seq_start_end, seq_len=seq_len,
        embedding_dim=embedding_dim, h_dim=h_dim)

    jax.block_until_ready((pred_traj_fake_rel, final_h))
    assert pred_traj_fake_rel.shape == (seq_len, batch, 2)
    assert final_h.shape == (1, batch, h_dim)
    print("KERNEL_OK")
</pallas_src>

<mosaic_0001>
module attributes {stable_mosaic.version = 11 : i64} {
  func.func @_decoder_multi_kernel(%arg0: memref<6x2xf32, #tpu.memory_space<vmem>>, %arg1: memref<6x2xf32, #tpu.memory_space<vmem>>, %arg2: memref<6x32xf32, #tpu.memory_space<vmem>>, %arg3: memref<6x32xf32, #tpu.memory_space<vmem>>, %arg4: memref<2x16xf32, #tpu.memory_space<vmem>>, %arg5: memref<1x16xf32, #tpu.memory_space<vmem>>, %arg6: memref<32x2xf32, #tpu.memory_space<vmem>>, %arg7: memref<1x2xf32, #tpu.memory_space<vmem>>, %arg8: memref<16x128xf32, #tpu.memory_space<vmem>>, %arg9: memref<32x128xf32, #tpu.memory_space<vmem>>, %arg10: memref<1x128xf32, #tpu.memory_space<vmem>>, %arg11: memref<2x16xf32, #tpu.memory_space<vmem>>, %arg12: memref<1x16xf32, #tpu.memory_space<vmem>>, %arg13: memref<16x128xf32, #tpu.memory_space<vmem>>, %arg14: memref<32x128xf32, #tpu.memory_space<vmem>>, %arg15: memref<1x128xf32, #tpu.memory_space<vmem>>, %arg16: memref<1x128xf32, #tpu.memory_space<vmem>>, %arg17: memref<1x128xf32, #tpu.memory_space<vmem>>, %arg18: memref<128x64xf32, #tpu.memory_space<vmem>>, %arg19: memref<1x64xf32, #tpu.memory_space<vmem>>, %arg20: memref<1x64xf32, #tpu.memory_space<vmem>>, %arg21: memref<1x64xf32, #tpu.memory_space<vmem>>, %arg22: memref<32x64xf32, #tpu.memory_space<vmem>>, %arg23: memref<64x64xf32, #tpu.memory_space<vmem>>, %arg24: memref<1x64xf32, #tpu.memory_space<vmem>>, %arg25: memref<1x64xf32, #tpu.memory_space<vmem>>, %arg26: memref<1x64xf32, #tpu.memory_space<vmem>>, %arg27: memref<64x32xf32, #tpu.memory_space<vmem>>, %arg28: memref<1x32xf32, #tpu.memory_space<vmem>>, %arg29: memref<1x32xf32, #tpu.memory_space<vmem>>, %arg30: memref<1x32xf32, #tpu.memory_space<vmem>>, %arg31: memref<3x6x2xf32, #tpu.memory_space<vmem>>, %arg32: memref<6x32xf32, #tpu.memory_space<vmem>>, %arg33: memref<6x64xf32, #tpu.memory_space<vmem>>) attributes {dimension_semantics = [], scalar_prefetch = 0 : i64, scratch_operands = 1 : i64, tpu.core_type = #tpu.core_type<tc>} {
    %c0 = arith.constant 0 : index
    %c0_0 = arith.constant 0 : index
    %0 = vector.load %arg0[%c0, %c0_0] : memref<6x2xf32, #tpu.memory_space<vmem>>, vector<6x2xf32>
    %c0_1 = arith.constant 0 : index
    %c0_2 = arith.constant 0 : index
    %1 = vector.load %arg2[%c0_1, %c0_2] : memref<6x32xf32, #tpu.memory_space<vmem>>, vector<6x32xf32>
    %c0_3 = arith.constant 0 : index
    %c0_4 = arith.constant 0 : index
    %2 = vector.load %arg3[%c0_3, %c0_4] : memref<6x32xf32, #tpu.memory_space<vmem>>, vector<6x32xf32>
    %c0_5 = arith.constant 0 : index
    %c0_6 = arith.constant 0 : index
    %3 = vector.load %arg4[%c0_5, %c0_6] : memref<2x16xf32, #tpu.memory_space<vmem>>, vector<2x16xf32>
    %c0_7 = arith.constant 0 : index
    %c0_8 = arith.constant 0 : index
    %4 = vector.load %arg5[%c0_7, %c0_8] : memref<1x16xf32, #tpu.memory_space<vmem>>, vector<1x16xf32>
    %c0_9 = arith.constant 0 : index
    %c0_10 = arith.constant 0 : index
    %5 = vector.load %arg6[%c0_9, %c0_10] : memref<32x2xf32, #tpu.memory_space<vmem>>, vector<32x2xf32>
    %c0_11 = arith.constant 0 : index
    %c0_12 = arith.constant 0 : index
    %6 = vector.load %arg7[%c0_11, %c0_12] : memref<1x2xf32, #tpu.memory_space<vmem>>, vector<1x2xf32>
    %c0_13 = arith.constant 0 : index
    %c0_14 = arith.constant 0 : index
    %7 = vector.load %arg8[%c0_13, %c0_14] : memref<16x128xf32, #tpu.memory_space<vmem>>, vector<16x128xf32>
    %c0_15 = arith.constant 0 : index
    %c0_16 = arith.constant 0 : index
    %8 = vector.load %arg9[%c0_15, %c0_16] : memref<32x128xf32, #tpu.memory_space<vmem>>, vector<32x128xf32>
    %c0_17 = arith.constant 0 : index
    %c0_18 = arith.constant 0 : index
    %9 = vector.load %arg10[%c0_17, %c0_18] : memref<1x128xf32, #tpu.memory_space<vmem>>, vector<1x128xf32>
    %c0_19 = arith.constant 0 : index
    %c0_20 = arith.constant 0 : index
    %10 = vector.load %arg11[%c0_19, %c0_20] : memref<2x16xf32, #tpu.memory_space<vmem>>, vector<2x16xf32>
    %c0_21 = arith.constant 0 : index
    %c0_22 = arith.constant 0 : index
    %11 = vector.load %arg12[%c0_21, %c0_22] : memref<1x16xf32, #tpu.memory_space<vmem>>, vector<1x16xf32>
    %c0_23 = arith.constant 0 : index
    %c0_24 = arith.constant 0 : index
    %12 = vector.load %arg13[%c0_23, %c0_24] : memref<16x128xf32, #tpu.memory_space<vmem>>, vector<16x128xf32>
    %c0_25 = arith.constant 0 : index
    %c0_26 = arith.constant 0 : index
    %13 = vector.load %arg14[%c0_25, %c0_26] : memref<32x128xf32, #tpu.memory_space<vmem>>, vector<32x128xf32>
    %c0_27 = arith.constant 0 : index
    %c0_28 = arith.constant 0 : index
    %14 = vector.load %arg15[%c0_27, %c0_28] : memref<1x128xf32, #tpu.memory_space<vmem>>, vector<1x128xf32>
    %c0_29 = arith.constant 0 : index
    %c0_30 = arith.constant 0 : index
    %15 = vector.load %arg16[%c0_29, %c0_30] : memref<1x128xf32, #tpu.memory_space<vmem>>, vector<1x128xf32>
    %c0_31 = arith.constant 0 : index
    %c0_32 = arith.constant 0 : index
    %16 = vector.load %arg17[%c0_31, %c0_32] : memref<1x128xf32, #tpu.memory_space<vmem>>, vector<1x128xf32>
    %c0_33 = arith.constant 0 : index
    %c0_34 = arith.constant 0 : index
    %17 = vector.load %arg18[%c0_33, %c0_34] : memref<128x64xf32, #tpu.memory_space<vmem>>, vector<128x64xf32>
    %c0_35 = arith.constant 0 : index
    %c0_36 = arith.constant 0 : index
    %18 = vector.load %arg19[%c0_35, %c0_36] : memref<1x64xf32, #tpu.memory_space<vmem>>, vector<1x64xf32>
    %c0_37 = arith.constant 0 : index
    %c0_38 = arith.constant 0 : index
    %19 = vector.load %arg20[%c0_37, %c0_38] : memref<1x64xf32, #tpu.memory_space<vmem>>, vector<1x64xf32>
    %c0_39 = arith.constant 0 : index
    %c0_40 = arith.constant 0 : index
    %20 = vector.load %arg21[%c0_39, %c0_40] : memref<1x64xf32, #tpu.memory_space<vmem>>, vector<1x64xf32>
    %c0_41 = arith.constant 0 : index
    %c0_42 = arith.constant 0 : index
    %21 = vector.load %arg22[%c0_41, %c0_42] : memref<32x64xf32, #tpu.memory_space<vmem>>, vector<32x64xf32>
    %c0_43 = arith.constant 0 : index
    %c0_44 = arith.constant 0 : index
    %22 = vector.load %arg23[%c0_43, %c0_44] : memref<64x64xf32, #tpu.memory_space<vmem>>, vector<64x64xf32>
    %c0_45 = arith.constant 0 : index
    %c0_46 = arith.constant 0 : index
    %23 = vector.load %arg24[%c0_45, %c0_46] : memref<1x64xf32, #tpu.memory_space<vmem>>, vector<1x64xf32>
    %c0_47 = arith.constant 0 : index
    %c0_48 = arith.constant 0 : index
    %24 = vector.load %arg25[%c0_47, %c0_48] : memref<1x64xf32, #tpu.memory_space<vmem>>, vector<1x64xf32>
    %c0_49 = arith.constant 0 : index
    %c0_50 = arith.constant 0 : index
    %25 = vector.load %arg26[%c0_49, %c0_50] : memref<1x64xf32, #tpu.memory_space<vmem>>, vector<1x64xf32>
    %c0_51 = arith.constant 0 : index
    %c0_52 = arith.constant 0 : index
    %26 = vector.load %arg27[%c0_51, %c0_52] : memref<64x32xf32, #tpu.memory_space<vmem>>, vector<64x32xf32>
    %c0_53 = arith.constant 0 : index
    %c0_54 = arith.constant 0 : index
    %27 = vector.load %arg28[%c0_53, %c0_54] : memref<1x32xf32, #tpu.memory_space<vmem>>, vector<1x32xf32>
    %c0_55 = arith.constant 0 : index
    %c0_56 = arith.constant 0 : index
    %28 = vector.load %arg29[%c0_55, %c0_56] : memref<1x32xf32, #tpu.memory_space<vmem>>, vector<1x32xf32>
    %c0_57 = arith.constant 0 : index
    %c0_58 = arith.constant 0 : index
    %29 = vector.load %arg30[%c0_57, %c0_58] : memref<1x32xf32, #tpu.memory_space<vmem>>, vector<1x32xf32>
    %c0_59 = arith.constant 0 : index
    %c0_60 = arith.constant 0 : index
    %30 = vector.load %arg1[%c0_59, %c0_60] : memref<6x2xf32, #tpu.memory_space<vmem>>, vector<6x2xf32>
    %31 = vector.extract_strided_slice %30 {offsets = [0, 0], sizes = [6, 1], strides = [1, 1]} : vector<6x2xf32> to vector<6x1xf32>
    %32 = vector.extract_strided_slice %3 {offsets = [0, 0], sizes = [1, 16], strides = [1, 1]} : vector<2x16xf32> to vector<1x16xf32>
    %33 = vector.broadcast %31 : vector<6x1xf32> to vector<6x16xf32>
    %34 = vector.broadcast %32 : vector<1x16xf32> to vector<6x16xf32>
    %35 = arith.mulf %33, %34 : vector<6x16xf32>
    %36 = vector.extract_strided_slice %30 {offsets = [0, 1], sizes = [6, 1], strides = [1, 1]} : vector<6x2xf32> to vector<6x1xf32>
    %37 = vector.extract_strided_slice %3 {offsets = [1, 0], sizes = [1, 16], strides = [1, 1]} : vector<2x16xf32> to vector<1x16xf32>
    %38 = vector.broadcast %36 : vector<6x1xf32> to vector<6x16xf32>
    %39 = vector.broadcast %37 : vector<1x16xf32> to vector<6x16xf32>
    %40 = arith.mulf %38, %39 : vector<6x16xf32>
    %41 = arith.addf %35, %40 : vector<6x16xf32>
    %42 = vector.broadcast %4 : vector<1x16xf32> to vector<6x16xf32>
    %43 = arith.addf %41, %42 : vector<6x16xf32>
    %cst = arith.constant dense<0.000000e+00> : vector<6x128xf32>
    %44 = tpu.matmul %43, %7, %cst {dimension_numbers = #tpu.dot_dimension_numbers<[1], [0], [0], [1], [0, 0, 1, 1], [], []>} : vector<6x16xf32>, vector<16x128xf32>, vector<6x128xf32> -> vector<6x128xf32>
    %cst_61 = arith.constant dense<0.000000e+00> : vector<6x128xf32>
    %45 = tpu.matmul %1, %8, %cst_61 {dimension_numbers = #tpu.dot_dimension_numbers<[1], [0], [0], [1], [0, 0, 1, 1], [], []>} : vector<6x32xf32>, vector<32x128xf32>, vector<6x128xf32> -> vector<6x128xf32>
    %46 = arith.addf %44, %45 : vector<6x128xf32>
    %47 = vector.broadcast %9 : vector<1x128xf32> to vector<6x128xf32>
    %48 = arith.addf %46, %47 : vector<6x128xf32>
    %49 = vector.extract_strided_slice %48 {offsets = [0, 0], sizes = [6, 32], strides = [1, 1]} : vector<6x128xf32> to vector<6x32xf32>
    %50 = arith.negf %49 : vector<6x32xf32>
    %51 = math.exp %50 : vector<6x32xf32>
    %cst_62 = arith.constant 1.000000e+00 : f32
    %52 = vector.broadcast %cst_62 : f32 to vector<6x32xf32>
    %53 = arith.addf %52, %51 : vector<6x32xf32>
    %54 = arith.divf %52, %53 : vector<6x32xf32>
    %55 = vector.extract_strided_slice %48 {offsets = [0, 32], sizes = [6, 32], strides = [1, 1]} : vector<6x128xf32> to vector<6x32xf32>
    %56 = arith.negf %55 : vector<6x32xf32>
    %57 = math.exp %56 : vector<6x32xf32>
    %cst_63 = arith.constant 1.000000e+00 : f32
    %58 = vector.broadcast %cst_63 : f32 to vector<6x32xf32>
    %59 = arith.addf %58, %57 : vector<6x32xf32>
    %60 = arith.divf %58, %59 : vector<6x32xf32>
    %61 = vector.extract_strided_slice %48 {offsets = [0, 64], sizes = [6, 32], strides = [1, 1]} : vector<6x128xf32> to vector<6x32xf32>
    %62 = math.tanh %61 : vector<6x32xf32>
    %63 = vector.extract_strided_slice %48 {offsets = [0, 96], sizes = [6, 32], strides = [1, 1]} : vector<6x128xf32> to vector<6x32xf32>
    %64 = arith.negf %63 : vector<6x32xf32>
    %65 = math.exp %64 : vector<6x32xf32>
    %cst_64 = arith.constant 1.000000e+00 : f32
    %66 = vector.broadcast %cst_64 : f32 to vector<6x32xf32>
    %67 = arith.addf %66, %65 : vector<6x32xf32>
    %68 = arith.divf %66, %67 : vector<6x32xf32>
    %69 = arith.mulf %60, %2 : vector<6x32xf32>
    %70 = arith.mulf %54, %62 : vector<6x32xf32>
    %71 = arith.addf %69, %70 : vector<6x32xf32>
    %72 = math.tanh %71 : vector<6x32xf32>
    %73 = arith.mulf %68, %72 : vector<6x32xf32>
    %cst_65 = arith.constant dense<0.000000e+00> : vector<6x2xf32>
    %74 = tpu.matmul %73, %5, %cst_65 {dimension_numbers = #tpu.dot_dimension_numbers<[1], [0], [0], [1], [0, 0, 1, 1], [], []>} : vector<6x32xf32>, vector<32x2xf32>, vector<6x2xf32> -> vector<6x2xf32>
    %75 = vector.broadcast %6 : vector<1x2xf32> to vector<6x2xf32>
    %76 = arith.addf %74, %75 : vector<6x2xf32>
    %77 = arith.addf %76, %0 : vector<6x2xf32>
    %78 = vector.extract_strided_slice %73 {offsets = [0, 0], sizes = [3, 32], strides = [1, 1]} : vector<6x32xf32> to vector<3x32xf32>
    %79 = vector.extract_strided_slice %77 {offsets = [0, 0], sizes = [3, 2], strides = [1, 1]} : vector<6x2xf32> to vector<3x2xf32>
    %cst_66 = arith.constant dense<0.000000e+00> : vector<3x128xf32>
    %80 = tpu.matmul %78, %13, %cst_66 {dimension_numbers = #tpu.dot_dimension_numbers<[1], [0], [0], [1], [0, 0, 1, 1], [], []>} : vector<3x32xf32>, vector<32x128xf32>, vector<3x128xf32> -> vector<3x128xf32>
    %81 = vector.extract_strided_slice %79 {offsets = [0, 0], sizes = [1, 2], strides = [1, 1]} : vector<3x2xf32> to vector<1x2xf32>
    %82 = vector.broadcast %81 : vector<1x2xf32> to vector<3x2xf32>
    %83 = arith.subf %79, %82 : vector<3x2xf32>
    %84 = vector.extract_strided_slice %83 {offsets = [0, 0], sizes = [3, 1], strides = [1, 1]} : vector<3x2xf32> to vector<3x1xf32>
    %85 = vector.extract_strided_slice %10 {offsets = [0, 0], sizes = [1, 16], strides = [1, 1]} : vector<2x16xf32> to vector<1x16xf32>
    %86 = vector.broadcast %84 : vector<3x1xf32> to vector<3x16xf32>
    %87 = vector.broadcast %85 : vector<1x16xf32> to vector<3x16xf32>
    %88 = arith.mulf %86, %87 : vector<3x16xf32>
    %89 = vector.extract_strided_slice %83 {offsets = [0, 1], sizes = [3, 1], strides = [1, 1]} : vector<3x2xf32> to vector<3x1xf32>
    %90 = vector.extract_strided_slice %10 {offsets = [1, 0], sizes = [1, 16], strides = [1, 1]} : vector<2x16xf32> to vector<1x16xf32>
    %91 = vector.broadcast %89 : vector<3x1xf32> to vector<3x16xf32>
    %92 = vector.broadcast %90 : vector<1x16xf32> to vector<3x16xf32>
    %93 = arith.mulf %91, %92 : vector<3x16xf32>
    %94 = arith.addf %88, %93 : vector<3x16xf32>
    %95 = vector.broadcast %11 : vector<1x16xf32> to vector<3x16xf32>
    %96 = arith.addf %94, %95 : vector<3x16xf32>
    %cst_67 = arith.constant dense<0.000000e+00> : vector<3x128xf32>
    %97 = tpu.matmul %96, %12, %cst_67 {dimension_numbers = #tpu.dot_dimension_numbers<[1], [0], [0], [1], [0, 0, 1, 1], [], []>} : vector<3x16xf32>, vector<16x128xf32>, vector<3x128xf32> -> vector<3x128xf32>
    %98 = arith.addf %97, %80 : vector<3x128xf32>
    %99 = vector.broadcast %14 : vector<1x128xf32> to vector<3x128xf32>
    %100 = arith.addf %98, %99 : vector<3x128xf32>
    %101 = vector.extract_strided_slice %79 {offsets = [1, 0], sizes = [1, 2], strides = [1, 1]} : vector<3x2xf32> to vector<1x2xf32>
    %102 = vector.broadcast %101 : vector<1x2xf32> to vector<3x2xf32>
    %103 = arith.subf %79, %102 : vector<3x2xf32>
    %104 = vector.extract_strided_slice %103 {offsets = [0, 0], sizes = [3, 1], strides = [1, 1]} : vector<3x2xf32> to vector<3x1xf32>
    %105 = vector.extract_strided_slice %10 {offsets = [0, 0], sizes = [1, 16], strides = [1, 1]} : vector<2x16xf32> to vector<1x16xf32>
    %106 = vector.broadcast %104 : vector<3x1xf32> to vector<3x16xf32>
    %107 = vector.broadcast %105 : vector<1x16xf32> to vector<3x16xf32>
    %108 = arith.mulf %106, %107 : vector<3x16xf32>
    %109 = vector.extract_strided_slice %103 {offsets = [0, 1], sizes = [3, 1], strides = [1, 1]} : vector<3x2xf32> to vector<3x1xf32>
    %110 = vector.extract_strided_slice %10 {offsets = [1, 0], sizes = [1, 16], strides = [1, 1]} : vector<2x16xf32> to vector<1x16xf32>
    %111 = vector.broadcast %109 : vector<3x1xf32> to vector<3x16xf32>
    %112 = vector.broadcast %110 : vector<1x16xf32> to vector<3x16xf32>
    %113 = arith.mulf %111, %112 : vector<3x16xf32>
    %114 = arith.addf %108, %113 : vector<3x16xf32>
    %115 = vector.broadcast %11 : vector<1x16xf32> to vector<3x16xf32>
    %116 = arith.addf %114, %115 : vector<3x16xf32>
    %cst_68 = arith.constant dense<0.000000e+00> : vector<3x128xf32>
    %117 = tpu.matmul %116, %12, %cst_68 {dimension_numbers = #tpu.dot_dimension_numbers<[1], [0], [0], [1], [0, 0, 1, 1], [], []>} : vector<3x16xf32>, vector<16x128xf32>, vector<3x128xf32> -> vector<3x128xf32>
    %118 = arith.addf %117, %80 : vector<3x128xf32>
    %119 = vector.broadcast %14 : vector<1x128xf32> to vector<3x128xf32>
    %120 = arith.addf %118, %119 : vector<3x128xf32>
    %121 = vector.extract_strided_slice %79 {offsets = [2, 0], sizes = [1, 2], strides = [1, 1]} : vector<3x2xf32> to vector<1x2xf32>
    %122 = vector.broadcast %121 : vector<1x2xf32> to vector<3x2xf32>
    %123 = arith.subf %79, %122 : vector<3x2xf32>
    %124 = vector.extract_strided_slice %123 {offsets = [0, 0], sizes = [3, 1], strides = [1, 1]} : vector<3x2xf32> to vector<3x1xf32>
    %125 = vector.extract_strided_slice %10 {offsets = [0, 0], sizes = [1, 16], strides = [1, 1]} : vector<2x16xf32> to vector<1x16xf32>
    %126 = vector.broadcast %124 : vector<3x1xf32> to vector<3x16xf32>
    %127 = vector.broadcast %125 : vector<1x16xf32> to vector<3x16xf32>
    %128 = arith.mulf %126, %127 : vector<3x16xf32>
    %129 = vector.extract_strided_slice %123 {offsets = [0, 1], sizes = [3, 1], strides = [1, 1]} : vector<3x2xf32> to vector<3x1xf32>
    %130 = vector.extract_strided_slice %10 {offsets = [1, 0], sizes = [1, 16], strides = [1, 1]} : vector<2x16xf32> to vector<1x16xf32>
    %131 = vector.broadcast %129 : vector<3x1xf32> to vector<3x16xf32>
    %132 = vector.broadcast %130 : vector<1x16xf32> to vector<3x16xf32>
    %133 = arith.mulf %131, %132 : vector<3x16xf32>
    %134 = arith.addf %128, %133 : vector<3x16xf32>
    %135 = vector.broadcast %11 : vector<1x16xf32> to vector<3x16xf32>
    %136 = arith.addf %134, %135 : vector<3x16xf32>
    %cst_69 = arith.constant dense<0.000000e+00> : vector<3x128xf32>
    %137 = tpu.matmul %136, %12, %cst_69 {dimension_numbers = #tpu.dot_dimension_numbers<[1], [0], [0], [1], [0, 0, 1, 1], [], []>} : vector<3x16xf32>, vector<16x128xf32>, vector<3x128xf32> -> vector<3x128xf32>
    %138 = arith.addf %137, %80 : vector<3x128xf32>
    %139 = vector.broadcast %14 : vector<1x128xf32> to vector<3x128xf32>
    %140 = arith.addf %138, %139 : vector<3x128xf32>
    %cst_70 = arith.constant dense<0.000000e+00> : vector<128xf32>
    %141 = vector.multi_reduction <add>, %100, %cst_70 [0] : vector<3x128xf32> to vector<128xf32>
    %142 = vector.shape_cast %141 : vector<128xf32> to vector<1x128xf32>
    %cst_71 = arith.constant 0.000000e+00 : f32
    %143 = vector.broadcast %cst_71 : f32 to vector<1x128xf32>
    %144 = arith.addf %143, %142 : vector<1x128xf32>
    %cst_72 = arith.constant dense<0.000000e+00> : vector<128xf32>
    %145 = vector.multi_reduction <add>, %120, %cst_72 [0] : vector<3x128xf32> to vector<128xf32>
    %146 = vector.shape_cast %145 : vector<128xf32> to vector<1x128xf32>
    %147 = arith.addf %144, %146 : vector<1x128xf32>
    %cst_73 = arith.constant dense<0.000000e+00> : vector<128xf32>
    %148 = vector.multi_reduction <add>, %140, %cst_73 [0] : vector<3x128xf32> to vector<128xf32>
    %149 = vector.shape_cast %148 : vector<128xf32> to vector<1x128xf32>
    %150 = arith.addf %147, %149 : vector<1x128xf32>
    %cst_74 = arith.constant 9.000000e+00 : f32
    %151 = vector.broadcast %cst_74 : f32 to vector<1x128xf32>
    %152 = arith.divf %150, %151 : vector<1x128xf32>
    %153 = vector.broadcast %152 : vector<1x128xf32> to vector<3x128xf32>
    %154 = arith.subf %100, %153 : vector<3x128xf32>
    %155 = arith.mulf %154, %154 : vector<3x128xf32>
    %cst_75 = arith.constant dense<0.000000e+00> : vector<128xf32>
    %156 = vector.multi_reduction <add>, %155, %cst_75 [0] : vector<3x128xf32> to vector<128xf32>
    %157 = vector.shape_cast %156 : vector<128xf32> to vector<1x128xf32>
    %cst_76 = arith.constant 0.000000e+00 : f32
    %158 = vector.broadcast %cst_76 : f32 to vector<1x128xf32>
    %159 = arith.addf %158, %157 : vector<1x128xf32>
    %160 = vector.broadcast %152 : vector<1x128xf32> to vector<3x128xf32>
    %161 = arith.subf %120, %160 : vector<3x128xf32>
    %162 = arith.mulf %161, %161 : vector<3x128xf32>
    %cst_77 = arith.constant dense<0.000000e+00> : vector<128xf32>
    %163 = vector.multi_reduction <add>, %162, %cst_77 [0] : vector<3x128xf32> to vector<128xf32>
    %164 = vector.shape_cast %163 : vector<128xf32> to vector<1x128xf32>
    %165 = arith.addf %159, %164 : vector<1x128xf32>
    %166 = vector.broadcast %152 : vector<1x128xf32> to vector<3x128xf32>
    %167 = arith.subf %140, %166 : vector<3x128xf32>
    %168 = arith.mulf %167, %167 : vector<3x128xf32>
    %cst_78 = arith.constant dense<0.000000e+00> : vector<128xf32>
    %169 = vector.multi_reduction <add>, %168, %cst_78 [0] : vector<3x128xf32> to vector<128xf32>
    %170 = vector.shape_cast %169 : vector<128xf32> to vector<1x128xf32>
    %171 = arith.addf %165, %170 : vector<1x128xf32>
    %cst_79 = arith.constant 9.000000e+00 : f32
    %172 = vector.broadcast %cst_79 : f32 to vector<1x128xf32>
    %173 = arith.divf %171, %172 : vector<1x128xf32>
    %cst_80 = arith.constant 9.99999974E-6 : f32
    %174 = vector.broadcast %cst_80 : f32 to vector<1x128xf32>
    %175 = arith.addf %173, %174 : vector<1x128xf32>
    %176 = math.rsqrt %175 : vector<1x128xf32>
    %177 = vector.broadcast %152 : vector<1x128xf32> to vector<3x128xf32>
    %178 = arith.subf %100, %177 : vector<3x128xf32>
    %179 = vector.broadcast %176 : vector<1x128xf32> to vector<3x128xf32>
    %180 = arith.mulf %178, %179 : vector<3x128xf32>
    %181 = vector.broadcast %15 : vector<1x128xf32> to vector<3x128xf32>
    %182 = arith.mulf %180, %181 : vector<3x128xf32>
    %183 = vector.broadcast %16 : vector<1x128xf32> to vector<3x128xf32>
    %184 = arith.addf %182, %183 : vector<3x128xf32>
    %cst_81 = arith.constant 0.000000e+00 : f32
    %185 = vector.broadcast %cst_81 : f32 to vector<3x128xf32>
    %186 = arith.maximumf %184, %185 : vector<3x128xf32>
    %cst_82 = arith.constant dense<0.000000e+00> : vector<3x64xf32>
    %187 = tpu.matmul %186, %17, %cst_82 {dimension_numbers = #tpu.dot_dimension_numbers<[1], [0], [0], [1], [0, 0, 1, 1], [], []>} : vector<3x128xf32>, vector<128x64xf32>, vector<3x64xf32> -> vector<3x64xf32>
    %188 = vector.broadcast %18 : vector<1x64xf32> to vector<3x64xf32>
    %189 = arith.addf %187, %188 : vector<3x64xf32>
    %190 = vector.broadcast %152 : vector<1x128xf32> to vector<3x128xf32>
    %191 = arith.subf %120, %190 : vector<3x128xf32>
    %192 = vector.broadcast %176 : vector<1x128xf32> to vector<3x128xf32>
    %193 = arith.mulf %191, %192 : vector<3x128xf32>
    %194 = vector.broadcast %15 : vector<1x128xf32> to vector<3x128xf32>
    %195 = arith.mulf %193, %194 : vector<3x128xf32>
    %196 = vector.broadcast %16 : vector<1x128xf32> to vector<3x128xf32>
    %197 = arith.addf %195, %196 : vector<3x128xf32>
    %cst_83 = arith.constant 0.000000e+00 : f32
    %198 = vector.broadcast %cst_83 : f32 to vector<3x128xf32>
    %199 = arith.maximumf %197, %198 : vector<3x128xf32>
    %cst_84 = arith.constant dense<0.000000e+00> : vector<3x64xf32>
    %200 = tpu.matmul %199, %17, %cst_84 {dimension_numbers = #tpu.dot_dimension_numbers<[1], [0], [0], [1], [0, 0, 1, 1], [], []>} : vector<3x128xf32>, vector<128x64xf32>, vector<3x64xf32> -> vector<3x64xf32>
    %201 = vector.broadcast %18 : vector<1x64xf32> to vector<3x64xf32>
    %202 = arith.addf %200, %201 : vector<3x64xf32>
    %203 = vector.broadcast %152 : vector<1x128xf32> to vector<3x128xf32>
    %204 = arith.subf %140, %203 : vector<3x128xf32>
    %205 = vector.broadcast %176 : vector<1x128xf32> to vector<3x128xf32>
    %206 = arith.mulf %204, %205 : vector<3x128xf32>
    %207 = vector.broadcast %15 : vector<1x128xf32> to vector<3x128xf32>
    %208 = arith.mulf %206, %207 : vector<3x128xf32>
    %209 = vector.broadcast %16 : vector<1x128xf32> to vector<3x128xf32>
    %210 = arith.addf %208, %209 : vector<3x128xf32>
    %cst_85 = arith.constant 0.000000e+00 : f32
    %211 = vector.broadcast %cst_85 : f32 to vector<3x128xf32>
    %212 = arith.maximumf %210, %211 : vector<3x128xf32>
    %cst_86 = arith.constant dense<0.000000e+00> : vector<3x64xf32>
    %213 = tpu.matmul %212, %17, %cst_86 {dimension_numbers = #tpu.dot_dimension_numbers<[1], [0], [0], [1], [0, 0, 1, 1], [], []>} : vector<3x128xf32>, vector<128x64xf32>, vector<3x64xf32> -> vector<3x64xf32>
    %214 = vector.broadcast %18 : vector<1x64xf32> to vector<3x64xf32>
    %215 = arith.addf %213, %214 : vector<3x64xf32>
    %cst_87 = arith.constant dense<0.000000e+00> : vector<64xf32>
    %216 = vector.multi_reduction <add>, %189, %cst_87 [0] : vector<3x64xf32> to vector<64xf32>
    %217 = vector.shape_cast %216 : vector<64xf32> to vector<1x64xf32>
    %cst_88 = arith.constant 0.000000e+00 : f32
    %218 = vector.broadcast %cst_88 : f32 to vector<1x64xf32>
    %219 = arith.addf %218, %217 : vector<1x64xf32>
    %cst_89 = arith.constant dense<0.000000e+00> : vector<64xf32>
    %220 = vector.multi_reduction <add>, %202, %cst_89 [0] : vector<3x64xf32> to vector<64xf32>
    %221 = vector.shape_cast %220 : vector<64xf32> to vector<1x64xf32>
    %222 = arith.addf %219, %221 : vector<1x64xf32>
    %cst_90 = arith.constant dense<0.000000e+00> : vector<64xf32>
    %223 = vector.multi_reduction <add>, %215, %cst_90 [0] : vector<3x64xf32> to vector<64xf32>
    %224 = vector.shape_cast %223 : vector<64xf32> to vector<1x64xf32>
    %225 = arith.addf %222, %224 : vector<1x64xf32>
    %cst_91 = arith.constant 9.000000e+00 : f32
    %226 = vector.broadcast %cst_91 : f32 to vector<1x64xf32>
    %227 = arith.divf %225, %226 : vector<1x64xf32>
    %228 = vector.broadcast %227 : vector<1x64xf32> to vector<3x64xf32>
    %229 = arith.subf %189, %228 : vector<3x64xf32>
    %230 = arith.mulf %229, %229 : vector<3x64xf32>
    %cst_92 = arith.constant dense<0.000000e+00> : vector<64xf32>
    %231 = vector.multi_reduction <add>, %230, %cst_92 [0] : vector<3x64xf32> to vector<64xf32>
    %232 = vector.shape_cast %231 : vector<64xf32> to vector<1x64xf32>
    %cst_93 = arith.constant 0.000000e+00 : f32
    %233 = vector.broadcast %cst_93 : f32 to vector<1x64xf32>
    %234 = arith.addf %233, %232 : vector<1x64xf32>
    %235 = vector.broadcast %227 : vector<1x64xf32> to vector<3x64xf32>
    %236 = arith.subf %202, %235 : vector<3x64xf32>
    %237 = arith.mulf %236, %236 : vector<3x64xf32>
    %cst_94 = arith.constant dense<0.000000e+00> : vector<64xf32>
    %238 = vector.multi_reduction <add>, %237, %cst_94 [0] : vector<3x64xf32> to vector<64xf32>
    %239 = vector.shape_cast %238 : vector<64xf32> to vector<1x64xf32>
    %240 = arith.addf %234, %239 : vector<1x64xf32>
    %241 = vector.broadcast %227 : vector<1x64xf32> to vector<3x64xf32>
    %242 = arith.subf %215, %241 : vector<3x64xf32>
    %243 = arith.mulf %242, %242 : vector<3x64xf32>
    %cst_95 = arith.constant dense<0.000000e+00> : vector<64xf32>
    %244 = vector.multi_reduction <add>, %243, %cst_95 [0] : vector<3x64xf32> to vector<64xf32>
    %245 = vector.shape_cast %244 : vector<64xf32> to vector<1x64xf32>
    %246 = arith.addf %240, %245 : vector<1x64xf32>
    %cst_96 = arith.constant 9.000000e+00 : f32
    %247 = vector.broadcast %cst_96 : f32 to vector<1x64xf32>
    %248 = arith.divf %246, %247 : vector<1x64xf32>
    %cst_97 = arith.constant 9.99999974E-6 : f32
    %249 = vector.broadcast %cst_97 : f32 to vector<1x64xf32>
    %250 = arith.addf %248, %249 : vector<1x64xf32>
    %251 = math.rsqrt %250 : vector<1x64xf32>
    %252 = vector.broadcast %227 : vector<1x64xf32> to vector<3x64xf32>
    %253 = arith.subf %189, %252 : vector<3x64xf32>
    %254 = vector.broadcast %251 : vector<1x64xf32> to vector<3x64xf32>
    %255 = arith.mulf %253, %254 : vector<3x64xf32>
    %256 = vector.broadcast %19 : vector<1x64xf32> to vector<3x64xf32>
    %257 = arith.mulf %255, %256 : vector<3x64xf32>
    %258 = vector.broadcast %20 : vector<1x64xf32> to vector<3x64xf32>
    %259 = arith.addf %257, %258 : vector<3x64xf32>
    %cst_98 = arith.constant 0.000000e+00 : f32
    %260 = vector.broadcast %cst_98 : f32 to vector<3x64xf32>
    %261 = arith.maximumf %259, %260 : vector<3x64xf32>
    %cst_99 = arith.constant dense<0xFF800000> : vector<64xf32>
    %262 = vector.multi_reduction <maximumf>, %261, %cst_99 [0] : vector<3x64xf32> to vector<64xf32>
    %263 = vector.shape_cast %262 : vector<64xf32> to vector<1x64xf32>
    %c0_100 = arith.constant 0 : index
    %c0_101 = arith.constant 0 : index
    %264 = vector.load %arg33[%c0_100, %c0_101] : memref<6x64xf32, #tpu.memory_space<vmem>>, vector<1x64xf32>
    tpu.vector_store %arg33[%c0_100, %c0_101], %263 {strides = array<i32>} : memref<6x64xf32, #tpu.memory_space<vmem>>, vector<1x64xf32>,
    %265 = vector.broadcast %227 : vector<1x64xf32> to vector<3x64xf32>
    %266 = arith.subf %202, %265 : vector<3x64xf32>
    %267 = vector.broadcast %251 : vector<1x64xf32> to vector<3x64xf32>
    %268 = arith.mulf %266, %267 : vector<3x64xf32>
    %269 = vector.broadcast %19 : vector<1x64xf32> to vector<3x64xf32>
    %270 = arith.mulf %268, %269 : vector<3x64xf32>
    %271 = vector.broadcast %20 : vector<1x64xf32> to vector<3x64xf32>
    %272 = arith.addf %270, %271 : vector<3x64xf32>
    %cst_102 = arith.constant 0.000000e+00 : f32
    %273 = vector.broadcast %cst_102 : f32 to vector<3x64xf32>
    %274 = arith.maximumf %272, %273 : vector<3x64xf32>
    %cst_103 = arith.constant dense<0xFF800000> : vector<64xf32>
    %275 = vector.multi_reduction <maximumf>, %274, %cst_103 [0] : vector<3x64xf32> to vector<64xf32>
    %276 = vector.shape_cast %275 : vector<64xf32> to vector<1x64xf32>
    %c1 = arith.constant 1 : index
    %c0_104 = arith.constant 0 : index
    %277 = vector.load %arg33[%c1, %c0_104] : memref<6x64xf32, #tpu.memory_space<vmem>>, vector<1x64xf32>
    tpu.vector_store %arg33[%c1, %c0_104], %276 {strides = array<i32>} : memref<6x64xf32, #tpu.memory_space<vmem>>, vector<1x64xf32>,
    %278 = vector.broadcast %227 : vector<1x64xf32> to vector<3x64xf32>
    %279 = arith.subf %215, %278 : vector<3x64xf32>
    %280 = vector.broadcast %251 : vector<1x64xf32> to vector<3x64xf32>
    %281 = arith.mulf %279, %280 : vector<3x64xf32>
    %282 = vector.broadcast %19 : vector<1x64xf32> to vector<3x64xf32>
    %283 = arith.mulf %281, %282 : vector<3x64xf32>
    %284 = vector.broadcast %20 : vector<1x64xf32> to vector<3x64xf32>
    %285 = arith.addf %283, %284 : vector<3x64xf32>
    %cst_105 = arith.constant 0.000000e+00 : f32
    %286 = vector.broadcast %cst_105 : f32 to vector<3x64xf32>
    %287 = arith.maximumf %285, %286 : vector<3x64xf32>
    %cst_106 = arith.constant dense<0xFF800000> : vector<64xf32>
    %288 = vector.multi_reduction <maximumf>, %287, %cst_106 [0] : vector<3x64xf32> to vector<64xf32>
    %289 = vector.shape_cast %288 : vector<64xf32> to vector<1x64xf32>
    %c2 = arith.constant 2 : index
    %c0_107 = arith.constant 0 : index
    %290 = vector.load %arg33[%c2, %c0_107] : memref<6x64xf32, #tpu.memory_space<vmem>>, vector<1x64xf32>
    tpu.vector_store %arg33[%c2, %c0_107], %289 {strides = array<i32>} : memref<6x64xf32, #tpu.memory_space<vmem>>, vector<1x64xf32>,
    %291 = vector.extract_strided_slice %73 {offsets = [3, 0], sizes = [3, 32], strides = [1, 1]} : vector<6x32xf32> to vector<3x32xf32>
    %292 = vector.extract_strided_slice %77 {offsets = [3, 0], sizes = [3, 2], strides = [1, 1]} : vector<6x2xf32> to vector<3x2xf32>
    %cst_108 = arith.constant dense<0.000000e+00> : vector<3x128xf32>
    %293 = tpu.matmul %291, %13, %cst_108 {dimension_numbers = #tpu.dot_dimension_numbers<[1], [0], [0], [1], [0, 0, 1, 1], [], []>} : vector<3x32xf32>, vector<32x128xf32>, vector<3x128xf32> -> vector<3x128xf32>
    %294 = vector.extract_strided_slice %292 {offsets = [0, 0], sizes = [1, 2], strides = [1, 1]} : vector<3x2xf32> to vector<1x2xf32>
    %295 = vector.broadcast %294 : vector<1x2xf32> to vector<3x2xf32>
    %296 = arith.subf %292, %295 : vector<3x2xf32>
    %297 = vector.extract_strided_slice %296 {offsets = [0, 0], sizes = [3, 1], strides = [1, 1]} : vector<3x2xf32> to vector<3x1xf32>
    %298 = vector.extract_strided_slice %10 {offsets = [0, 0], sizes = [1, 16], strides = [1, 1]} : vector<2x16xf32> to vector<1x16xf32>
    %299 = vector.broadcast %297 : vector<3x1xf32> to vector<3x16xf32>
    %300 = vector.broadcast %298 : vector<1x16xf32> to vector<3x16xf32>
    %301 = arith.mulf %299, %300 : vector<3x16xf32>
    %302 = vector.extract_strided_slice %296 {offsets = [0, 1], sizes = [3, 1], strides = [1, 1]} : vector<3x2xf32> to vector<3x1xf32>
    %303 = vector.extract_strided_slice %10 {offsets = [1, 0], sizes = [1, 16], strides = [1, 1]} : vector<2x16xf32> to vector<1x16xf32>
    %304 = vector.broadcast %302 : vector<3x1xf32> to vector<3x16xf32>
    %305 = vector.broadcast %303 : vector<1x16xf32> to vector<3x16xf32>
    %306 = arith.mulf %304, %305 : vector<3x16xf32>
    %307 = arith.addf %301, %306 : vector<3x16xf32>
    %308 = vector.broadcast %11 : vector<1x16xf32> to vector<3x16xf32>
    %309 = arith.addf %307, %308 : vector<3x16xf32>
    %cst_109 = arith.constant dense<0.000000e+00> : vector<3x128xf32>
    %310 = tpu.matmul %309, %12, %cst_109 {dimension_numbers = #tpu.dot_dimension_numbers<[1], [0], [0], [1], [0, 0, 1, 1], [], []>} : vector<3x16xf32>, vector<16x128xf32>, vector<3x128xf32> -> vector<3x128xf32>
    %311 = arith.addf %310, %293 : vector<3x128xf32>
    %312 = vector.broadcast %14 : vector<1x128xf32> to vector<3x128xf32>
    %313 = arith.addf %311, %312 : vector<3x128xf32>
    %314 = vector.extract_strided_slice %292 {offsets = [1, 0], sizes = [1, 2], strides = [1, 1]} : vector<3x2xf32> to vector<1x2xf32>
    %315 = vector.broadcast %314 : vector<1x2xf32> to vector<3x2xf32>
    %316 = arith.subf %292, %315 : vector<3x2xf32>
    %317 = vector.extract_strided_slice %316 {offsets = [0, 0], sizes = [3, 1], strides = [1, 1]} : vector<3x2xf32> to vector<3x1xf32>
    %318 = vector.extract_strided_slice %10 {offsets = [0, 0], sizes = [1, 16], strides = [1, 1]} : vector<2x16xf32> to vector<1x16xf32>
    %319 = vector.broadcast %317 : vector<3x1xf32> to vector<3x16xf32>
    %320 = vector.broadcast %318 : vector<1x16xf32> to vector<3x16xf32>
    %321 = arith.mulf %319, %320 : vector<3x16xf32>
    %322 = vector.extract_strided_slice %316 {offsets = [0, 1], sizes = [3, 1], strides = [1, 1]} : vector<3x2xf32> to vector<3x1xf32>
    %323 = vector.extract_strided_slice %10 {offsets = [1, 0], sizes = [1, 16], strides = [1, 1]} : vector<2x16xf32> to vector<1x16xf32>
    %324 = vector.broadcast %322 : vector<3x1xf32> to vector<3x16xf32>
    %325 = vector.broadcast %323 : vector<1x16xf32> to vector<3x16xf32>
    %326 = arith.mulf %324, %325 : vector<3x16xf32>
    %327 = arith.addf %321, %326 : vector<3x16xf32>
    %328 = vector.broadcast %11 : vector<1x16xf32> to vector<3x16xf32>
    %329 = arith.addf %327, %328 : vector<3x16xf32>
    %cst_110 = arith.constant dense<0.000000e+00> : vector<3x128xf32>
    %330 = tpu.matmul %329, %12, %cst_110 {dimension_numbers = #tpu.dot_dimension_numbers<[1], [0], [0], [1], [0, 0, 1, 1], [], []>} : vector<3x16xf32>, vector<16x128xf32>, vector<3x128xf32> -> vector<3x128xf32>
    %331 = arith.addf %330, %293 : vector<3x128xf32>
    %332 = vector.broadcast %14 : vector<1x128xf32> to vector<3x128xf32>
    %333 = arith.addf %331, %332 : vector<3x128xf32>
    %334 = vector.extract_strided_slice %292 {offsets = [2, 0], sizes = [1, 2], strides = [1, 1]} : vector<3x2xf32> to vector<1x2xf32>
    %335 = vector.broadcast %334 : vector<1x2xf32> to vector<3x2xf32>
    %336 = arith.subf %292, %335 : vector<3x2xf32>
    %337 = vector.extract_strided_slice %336 {offsets = [0, 0], sizes = [3, 1], strides = [1, 1]} : vector<3x2xf32> to vector<3x1xf32>
    %338 = vector.extract_strided_slice %10 {offsets = [0, 0], sizes = [1, 16], strides = [1, 1]} : vector<2x16xf32> to vector<1x16xf32>
    %339 = vector.broadcast %337 : vector<3x1xf32> to vector<3x16xf32>
    %340 = vector.broadcast %338 : vector<1x16xf32> to vector<3x16xf32>
    %341 = arith.mulf %339, %340 : vector<3x16xf32>
    %342 = vector.extract_strided_slice %336 {offsets = [0, 1], sizes = [3, 1], strides = [1, 1]} : vector<3x2xf32> to vector<3x1xf32>
    %343 = vector.extract_strided_slice %10 {offsets = [1, 0], sizes = [1, 16], strides = [1, 1]} : vector<2x16xf32> to vector<1x16xf32>
    %344 = vector.broadcast %342 : vector<3x1xf32> to vector<3x16xf32>
    %345 = vector.broadcast %343 : vector<1x16xf32> to vector<3x16xf32>
    %346 = arith.mulf %344, %345 : vector<3x16xf32>
    %347 = arith.addf %341, %346 : vector<3x16xf32>
    %348 = vector.broadcast %11 : vector<1x16xf32> to vector<3x16xf32>
    %349 = arith.addf %347, %348 : vector<3x16xf32>
    %cst_111 = arith.constant dense<0.000000e+00> : vector<3x128xf32>
    %350 = tpu.matmul %349, %12, %cst_111 {dimension_numbers = #tpu.dot_dimension_numbers<[1], [0], [0], [1], [0, 0, 1, 1], [], []>} : vector<3x16xf32>, vector<16x128xf32>, vector<3x128xf32> -> vector<3x128xf32>
    %351 = arith.addf %350, %293 : vector<3x128xf32>
    %352 = vector.broadcast %14 : vector<1x128xf32> to vector<3x128xf32>
    %353 = arith.addf %351, %352 : vector<3x128xf32>
    %cst_112 = arith.constant dense<0.000000e+00> : vector<128xf32>
    %354 = vector.multi_reduction <add>, %313, %cst_112 [0] : vector<3x128xf32> to vector<128xf32>
    %355 = vector.shape_cast %354 : vector<128xf32> to vector<1x128xf32>
    %cst_113 = arith.constant 0.000000e+00 : f32
    %356 = vector.broadcast %cst_113 : f32 to vector<1x128xf32>
    %357 = arith.addf %356, %355 : vector<1x128xf32>
    %cst_114 = arith.constant dense<0.000000e+00> : vector<128xf32>
    %358 = vector.multi_reduction <add>, %333, %cst_114 [0] : vector<3x128xf32> to vector<128xf32>
    %359 = vector.shape_cast %358 : vector<128xf32> to vector<1x128xf32>
    %360 = arith.addf %357, %359 : vector<1x128xf32>
    %cst_115 = arith.constant dense<0.000000e+00> : vector<128xf32>
    %361 = vector.multi_reduction <add>, %353, %cst_115 [0] : vector<3x128xf32> to vector<128xf32>
    %362 = vector.shape_cast %361 : vector<128xf32> to vector<1x128xf32>
    %363 = arith.addf %360, %362 : vector<1x128xf32>
    %cst_116 = arith.constant 9.000000e+00 : f32
    %364 = vector.broadcast %cst_116 : f32 to vector<1x128xf32>
    %365 = arith.divf %363, %364 : vector<1x128xf32>
    %366 = vector.broadcast %365 : vector<1x128xf32> to vector<3x128xf32>
    %367 = arith.subf %313, %366 : vector<3x128xf32>
    %368 = arith.mulf %367, %367 : vector<3x128xf32>
    %cst_117 = arith.constant dense<0.000000e+00> : vector<128xf32>
    %369 = vector.multi_reduction <add>, %368, %cst_117 [0] : vector<3x128xf32> to vector<128xf32>
    %370 = vector.shape_cast %369 : vector<128xf32> to vector<1x128xf32>
    %cst_118 = arith.constant 0.000000e+00 : f32
    %371 = vector.broadcast %cst_118 : f32 to vector<1x128xf32>
    %372 = arith.addf %371, %370 : vector<1x128xf32>
    %373 = vector.broadcast %365 : vector<1x128xf32> to vector<3x128xf32>
    %374 = arith.subf %333, %373 : vector<3x128xf32>
    %375 = arith.mulf %374, %374 : vector<3x128xf32>
    %cst_119 = arith.constant dense<0.000000e+00> : vector<128xf32>
    %376 = vector.multi_reduction <add>, %375, %cst_119 [0] : vector<3x128xf32> to vector<128xf32>
    %377 = vector.shape_cast %376 : vector<128xf32> to vector<1x128xf32>
    %378 = arith.addf %372, %377 : vector<1x128xf32>
    %379 = vector.broadcast %365 : vector<1x128xf32> to vector<3x128xf32>
    %380 = arith.subf %353, %379 : vector<3x128xf32>
    %381 = arith.mulf %380, %380 : vector<3x128xf32>
    %cst_120 = arith.constant dense<0.000000e+00> : vector<128xf32>
    %382 = vector.multi_reduction <add>, %381, %cst_120 [0] : vector<3x128xf32> to vector<128xf32>
    %383 = vector.shape_cast %382 : vector<128xf32> to vector<1x128xf32>
    %384 = arith.addf %378, %383 : vector<1x128xf32>
    %cst_121 = arith.constant 9.000000e+00 : f32
    %385 = vector.broadcast %cst_121 : f32 to vector<1x128xf32>
    %386 = arith.divf %384, %385 : vector<1x128xf32>
    %cst_122 = arith.constant 9.99999974E-6 : f32
    %387 = vector.broadcast %cst_122 : f32 to vector<1x128xf32>
    %388 = arith.addf %386, %387 : vector<1x128xf32>
    %389 = math.rsqrt %388 : vector<1x128xf32>
    %390 = vector.broadcast %365 : vector<1x128xf32> to vector<3x128xf32>
    %391 = arith.subf %313, %390 : vector<3x128xf32>
    %392 = vector.broadcast %389 : vector<1x128xf32> to vector<3x128xf32>
    %393 = arith.mulf %391, %392 : vector<3x128xf32>
    %394 = vector.broadcast %15 : vector<1x128xf32> to vector<3x128xf32>
    %395 = arith.mulf %393, %394 : vector<3x128xf32>
    %396 = vector.broadcast %16 : vector<1x128xf32> to vector<3x128xf32>
    %397 = arith.addf %395, %396 : vector<3x128xf32>
    %cst_123 = arith.constant 0.000000e+00 : f32
    %398 = vector.broadcast %cst_123 : f32 to vector<3x128xf32>
    %399 = arith.maximumf %397, %398 : vector<3x128xf32>
    %cst_124 = arith.constant dense<0.000000e+00> : vector<3x64xf32>
    %400 = tpu.matmul %399, %17, %cst_124 {dimension_numbers = #tpu.dot_dimension_numbers<[1], [0], [0], [1], [0, 0, 1, 1], [], []>} : vector<3x128xf32>, vector<128x64xf32>, vector<3x64xf32> -> vector<3x64xf32>
    %401 = vector.broadcast %18 : vector<1x64xf32> to vector<3x64xf32>
    %402 = arith.addf %400, %401 : vector<3x64xf32>
    %403 = vector.broadcast %365 : vector<1x128xf32> to vector<3x128xf32>
    %404 = arith.subf %333, %403 : vector<3x128xf32>
    %405 = vector.broadcast %389 : vector<1x128xf32> to vector<3x128xf32>
    %406 = arith.mulf %404, %405 : vector<3x128xf32>
    %407 = vector.broadcast %15 : vector<1x128xf32> to vector<3x128xf32>
    %408 = arith.mulf %406, %407 : vector<3x128xf32>
    %409 = vector.broadcast %16 : vector<1x128xf32> to vector<3x128xf32>
    %410 = arith.addf %408, %409 : vector<3x128xf32>
    %cst_125 = arith.constant 0.000000e+00 : f32
    %411 = vector.broadcast %cst_125 : f32 to vector<3x128xf32>
    %412 = arith.maximumf %410, %411 : vector<3x128xf32>
    %cst_126 = arith.constant dense<0.000000e+00> : vector<3x64xf32>
    %413 = tpu.matmul %412, %17, %cst_126 {dimension_numbers = #tpu.dot_dimension_numbers<[1], [0], [0], [1], [0, 0, 1, 1], [], []>} : vector<3x128xf32>, vector<128x64xf32>, vector<3x64xf32> -> vector<3x64xf32>
    %414 = vector.broadcast %18 : vector<1x64xf32> to vector<3x64xf32>
    %415 = arith.addf %413, %414 : vector<3x64xf32>
    %416 = vector.broadcast %365 : vector<1x128xf32> to vector<3x128xf32>
    %417 = arith.subf %353, %416 : vector<3x128xf32>
    %418 = vector.broadcast %389 : vector<1x128xf32> to vector<3x128xf32>
    %419 = arith.mulf %417, %418 : vector<3x128xf32>
    %420 = vector.broadcast %15 : vector<1x128xf32> to vector<3x128xf32>
    %421 = arith.mulf %419, %420 : vector<3x128xf32>
    %422 = vector.broadcast %16 : vector<1x128xf32> to vector<3x128xf32>
    %423 = arith.addf %421, %422 : vector<3x128xf32>
    %cst_127 = arith.constant 0.000000e+00 : f32
    %424 = vector.broadcast %cst_127 : f32 to vector<3x128xf32>
    %425 = arith.maximumf %423, %424 : vector<3x128xf32>
    %cst_128 = arith.constant dense<0.000000e+00> : vector<3x64xf32>
    %426 = tpu.matmul %425, %17, %cst_128 {dimension_numbers = #tpu.dot_dimension_numbers<[1], [0], [0], [1], [0, 0, 1, 1], [], []>} : vector<3x128xf32>, vector<128x64xf32>, vector<3x64xf32> -> vector<3x64xf32>
    %427 = vector.broadcast %18 : vector<1x64xf32> to vector<3x64xf32>
    %428 = arith.addf %426, %427 : vector<3x64xf32>
    %cst_129 = arith.constant dense<0.000000e+00> : vector<64xf32>
    %429 = vector.multi_reduction <add>, %402, %cst_129 [0] : vector<3x64xf32> to vector<64xf32>
    %430 = vector.shape_cast %429 : vector<64xf32> to vector<1x64xf32>
    %cst_130 = arith.constant 0.000000e+00 : f32
    %431 = vector.broadcast %cst_130 : f32 to vector<1x64xf32>
    %432 = arith.addf %431, %430 : vector<1x64xf32>
    %cst_131 = arith.constant dense<0.000000e+00> : vector<64xf32>
    %433 = vector.multi_reduction <add>, %415, %cst_131 [0] : vector<3x64xf32> to vector<64xf32>
    %434 = vector.shape_cast %433 : vector<64xf32> to vector<1x64xf32>
    %435 = arith.addf %432, %434 : vector<1x64xf32>
    %cst_132 = arith.constant dense<0.000000e+00> : vector<64xf32>
    %436 = vector.multi_reduction <add>, %428, %cst_132 [0] : vector<3x64xf32> to vector<64xf32>
    %437 = vector.shape_cast %436 : vector<64xf32> to vector<1x64xf32>
    %438 = arith.addf %435, %437 : vector<1x64xf32>
    %cst_133 = arith.constant 9.000000e+00 : f32
    %439 = vector.broadcast %cst_133 : f32 to vector<1x64xf32>
    %440 = arith.divf %438, %439 : vector<1x64xf32>
    %441 = vector.broadcast %440 : vector<1x64xf32> to vector<3x64xf32>
    %442 = arith.subf %402, %441 : vector<3x64xf32>
    %443 = arith.mulf %442, %442 : vector<3x64xf32>
    %cst_134 = arith.constant dense<0.000000e+00> : vector<64xf32>
    %444 = vector.multi_reduction <add>, %443, %cst_134 [0] : vector<3x64xf32> to vector<64xf32>
    %445 = vector.shape_cast %444 : vector<64xf32> to vector<1x64xf32>
    %cst_135 = arith.constant 0.000000e+00 : f32
    %446 = vector.broadcast %cst_135 : f32 to vector<1x64xf32>
    %447 = arith.addf %446, %445 : vector<1x64xf32>
    %448 = vector.broadcast %440 : vector<1x64xf32> to vector<3x64xf32>
    %449 = arith.subf %415, %448 : vector<3x64xf32>
    %450 = arith.mulf %449, %449 : vector<3x64xf32>
    %cst_136 = arith.constant dense<0.000000e+00> : vector<64xf32>
    %451 = vector.multi_reduction <add>, %450, %cst_136 [0] : vector<3x64xf32> to vector<64xf32>
    %452 = vector.shape_cast %451 : vector<64xf32> to vector<1x64xf32>
    %453 = arith.addf %447, %452 : vector<1x64xf32>
    %454 = vector.broadcast %440 : vector<1x64xf32> to vector<3x64xf32>
    %455 = arith.subf %428, %454 : vector<3x64xf32>
    %456 = arith.mulf %455, %455 : vector<3x64xf32>
    %cst_137 = arith.constant dense<0.000000e+00> : vector<64xf32>
    %457 = vector.multi_reduction <add>, %456, %cst_137 [0] : vector<3x64xf32> to vector<64xf32>
    %458 = vector.shape_cast %457 : vector<64xf32> to vector<1x64xf32>
    %459 = arith.addf %453, %458 : vector<1x64xf32>
    %cst_138 = arith.constant 9.000000e+00 : f32
    %460 = vector.broadcast %cst_138 : f32 to vector<1x64xf32>
    %461 = arith.divf %459, %460 : vector<1x64xf32>
    %cst_139 = arith.constant 9.99999974E-6 : f32
    %462 = vector.broadcast %cst_139 : f32 to vector<1x64xf32>
    %463 = arith.addf %461, %462 : vector<1x64xf32>
    %464 = math.rsqrt %463 : vector<1x64xf32>
    %465 = vector.broadcast %440 : vector<1x64xf32> to vector<3x64xf32>
    %466 = arith.subf %402, %465 : vector<3x64xf32>
    %467 = vector.broadcast %464 : vector<1x64xf32> to vector<3x64xf32>
    %468 = arith.mulf %466, %467 : vector<3x64xf32>
    %469 = vector.broadcast %19 : vector<1x64xf32> to vector<3x64xf32>
    %470 = arith.mulf %468, %469 : vector<3x64xf32>
    %471 = vector.broadcast %20 : vector<1x64xf32> to vector<3x64xf32>
    %472 = arith.addf %470, %471 : vector<3x64xf32>
    %cst_140 = arith.constant 0.000000e+00 : f32
    %473 = vector.broadcast %cst_140 : f32 to vector<3x64xf32>
    %474 = arith.maximumf %472, %473 : vector<3x64xf32>
    %cst_141 = arith.constant dense<0xFF800000> : vector<64xf32>
    %475 = vector.multi_reduction <maximumf>, %474, %cst_141 [0] : vector<3x64xf32> to vector<64xf32>
    %476 = vector.shape_cast %475 : vector<64xf32> to vector<1x64xf32>
    %c3 = arith.constant 3 : index
    %c0_142 = arith.constant 0 : index
    %477 = vector.load %arg33[%c3, %c0_142] : memref<6x64xf32, #tpu.memory_space<vmem>>, vector<1x64xf32>
    tpu.vector_store %arg33[%c3, %c0_142], %476 {strides = array<i32>} : memref<6x64xf32, #tpu.memory_space<vmem>>, vector<1x64xf32>,
    %478 = vector.broadcast %440 : vector<1x64xf32> to vector<3x64xf32>
    %479 = arith.subf %415, %478 : vector<3x64xf32>
    %480 = vector.broadcast %464 : vector<1x64xf32> to vector<3x64xf32>
    %481 = arith.mulf %479, %480 : vector<3x64xf32>
    %482 = vector.broadcast %19 : vector<1x64xf32> to vector<3x64xf32>
    %483 = arith.mulf %481, %482 : vector<3x64xf32>
    %484 = vector.broadcast %20 : vector<1x64xf32> to vector<3x64xf32>
    %485 = arith.addf %483, %484 : vector<3x64xf32>
    %cst_143 = arith.constant 0.000000e+00 : f32
    %486 = vector.broadcast %cst_143 : f32 to vector<3x64xf32>
    %487 = arith.maximumf %485, %486 : vector<3x64xf32>
    %cst_144 = arith.constant dense<0xFF800000> : vector<64xf32>
    %488 = vector.multi_reduction <maximumf>, %487, %cst_144 [0] : vector<3x64xf32> to vector<64xf32>
    %489 = vector.shape_cast %488 : vector<64xf32> to vector<1x64xf32>
    %c4 = arith.constant 4 : index
    %c0_145 = arith.constant 0 : index
    %490 = vector.load %arg33[%c4, %c0_145] : memref<6x64xf32, #tpu.memory_space<vmem>>, vector<1x64xf32>
    tpu.vector_store %arg33[%c4, %c0_145], %489 {strides = array<i32>} : memref<6x64xf32, #tpu.memory_space<vmem>>, vector<1x64xf32>,
    %491 = vector.broadcast %440 : vector<1x64xf32> to vector<3x64xf32>
    %492 = arith.subf %428, %491 : vector<3x64xf32>
    %493 = vector.broadcast %464 : vector<1x64xf32> to vector<3x64xf32>
    %494 = arith.mulf %492, %493 : vector<3x64xf32>
    %495 = vector.broadcast %19 : vector<1x64xf32> to vector<3x64xf32>
    %496 = arith.mulf %494, %495 : vector<3x64xf32>
    %497 = vector.broadcast %20 : vector<1x64xf32> to vector<3x64xf32>
    %498 = arith.addf %496, %497 : vector<3x64xf32>
    %cst_146 = arith.constant 0.000000e+00 : f32
    %499 = vector.broadcast %cst_146 : f32 to vector<3x64xf32>
    %500 = arith.maximumf %498, %499 : vector<3x64xf32>
    %cst_147 = arith.constant dense<0xFF800000> : vector<64xf32>
    %501 = vector.multi_reduction <maximumf>, %500, %cst_147 [0] : vector<3x64xf32> to vector<64xf32>
    %502 = vector.shape_cast %501 : vector<64xf32> to vector<1x64xf32>
    %c5 = arith.constant 5 : index
    %c0_148 = arith.constant 0 : index
    %503 = vector.load %arg33[%c5, %c0_148] : memref<6x64xf32, #tpu.memory_space<vmem>>, vector<1x64xf32>
    tpu.vector_store %arg33[%c5, %c0_148], %502 {strides = array<i32>} : memref<6x64xf32, #tpu.memory_space<vmem>>, vector<1x64xf32>,
    %c0_149 = arith.constant 0 : index
    %c0_150 = arith.constant 0 : index
    %504 = vector.load %arg33[%c0_149, %c0_150] : memref<6x64xf32, #tpu.memory_space<vmem>>, vector<6x64xf32>
    %cst_151 = arith.constant dense<0.000000e+00> : vector<6x64xf32>
    %505 = tpu.matmul %73, %21, %cst_151 {dimension_numbers = #tpu.dot_dimension_numbers<[1], [0], [0], [1], [0, 0, 1, 1], [], []>} : vector<6x32xf32>, vector<32x64xf32>, vector<6x64xf32> -> vector<6x64xf32>
    %cst_152 = arith.constant dense<0.000000e+00> : vector<6x64xf32>
    %506 = tpu.matmul %504, %22, %cst_152 {dimension_numbers = #tpu.dot_dimension_numbers<[1], [0], [0], [1], [0, 0, 1, 1], [], []>} : vector<6x64xf32>, vector<64x64xf32>, vector<6x64xf32> -> vector<6x64xf32>
    %507 = arith.addf %505, %506 : vector<6x64xf32>
    %508 = vector.broadcast %23 : vector<1x64xf32> to vector<6x64xf32>
    %509 = arith.addf %507, %508 : vector<6x64xf32>
    %cst_153 = arith.constant dense<0.000000e+00> : vector<64xf32>
    %510 = vector.multi_reduction <add>, %509, %cst_153 [0] : vector<6x64xf32> to vector<64xf32>
    %511 = vector.shape_cast %510 : vector<64xf32> to vector<1x64xf32>
    %cst_154 = arith.constant 6.000000e+00 : f32
    %512 = vector.broadcast %cst_154 : f32 to vector<1x64xf32>
    %513 = arith.divf %511, %512 : vector<1x64xf32>
    %514 = vector.broadcast %513 : vector<1x64xf32> to vector<6x64xf32>
    %515 = arith.subf %509, %514 : vector<6x64xf32>
    %516 = arith.mulf %515, %515 : vector<6x64xf32>
    %cst_155 = arith.constant dense<0.000000e+00> : vector<64xf32>
    %517 = vector.multi_reduction <add>, %516, %cst_155 [0] : vector<6x64xf32> to vector<64xf32>
    %518 = vector.shape_cast %517 : vector<64xf32> to vector<1x64xf32>
    %cst_156 = arith.constant 6.000000e+00 : f32
    %519 = vector.broadcast %cst_156 : f32 to vector<1x64xf32>
    %520 = arith.divf %518, %519 : vector<1x64xf32>
    %521 = vector.broadcast %513 : vector<1x64xf32> to vector<6x64xf32>
    %522 = arith.subf %509, %521 : vector<6x64xf32>
    %cst_157 = arith.constant 9.99999974E-6 : f32
    %523 = vector.broadcast %cst_157 : f32 to vector<1x64xf32>
    %524 = arith.addf %520, %523 : vector<1x64xf32>
    %525 = math.rsqrt %524 : vector<1x64xf32>
    %526 = vector.broadcast %525 : vector<1x64xf32> to vector<6x64xf32>
    %527 = arith.mulf %522, %526 : vector<6x64xf32>
    %528 = vector.broadcast %24 : vector<1x64xf32> to vector<6x64xf32>
    %529 = arith.mulf %527, %528 : vector<6x64xf32>
    %530 = vector.broadcast %25 : vector<1x64xf32> to vector<6x64xf32>
    %531 = arith.addf %529, %530 : vector<6x64xf32>
    %cst_158 = arith.constant 0.000000e+00 : f32
    %532 = vector.broadcast %cst_158 : f32 to vector<6x64xf32>
    %533 = arith.maximumf %531, %532 : vector<6x64xf32>
    %cst_159 = arith.constant dense<0.000000e+00> : vector<6x32xf32>
    %534 = tpu.matmul %533, %26, %cst_159 {dimension_numbers = #tpu.dot_dimension_numbers<[1], [0], [0], [1], [0, 0, 1, 1], [], []>} : vector<6x64xf32>, vector<64x32xf32>, vector<6x32xf32> -> vector<6x32xf32>
    %535 = vector.broadcast %27 : vector<1x32xf32> to vector<6x32xf32>
    %536 = arith.addf %534, %535 : vector<6x32xf32>
    %cst_160 = arith.constant dense<0.000000e+00> : vector<32xf32>
    %537 = vector.multi_reduction <add>, %536, %cst_160 [0] : vector<6x32xf32> to vector<32xf32>
    %538 = vector.shape_cast %537 : vector<32xf32> to vector<1x32xf32>
    %cst_161 = arith.constant 6.000000e+00 : f32
    %539 = vector.broadcast %cst_161 : f32 to vector<1x32xf32>
    %540 = arith.divf %538, %539 : vector<1x32xf32>
    %541 = vector.broadcast %540 : vector<1x32xf32> to vector<6x32xf32>
    %542 = arith.subf %536, %541 : vector<6x32xf32>
    %543 = arith.mulf %542, %542 : vector<6x32xf32>
    %cst_162 = arith.constant dense<0.000000e+00> : vector<32xf32>
    %544 = vector.multi_reduction <add>, %543, %cst_162 [0] : vector<6x32xf32> to vector<32xf32>
    %545 = vector.shape_cast %544 : vector<32xf32> to vector<1x32xf32>
    %cst_163 = arith.constant 6.000000e+00 : f32
    %546 = vector.broadcast %cst_163 : f32 to vector<1x32xf32>
    %547 = arith.divf %545, %546 : vector<1x32xf32>
    %548 = vector.broadcast %540 : vector<1x32xf32> to vector<6x32xf32>
    %549 = arith.subf %536, %548 : vector<6x32xf32>
    %cst_164 = arith.constant 9.99999974E-6 : f32
    %550 = vector.broadcast %cst_164 : f32 to vector<1x32xf32>
    %551 = arith.addf %547, %550 : vector<1x32xf32>
    %552 = math.rsqrt %551 : vector<1x32xf32>
    %553 = vector.broadcast %552 : vector<1x32xf32> to vector<6x32xf32>
    %554 = arith.mulf %549, %553 : vector<6x32xf32>
    %555 = vector.broadcast %28 : vector<1x32xf32> to vector<6x32xf32>
    %556 = arith.mulf %554, %555 : vector<6x32xf32>
    %557 = vector.broadcast %29 : vector<1x32xf32> to vector<6x32xf32>
    %558 = arith.addf %556, %557 : vector<6x32xf32>
    %cst_165 = arith.constant 0.000000e+00 : f32
    %559 = vector.broadcast %cst_165 : f32 to vector<6x32xf32>
    %560 = arith.maximumf %558, %559 : vector<6x32xf32>
    %561 = vector.extract_strided_slice %76 {offsets = [0, 0], sizes = [6, 1], strides = [1, 1]} : vector<6x2xf32> to vector<6x1xf32>
    %562 = vector.extract_strided_slice %3 {offsets = [0, 0], sizes = [1, 16], strides = [1, 1]} : vector<2x16xf32> to vector<1x16xf32>
    %563 = vector.broadcast %561 : vector<6x1xf32> to vector<6x16xf32>
    %564 = vector.broadcast %562 : vector<1x16xf32> to vector<6x16xf32>
    %565 = arith.mulf %563, %564 : vector<6x16xf32>
    %566 = vector.extract_strided_slice %76 {offsets = [0, 1], sizes = [6, 1], strides = [1, 1]} : vector<6x2xf32> to vector<6x1xf32>
    %567 = vector.extract_strided_slice %3 {offsets = [1, 0], sizes = [1, 16], strides = [1, 1]} : vector<2x16xf32> to vector<1x16xf32>
    %568 = vector.broadcast %566 : vector<6x1xf32> to vector<6x16xf32>
    %569 = vector.broadcast %567 : vector<1x16xf32> to vector<6x16xf32>
    %570 = arith.mulf %568, %569 : vector<6x16xf32>
    %571 = arith.addf %565, %570 : vector<6x16xf32>
    %572 = vector.broadcast %4 : vector<1x16xf32> to vector<6x16xf32>
    %573 = arith.addf %571, %572 : vector<6x16xf32>
    %c0_166 = arith.constant 0 : index
    %c0_167 = arith.constant 0 : index
    %c0_168 = arith.constant 0 : index
    %574 = vector.load %arg31[%c0_166, %c0_167, %c0_168] : memref<3x6x2xf32, #tpu.memory_space<vmem>>, vector<1x6x2xf32>
    %575 = vector.shape_cast %574 : vector<1x6x2xf32> to vector<6x2xf32>
    %576 = vector.shape_cast %76 : vector<6x2xf32> to vector<1x6x2xf32>
    tpu.vector_store %arg31[%c0_166, %c0_167, %c0_168], %576 {strides = array<i32>} : memref<3x6x2xf32, #tpu.memory_space<vmem>>, vector<1x6x2xf32>,
    %cst_169 = arith.constant dense<0.000000e+00> : vector<6x128xf32>
    %577 = tpu.matmul %573, %7, %cst_169 {dimension_numbers = #tpu.dot_dimension_numbers<[1], [0], [0], [1], [0, 0, 1, 1], [], []>} : vector<6x16xf32>, vector<16x128xf32>, vector<6x128xf32> -> vector<6x128xf32>
    %cst_170 = arith.constant dense<0.000000e+00> : vector<6x128xf32>
    %578 = tpu.matmul %560, %8, %cst_170 {dimension_numbers = #tpu.dot_dimension_numbers<[1], [0], [0], [1], [0, 0, 1, 1], [], []>} : vector<6x32xf32>, vector<32x128xf32>, vector<6x128xf32> -> vector<6x128xf32>
    %579 = arith.addf %577, %578 : vector<6x128xf32>
    %580 = vector.broadcast %9 : vector<1x128xf32> to vector<6x128xf32>
    %581 = arith.addf %579, %580 : vector<6x128xf32>
    %582 = vector.extract_strided_slice %581 {offsets = [0, 0], sizes = [6, 32], strides = [1, 1]} : vector<6x128xf32> to vector<6x32xf32>
    %583 = arith.negf %582 : vector<6x32xf32>
    %584 = math.exp %583 : vector<6x32xf32>
    %cst_171 = arith.constant 1.000000e+00 : f32
    %585 = vector.broadcast %cst_171 : f32 to vector<6x32xf32>
    %586 = arith.addf %585, %584 : vector<6x32xf32>
    %587 = arith.divf %585, %586 : vector<6x32xf32>
    %588 = vector.extract_strided_slice %581 {offsets = [0, 32], sizes = [6, 32], strides = [1, 1]} : vector<6x128xf32> to vector<6x32xf32>
    %589 = arith.negf %588 : vector<6x32xf32>
    %590 = math.exp %589 : vector<6x32xf32>
    %cst_172 = arith.constant 1.000000e+00 : f32
    %591 = vector.broadcast %cst_172 : f32 to vector<6x32xf32>
    %592 = arith.addf %591, %590 : vector<6x32xf32>
    %593 = arith.divf %591, %592 : vector<6x32xf32>
    %594 = vector.extract_strided_slice %581 {offsets = [0, 64], sizes = [6, 32], strides = [1, 1]} : vector<6x128xf32> to vector<6x32xf32>
    %595 = math.tanh %594 : vector<6x32xf32>
    %596 = vector.extract_strided_slice %581 {offsets = [0, 96], sizes = [6, 32], strides = [1, 1]} : vector<6x128xf32> to vector<6x32xf32>
    %597 = arith.negf %596 : vector<6x32xf32>
    %598 = math.exp %597 : vector<6x32xf32>
    %cst_173 = arith.constant 1.000000e+00 : f32
    %599 = vector.broadcast %cst_173 : f32 to vector<6x32xf32>
    %600 = arith.addf %599, %598 : vector<6x32xf32>
    %601 = arith.divf %599, %600 : vector<6x32xf32>
    %602 = arith.mulf %593, %71 : vector<6x32xf32>
    %603 = arith.mulf %587, %595 : vector<6x32xf32>
    %604 = arith.addf %602, %603 : vector<6x32xf32>
    %605 = math.tanh %604 : vector<6x32xf32>
    %606 = arith.mulf %601, %605 : vector<6x32xf32>
    %cst_174 = arith.constant dense<0.000000e+00> : vector<6x2xf32>
    %607 = tpu.matmul %606, %5, %cst_174 {dimension_numbers = #tpu.dot_dimension_numbers<[1], [0], [0], [1], [0, 0, 1, 1], [], []>} : vector<6x32xf32>, vector<32x2xf32>, vector<6x2xf32> -> vector<6x2xf32>
    %608 = vector.broadcast %6 : vector<1x2xf32> to vector<6x2xf32>
    %609 = arith.addf %607, %608 : vector<6x2xf32>
    %610 = arith.addf %609, %77 : vector<6x2xf32>
    %611 = vector.extract_strided_slice %606 {offsets = [0, 0], sizes = [3, 32], strides = [1, 1]} : vector<6x32xf32> to vector<3x32xf32>
    %612 = vector.extract_strided_slice %610 {offsets = [0, 0], sizes = [3, 2], strides = [1, 1]} : vector<6x2xf32> to vector<3x2xf32>
    %cst_175 = arith.constant dense<0.000000e+00> : vector<3x128xf32>
    %613 = tpu.matmul %611, %13, %cst_175 {dimension_numbers = #tpu.dot_dimension_numbers<[1], [0], [0], [1], [0, 0, 1, 1], [], []>} : vector<3x32xf32>, vector<32x128xf32>, vector<3x128xf32> -> vector<3x128xf32>
    %614 = vector.extract_strided_slice %612 {offsets = [0, 0], sizes = [1, 2], strides = [1, 1]} : vector<3x2xf32> to vector<1x2xf32>
    %615 = vector.broadcast %614 : vector<1x2xf32> to vector<3x2xf32>
    %616 = arith.subf %612, %615 : vector<3x2xf32>
    %617 = vector.extract_strided_slice %616 {offsets = [0, 0], sizes = [3, 1], strides = [1, 1]} : vector<3x2xf32> to vector<3x1xf32>
    %618 = vector.extract_strided_slice %10 {offsets = [0, 0], sizes = [1, 16], strides = [1, 1]} : vector<2x16xf32> to vector<1x16xf32>
    %619 = vector.broadcast %617 : vector<3x1xf32> to vector<3x16xf32>
    %620 = vector.broadcast %618 : vector<1x16xf32> to vector<3x16xf32>
    %621 = arith.mulf %619, %620 : vector<3x16xf32>
    %622 = vector.extract_strided_slice %616 {offsets = [0, 1], sizes = [3, 1], strides = [1, 1]} : vector<3x2xf32> to vector<3x1xf32>
    %623 = vector.extract_strided_slice %10 {offsets = [1, 0], sizes = [1, 16], strides = [1, 1]} : vector<2x16xf32> to vector<1x16xf32>
    %624 = vector.broadcast %622 : vector<3x1xf32> to vector<3x16xf32>
    %625 = vector.broadcast %623 : vector<1x16xf32> to vector<3x16xf32>
    %626 = arith.mulf %624, %625 : vector<3x16xf32>
    %627 = arith.addf %621, %626 : vector<3x16xf32>
    %628 = vector.broadcast %11 : vector<1x16xf32> to vector<3x16xf32>
    %629 = arith.addf %627, %628 : vector<3x16xf32>
    %cst_176 = arith.constant dense<0.000000e+00> : vector<3x128xf32>
    %630 = tpu.matmul %629, %12, %cst_176 {dimension_numbers = #tpu.dot_dimension_numbers<[1], [0], [0], [1], [0, 0, 1, 1], [], []>} : vector<3x16xf32>, vector<16x128xf32>, vector<3x128xf32> -> vector<3x128xf32>
    %631 = arith.addf %630, %613 : vector<3x128xf32>
    %632 = vector.broadcast %14 : vector<1x128xf32> to vector<3x128xf32>
    %633 = arith.addf %631, %632 : vector<3x128xf32>
    %634 = vector.extract_strided_slice %612 {offsets = [1, 0], sizes = [1, 2], strides = [1, 1]} : vector<3x2xf32> to vector<1x2xf32>
    %635 = vector.broadcast %634 : vector<1x2xf32> to vector<3x2xf32>
    %636 = arith.subf %612, %635 : vector<3x2xf32>
    %637 = vector.extract_strided_slice %636 {offsets = [0, 0], sizes = [3, 1], strides = [1, 1]} : vector<3x2xf32> to vector<3x1xf32>
    %638 = vector.extract_strided_slice %10 {offsets = [0, 0], sizes = [1, 16], strides = [1, 1]} : vector<2x16xf32> to vector<1x16xf32>
    %639 = vector.broadcast %637 : vector<3x1xf32> to vector<3x16xf32>
    %640 = vector.broadcast %638 : vector<1x16xf32> to vector<3x16xf32>
    %641 = arith.mulf %639, %640 : vector<3x16xf32>
    %642 = vector.extract_strided_slice %636 {offsets = [0, 1], sizes = [3, 1], strides = [1, 1]} : vector<3x2xf32> to vector<3x1xf32>
    %643 = vector.extract_strided_slice %10 {offsets = [1, 0], sizes = [1, 16], strides = [1, 1]} : vector<2x16xf32> to vector<1x16xf32>
    %644 = vector.broadcast %642 : vector<3x1xf32> to vector<3x16xf32>
    %645 = vector.broadcast %643 : vector<1x16xf32> to vector<3x16xf32>
    %646 = arith.mulf %644, %645 : vector<3x16xf32>
    %647 = arith.addf %641, %646 : vector<3x16xf32>
    %648 = vector.broadcast %11 : vector<1x16xf32> to vector<3x16xf32>
    %649 = arith.addf %647, %648 : vector<3x16xf32>
    %cst_177 = arith.constant dense<0.000000e+00> : vector<3x128xf32>
    %650 = tpu.matmul %649, %12, %cst_177 {dimension_numbers = #tpu.dot_dimension_numbers<[1], [0], [0], [1], [0, 0, 1, 1], [], []>} : vector<3x16xf32>, vector<16x128xf32>, vector<3x128xf32> -> vector<3x128xf32>
    %651 = arith.addf %650, %613 : vector<3x128xf32>
    %652 = vector.broadcast %14 : vector<1x128xf32> to vector<3x128xf32>
    %653 = arith.addf %651, %652 : vector<3x128xf32>
    %654 = vector.extract_strided_slice %612 {offsets = [2, 0], sizes = [1, 2], strides = [1, 1]} : vector<3x2xf32> to vector<1x2xf32>
    %655 = vector.broadcast %654 : vector<1x2xf32> to vector<3x2xf32>
    %656 = arith.subf %612, %655 : vector<3x2xf32>
    %657 = vector.extract_strided_slice %656 {offsets = [0, 0], sizes = [3, 1], strides = [1, 1]} : vector<3x2xf32> to vector<3x1xf32>
    %658 = vector.extract_strided_slice %10 {offsets = [0, 0], sizes = [1, 16], strides = [1, 1]} : vector<2x16xf32> to vector<1x16xf32>
    %659 = vector.broadcast %657 : vector<3x1xf32> to vector<3x16xf32>
    %660 = vector.broadcast %658 : vector<1x16xf32> to vector<3x16xf32>
    %661 = arith.mulf %659, %660 : vector<3x16xf32>
    %662 = vector.extract_strided_slice %656 {offsets = [0, 1], sizes = [3, 1], strides = [1, 1]} : vector<3x2xf32> to vector<3x1xf32>
    %663 = vector.extract_strided_slice %10 {offsets = [1, 0], sizes = [1, 16], strides = [1, 1]} : vector<2x16xf32> to vector<1x16xf32>
    %664 = vector.broadcast %662 : vector<3x1xf32> to vector<3x16xf32>
    %665 = vector.broadcast %663 : vector<1x16xf32> to vector<3x16xf32>
    %666 = arith.mulf %664, %665 : vector<3x16xf32>
    %667 = arith.addf %661, %666 : vector<3x16xf32>
    %668 = vector.broadcast %11 : vector<1x16xf32> to vector<3x16xf32>
    %669 = arith.addf %667, %668 : vector<3x16xf32>
    %cst_178 = arith.constant dense<0.000000e+00> : vector<3x128xf32>
    %670 = tpu.matmul %669, %12, %cst_178 {dimension_numbers = #tpu.dot_dimension_numbers<[1], [0], [0], [1], [0, 0, 1, 1], [], []>} : vector<3x16xf32>, vector<16x128xf32>, vector<3x128xf32> -> vector<3x128xf32>
    %671 = arith.addf %670, %613 : vector<3x128xf32>
    %672 = vector.broadcast %14 : vector<1x128xf32> to vector<3x128xf32>
    %673 = arith.addf %671, %672 : vector<3x128xf32>
    %cst_179 = arith.constant dense<0.000000e+00> : vector<128xf32>
    %674 = vector.multi_reduction <add>, %633, %cst_179 [0] : vector<3x128xf32> to vector<128xf32>
    %675 = vector.shape_cast %674 : vector<128xf32> to vector<1x128xf32>
    %cst_180 = arith.constant 0.000000e+00 : f32
    %676 = vector.broadcast %cst_180 : f32 to vector<1x128xf32>
    %677 = arith.addf %676, %675 : vector<1x128xf32>
    %cst_181 = arith.constant dense<0.000000e+00> : vector<128xf32>
    %678 = vector.multi_reduction <add>, %653, %cst_181 [0] : vector<3x128xf32> to vector<128xf32>
    %679 = vector.shape_cast %678 : vector<128xf32> to vector<1x128xf32>
    %680 = arith.addf %677, %679 : vector<1x128xf32>
    %cst_182 = arith.constant dense<0.000000e+00> : vector<128xf32>
    %681 = vector.multi_reduction <add>, %673, %cst_182 [0] : vector<3x128xf32> to vector<128xf32>
    %682 = vector.shape_cast %681 : vector<128xf32> to vector<1x128xf32>
    %683 = arith.addf %680, %682 : vector<1x128xf32>
    %cst_183 = arith.constant 9.000000e+00 : f32
    %684 = vector.broadcast %cst_183 : f32 to vector<1x128xf32>
    %685 = arith.divf %683, %684 : vector<1x128xf32>
    %686 = vector.broadcast %685 : vector<1x128xf32> to vector<3x128xf32>
    %687 = arith.subf %633, %686 : vector<3x128xf32>
    %688 = arith.mulf %687, %687 : vector<3x128xf32>
    %cst_184 = arith.constant dense<0.000000e+00> : vector<128xf32>
    %689 = vector.multi_reduction <add>, %688, %cst_184 [0] : vector<3x128xf32> to vector<128xf32>
    %690 = vector.shape_cast %689 : vector<128xf32> to vector<1x128xf32>
    %cst_185 = arith.constant 0.000000e+00 : f32
    %691 = vector.broadcast %cst_185 : f32 to vector<1x128xf32>
    %692 = arith.addf %691, %690 : vector<1x128xf32>
    %693 = vector.broadcast %685 : vector<1x128xf32> to vector<3x128xf32>
    %694 = arith.subf %653, %693 : vector<3x128xf32>
    %695 = arith.mulf %694, %694 : vector<3x128xf32>
    %cst_186 = arith.constant dense<0.000000e+00> : vector<128xf32>
    %696 = vector.multi_reduction <add>, %695, %cst_186 [0] : vector<3x128xf32> to vector<128xf32>
    %697 = vector.shape_cast %696 : vector<128xf32> to vector<1x128xf32>
    %698 = arith.addf %692, %697 : vector<1x128xf32>
    %699 = vector.broadcast %685 : vector<1x128xf32> to vector<3x128xf32>
    %700 = arith.subf %673, %699 : vector<3x128xf32>
    %701 = arith.mulf %700, %700 : vector<3x128xf32>
    %cst_187 = arith.constant dense<0.000000e+00> : vector<128xf32>
    %702 = vector.multi_reduction <add>, %701, %cst_187 [0] : vector<3x128xf32> to vector<128xf32>
    %703 = vector.shape_cast %702 : vector<128xf32> to vector<1x128xf32>
    %704 = arith.addf %698, %703 : vector<1x128xf32>
    %cst_188 = arith.constant 9.000000e+00 : f32
    %705 = vector.broadcast %cst_188 : f32 to vector<1x128xf32>
    %706 = arith.divf %704, %705 : vector<1x128xf32>
    %cst_189 = arith.constant 9.99999974E-6 : f32
    %707 = vector.broadcast %cst_189 : f32 to vector<1x128xf32>
    %708 = arith.addf %706, %707 : vector<1x128xf32>
    %709 = math.rsqrt %708 : vector<1x128xf32>
    %710 = vector.broadcast %685 : vector<1x128xf32> to vector<3x128xf32>
    %711 = arith.subf %633, %710 : vector<3x128xf32>
    %712 = vector.broadcast %709 : vector<1x128xf32> to vector<3x128xf32>
    %713 = arith.mulf %711, %712 : vector<3x128xf32>
    %714 = vector.broadcast %15 : vector<1x128xf32> to vector<3x128xf32>
    %715 = arith.mulf %713, %714 : vector<3x128xf32>
    %716 = vector.broadcast %16 : vector<1x128xf32> to vector<3x128xf32>
    %717 = arith.addf %715, %716 : vector<3x128xf32>
    %cst_190 = arith.constant 0.000000e+00 : f32
    %718 = vector.broadcast %cst_190 : f32 to vector<3x128xf32>
    %719 = arith.maximumf %717, %718 : vector<3x128xf32>
    %cst_191 = arith.constant dense<0.000000e+00> : vector<3x64xf32>
    %720 = tpu.matmul %719, %17, %cst_191 {dimension_numbers = #tpu.dot_dimension_numbers<[1], [0], [0], [1], [0, 0, 1, 1], [], []>} : vector<3x128xf32>, vector<128x64xf32>, vector<3x64xf32> -> vector<3x64xf32>
    %721 = vector.broadcast %18 : vector<1x64xf32> to vector<3x64xf32>
    %722 = arith.addf %720, %721 : vector<3x64xf32>
    %723 = vector.broadcast %685 : vector<1x128xf32> to vector<3x128xf32>
    %724 = arith.subf %653, %723 : vector<3x128xf32>
    %725 = vector.broadcast %709 : vector<1x128xf32> to vector<3x128xf32>
    %726 = arith.mulf %724, %725 : vector<3x128xf32>
    %727 = vector.broadcast %15 : vector<1x128xf32> to vector<3x128xf32>
    %728 = arith.mulf %726, %727 : vector<3x128xf32>
    %729 = vector.broadcast %16 : vector<1x128xf32> to vector<3x128xf32>
    %730 = arith.addf %728, %729 : vector<3x128xf32>
    %cst_192 = arith.constant 0.000000e+00 : f32
    %731 = vector.broadcast %cst_192 : f32 to vector<3x128xf32>
    %732 = arith.maximumf %730, %731 : vector<3x128xf32>
    %cst_193 = arith.constant dense<0.000000e+00> : vector<3x64xf32>
    %733 = tpu.matmul %732, %17, %cst_193 {dimension_numbers = #tpu.dot_dimension_numbers<[1], [0], [0], [1], [0, 0, 1, 1], [], []>} : vector<3x128xf32>, vector<128x64xf32>, vector<3x64xf32> -> vector<3x64xf32>
    %734 = vector.broadcast %18 : vector<1x64xf32> to vector<3x64xf32>
    %735 = arith.addf %733, %734 : vector<3x64xf32>
    %736 = vector.broadcast %685 : vector<1x128xf32> to vector<3x128xf32>
    %737 = arith.subf %673, %736 : vector<3x128xf32>
    %738 = vector.broadcast %709 : vector<1x128xf32> to vector<3x128xf32>
    %739 = arith.mulf %737, %738 : vector<3x128xf32>
    %740 = vector.broadcast %15 : vector<1x128xf32> to vector<3x128xf32>
    %741 = arith.mulf %739, %740 : vector<3x128xf32>
    %742 = vector.broadcast %16 : vector<1x128xf32> to vector<3x128xf32>
    %743 = arith.addf %741, %742 : vector<3x128xf32>
    %cst_194 = arith.constant 0.000000e+00 : f32
    %744 = vector.broadcast %cst_194 : f32 to vector<3x128xf32>
    %745 = arith.maximumf %743, %744 : vector<3x128xf32>
    %cst_195 = arith.constant dense<0.000000e+00> : vector<3x64xf32>
    %746 = tpu.matmul %745, %17, %cst_195 {dimension_numbers = #tpu.dot_dimension_numbers<[1], [0], [0], [1], [0, 0, 1, 1], [], []>} : vector<3x128xf32>, vector<128x64xf32>, vector<3x64xf32> -> vector<3x64xf32>
    %747 = vector.broadcast %18 : vector<1x64xf32> to vector<3x64xf32>
    %748 = arith.addf %746, %747 : vector<3x64xf32>
    %cst_196 = arith.constant dense<0.000000e+00> : vector<64xf32>
    %749 = vector.multi_reduction <add>, %722, %cst_196 [0] : vector<3x64xf32> to vector<64xf32>
    %750 = vector.shape_cast %749 : vector<64xf32> to vector<1x64xf32>
    %cst_197 = arith.constant 0.000000e+00 : f32
    %751 = vector.broadcast %cst_197 : f32 to vector<1x64xf32>
    %752 = arith.addf %751, %750 : vector<1x64xf32>
    %cst_198 = arith.constant dense<0.000000e+00> : vector<64xf32>
    %753 = vector.multi_reduction <add>, %735, %cst_198 [0] : vector<3x64xf32> to vector<64xf32>
    %754 = vector.shape_cast %753 : vector<64xf32> to vector<1x64xf32>
    %755 = arith.addf %752, %754 : vector<1x64xf32>
    %cst_199 = arith.constant dense<0.000000e+00> : vector<64xf32>
    %756 = vector.multi_reduction <add>, %748, %cst_199 [0] : vector<3x64xf32> to vector<64xf32>
    %757 = vector.shape_cast %756 : vector<64xf32> to vector<1x64xf32>
    %758 = arith.addf %755, %757 : vector<1x64xf32>
    %cst_200 = arith.constant 9.000000e+00 : f32
    %759 = vector.broadcast %cst_200 : f32 to vector<1x64xf32>
    %760 = arith.divf %758, %759 : vector<1x64xf32>
    %761 = vector.broadcast %760 : vector<1x64xf32> to vector<3x64xf32>
    %762 = arith.subf %722, %761 : vector<3x64xf32>
    %763 = arith.mulf %762, %762 : vector<3x64xf32>
    %cst_201 = arith.constant dense<0.000000e+00> : vector<64xf32>
    %764 = vector.multi_reduction <add>, %763, %cst_201 [0] : vector<3x64xf32> to vector<64xf32>
    %765 = vector.shape_cast %764 : vector<64xf32> to vector<1x64xf32>
    %cst_202 = arith.constant 0.000000e+00 : f32
    %766 = vector.broadcast %cst_202 : f32 to vector<1x64xf32>
    %767 = arith.addf %766, %765 : vector<1x64xf32>
    %768 = vector.broadcast %760 : vector<1x64xf32> to vector<3x64xf32>
    %769 = arith.subf %735, %768 : vector<3x64xf32>
    %770 = arith.mulf %769, %769 : vector<3x64xf32>
    %cst_203 = arith.constant dense<0.000000e+00> : vector<64xf32>
    %771 = vector.multi_reduction <add>, %770, %cst_203 [0] : vector<3x64xf32> to vector<64xf32>
    %772 = vector.shape_cast %771 : vector<64xf32> to vector<1x64xf32>
    %773 = arith.addf %767, %772 : vector<1x64xf32>
    %774 = vector.broadcast %760 : vector<1x64xf32> to vector<3x64xf32>
    %775 = arith.subf %748, %774 : vector<3x64xf32>
    %776 = arith.mulf %775, %775 : vector<3x64xf32>
    %cst_204 = arith.constant dense<0.000000e+00> : vector<64xf32>
    %777 = vector.multi_reduction <add>, %776, %cst_204 [0] : vector<3x64xf32> to vector<64xf32>
    %778 = vector.shape_cast %777 : vector<64xf32> to vector<1x64xf32>
    %779 = arith.addf %773, %778 : vector<1x64xf32>
    %cst_205 = arith.constant 9.000000e+00 : f32
    %780 = vector.broadcast %cst_205 : f32 to vector<1x64xf32>
    %781 = arith.divf %779, %780 : vector<1x64xf32>
    %cst_206 = arith.constant 9.99999974E-6 : f32
    %782 = vector.broadcast %cst_206 : f32 to vector<1x64xf32>
    %783 = arith.addf %781, %782 : vector<1x64xf32>
    %784 = math.rsqrt %783 : vector<1x64xf32>
    %785 = vector.broadcast %760 : vector<1x64xf32> to vector<3x64xf32>
    %786 = arith.subf %722, %785 : vector<3x64xf32>
    %787 = vector.broadcast %784 : vector<1x64xf32> to vector<3x64xf32>
    %788 = arith.mulf %786, %787 : vector<3x64xf32>
    %789 = vector.broadcast %19 : vector<1x64xf32> to vector<3x64xf32>
    %790 = arith.mulf %788, %789 : vector<3x64xf32>
    %791 = vector.broadcast %20 : vector<1x64xf32> to vector<3x64xf32>
    %792 = arith.addf %790, %791 : vector<3x64xf32>
    %cst_207 = arith.constant 0.000000e+00 : f32
    %793 = vector.broadcast %cst_207 : f32 to vector<3x64xf32>
    %794 = arith.maximumf %792, %793 : vector<3x64xf32>
    %cst_208 = arith.constant dense<0xFF800000> : vector<64xf32>
    %795 = vector.multi_reduction <maximumf>, %794, %cst_208 [0] : vector<3x64xf32> to vector<64xf32>
    %796 = vector.shape_cast %795 : vector<64xf32> to vector<1x64xf32>
    %c0_209 = arith.constant 0 : index
    %c0_210 = arith.constant 0 : index
    %797 = vector.load %arg33[%c0_209, %c0_210] : memref<6x64xf32, #tpu.memory_space<vmem>>, vector<1x64xf32>
    tpu.vector_store %arg33[%c0_209, %c0_210], %796 {strides = array<i32>} : memref<6x64xf32, #tpu.memory_space<vmem>>, vector<1x64xf32>,
    %798 = vector.broadcast %760 : vector<1x64xf32> to vector<3x64xf32>
    %799 = arith.subf %735, %798 : vector<3x64xf32>
    %800 = vector.broadcast %784 : vector<1x64xf32> to vector<3x64xf32>
    %801 = arith.mulf %799, %800 : vector<3x64xf32>
    %802 = vector.broadcast %19 : vector<1x64xf32> to vector<3x64xf32>
    %803 = arith.mulf %801, %802 : vector<3x64xf32>
    %804 = vector.broadcast %20 : vector<1x64xf32> to vector<3x64xf32>
    %805 = arith.addf %803, %804 : vector<3x64xf32>
    %cst_211 = arith.constant 0.000000e+00 : f32
    %806 = vector.broadcast %cst_211 : f32 to vector<3x64xf32>
    %807 = arith.maximumf %805, %806 : vector<3x64xf32>
    %cst_212 = arith.constant dense<0xFF800000> : vector<64xf32>
    %808 = vector.multi_reduction <maximumf>, %807, %cst_212 [0] : vector<3x64xf32> to vector<64xf32>
    %809 = vector.shape_cast %808 : vector<64xf32> to vector<1x64xf32>
    %c1_213 = arith.constant 1 : index
    %c0_214 = arith.constant 0 : index
    %810 = vector.load %arg33[%c1_213, %c0_214] : memref<6x64xf32, #tpu.memory_space<vmem>>, vector<1x64xf32>
    tpu.vector_store %arg33[%c1_213, %c0_214], %809 {strides = array<i32>} : memref<6x64xf32, #tpu.memory_space<vmem>>, vector<1x64xf32>,
    %811 = vector.broadcast %760 : vector<1x64xf32> to vector<3x64xf32>
    %812 = arith.subf %748, %811 : vector<3x64xf32>
    %813 = vector.broadcast %784 : vector<1x64xf32> to vector<3x64xf32>
    %814 = arith.mulf %812, %813 : vector<3x64xf32>
    %815 = vector.broadcast %19 : vector<1x64xf32> to vector<3x64xf32>
    %816 = arith.mulf %814, %815 : vector<3x64xf32>
    %817 = vector.broadcast %20 : vector<1x64xf32> to vector<3x64xf32>
    %818 = arith.addf %816, %817 : vector<3x64xf32>
    %cst_215 = arith.constant 0.000000e+00 : f32
    %819 = vector.broadcast %cst_215 : f32 to vector<3x64xf32>
    %820 = arith.maximumf %818, %819 : vector<3x64xf32>
    %cst_216 = arith.constant dense<0xFF800000> : vector<64xf32>
    %821 = vector.multi_reduction <maximumf>, %820, %cst_216 [0] : vector<3x64xf32> to vector<64xf32>
    %822 = vector.shape_cast %821 : vector<64xf32> to vector<1x64xf32>
    %c2_217 = arith.constant 2 : index
    %c0_218 = arith.constant 0 : index
    %823 = vector.load %arg33[%c2_217, %c0_218] : memref<6x64xf32, #tpu.memory_space<vmem>>, vector<1x64xf32>
    tpu.vector_store %arg33[%c2_217, %c0_218], %822 {strides = array<i32>} : memref<6x64xf32, #tpu.memory_space<vmem>>, vector<1x64xf32>,
    %824 = vector.extract_strided_slice %606 {offsets = [3, 0], sizes = [3, 32], strides = [1, 1]} : vector<6x32xf32> to vector<3x32xf32>
    %825 = vector.extract_strided_slice %610 {offsets = [3, 0], sizes = [3, 2], strides = [1, 1]} : vector<6x2xf32> to vector<3x2xf32>
    %cst_219 = arith.constant dense<0.000000e+00> : vector<3x128xf32>
    %826 = tpu.matmul %824, %13, %cst_219 {dimension_numbers = #tpu.dot_dimension_numbers<[1], [0], [0], [1], [0, 0, 1, 1], [], []>} : vector<3x32xf32>, vector<32x128xf32>, vector<3x128xf32> -> vector<3x128xf32>
    %827 = vector.extract_strided_slice %825 {offsets = [0, 0], sizes = [1, 2], strides = [1, 1]} : vector<3x2xf32> to vector<1x2xf32>
    %828 = vector.broadcast %827 : vector<1x2xf32> to vector<3x2xf32>
    %829 = arith.subf %825, %828 : vector<3x2xf32>
    %830 = vector.extract_strided_slice %829 {offsets = [0, 0], sizes = [3, 1], strides = [1, 1]} : vector<3x2xf32> to vector<3x1xf32>
    %831 = vector.extract_strided_slice %10 {offsets = [0, 0], sizes = [1, 16], strides = [1, 1]} : vector<2x16xf32> to vector<1x16xf32>
    %832 = vector.broadcast %830 : vector<3x1xf32> to vector<3x16xf32>
    %833 = vector.broadcast %831 : vector<1x16xf32> to vector<3x16xf32>
    %834 = arith.mulf %832, %833 : vector<3x16xf32>
    %835 = vector.extract_strided_slice %829 {offsets = [0, 1], sizes = [3, 1], strides = [1, 1]} : vector<3x2xf32> to vector<3x1xf32>
    %836 = vector.extract_strided_slice %10 {offsets = [1, 0], sizes = [1, 16], strides = [1, 1]} : vector<2x16xf32> to vector<1x16xf32>
    %837 = vector.broadcast %835 : vector<3x1xf32> to vector<3x16xf32>
    %838 = vector.broadcast %836 : vector<1x16xf32> to vector<3x16xf32>
    %839 = arith.mulf %837, %838 : vector<3x16xf32>
    %840 = arith.addf %834, %839 : vector<3x16xf32>
    %841 = vector.broadcast %11 : vector<1x16xf32> to vector<3x16xf32>
    %842 = arith.addf %840, %841 : vector<3x16xf32>
    %cst_220 = arith.constant dense<0.000000e+00> : vector<3x128xf32>
    %843 = tpu.matmul %842, %12, %cst_220 {dimension_numbers = #tpu.dot_dimension_numbers<[1], [0], [0], [1], [0, 0, 1, 1], [], []>} : vector<3x16xf32>, vector<16x128xf32>, vector<3x128xf32> -> vector<3x128xf32>
    %844 = arith.addf %843, %826 : vector<3x128xf32>
    %845 = vector.broadcast %14 : vector<1x128xf32> to vector<3x128xf32>
    %846 = arith.addf %844, %845 : vector<3x128xf32>
    %847 = vector.extract_strided_slice %825 {offsets = [1, 0], sizes = [1, 2], strides = [1, 1]} : vector<3x2xf32> to vector<1x2xf32>
    %848 = vector.broadcast %847 : vector<1x2xf32> to vector<3x2xf32>
    %849 = arith.subf %825, %848 : vector<3x2xf32>
    %850 = vector.extract_strided_slice %849 {offsets = [0, 0], sizes = [3, 1], strides = [1, 1]} : vector<3x2xf32> to vector<3x1xf32>
    %851 = vector.extract_strided_slice %10 {offsets = [0, 0], sizes = [1, 16], strides = [1, 1]} : vector<2x16xf32> to vector<1x16xf32>
    %852 = vector.broadcast %850 : vector<3x1xf32> to vector<3x16xf32>
    %853 = vector.broadcast %851 : vector<1x16xf32> to vector<3x16xf32>
    %854 = arith.mulf %852, %853 : vector<3x16xf32>
    %855 = vector.extract_strided_slice %849 {offsets = [0, 1], sizes = [3, 1], strides = [1, 1]} : vector<3x2xf32> to vector<3x1xf32>
    %856 = vector.extract_strided_slice %10 {offsets = [1, 0], sizes = [1, 16], strides = [1, 1]} : vector<2x16xf32> to vector<1x16xf32>
    %857 = vector.broadcast %855 : vector<3x1xf32> to vector<3x16xf32>
    %858 = vector.broadcast %856 : vector<1x16xf32> to vector<3x16xf32>
    %859 = arith.mulf %857, %858 : vector<3x16xf32>
    %860 = arith.addf %854, %859 : vector<3x16xf32>
    %861 = vector.broadcast %11 : vector<1x16xf32> to vector<3x16xf32>
    %862 = arith.addf %860, %861 : vector<3x16xf32>
    %cst_221 = arith.constant dense<0.000000e+00> : vector<3x128xf32>
    %863 = tpu.matmul %862, %12, %cst_221 {dimension_numbers = #tpu.dot_dimension_numbers<[1], [0], [0], [1], [0, 0, 1, 1], [], []>} : vector<3x16xf32>, vector<16x128xf32>, vector<3x128xf32> -> vector<3x128xf32>
    %864 = arith.addf %863, %826 : vector<3x128xf32>
    %865 = vector.broadcast %14 : vector<1x128xf32> to vector<3x128xf32>
    %866 = arith.addf %864, %865 : vector<3x128xf32>
    %867 = vector.extract_strided_slice %825 {offsets = [2, 0], sizes = [1, 2], strides = [1, 1]} : vector<3x2xf32> to vector<1x2xf32>
    %868 = vector.broadcast %867 : vector<1x2xf32> to vector<3x2xf32>
    %869 = arith.subf %825, %868 : vector<3x2xf32>
    %870 = vector.extract_strided_slice %869 {offsets = [0, 0], sizes = [3, 1], strides = [1, 1]} : vector<3x2xf32> to vector<3x1xf32>
    %871 = vector.extract_strided_slice %10 {offsets = [0, 0], sizes = [1, 16], strides = [1, 1]} : vector<2x16xf32> to vector<1x16xf32>
    %872 = vector.broadcast %870 : vector<3x1xf32> to vector<3x16xf32>
    %873 = vector.broadcast %871 : vector<1x16xf32> to vector<3x16xf32>
    %874 = arith.mulf %872, %873 : vector<3x16xf32>
    %875 = vector.extract_strided_slice %869 {offsets = [0, 1], sizes = [3, 1], strides = [1, 1]} : vector<3x2xf32> to vector<3x1xf32>
    %876 = vector.extract_strided_slice %10 {offsets = [1, 0], sizes = [1, 16], strides = [1, 1]} : vector<2x16xf32> to vector<1x16xf32>
    %877 = vector.broadcast %875 : vector<3x1xf32> to vector<3x16xf32>
    %878 = vector.broadcast %876 : vector<1x16xf32> to vector<3x16xf32>
    %879 = arith.mulf %877, %878 : vector<3x16xf32>
    %880 = arith.addf %874, %879 : vector<3x16xf32>
    %881 = vector.broadcast %11 : vector<1x16xf32> to vector<3x16xf32>
    %882 = arith.addf %880, %881 : vector<3x16xf32>
    %cst_222 = arith.constant dense<0.000000e+00> : vector<3x128xf32>
    %883 = tpu.matmul %882, %12, %cst_222 {dimension_numbers = #tpu.dot_dimension_numbers<[1], [0], [0], [1], [0, 0, 1, 1], [], []>} : vector<3x16xf32>, vector<16x128xf32>, vector<3x128xf32> -> vector<3x128xf32>
    %884 = arith.addf %883, %826 : vector<3x128xf32>
    %885 = vector.broadcast %14 : vector<1x128xf32> to vector<3x128xf32>
    %886 = arith.addf %884, %885 : vector<3x128xf32>
    %cst_223 = arith.constant dense<0.000000e+00> : vector<128xf32>
    %887 = vector.multi_reduction <add>, %846, %cst_223 [0] : vector<3x128xf32> to vector<128xf32>
    %888 = vector.shape_cast %887 : vector<128xf32> to vector<1x128xf32>
    %cst_224 = arith.constant 0.000000e+00 : f32
    %889 = vector.broadcast %cst_224 : f32 to vector<1x128xf32>
    %890 = arith.addf %889, %888 : vector<1x128xf32>
    %cst_225 = arith.constant dense<0.000000e+00> : vector<128xf32>
    %891 = vector.multi_reduction <add>, %866, %cst_225 [0] : vector<3x128xf32> to vector<128xf32>
    %892 = vector.shape_cast %891 : vector<128xf32> to vector<1x128xf32>
    %893 = arith.addf %890, %892 : vector<1x128xf32>
    %cst_226 = arith.constant dense<0.000000e+00> : vector<128xf32>
    %894 = vector.multi_reduction <add>, %886, %cst_226 [0] : vector<3x128xf32> to vector<128xf32>
    %895 = vector.shape_cast %894 : vector<128xf32> to vector<1x128xf32>
    %896 = arith.addf %893, %895 : vector<1x128xf32>
    %cst_227 = arith.constant 9.000000e+00 : f32
    %897 = vector.broadcast %cst_227 : f32 to vector<1x128xf32>
    %898 = arith.divf %896, %897 : vector<1x128xf32>
    %899 = vector.broadcast %898 : vector<1x128xf32> to vector<3x128xf32>
    %900 = arith.subf %846, %899 : vector<3x128xf32>
    %901 = arith.mulf %900, %900 : vector<3x128xf32>
    %cst_228 = arith.constant dense<0.000000e+00> : vector<128xf32>
    %902 = vector.multi_reduction <add>, %901, %cst_228 [0] : vector<3x128xf32> to vector<128xf32>
    %903 = vector.shape_cast %902 : vector<128xf32> to vector<1x128xf32>
    %cst_229 = arith.constant 0.000000e+00 : f32
    %904 = vector.broadcast %cst_229 : f32 to vector<1x128xf32>
    %905 = arith.addf %904, %903 : vector<1x128xf32>
    %906 = vector.broadcast %898 : vector<1x128xf32> to vector<3x128xf32>
    %907 = arith.subf %866, %906 : vector<3x128xf32>
    %908 = arith.mulf %907, %907 : vector<3x128xf32>
    %cst_230 = arith.constant dense<0.000000e+00> : vector<128xf32>
    %909 = vector.multi_reduction <add>, %908, %cst_230 [0] : vector<3x128xf32> to vector<128xf32>
    %910 = vector.shape_cast %909 : vector<128xf32> to vector<1x128xf32>
    %911 = arith.addf %905, %910 : vector<1x128xf32>
    %912 = vector.broadcast %898 : vector<1x128xf32> to vector<3x128xf32>
    %913 = arith.subf %886, %912 : vector<3x128xf32>
    %914 = arith.mulf %913, %913 : vector<3x128xf32>
    %cst_231 = arith.constant dense<0.000000e+00> : vector<128xf32>
    %915 = vector.multi_reduction <add>, %914, %cst_231 [0] : vector<3x128xf32> to vector<128xf32>
    %916 = vector.shape_cast %915 : vector<128xf32> to vector<1x128xf32>
    %917 = arith.addf %911, %916 : vector<1x128xf32>
    %cst_232 = arith.constant 9.000000e+00 : f32
    %918 = vector.broadcast %cst_232 : f32 to vector<1x128xf32>
    %919 = arith.divf %917, %918 : vector<1x128xf32>
    %cst_233 = arith.constant 9.99999974E-6 : f32
    %920 = vector.broadcast %cst_233 : f32 to vector<1x128xf32>
    %921 = arith.addf %919, %920 : vector<1x128xf32>
    %922 = math.rsqrt %921 : vector<1x128xf32>
    %923 = vector.broadcast %898 : vector<1x128xf32> to vector<3x128xf32>
    %924 = arith.subf %846, %923 : vector<3x128xf32>
    %925 = vector.broadcast %922 : vector<1x128xf32> to vector<3x128xf32>
    %926 = arith.mulf %924, %925 : vector<3x128xf32>
    %927 = vector.broadcast %15 : vector<1x128xf32> to vector<3x128xf32>
    %928 = arith.mulf %926, %927 : vector<3x128xf32>
    %929 = vector.broadcast %16 : vector<1x128xf32> to vector<3x128xf32>
    %930 = arith.addf %928, %929 : vector<3x128xf32>
    %cst_234 = arith.constant 0.000000e+00 : f32
    %931 = vector.broadcast %cst_234 : f32 to vector<3x128xf32>
    %932 = arith.maximumf %930, %931 : vector<3x128xf32>
    %cst_235 = arith.constant dense<0.000000e+00> : vector<3x64xf32>
    %933 = tpu.matmul %932, %17, %cst_235 {dimension_numbers = #tpu.dot_dimension_numbers<[1], [0], [0], [1], [0, 0, 1, 1], [], []>} : vector<3x128xf32>, vector<128x64xf32>, vector<3x64xf32> -> vector<3x64xf32>
    %934 = vector.broadcast %18 : vector<1x64xf32> to vector<3x64xf32>
    %935 = arith.addf %933, %934 : vector<3x64xf32>
    %936 = vector.broadcast %898 : vector<1x128xf32> to vector<3x128xf32>
    %937 = arith.subf %866, %936 : vector<3x128xf32>
    %938 = vector.broadcast %922 : vector<1x128xf32> to vector<3x128xf32>
    %939 = arith.mulf %937, %938 : vector<3x128xf32>
    %940 = vector.broadcast %15 : vector<1x128xf32> to vector<3x128xf32>
    %941 = arith.mulf %939, %940 : vector<3x128xf32>
    %942 = vector.broadcast %16 : vector<1x128xf32> to vector<3x128xf32>
    %943 = arith.addf %941, %942 : vector<3x128xf32>
    %cst_236 = arith.constant 0.000000e+00 : f32
    %944 = vector.broadcast %cst_236 : f32 to vector<3x128xf32>
    %945 = arith.maximumf %943, %944 : vector<3x128xf32>
    %cst_237 = arith.constant dense<0.000000e+00> : vector<3x64xf32>
    %946 = tpu.matmul %945, %17, %cst_237 {dimension_numbers = #tpu.dot_dimension_numbers<[1], [0], [0], [1], [0, 0, 1, 1], [], []>} : vector<3x128xf32>, vector<128x64xf32>, vector<3x64xf32> -> vector<3x64xf32>
    %947 = vector.broadcast %18 : vector<1x64xf32> to vector<3x64xf32>
    %948 = arith.addf %946, %947 : vector<3x64xf32>
    %949 = vector.broadcast %898 : vector<1x128xf32> to vector<3x128xf32>
    %950 = arith.subf %886, %949 : vector<3x128xf32>
    %951 = vector.broadcast %922 : vector<1x128xf32> to vector<3x128xf32>
    %952 = arith.mulf %950, %951 : vector<3x128xf32>
    %953 = vector.broadcast %15 : vector<1x128xf32> to vector<3x128xf32>
    %954 = arith.mulf %952, %953 : vector<3x128xf32>
    %955 = vector.broadcast %16 : vector<1x128xf32> to vector<3x128xf32>
    %956 = arith.addf %954, %955 : vector<3x128xf32>
    %cst_238 = arith.constant 0.000000e+00 : f32
    %957 = vector.broadcast %cst_238 : f32 to vector<3x128xf32>
    %958 = arith.maximumf %956, %957 : vector<3x128xf32>
    %cst_239 = arith.constant dense<0.000000e+00> : vector<3x64xf32>
    %959 = tpu.matmul %958, %17, %cst_239 {dimension_numbers = #tpu.dot_dimension_numbers<[1], [0], [0], [1], [0, 0, 1, 1], [], []>} : vector<3x128xf32>, vector<128x64xf32>, vector<3x64xf32> -> vector<3x64xf32>
    %960 = vector.broadcast %18 : vector<1x64xf32> to vector<3x64xf32>
    %961 = arith.addf %959, %960 : vector<3x64xf32>
    %cst_240 = arith.constant dense<0.000000e+00> : vector<64xf32>
    %962 = vector.multi_reduction <add>, %935, %cst_240 [0] : vector<3x64xf32> to vector<64xf32>
    %963 = vector.shape_cast %962 : vector<64xf32> to vector<1x64xf32>
    %cst_241 = arith.constant 0.000000e+00 : f32
    %964 = vector.broadcast %cst_241 : f32 to vector<1x64xf32>
    %965 = arith.addf %964, %963 : vector<1x64xf32>
    %cst_242 = arith.constant dense<0.000000e+00> : vector<64xf32>
    %966 = vector.multi_reduction <add>, %948, %cst_242 [0] : vector<3x64xf32> to vector<64xf32>
    %967 = vector.shape_cast %966 : vector<64xf32> to vector<1x64xf32>
    %968 = arith.addf %965, %967 : vector<1x64xf32>
    %cst_243 = arith.constant dense<0.000000e+00> : vector<64xf32>
    %969 = vector.multi_reduction <add>, %961, %cst_243 [0] : vector<3x64xf32> to vector<64xf32>
    %970 = vector.shape_cast %969 : vector<64xf32> to vector<1x64xf32>
    %971 = arith.addf %968, %970 : vector<1x64xf32>
    %cst_244 = arith.constant 9.000000e+00 : f32
    %972 = vector.broadcast %cst_244 : f32 to vector<1x64xf32>
    %973 = arith.divf %971, %972 : vector<1x64xf32>
    %974 = vector.broadcast %973 : vector<1x64xf32> to vector<3x64xf32>
    %975 = arith.subf %935, %974 : vector<3x64xf32>
    %976 = arith.mulf %975, %975 : vector<3x64xf32>
    %cst_245 = arith.constant dense<0.000000e+00> : vector<64xf32>
    %977 = vector.multi_reduction <add>, %976, %cst_245 [0] : vector<3x64xf32> to vector<64xf32>
    %978 = vector.shape_cast %977 : vector<64xf32> to vector<1x64xf32>
    %cst_246 = arith.constant 0.000000e+00 : f32
    %979 = vector.broadcast %cst_246 : f32 to vector<1x64xf32>
    %980 = arith.addf %979, %978 : vector<1x64xf32>
    %981 = vector.broadcast %973 : vector<1x64xf32> to vector<3x64xf32>
    %982 = arith.subf %948, %981 : vector<3x64xf32>
    %983 = arith.mulf %982, %982 : vector<3x64xf32>
    %cst_247 = arith.constant dense<0.000000e+00> : vector<64xf32>
    %984 = vector.multi_reduction <add>, %983, %cst_247 [0] : vector<3x64xf32> to vector<64xf32>
    %985 = vector.shape_cast %984 : vector<64xf32> to vector<1x64xf32>
    %986 = arith.addf %980, %985 : vector<1x64xf32>
    %987 = vector.broadcast %973 : vector<1x64xf32> to vector<3x64xf32>
    %988 = arith.subf %961, %987 : vector<3x64xf32>
    %989 = arith.mulf %988, %988 : vector<3x64xf32>
    %cst_248 = arith.constant dense<0.000000e+00> : vector<64xf32>
    %990 = vector.multi_reduction <add>, %989, %cst_248 [0] : vector<3x64xf32> to vector<64xf32>
    %991 = vector.shape_cast %990 : vector<64xf32> to vector<1x64xf32>
    %992 = arith.addf %986, %991 : vector<1x64xf32>
    %cst_249 = arith.constant 9.000000e+00 : f32
    %993 = vector.broadcast %cst_249 : f32 to vector<1x64xf32>
    %994 = arith.divf %992, %993 : vector<1x64xf32>
    %cst_250 = arith.constant 9.99999974E-6 : f32
    %995 = vector.broadcast %cst_250 : f32 to vector<1x64xf32>
    %996 = arith.addf %994, %995 : vector<1x64xf32>
    %997 = math.rsqrt %996 : vector<1x64xf32>
    %998 = vector.broadcast %973 : vector<1x64xf32> to vector<3x64xf32>
    %999 = arith.subf %935, %998 : vector<3x64xf32>
    %1000 = vector.broadcast %997 : vector<1x64xf32> to vector<3x64xf32>
    %1001 = arith.mulf %999, %1000 : vector<3x64xf32>
    %1002 = vector.broadcast %19 : vector<1x64xf32> to vector<3x64xf32>
    %1003 = arith.mulf %1001, %1002 : vector<3x64xf32>
    %1004 = vector.broadcast %20 : vector<1x64xf32> to vector<3x64xf32>
    %1005 = arith.addf %1003, %1004 : vector<3x64xf32>
    %cst_251 = arith.constant 0.000000e+00 : f32
    %1006 = vector.broadcast %cst_251 : f32 to vector<3x64xf32>
    %1007 = arith.maximumf %1005, %1006 : vector<3x64xf32>
    %cst_252 = arith.constant dense<0xFF800000> : vector<64xf32>
    %1008 = vector.multi_reduction <maximumf>, %1007, %cst_252 [0] : vector<3x64xf32> to vector<64xf32>
    %1009 = vector.shape_cast %1008 : vector<64xf32> to vector<1x64xf32>
    %c3_253 = arith.constant 3 : index
    %c0_254 = arith.constant 0 : index
    %1010 = vector.load %arg33[%c3_253, %c0_254] : memref<6x64xf32, #tpu.memory_space<vmem>>, vector<1x64xf32>
    tpu.vector_store %arg33[%c3_253, %c0_254], %1009 {strides = array<i32>} : memref<6x64xf32, #tpu.memory_space<vmem>>, vector<1x64xf32>,
    %1011 = vector.broadcast %973 : vector<1x64xf32> to vector<3x64xf32>
    %1012 = arith.subf %948, %1011 : vector<3x64xf32>
    %1013 = vector.broadcast %997 : vector<1x64xf32> to vector<3x64xf32>
    %1014 = arith.mulf %1012, %1013 : vector<3x64xf32>
    %1015 = vector.broadcast %19 : vector<1x64xf32> to vector<3x64xf32>
    %1016 = arith.mulf %1014, %1015 : vector<3x64xf32>
    %1017 = vector.broadcast %20 : vector<1x64xf32> to vector<3x64xf32>
    %1018 = arith.addf %1016, %1017 : vector<3x64xf32>
    %cst_255 = arith.constant 0.000000e+00 : f32
    %1019 = vector.broadcast %cst_255 : f32 to vector<3x64xf32>
    %1020 = arith.maximumf %1018, %1019 : vector<3x64xf32>
    %cst_256 = arith.constant dense<0xFF800000> : vector<64xf32>
    %1021 = vector.multi_reduction <maximumf>, %1020, %cst_256 [0] : vector<3x64xf32> to vector<64xf32>
    %1022 = vector.shape_cast %1021 : vector<64xf32> to vector<1x64xf32>
    %c4_257 = arith.constant 4 : index
    %c0_258 = arith.constant 0 : index
    %1023 = vector.load %arg33[%c4_257, %c0_258] : memref<6x64xf32, #tpu.memory_space<vmem>>, vector<1x64xf32>
    tpu.vector_store %arg33[%c4_257, %c0_258], %1022 {strides = array<i32>} : memref<6x64xf32, #tpu.memory_space<vmem>>, vector<1x64xf32>,
    %1024 = vector.broadcast %973 : vector<1x64xf32> to vector<3x64xf32>
    %1025 = arith.subf %961, %1024 : vector<3x64xf32>
    %1026 = vector.broadcast %997 : vector<1x64xf32> to vector<3x64xf32>
    %1027 = arith.mulf %1025, %1026 : vector<3x64xf32>
    %1028 = vector.broadcast %19 : vector<1x64xf32> to vector<3x64xf32>
    %1029 = arith.mulf %1027, %1028 : vector<3x64xf32>
    %1030 = vector.broadcast %20 : vector<1x64xf32> to vector<3x64xf32>
    %1031 = arith.addf %1029, %1030 : vector<3x64xf32>
    %cst_259 = arith.constant 0.000000e+00 : f32
    %1032 = vector.broadcast %cst_259 : f32 to vector<3x64xf32>
    %1033 = arith.maximumf %1031, %1032 : vector<3x64xf32>
    %cst_260 = arith.constant dense<0xFF800000> : vector<64xf32>
    %1034 = vector.multi_reduction <maximumf>, %1033, %cst_260 [0] : vector<3x64xf32> to vector<64xf32>
    %1035 = vector.shape_cast %1034 : vector<64xf32> to vector<1x64xf32>
    %c5_261 = arith.constant 5 : index
    %c0_262 = arith.constant 0 : index
    %1036 = vector.load %arg33[%c5_261, %c0_262] : memref<6x64xf32, #tpu.memory_space<vmem>>, vector<1x64xf32>
    tpu.vector_store %arg33[%c5_261, %c0_262], %1035 {strides = array<i32>} : memref<6x64xf32, #tpu.memory_space<vmem>>, vector<1x64xf32>,
    %c0_263 = arith.constant 0 : index
    %c0_264 = arith.constant 0 : index
    %1037 = vector.load %arg33[%c0_263, %c0_264] : memref<6x64xf32, #tpu.memory_space<vmem>>, vector<6x64xf32>
    %cst_265 = arith.constant dense<0.000000e+00> : vector<6x64xf32>
    %1038 = tpu.matmul %606, %21, %cst_265 {dimension_numbers = #tpu.dot_dimension_numbers<[1], [0], [0], [1], [0, 0, 1, 1], [], []>} : vector<6x32xf32>, vector<32x64xf32>, vector<6x64xf32> -> vector<6x64xf32>
    %cst_266 = arith.constant dense<0.000000e+00> : vector<6x64xf32>
    %1039 = tpu.matmul %1037, %22, %cst_266 {dimension_numbers = #tpu.dot_dimension_numbers<[1], [0], [0], [1], [0, 0, 1, 1], [], []>} : vector<6x64xf32>, vector<64x64xf32>, vector<6x64xf32> -> vector<6x64xf32>
    %1040 = arith.addf %1038, %1039 : vector<6x64xf32>
    %1041 = vector.broadcast %23 : vector<1x64xf32> to vector<6x64xf32>
    %1042 = arith.addf %1040, %1041 : vector<6x64xf32>
    %cst_267 = arith.constant dense<0.000000e+00> : vector<64xf32>
    %1043 = vector.multi_reduction <add>, %1042, %cst_267 [0] : vector<6x64xf32> to vector<64xf32>
    %1044 = vector.shape_cast %1043 : vector<64xf32> to vector<1x64xf32>
    %cst_268 = arith.constant 6.000000e+00 : f32
    %1045 = vector.broadcast %cst_268 : f32 to vector<1x64xf32>
    %1046 = arith.divf %1044, %1045 : vector<1x64xf32>
    %1047 = vector.broadcast %1046 : vector<1x64xf32> to vector<6x64xf32>
    %1048 = arith.subf %1042, %1047 : vector<6x64xf32>
    %1049 = arith.mulf %1048, %1048 : vector<6x64xf32>
    %cst_269 = arith.constant dense<0.000000e+00> : vector<64xf32>
    %1050 = vector.multi_reduction <add>, %1049, %cst_269 [0] : vector<6x64xf32> to vector<64xf32>
    %1051 = vector.shape_cast %1050 : vector<64xf32> to vector<1x64xf32>
    %cst_270 = arith.constant 6.000000e+00 : f32
    %1052 = vector.broadcast %cst_270 : f32 to vector<1x64xf32>
    %1053 = arith.divf %1051, %1052 : vector<1x64xf32>
    %1054 = vector.broadcast %1046 : vector<1x64xf32> to vector<6x64xf32>
    %1055 = arith.subf %1042, %1054 : vector<6x64xf32>
    %cst_271 = arith.constant 9.99999974E-6 : f32
    %1056 = vector.broadcast %cst_271 : f32 to vector<1x64xf32>
    %1057 = arith.addf %1053, %1056 : vector<1x64xf32>
    %1058 = math.rsqrt %1057 : vector<1x64xf32>
    %1059 = vector.broadcast %1058 : vector<1x64xf32> to vector<6x64xf32>
    %1060 = arith.mulf %1055, %1059 : vector<6x64xf32>
    %1061 = vector.broadcast %24 : vector<1x64xf32> to vector<6x64xf32>
    %1062 = arith.mulf %1060, %1061 : vector<6x64xf32>
    %1063 = vector.broadcast %25 : vector<1x64xf32> to vector<6x64xf32>
    %1064 = arith.addf %1062, %1063 : vector<6x64xf32>
    %cst_272 = arith.constant 0.000000e+00 : f32
    %1065 = vector.broadcast %cst_272 : f32 to vector<6x64xf32>
    %1066 = arith.maximumf %1064, %1065 : vector<6x64xf32>
    %cst_273 = arith.constant dense<0.000000e+00> : vector<6x32xf32>
    %1067 = tpu.matmul %1066, %26, %cst_273 {dimension_numbers = #tpu.dot_dimension_numbers<[1], [0], [0], [1], [0, 0, 1, 1], [], []>} : vector<6x64xf32>, vector<64x32xf32>, vector<6x32xf32> -> vector<6x32xf32>
    %1068 = vector.broadcast %27 : vector<1x32xf32> to vector<6x32xf32>
    %1069 = arith.addf %1067, %1068 : vector<6x32xf32>
    %cst_274 = arith.constant dense<0.000000e+00> : vector<32xf32>
    %1070 = vector.multi_reduction <add>, %1069, %cst_274 [0] : vector<6x32xf32> to vector<32xf32>
    %1071 = vector.shape_cast %1070 : vector<32xf32> to vector<1x32xf32>
    %cst_275 = arith.constant 6.000000e+00 : f32
    %1072 = vector.broadcast %cst_275 : f32 to vector<1x32xf32>
    %1073 = arith.divf %1071, %1072 : vector<1x32xf32>
    %1074 = vector.broadcast %1073 : vector<1x32xf32> to vector<6x32xf32>
    %1075 = arith.subf %1069, %1074 : vector<6x32xf32>
    %1076 = arith.mulf %1075, %1075 : vector<6x32xf32>
    %cst_276 = arith.constant dense<0.000000e+00> : vector<32xf32>
    %1077 = vector.multi_reduction <add>, %1076, %cst_276 [0] : vector<6x32xf32> to vector<32xf32>
    %1078 = vector.shape_cast %1077 : vector<32xf32> to vector<1x32xf32>
    %cst_277 = arith.constant 6.000000e+00 : f32
    %1079 = vector.broadcast %cst_277 : f32 to vector<1x32xf32>
    %1080 = arith.divf %1078, %1079 : vector<1x32xf32>
    %1081 = vector.broadcast %1073 : vector<1x32xf32> to vector<6x32xf32>
    %1082 = arith.subf %1069, %1081 : vector<6x32xf32>
    %cst_278 = arith.constant 9.99999974E-6 : f32
    %1083 = vector.broadcast %cst_278 : f32 to vector<1x32xf32>
    %1084 = arith.addf %1080, %1083 : vector<1x32xf32>
    %1085 = math.rsqrt %1084 : vector<1x32xf32>
    %1086 = vector.broadcast %1085 : vector<1x32xf32> to vector<6x32xf32>
    %1087 = arith.mulf %1082, %1086 : vector<6x32xf32>
    %1088 = vector.broadcast %28 : vector<1x32xf32> to vector<6x32xf32>
    %1089 = arith.mulf %1087, %1088 : vector<6x32xf32>
    %1090 = vector.broadcast %29 : vector<1x32xf32> to vector<6x32xf32>
    %1091 = arith.addf %1089, %1090 : vector<6x32xf32>
    %cst_279 = arith.constant 0.000000e+00 : f32
    %1092 = vector.broadcast %cst_279 : f32 to vector<6x32xf32>
    %1093 = arith.maximumf %1091, %1092 : vector<6x32xf32>
    %1094 = vector.extract_strided_slice %609 {offsets = [0, 0], sizes = [6, 1], strides = [1, 1]} : vector<6x2xf32> to vector<6x1xf32>
    %1095 = vector.extract_strided_slice %3 {offsets = [0, 0], sizes = [1, 16], strides = [1, 1]} : vector<2x16xf32> to vector<1x16xf32>
    %1096 = vector.broadcast %1094 : vector<6x1xf32> to vector<6x16xf32>
    %1097 = vector.broadcast %1095 : vector<1x16xf32> to vector<6x16xf32>
    %1098 = arith.mulf %1096, %1097 : vector<6x16xf32>
    %1099 = vector.extract_strided_slice %609 {offsets = [0, 1], sizes = [6, 1], strides = [1, 1]} : vector<6x2xf32> to vector<6x1xf32>
    %1100 = vector.extract_strided_slice %3 {offsets = [1, 0], sizes = [1, 16], strides = [1, 1]} : vector<2x16xf32> to vector<1x16xf32>
    %1101 = vector.broadcast %1099 : vector<6x1xf32> to vector<6x16xf32>
    %1102 = vector.broadcast %1100 : vector<1x16xf32> to vector<6x16xf32>
    %1103 = arith.mulf %1101, %1102 : vector<6x16xf32>
    %1104 = arith.addf %1098, %1103 : vector<6x16xf32>
    %1105 = vector.broadcast %4 : vector<1x16xf32> to vector<6x16xf32>
    %1106 = arith.addf %1104, %1105 : vector<6x16xf32>
    %c1_280 = arith.constant 1 : index
    %c0_281 = arith.constant 0 : index
    %c0_282 = arith.constant 0 : index
    %1107 = vector.load %arg31[%c1_280, %c0_281, %c0_282] : memref<3x6x2xf32, #tpu.memory_space<vmem>>, vector<1x6x2xf32>
    %1108 = vector.shape_cast %1107 : vector<1x6x2xf32> to vector<6x2xf32>
    %1109 = vector.shape_cast %609 : vector<6x2xf32> to vector<1x6x2xf32>
    tpu.vector_store %arg31[%c1_280, %c0_281, %c0_282], %1109 {strides = array<i32>} : memref<3x6x2xf32, #tpu.memory_space<vmem>>, vector<1x6x2xf32>,
    %cst_283 = arith.constant dense<0.000000e+00> : vector<6x128xf32>
    %1110 = tpu.matmul %1106, %7, %cst_283 {dimension_numbers = #tpu.dot_dimension_numbers<[1], [0], [0], [1], [0, 0, 1, 1], [], []>} : vector<6x16xf32>, vector<16x128xf32>, vector<6x128xf32> -> vector<6x128xf32>
    %cst_284 = arith.constant dense<0.000000e+00> : vector<6x128xf32>
    %1111 = tpu.matmul %1093, %8, %cst_284 {dimension_numbers = #tpu.dot_dimension_numbers<[1], [0], [0], [1], [0, 0, 1, 1], [], []>} : vector<6x32xf32>, vector<32x128xf32>, vector<6x128xf32> -> vector<6x128xf32>
    %1112 = arith.addf %1110, %1111 : vector<6x128xf32>
    %1113 = vector.broadcast %9 : vector<1x128xf32> to vector<6x128xf32>
    %1114 = arith.addf %1112, %1113 : vector<6x128xf32>
    %1115 = vector.extract_strided_slice %1114 {offsets = [0, 0], sizes = [6, 32], strides = [1, 1]} : vector<6x128xf32> to vector<6x32xf32>
    %1116 = arith.negf %1115 : vector<6x32xf32>
    %1117 = math.exp %1116 : vector<6x32xf32>
    %cst_285 = arith.constant 1.000000e+00 : f32
    %1118 = vector.broadcast %cst_285 : f32 to vector<6x32xf32>
    %1119 = arith.addf %1118, %1117 : vector<6x32xf32>
    %1120 = arith.divf %1118, %1119 : vector<6x32xf32>
    %1121 = vector.extract_strided_slice %1114 {offsets = [0, 32], sizes = [6, 32], strides = [1, 1]} : vector<6x128xf32> to vector<6x32xf32>
    %1122 = arith.negf %1121 : vector<6x32xf32>
    %1123 = math.exp %1122 : vector<6x32xf32>
    %cst_286 = arith.constant 1.000000e+00 : f32
    %1124 = vector.broadcast %cst_286 : f32 to vector<6x32xf32>
    %1125 = arith.addf %1124, %1123 : vector<6x32xf32>
    %1126 = arith.divf %1124, %1125 : vector<6x32xf32>
    %1127 = vector.extract_strided_slice %1114 {offsets = [0, 64], sizes = [6, 32], strides = [1, 1]} : vector<6x128xf32> to vector<6x32xf32>
    %1128 = math.tanh %1127 : vector<6x32xf32>
    %1129 = vector.extract_strided_slice %1114 {offsets = [0, 96], sizes = [6, 32], strides = [1, 1]} : vector<6x128xf32> to vector<6x32xf32>
    %1130 = arith.negf %1129 : vector<6x32xf32>
    %1131 = math.exp %1130 : vector<6x32xf32>
    %cst_287 = arith.constant 1.000000e+00 : f32
    %1132 = vector.broadcast %cst_287 : f32 to vector<6x32xf32>
    %1133 = arith.addf %1132, %1131 : vector<6x32xf32>
    %1134 = arith.divf %1132, %1133 : vector<6x32xf32>
    %1135 = arith.mulf %1126, %604 : vector<6x32xf32>
    %1136 = arith.mulf %1120, %1128 : vector<6x32xf32>
    %1137 = arith.addf %1135, %1136 : vector<6x32xf32>
    %1138 = math.tanh %1137 : vector<6x32xf32>
    %1139 = arith.mulf %1134, %1138 : vector<6x32xf32>
    %cst_288 = arith.constant dense<0.000000e+00> : vector<6x2xf32>
    %1140 = tpu.matmul %1139, %5, %cst_288 {dimension_numbers = #tpu.dot_dimension_numbers<[1], [0], [0], [1], [0, 0, 1, 1], [], []>} : vector<6x32xf32>, vector<32x2xf32>, vector<6x2xf32> -> vector<6x2xf32>
    %1141 = vector.broadcast %6 : vector<1x2xf32> to vector<6x2xf32>
    %1142 = arith.addf %1140, %1141 : vector<6x2xf32>
    %1143 = arith.addf %1142, %610 : vector<6x2xf32>
    %1144 = vector.extract_strided_slice %1139 {offsets = [0, 0], sizes = [3, 32], strides = [1, 1]} : vector<6x32xf32> to vector<3x32xf32>
    %1145 = vector.extract_strided_slice %1143 {offsets = [0, 0], sizes = [3, 2], strides = [1, 1]} : vector<6x2xf32> to vector<3x2xf32>
    %cst_289 = arith.constant dense<0.000000e+00> : vector<3x128xf32>
    %1146 = tpu.matmul %1144, %13, %cst_289 {dimension_numbers = #tpu.dot_dimension_numbers<[1], [0], [0], [1], [0, 0, 1, 1], [], []>} : vector<3x32xf32>, vector<32x128xf32>, vector<3x128xf32> -> vector<3x128xf32>
    %1147 = vector.extract_strided_slice %1145 {offsets = [0, 0], sizes = [1, 2], strides = [1, 1]} : vector<3x2xf32> to vector<1x2xf32>
    %1148 = vector.broadcast %1147 : vector<1x2xf32> to vector<3x2xf32>
    %1149 = arith.subf %1145, %1148 : vector<3x2xf32>
    %1150 = vector.extract_strided_slice %1149 {offsets = [0, 0], sizes = [3, 1], strides = [1, 1]} : vector<3x2xf32> to vector<3x1xf32>
    %1151 = vector.extract_strided_slice %10 {offsets = [0, 0], sizes = [1, 16], strides = [1, 1]} : vector<2x16xf32> to vector<1x16xf32>
    %1152 = vector.broadcast %1150 : vector<3x1xf32> to vector<3x16xf32>
    %1153 = vector.broadcast %1151 : vector<1x16xf32> to vector<3x16xf32>
    %1154 = arith.mulf %1152, %1153 : vector<3x16xf32>
    %1155 = vector.extract_strided_slice %1149 {offsets = [0, 1], sizes = [3, 1], strides = [1, 1]} : vector<3x2xf32> to vector<3x1xf32>
    %1156 = vector.extract_strided_slice %10 {offsets = [1, 0], sizes = [1, 16], strides = [1, 1]} : vector<2x16xf32> to vector<1x16xf32>
    %1157 = vector.broadcast %1155 : vector<3x1xf32> to vector<3x16xf32>
    %1158 = vector.broadcast %1156 : vector<1x16xf32> to vector<3x16xf32>
    %1159 = arith.mulf %1157, %1158 : vector<3x16xf32>
    %1160 = arith.addf %1154, %1159 : vector<3x16xf32>
    %1161 = vector.broadcast %11 : vector<1x16xf32> to vector<3x16xf32>
    %1162 = arith.addf %1160, %1161 : vector<3x16xf32>
    %cst_290 = arith.constant dense<0.000000e+00> : vector<3x128xf32>
    %1163 = tpu.matmul %1162, %12, %cst_290 {dimension_numbers = #tpu.dot_dimension_numbers<[1], [0], [0], [1], [0, 0, 1, 1], [], []>} : vector<3x16xf32>, vector<16x128xf32>, vector<3x128xf32> -> vector<3x128xf32>
    %1164 = arith.addf %1163, %1146 : vector<3x128xf32>
    %1165 = vector.broadcast %14 : vector<1x128xf32> to vector<3x128xf32>
    %1166 = arith.addf %1164, %1165 : vector<3x128xf32>
    %1167 = vector.extract_strided_slice %1145 {offsets = [1, 0], sizes = [1, 2], strides = [1, 1]} : vector<3x2xf32> to vector<1x2xf32>
    %1168 = vector.broadcast %1167 : vector<1x2xf32> to vector<3x2xf32>
    %1169 = arith.subf %1145, %1168 : vector<3x2xf32>
    %1170 = vector.extract_strided_slice %1169 {offsets = [0, 0], sizes = [3, 1], strides = [1, 1]} : vector<3x2xf32> to vector<3x1xf32>
    %1171 = vector.extract_strided_slice %10 {offsets = [0, 0], sizes = [1, 16], strides = [1, 1]} : vector<2x16xf32> to vector<1x16xf32>
    %1172 = vector.broadcast %1170 : vector<3x1xf32> to vector<3x16xf32>
    %1173 = vector.broadcast %1171 : vector<1x16xf32> to vector<3x16xf32>
    %1174 = arith.mulf %1172, %1173 : vector<3x16xf32>
    %1175 = vector.extract_strided_slice %1169 {offsets = [0, 1], sizes = [3, 1], strides = [1, 1]} : vector<3x2xf32> to vector<3x1xf32>
    %1176 = vector.extract_strided_slice %10 {offsets = [1, 0], sizes = [1, 16], strides = [1, 1]} : vector<2x16xf32> to vector<1x16xf32>
    %1177 = vector.broadcast %1175 : vector<3x1xf32> to vector<3x16xf32>
    %1178 = vector.broadcast %1176 : vector<1x16xf32> to vector<3x16xf32>
    %1179 = arith.mulf %1177, %1178 : vector<3x16xf32>
    %1180 = arith.addf %1174, %1179 : vector<3x16xf32>
    %1181 = vector.broadcast %11 : vector<1x16xf32> to vector<3x16xf32>
    %1182 = arith.addf %1180, %1181 : vector<3x16xf32>
    %cst_291 = arith.constant dense<0.000000e+00> : vector<3x128xf32>
    %1183 = tpu.matmul %1182, %12, %cst_291 {dimension_numbers = #tpu.dot_dimension_numbers<[1], [0], [0], [1], [0, 0, 1, 1], [], []>} : vector<3x16xf32>, vector<16x128xf32>, vector<3x128xf32> -> vector<3x128xf32>
    %1184 = arith.addf %1183, %1146 : vector<3x128xf32>
    %1185 = vector.broadcast %14 : vector<1x128xf32> to vector<3x128xf32>
    %1186 = arith.addf %1184, %1185 : vector<3x128xf32>
    %1187 = vector.extract_strided_slice %1145 {offsets = [2, 0], sizes = [1, 2], strides = [1, 1]} : vector<3x2xf32> to vector<1x2xf32>
    %1188 = vector.broadcast %1187 : vector<1x2xf32> to vector<3x2xf32>
    %1189 = arith.subf %1145, %1188 : vector<3x2xf32>
    %1190 = vector.extract_strided_slice %1189 {offsets = [0, 0], sizes = [3, 1], strides = [1, 1]} : vector<3x2xf32> to vector<3x1xf32>
    %1191 = vector.extract_strided_slice %10 {offsets = [0, 0], sizes = [1, 16], strides = [1, 1]} : vector<2x16xf32> to vector<1x16xf32>
    %1192 = vector.broadcast %1190 : vector<3x1xf32> to vector<3x16xf32>
    %1193 = vector.broadcast %1191 : vector<1x16xf32> to vector<3x16xf32>
    %1194 = arith.mulf %1192, %1193 : vector<3x16xf32>
    %1195 = vector.extract_strided_slice %1189 {offsets = [0, 1], sizes = [3, 1], strides = [1, 1]} : vector<3x2xf32> to vector<3x1xf32>
    %1196 = vector.extract_strided_slice %10 {offsets = [1, 0], sizes = [1, 16], strides = [1, 1]} : vector<2x16xf32> to vector<1x16xf32>
    %1197 = vector.broadcast %1195 : vector<3x1xf32> to vector<3x16xf32>
    %1198 = vector.broadcast %1196 : vector<1x16xf32> to vector<3x16xf32>
    %1199 = arith.mulf %1197, %1198 : vector<3x16xf32>
    %1200 = arith.addf %1194, %1199 : vector<3x16xf32>
    %1201 = vector.broadcast %11 : vector<1x16xf32> to vector<3x16xf32>
    %1202 = arith.addf %1200, %1201 : vector<3x16xf32>
    %cst_292 = arith.constant dense<0.000000e+00> : vector<3x128xf32>
    %1203 = tpu.matmul %1202, %12, %cst_292 {dimension_numbers = #tpu.dot_dimension_numbers<[1], [0], [0], [1], [0, 0, 1, 1], [], []>} : vector<3x16xf32>, vector<16x128xf32>, vector<3x128xf32> -> vector<3x128xf32>
    %1204 = arith.addf %1203, %1146 : vector<3x128xf32>
    %1205 = vector.broadcast %14 : vector<1x128xf32> to vector<3x128xf32>
    %1206 = arith.addf %1204, %1205 : vector<3x128xf32>
    %cst_293 = arith.constant dense<0.000000e+00> : vector<128xf32>
    %1207 = vector.multi_reduction <add>, %1166, %cst_293 [0] : vector<3x128xf32> to vector<128xf32>
    %1208 = vector.shape_cast %1207 : vector<128xf32> to vector<1x128xf32>
    %cst_294 = arith.constant 0.000000e+00 : f32
    %1209 = vector.broadcast %cst_294 : f32 to vector<1x128xf32>
    %1210 = arith.addf %1209, %1208 : vector<1x128xf32>
    %cst_295 = arith.constant dense<0.000000e+00> : vector<128xf32>
    %1211 = vector.multi_reduction <add>, %1186, %cst_295 [0] : vector<3x128xf32> to vector<128xf32>
    %1212 = vector.shape_cast %1211 : vector<128xf32> to vector<1x128xf32>
    %1213 = arith.addf %1210, %1212 : vector<1x128xf32>
    %cst_296 = arith.constant dense<0.000000e+00> : vector<128xf32>
    %1214 = vector.multi_reduction <add>, %1206, %cst_296 [0] : vector<3x128xf32> to vector<128xf32>
    %1215 = vector.shape_cast %1214 : vector<128xf32> to vector<1x128xf32>
    %1216 = arith.addf %1213, %1215 : vector<1x128xf32>
    %cst_297 = arith.constant 9.000000e+00 : f32
    %1217 = vector.broadcast %cst_297 : f32 to vector<1x128xf32>
    %1218 = arith.divf %1216, %1217 : vector<1x128xf32>
    %1219 = vector.broadcast %1218 : vector<1x128xf32> to vector<3x128xf32>
    %1220 = arith.subf %1166, %1219 : vector<3x128xf32>
    %1221 = arith.mulf %1220, %1220 : vector<3x128xf32>
    %cst_298 = arith.constant dense<0.000000e+00> : vector<128xf32>
    %1222 = vector.multi_reduction <add>, %1221, %cst_298 [0] : vector<3x128xf32> to vector<128xf32>
    %1223 = vector.shape_cast %1222 : vector<128xf32> to vector<1x128xf32>
    %cst_299 = arith.constant 0.000000e+00 : f32
    %1224 = vector.broadcast %cst_299 : f32 to vector<1x128xf32>
    %1225 = arith.addf %1224, %1223 : vector<1x128xf32>
    %1226 = vector.broadcast %1218 : vector<1x128xf32> to vector<3x128xf32>
    %1227 = arith.subf %1186, %1226 : vector<3x128xf32>
    %1228 = arith.mulf %1227, %1227 : vector<3x128xf32>
    %cst_300 = arith.constant dense<0.000000e+00> : vector<128xf32>
    %1229 = vector.multi_reduction <add>, %1228, %cst_300 [0] : vector<3x128xf32> to vector<128xf32>
    %1230 = vector.shape_cast %1229 : vector<128xf32> to vector<1x128xf32>
    %1231 = arith.addf %1225, %1230 : vector<1x128xf32>
    %1232 = vector.broadcast %1218 : vector<1x128xf32> to vector<3x128xf32>
    %1233 = arith.subf %1206, %1232 : vector<3x128xf32>
    %1234 = arith.mulf %1233, %1233 : vector<3x128xf32>
    %cst_301 = arith.constant dense<0.000000e+00> : vector<128xf32>
    %1235 = vector.multi_reduction <add>, %1234, %cst_301 [0] : vector<3x128xf32> to vector<128xf32>
    %1236 = vector.shape_cast %1235 : vector<128xf32> to vector<1x128xf32>
    %1237 = arith.addf %1231, %1236 : vector<1x128xf32>
    %cst_302 = arith.constant 9.000000e+00 : f32
    %1238 = vector.broadcast %cst_302 : f32 to vector<1x128xf32>
    %1239 = arith.divf %1237, %1238 : vector<1x128xf32>
    %cst_303 = arith.constant 9.99999974E-6 : f32
    %1240 = vector.broadcast %cst_303 : f32 to vector<1x128xf32>
    %1241 = arith.addf %1239, %1240 : vector<1x128xf32>
    %1242 = math.rsqrt %1241 : vector<1x128xf32>
    %1243 = vector.broadcast %1218 : vector<1x128xf32> to vector<3x128xf32>
    %1244 = arith.subf %1166, %1243 : vector<3x128xf32>
    %1245 = vector.broadcast %1242 : vector<1x128xf32> to vector<3x128xf32>
    %1246 = arith.mulf %1244, %1245 : vector<3x128xf32>
    %1247 = vector.broadcast %15 : vector<1x128xf32> to vector<3x128xf32>
    %1248 = arith.mulf %1246, %1247 : vector<3x128xf32>
    %1249 = vector.broadcast %16 : vector<1x128xf32> to vector<3x128xf32>
    %1250 = arith.addf %1248, %1249 : vector<3x128xf32>
    %cst_304 = arith.constant 0.000000e+00 : f32
    %1251 = vector.broadcast %cst_304 : f32 to vector<3x128xf32>
    %1252 = arith.maximumf %1250, %1251 : vector<3x128xf32>
    %cst_305 = arith.constant dense<0.000000e+00> : vector<3x64xf32>
    %1253 = tpu.matmul %1252, %17, %cst_305 {dimension_numbers = #tpu.dot_dimension_numbers<[1], [0], [0], [1], [0, 0, 1, 1], [], []>} : vector<3x128xf32>, vector<128x64xf32>, vector<3x64xf32> -> vector<3x64xf32>
    %1254 = vector.broadcast %18 : vector<1x64xf32> to vector<3x64xf32>
    %1255 = arith.addf %1253, %1254 : vector<3x64xf32>
    %1256 = vector.broadcast %1218 : vector<1x128xf32> to vector<3x128xf32>
    %1257 = arith.subf %1186, %1256 : vector<3x128xf32>
    %1258 = vector.broadcast %1242 : vector<1x128xf32> to vector<3x128xf32>
    %1259 = arith.mulf %1257, %1258 : vector<3x128xf32>
    %1260 = vector.broadcast %15 : vector<1x128xf32> to vector<3x128xf32>
    %1261 = arith.mulf %1259, %1260 : vector<3x128xf32>
    %1262 = vector.broadcast %16 : vector<1x128xf32> to vector<3x128xf32>
    %1263 = arith.addf %1261, %1262 : vector<3x128xf32>
    %cst_306 = arith.constant 0.000000e+00 : f32
    %1264 = vector.broadcast %cst_306 : f32 to vector<3x128xf32>
    %1265 = arith.maximumf %1263, %1264 : vector<3x128xf32>
    %cst_307 = arith.constant dense<0.000000e+00> : vector<3x64xf32>
    %1266 = tpu.matmul %1265, %17, %cst_307 {dimension_numbers = #tpu.dot_dimension_numbers<[1], [0], [0], [1], [0, 0, 1, 1], [], []>} : vector<3x128xf32>, vector<128x64xf32>, vector<3x64xf32> -> vector<3x64xf32>
    %1267 = vector.broadcast %18 : vector<1x64xf32> to vector<3x64xf32>
    %1268 = arith.addf %1266, %1267 : vector<3x64xf32>
    %1269 = vector.broadcast %1218 : vector<1x128xf32> to vector<3x128xf32>
    %1270 = arith.subf %1206, %1269 : vector<3x128xf32>
    %1271 = vector.broadcast %1242 : vector<1x128xf32> to vector<3x128xf32>
    %1272 = arith.mulf %1270, %1271 : vector<3x128xf32>
    %1273 = vector.broadcast %15 : vector<1x128xf32> to vector<3x128xf32>
    %1274 = arith.mulf %1272, %1273 : vector<3x128xf32>
    %1275 = vector.broadcast %16 : vector<1x128xf32> to vector<3x128xf32>
    %1276 = arith.addf %1274, %1275 : vector<3x128xf32>
    %cst_308 = arith.constant 0.000000e+00 : f32
    %1277 = vector.broadcast %cst_308 : f32 to vector<3x128xf32>
    %1278 = arith.maximumf %1276, %1277 : vector<3x128xf32>
    %cst_309 = arith.constant dense<0.000000e+00> : vector<3x64xf32>
    %1279 = tpu.matmul %1278, %17, %cst_309 {dimension_numbers = #tpu.dot_dimension_numbers<[1], [0], [0], [1], [0, 0, 1, 1], [], []>} : vector<3x128xf32>, vector<128x64xf32>, vector<3x64xf32> -> vector<3x64xf32>
    %1280 = vector.broadcast %18 : vector<1x64xf32> to vector<3x64xf32>
    %1281 = arith.addf %1279, %1280 : vector<3x64xf32>
    %cst_310 = arith.constant dense<0.000000e+00> : vector<64xf32>
    %1282 = vector.multi_reduction <add>, %1255, %cst_310 [0] : vector<3x64xf32> to vector<64xf32>
    %1283 = vector.shape_cast %1282 : vector<64xf32> to vector<1x64xf32>
    %cst_311 = arith.constant 0.000000e+00 : f32
    %1284 = vector.broadcast %cst_311 : f32 to vector<1x64xf32>
    %1285 = arith.addf %1284, %1283 : vector<1x64xf32>
    %cst_312 = arith.constant dense<0.000000e+00> : vector<64xf32>
    %1286 = vector.multi_reduction <add>, %1268, %cst_312 [0] : vector<3x64xf32> to vector<64xf32>
    %1287 = vector.shape_cast %1286 : vector<64xf32> to vector<1x64xf32>
    %1288 = arith.addf %1285, %1287 : vector<1x64xf32>
    %cst_313 = arith.constant dense<0.000000e+00> : vector<64xf32>
    %1289 = vector.multi_reduction <add>, %1281, %cst_313 [0] : vector<3x64xf32> to vector<64xf32>
    %1290 = vector.shape_cast %1289 : vector<64xf32> to vector<1x64xf32>
    %1291 = arith.addf %1288, %1290 : vector<1x64xf32>
    %cst_314 = arith.constant 9.000000e+00 : f32
    %1292 = vector.broadcast %cst_314 : f32 to vector<1x64xf32>
    %1293 = arith.divf %1291, %1292 : vector<1x64xf32>
    %1294 = vector.broadcast %1293 : vector<1x64xf32> to vector<3x64xf32>
    %1295 = arith.subf %1255, %1294 : vector<3x64xf32>
    %1296 = arith.mulf %1295, %1295 : vector<3x64xf32>
    %cst_315 = arith.constant dense<0.000000e+00> : vector<64xf32>
    %1297 = vector.multi_reduction <add>, %1296, %cst_315 [0] : vector<3x64xf32> to vector<64xf32>
    %1298 = vector.shape_cast %1297 : vector<64xf32> to vector<1x64xf32>
    %cst_316 = arith.constant 0.000000e+00 : f32
    %1299 = vector.broadcast %cst_316 : f32 to vector<1x64xf32>
    %1300 = arith.addf %1299, %1298 : vector<1x64xf32>
    %1301 = vector.broadcast %1293 : vector<1x64xf32> to vector<3x64xf32>
    %1302 = arith.subf %1268, %1301 : vector<3x64xf32>
    %1303 = arith.mulf %1302, %1302 : vector<3x64xf32>
    %cst_317 = arith.constant dense<0.000000e+00> : vector<64xf32>
    %1304 = vector.multi_reduction <add>, %1303, %cst_317 [0] : vector<3x64xf32> to vector<64xf32>
    %1305 = vector.shape_cast %1304 : vector<64xf32> to vector<1x64xf32>
    %1306 = arith.addf %1300, %1305 : vector<1x64xf32>
    %1307 = vector.broadcast %1293 : vector<1x64xf32> to vector<3x64xf32>
    %1308 = arith.subf %1281, %1307 : vector<3x64xf32>
    %1309 = arith.mulf %1308, %1308 : vector<3x64xf32>
    %cst_318 = arith.constant dense<0.000000e+00> : vector<64xf32>
    %1310 = vector.multi_reduction <add>, %1309, %cst_318 [0] : vector<3x64xf32> to vector<64xf32>
    %1311 = vector.shape_cast %1310 : vector<64xf32> to vector<1x64xf32>
    %1312 = arith.addf %1306, %1311 : vector<1x64xf32>
    %cst_319 = arith.constant 9.000000e+00 : f32
    %1313 = vector.broadcast %cst_319 : f32 to vector<1x64xf32>
    %1314 = arith.divf %1312, %1313 : vector<1x64xf32>
    %cst_320 = arith.constant 9.99999974E-6 : f32
    %1315 = vector.broadcast %cst_320 : f32 to vector<1x64xf32>
    %1316 = arith.addf %1314, %1315 : vector<1x64xf32>
    %1317 = math.rsqrt %1316 : vector<1x64xf32>
    %1318 = vector.broadcast %1293 : vector<1x64xf32> to vector<3x64xf32>
    %1319 = arith.subf %1255, %1318 : vector<3x64xf32>
    %1320 = vector.broadcast %1317 : vector<1x64xf32> to vector<3x64xf32>
    %1321 = arith.mulf %1319, %1320 : vector<3x64xf32>
    %1322 = vector.broadcast %19 : vector<1x64xf32> to vector<3x64xf32>
    %1323 = arith.mulf %1321, %1322 : vector<3x64xf32>
    %1324 = vector.broadcast %20 : vector<1x64xf32> to vector<3x64xf32>
    %1325 = arith.addf %1323, %1324 : vector<3x64xf32>
    %cst_321 = arith.constant 0.000000e+00 : f32
    %1326 = vector.broadcast %cst_321 : f32 to vector<3x64xf32>
    %1327 = arith.maximumf %1325, %1326 : vector<3x64xf32>
    %cst_322 = arith.constant dense<0xFF800000> : vector<64xf32>
    %1328 = vector.multi_reduction <maximumf>, %1327, %cst_322 [0] : vector<3x64xf32> to vector<64xf32>
    %1329 = vector.shape_cast %1328 : vector<64xf32> to vector<1x64xf32>
    %c0_323 = arith.constant 0 : index
    %c0_324 = arith.constant 0 : index
    %1330 = vector.load %arg33[%c0_323, %c0_324] : memref<6x64xf32, #tpu.memory_space<vmem>>, vector<1x64xf32>
    tpu.vector_store %arg33[%c0_323, %c0_324], %1329 {strides = array<i32>} : memref<6x64xf32, #tpu.memory_space<vmem>>, vector<1x64xf32>,
    %1331 = vector.broadcast %1293 : vector<1x64xf32> to vector<3x64xf32>
    %1332 = arith.subf %1268, %1331 : vector<3x64xf32>
    %1333 = vector.broadcast %1317 : vector<1x64xf32> to vector<3x64xf32>
    %1334 = arith.mulf %1332, %1333 : vector<3x64xf32>
    %1335 = vector.broadcast %19 : vector<1x64xf32> to vector<3x64xf32>
    %1336 = arith.mulf %1334, %1335 : vector<3x64xf32>
    %1337 = vector.broadcast %20 : vector<1x64xf32> to vector<3x64xf32>
    %1338 = arith.addf %1336, %1337 : vector<3x64xf32>
    %cst_325 = arith.constant 0.000000e+00 : f32
    %1339 = vector.broadcast %cst_325 : f32 to vector<3x64xf32>
    %1340 = arith.maximumf %1338, %1339 : vector<3x64xf32>
    %cst_326 = arith.constant dense<0xFF800000> : vector<64xf32>
    %1341 = vector.multi_reduction <maximumf>, %1340, %cst_326 [0] : vector<3x64xf32> to vector<64xf32>
    %1342 = vector.shape_cast %1341 : vector<64xf32> to vector<1x64xf32>
    %c1_327 = arith.constant 1 : index
    %c0_328 = arith.constant 0 : index
    %1343 = vector.load %arg33[%c1_327, %c0_328] : memref<6x64xf32, #tpu.memory_space<vmem>>, vector<1x64xf32>
    tpu.vector_store %arg33[%c1_327, %c0_328], %1342 {strides = array<i32>} : memref<6x64xf32, #tpu.memory_space<vmem>>, vector<1x64xf32>,
    %1344 = vector.broadcast %1293 : vector<1x64xf32> to vector<3x64xf32>
    %1345 = arith.subf %1281, %1344 : vector<3x64xf32>
    %1346 = vector.broadcast %1317 : vector<1x64xf32> to vector<3x64xf32>
    %1347 = arith.mulf %1345, %1346 : vector<3x64xf32>
    %1348 = vector.broadcast %19 : vector<1x64xf32> to vector<3x64xf32>
    %1349 = arith.mulf %1347, %1348 : vector<3x64xf32>
    %1350 = vector.broadcast %20 : vector<1x64xf32> to vector<3x64xf32>
    %1351 = arith.addf %1349, %1350 : vector<3x64xf32>
    %cst_329 = arith.constant 0.000000e+00 : f32
    %1352 = vector.broadcast %cst_329 : f32 to vector<3x64xf32>
    %1353 = arith.maximumf %1351, %1352 : vector<3x64xf32>
    %cst_330 = arith.constant dense<0xFF800000> : vector<64xf32>
    %1354 = vector.multi_reduction <maximumf>, %1353, %cst_330 [0] : vector<3x64xf32> to vector<64xf32>
    %1355 = vector.shape_cast %1354 : vector<64xf32> to vector<1x64xf32>
    %c2_331 = arith.constant 2 : index
    %c0_332 = arith.constant 0 : index
    %1356 = vector.load %arg33[%c2_331, %c0_332] : memref<6x64xf32, #tpu.memory_space<vmem>>, vector<1x64xf32>
    tpu.vector_store %arg33[%c2_331, %c0_332], %1355 {strides = array<i32>} : memref<6x64xf32, #tpu.memory_space<vmem>>, vector<1x64xf32>,
    %1357 = vector.extract_strided_slice %1139 {offsets = [3, 0], sizes = [3, 32], strides = [1, 1]} : vector<6x32xf32> to vector<3x32xf32>
    %1358 = vector.extract_strided_slice %1143 {offsets = [3, 0], sizes = [3, 2], strides = [1, 1]} : vector<6x2xf32> to vector<3x2xf32>
    %cst_333 = arith.constant dense<0.000000e+00> : vector<3x128xf32>
    %1359 = tpu.matmul %1357, %13, %cst_333 {dimension_numbers = #tpu.dot_dimension_numbers<[1], [0], [0], [1], [0, 0, 1, 1], [], []>} : vector<3x32xf32>, vector<32x128xf32>, vector<3x128xf32> -> vector<3x128xf32>
    %1360 = vector.extract_strided_slice %1358 {offsets = [0, 0], sizes = [1, 2], strides = [1, 1]} : vector<3x2xf32> to vector<1x2xf32>
    %1361 = vector.broadcast %1360 : vector<1x2xf32> to vector<3x2xf32>
    %1362 = arith.subf %1358, %1361 : vector<3x2xf32>
    %1363 = vector.extract_strided_slice %1362 {offsets = [0, 0], sizes = [3, 1], strides = [1, 1]} : vector<3x2xf32> to vector<3x1xf32>
    %1364 = vector.extract_strided_slice %10 {offsets = [0, 0], sizes = [1, 16], strides = [1, 1]} : vector<2x16xf32> to vector<1x16xf32>
    %1365 = vector.broadcast %1363 : vector<3x1xf32> to vector<3x16xf32>
    %1366 = vector.broadcast %1364 : vector<1x16xf32> to vector<3x16xf32>
    %1367 = arith.mulf %1365, %1366 : vector<3x16xf32>
    %1368 = vector.extract_strided_slice %1362 {offsets = [0, 1], sizes = [3, 1], strides = [1, 1]} : vector<3x2xf32> to vector<3x1xf32>
    %1369 = vector.extract_strided_slice %10 {offsets = [1, 0], sizes = [1, 16], strides = [1, 1]} : vector<2x16xf32> to vector<1x16xf32>
    %1370 = vector.broadcast %1368 : vector<3x1xf32> to vector<3x16xf32>
    %1371 = vector.broadcast %1369 : vector<1x16xf32> to vector<3x16xf32>
    %1372 = arith.mulf %1370, %1371 : vector<3x16xf32>
    %1373 = arith.addf %1367, %1372 : vector<3x16xf32>
    %1374 = vector.broadcast %11 : vector<1x16xf32> to vector<3x16xf32>
    %1375 = arith.addf %1373, %1374 : vector<3x16xf32>
    %cst_334 = arith.constant dense<0.000000e+00> : vector<3x128xf32>
    %1376 = tpu.matmul %1375, %12, %cst_334 {dimension_numbers = #tpu.dot_dimension_numbers<[1], [0], [0], [1], [0, 0, 1, 1], [], []>} : vector<3x16xf32>, vector<16x128xf32>, vector<3x128xf32> -> vector<3x128xf32>
    %1377 = arith.addf %1376, %1359 : vector<3x128xf32>
    %1378 = vector.broadcast %14 : vector<1x128xf32> to vector<3x128xf32>
    %1379 = arith.addf %1377, %1378 : vector<3x128xf32>
    %1380 = vector.extract_strided_slice %1358 {offsets = [1, 0], sizes = [1, 2], strides = [1, 1]} : vector<3x2xf32> to vector<1x2xf32>
    %1381 = vector.broadcast %1380 : vector<1x2xf32> to vector<3x2xf32>
    %1382 = arith.subf %1358, %1381 : vector<3x2xf32>
    %1383 = vector.extract_strided_slice %1382 {offsets = [0, 0], sizes = [3, 1], strides = [1, 1]} : vector<3x2xf32> to vector<3x1xf32>
    %1384 = vector.extract_strided_slice %10 {offsets = [0, 0], sizes = [1, 16], strides = [1, 1]} : vector<2x16xf32> to vector<1x16xf32>
    %1385 = vector.broadcast %1383 : vector<3x1xf32> to vector<3x16xf32>
    %1386 = vector.broadcast %1384 : vector<1x16xf32> to vector<3x16xf32>
    %1387 = arith.mulf %1385, %1386 : vector<3x16xf32>
    %1388 = vector.extract_strided_slice %1382 {offsets = [0, 1], sizes = [3, 1], strides = [1, 1]} : vector<3x2xf32> to vector<3x1xf32>
    %1389 = vector.extract_strided_slice %10 {offsets = [1, 0], sizes = [1, 16], strides = [1, 1]} : vector<2x16xf32> to vector<1x16xf32>
    %1390 = vector.broadcast %1388 : vector<3x1xf32> to vector<3x16xf32>
    %1391 = vector.broadcast %1389 : vector<1x16xf32> to vector<3x16xf32>
    %1392 = arith.mulf %1390, %1391 : vector<3x16xf32>
    %1393 = arith.addf %1387, %1392 : vector<3x16xf32>
    %1394 = vector.broadcast %11 : vector<1x16xf32> to vector<3x16xf32>
    %1395 = arith.addf %1393, %1394 : vector<3x16xf32>
    %cst_335 = arith.constant dense<0.000000e+00> : vector<3x128xf32>
    %1396 = tpu.matmul %1395, %12, %cst_335 {dimension_numbers = #tpu.dot_dimension_numbers<[1], [0], [0], [1], [0, 0, 1, 1], [], []>} : vector<3x16xf32>, vector<16x128xf32>, vector<3x128xf32> -> vector<3x128xf32>
    %1397 = arith.addf %1396, %1359 : vector<3x128xf32>
    %1398 = vector.broadcast %14 : vector<1x128xf32> to vector<3x128xf32>
    %1399 = arith.addf %1397, %1398 : vector<3x128xf32>
    %1400 = vector.extract_strided_slice %1358 {offsets = [2, 0], sizes = [1, 2], strides = [1, 1]} : vector<3x2xf32> to vector<1x2xf32>
    %1401 = vector.broadcast %1400 : vector<1x2xf32> to vector<3x2xf32>
    %1402 = arith.subf %1358, %1401 : vector<3x2xf32>
    %1403 = vector.extract_strided_slice %1402 {offsets = [0, 0], sizes = [3, 1], strides = [1, 1]} : vector<3x2xf32> to vector<3x1xf32>
    %1404 = vector.extract_strided_slice %10 {offsets = [0, 0], sizes = [1, 16], strides = [1, 1]} : vector<2x16xf32> to vector<1x16xf32>
    %1405 = vector.broadcast %1403 : vector<3x1xf32> to vector<3x16xf32>
    %1406 = vector.broadcast %1404 : vector<1x16xf32> to vector<3x16xf32>
    %1407 = arith.mulf %1405, %1406 : vector<3x16xf32>
    %1408 = vector.extract_strided_slice %1402 {offsets = [0, 1], sizes = [3, 1], strides = [1, 1]} : vector<3x2xf32> to vector<3x1xf32>
    %1409 = vector.extract_strided_slice %10 {offsets = [1, 0], sizes = [1, 16], strides = [1, 1]} : vector<2x16xf32> to vector<1x16xf32>
    %1410 = vector.broadcast %1408 : vector<3x1xf32> to vector<3x16xf32>
    %1411 = vector.broadcast %1409 : vector<1x16xf32> to vector<3x16xf32>
    %1412 = arith.mulf %1410, %1411 : vector<3x16xf32>
    %1413 = arith.addf %1407, %1412 : vector<3x16xf32>
    %1414 = vector.broadcast %11 : vector<1x16xf32> to vector<3x16xf32>
    %1415 = arith.addf %1413, %1414 : vector<3x16xf32>
    %cst_336 = arith.constant dense<0.000000e+00> : vector<3x128xf32>
    %1416 = tpu.matmul %1415, %12, %cst_336 {dimension_numbers = #tpu.dot_dimension_numbers<[1], [0], [0], [1], [0, 0, 1, 1], [], []>} : vector<3x16xf32>, vector<16x128xf32>, vector<3x128xf32> -> vector<3x128xf32>
    %1417 = arith.addf %1416, %1359 : vector<3x128xf32>
    %1418 = vector.broadcast %14 : vector<1x128xf32> to vector<3x128xf32>
    %1419 = arith.addf %1417, %1418 : vector<3x128xf32>
    %cst_337 = arith.constant dense<0.000000e+00> : vector<128xf32>
    %1420 = vector.multi_reduction <add>, %1379, %cst_337 [0] : vector<3x128xf32> to vector<128xf32>
    %1421 = vector.shape_cast %1420 : vector<128xf32> to vector<1x128xf32>
    %cst_338 = arith.constant 0.000000e+00 : f32
    %1422 = vector.broadcast %cst_338 : f32 to vector<1x128xf32>
    %1423 = arith.addf %1422, %1421 : vector<1x128xf32>
    %cst_339 = arith.constant dense<0.000000e+00> : vector<128xf32>
    %1424 = vector.multi_reduction <add>, %1399, %cst_339 [0] : vector<3x128xf32> to vector<128xf32>
    %1425 = vector.shape_cast %1424 : vector<128xf32> to vector<1x128xf32>
    %1426 = arith.addf %1423, %1425 : vector<1x128xf32>
    %cst_340 = arith.constant dense<0.000000e+00> : vector<128xf32>
    %1427 = vector.multi_reduction <add>, %1419, %cst_340 [0] : vector<3x128xf32> to vector<128xf32>
    %1428 = vector.shape_cast %1427 : vector<128xf32> to vector<1x128xf32>
    %1429 = arith.addf %1426, %1428 : vector<1x128xf32>
    %cst_341 = arith.constant 9.000000e+00 : f32
    %1430 = vector.broadcast %cst_341 : f32 to vector<1x128xf32>
    %1431 = arith.divf %1429, %1430 : vector<1x128xf32>
    %1432 = vector.broadcast %1431 : vector<1x128xf32> to vector<3x128xf32>
    %1433 = arith.subf %1379, %1432 : vector<3x128xf32>
    %1434 = arith.mulf %1433, %1433 : vector<3x128xf32>
    %cst_342 = arith.constant dense<0.000000e+00> : vector<128xf32>
    %1435 = vector.multi_reduction <add>, %1434, %cst_342 [0] : vector<3x128xf32> to vector<128xf32>
    %1436 = vector.shape_cast %1435 : vector<128xf32> to vector<1x128xf32>
    %cst_343 = arith.constant 0.000000e+00 : f32
    %1437 = vector.broadcast %cst_343 : f32 to vector<1x128xf32>
    %1438 = arith.addf %1437, %1436 : vector<1x128xf32>
    %1439 = vector.broadcast %1431 : vector<1x128xf32> to vector<3x128xf32>
    %1440 = arith.subf %1399, %1439 : vector<3x128xf32>
    %1441 = arith.mulf %1440, %1440 : vector<3x128xf32>
    %cst_344 = arith.constant dense<0.000000e+00> : vector<128xf32>
    %1442 = vector.multi_reduction <add>, %1441, %cst_344 [0] : vector<3x128xf32> to vector<128xf32>
    %1443 = vector.shape_cast %1442 : vector<128xf32> to vector<1x128xf32>
    %1444 = arith.addf %1438, %1443 : vector<1x128xf32>
    %1445 = vector.broadcast %1431 : vector<1x128xf32> to vector<3x128xf32>
    %1446 = arith.subf %1419, %1445 : vector<3x128xf32>
    %1447 = arith.mulf %1446, %1446 : vector<3x128xf32>
    %cst_345 = arith.constant dense<0.000000e+00> : vector<128xf32>
    %1448 = vector.multi_reduction <add>, %1447, %cst_345 [0] : vector<3x128xf32> to vector<128xf32>
    %1449 = vector.shape_cast %1448 : vector<128xf32> to vector<1x128xf32>
    %1450 = arith.addf %1444, %1449 : vector<1x128xf32>
    %cst_346 = arith.constant 9.000000e+00 : f32
    %1451 = vector.broadcast %cst_346 : f32 to vector<1x128xf32>
    %1452 = arith.divf %1450, %1451 : vector<1x128xf32>
    %cst_347 = arith.constant 9.99999974E-6 : f32
    %1453 = vector.broadcast %cst_347 : f32 to vector<1x128xf32>
    %1454 = arith.addf %1452, %1453 : vector<1x128xf32>
    %1455 = math.rsqrt %1454 : vector<1x128xf32>
    %1456 = vector.broadcast %1431 : vector<1x128xf32> to vector<3x128xf32>
    %1457 = arith.subf %1379, %1456 : vector<3x128xf32>
    %1458 = vector.broadcast %1455 : vector<1x128xf32> to vector<3x128xf32>
    %1459 = arith.mulf %1457, %1458 : vector<3x128xf32>
    %1460 = vector.broadcast %15 : vector<1x128xf32> to vector<3x128xf32>
    %1461 = arith.mulf %1459, %1460 : vector<3x128xf32>
    %1462 = vector.broadcast %16 : vector<1x128xf32> to vector<3x128xf32>
    %1463 = arith.addf %1461, %1462 : vector<3x128xf32>
    %cst_348 = arith.constant 0.000000e+00 : f32
    %1464 = vector.broadcast %cst_348 : f32 to vector<3x128xf32>
    %1465 = arith.maximumf %1463, %1464 : vector<3x128xf32>
    %cst_349 = arith.constant dense<0.000000e+00> : vector<3x64xf32>
    %1466 = tpu.matmul %1465, %17, %cst_349 {dimension_numbers = #tpu.dot_dimension_numbers<[1], [0], [0], [1], [0, 0, 1, 1], [], []>} : vector<3x128xf32>, vector<128x64xf32>, vector<3x64xf32> -> vector<3x64xf32>
    %1467 = vector.broadcast %18 : vector<1x64xf32> to vector<3x64xf32>
    %1468 = arith.addf %1466, %1467 : vector<3x64xf32>
    %1469 = vector.broadcast %1431 : vector<1x128xf32> to vector<3x128xf32>
    %1470 = arith.subf %1399, %1469 : vector<3x128xf32>
    %1471 = vector.broadcast %1455 : vector<1x128xf32> to vector<3x128xf32>
    %1472 = arith.mulf %1470, %1471 : vector<3x128xf32>
    %1473 = vector.broadcast %15 : vector<1x128xf32> to vector<3x128xf32>
    %1474 = arith.mulf %1472, %1473 : vector<3x128xf32>
    %1475 = vector.broadcast %16 : vector<1x128xf32> to vector<3x128xf32>
    %1476 = arith.addf %1474, %1475 : vector<3x128xf32>
    %cst_350 = arith.constant 0.000000e+00 : f32
    %1477 = vector.broadcast %cst_350 : f32 to vector<3x128xf32>
    %1478 = arith.maximumf %1476, %1477 : vector<3x128xf32>
    %cst_351 = arith.constant dense<0.000000e+00> : vector<3x64xf32>
    %1479 = tpu.matmul %1478, %17, %cst_351 {dimension_numbers = #tpu.dot_dimension_numbers<[1], [0], [0], [1], [0, 0, 1, 1], [], []>} : vector<3x128xf32>, vector<128x64xf32>, vector<3x64xf32> -> vector<3x64xf32>
    %1480 = vector.broadcast %18 : vector<1x64xf32> to vector<3x64xf32>
    %1481 = arith.addf %1479, %1480 : vector<3x64xf32>
    %1482 = vector.broadcast %1431 : vector<1x128xf32> to vector<3x128xf32>
    %1483 = arith.subf %1419, %1482 : vector<3x128xf32>
    %1484 = vector.broadcast %1455 : vector<1x128xf32> to vector<3x128xf32>
    %1485 = arith.mulf %1483, %1484 : vector<3x128xf32>
    %1486 = vector.broadcast %15 : vector<1x128xf32> to vector<3x128xf32>
    %1487 = arith.mulf %1485, %1486 : vector<3x128xf32>
    %1488 = vector.broadcast %16 : vector<1x128xf32> to vector<3x128xf32>
    %1489 = arith.addf %1487, %1488 : vector<3x128xf32>
    %cst_352 = arith.constant 0.000000e+00 : f32
    %1490 = vector.broadcast %cst_352 : f32 to vector<3x128xf32>
    %1491 = arith.maximumf %1489, %1490 : vector<3x128xf32>
    %cst_353 = arith.constant dense<0.000000e+00> : vector<3x64xf32>
    %1492 = tpu.matmul %1491, %17, %cst_353 {dimension_numbers = #tpu.dot_dimension_numbers<[1], [0], [0], [1], [0, 0, 1, 1], [], []>} : vector<3x128xf32>, vector<128x64xf32>, vector<3x64xf32> -> vector<3x64xf32>
    %1493 = vector.broadcast %18 : vector<1x64xf32> to vector<3x64xf32>
    %1494 = arith.addf %1492, %1493 : vector<3x64xf32>
    %cst_354 = arith.constant dense<0.000000e+00> : vector<64xf32>
    %1495 = vector.multi_reduction <add>, %1468, %cst_354 [0] : vector<3x64xf32> to vector<64xf32>
    %1496 = vector.shape_cast %1495 : vector<64xf32> to vector<1x64xf32>
    %cst_355 = arith.constant 0.000000e+00 : f32
    %1497 = vector.broadcast %cst_355 : f32 to vector<1x64xf32>
    %1498 = arith.addf %1497, %1496 : vector<1x64xf32>
    %cst_356 = arith.constant dense<0.000000e+00> : vector<64xf32>
    %1499 = vector.multi_reduction <add>, %1481, %cst_356 [0] : vector<3x64xf32> to vector<64xf32>
    %1500 = vector.shape_cast %1499 : vector<64xf32> to vector<1x64xf32>
    %1501 = arith.addf %1498, %1500 : vector<1x64xf32>
    %cst_357 = arith.constant dense<0.000000e+00> : vector<64xf32>
    %1502 = vector.multi_reduction <add>, %1494, %cst_357 [0] : vector<3x64xf32> to vector<64xf32>
    %1503 = vector.shape_cast %1502 : vector<64xf32> to vector<1x64xf32>
    %1504 = arith.addf %1501, %1503 : vector<1x64xf32>
    %cst_358 = arith.constant 9.000000e+00 : f32
    %1505 = vector.broadcast %cst_358 : f32 to vector<1x64xf32>
    %1506 = arith.divf %1504, %1505 : vector<1x64xf32>
    %1507 = vector.broadcast %1506 : vector<1x64xf32> to vector<3x64xf32>
    %1508 = arith.subf %1468, %1507 : vector<3x64xf32>
    %1509 = arith.mulf %1508, %1508 : vector<3x64xf32>
    %cst_359 = arith.constant dense<0.000000e+00> : vector<64xf32>
    %1510 = vector.multi_reduction <add>, %1509, %cst_359 [0] : vector<3x64xf32> to vector<64xf32>
    %1511 = vector.shape_cast %1510 : vector<64xf32> to vector<1x64xf32>
    %cst_360 = arith.constant 0.000000e+00 : f32
    %1512 = vector.broadcast %cst_360 : f32 to vector<1x64xf32>
    %1513 = arith.addf %1512, %1511 : vector<1x64xf32>
    %1514 = vector.broadcast %1506 : vector<1x64xf32> to vector<3x64xf32>
    %1515 = arith.subf %1481, %1514 : vector<3x64xf32>
    %1516 = arith.mulf %1515, %1515 : vector<3x64xf32>
    %cst_361 = arith.constant dense<0.000000e+00> : vector<64xf32>
    %1517 = vector.multi_reduction <add>, %1516, %cst_361 [0] : vector<3x64xf32> to vector<64xf32>
    %1518 = vector.shape_cast %1517 : vector<64xf32> to vector<1x64xf32>
    %1519 = arith.addf %1513, %1518 : vector<1x64xf32>
    %1520 = vector.broadcast %1506 : vector<1x64xf32> to vector<3x64xf32>
    %1521 = arith.subf %1494, %1520 : vector<3x64xf32>
    %1522 = arith.mulf %1521, %1521 : vector<3x64xf32>
    %cst_362 = arith.constant dense<0.000000e+00> : vector<64xf32>
    %1523 = vector.multi_reduction <add>, %1522, %cst_362 [0] : vector<3x64xf32> to vector<64xf32>
    %1524 = vector.shape_cast %1523 : vector<64xf32> to vector<1x64xf32>
    %1525 = arith.addf %1519, %1524 : vector<1x64xf32>
    %cst_363 = arith.constant 9.000000e+00 : f32
    %1526 = vector.broadcast %cst_363 : f32 to vector<1x64xf32>
    %1527 = arith.divf %1525, %1526 : vector<1x64xf32>
    %cst_364 = arith.constant 9.99999974E-6 : f32
    %1528 = vector.broadcast %cst_364 : f32 to vector<1x64xf32>
    %1529 = arith.addf %1527, %1528 : vector<1x64xf32>
    %1530 = math.rsqrt %1529 : vector<1x64xf32>
    %1531 = vector.broadcast %1506 : vector<1x64xf32> to vector<3x64xf32>
    %1532 = arith.subf %1468, %1531 : vector<3x64xf32>
    %1533 = vector.broadcast %1530 : vector<1x64xf32> to vector<3x64xf32>
    %1534 = arith.mulf %1532, %1533 : vector<3x64xf32>
    %1535 = vector.broadcast %19 : vector<1x64xf32> to vector<3x64xf32>
    %1536 = arith.mulf %1534, %1535 : vector<3x64xf32>
    %1537 = vector.broadcast %20 : vector<1x64xf32> to vector<3x64xf32>
    %1538 = arith.addf %1536, %1537 : vector<3x64xf32>
    %cst_365 = arith.constant 0.000000e+00 : f32
    %1539 = vector.broadcast %cst_365 : f32 to vector<3x64xf32>
    %1540 = arith.maximumf %1538, %1539 : vector<3x64xf32>
    %cst_366 = arith.constant dense<0xFF800000> : vector<64xf32>
    %1541 = vector.multi_reduction <maximumf>, %1540, %cst_366 [0] : vector<3x64xf32> to vector<64xf32>
    %1542 = vector.shape_cast %1541 : vector<64xf32> to vector<1x64xf32>
    %c3_367 = arith.constant 3 : index
    %c0_368 = arith.constant 0 : index
    %1543 = vector.load %arg33[%c3_367, %c0_368] : memref<6x64xf32, #tpu.memory_space<vmem>>, vector<1x64xf32>
    tpu.vector_store %arg33[%c3_367, %c0_368], %1542 {strides = array<i32>} : memref<6x64xf32, #tpu.memory_space<vmem>>, vector<1x64xf32>,
    %1544 = vector.broadcast %1506 : vector<1x64xf32> to vector<3x64xf32>
    %1545 = arith.subf %1481, %1544 : vector<3x64xf32>
    %1546 = vector.broadcast %1530 : vector<1x64xf32> to vector<3x64xf32>
    %1547 = arith.mulf %1545, %1546 : vector<3x64xf32>
    %1548 = vector.broadcast %19 : vector<1x64xf32> to vector<3x64xf32>
    %1549 = arith.mulf %1547, %1548 : vector<3x64xf32>
    %1550 = vector.broadcast %20 : vector<1x64xf32> to vector<3x64xf32>
    %1551 = arith.addf %1549, %1550 : vector<3x64xf32>
    %cst_369 = arith.constant 0.000000e+00 : f32
    %1552 = vector.broadcast %cst_369 : f32 to vector<3x64xf32>
    %1553 = arith.maximumf %1551, %1552 : vector<3x64xf32>
    %cst_370 = arith.constant dense<0xFF800000> : vector<64xf32>
    %1554 = vector.multi_reduction <maximumf>, %1553, %cst_370 [0] : vector<3x64xf32> to vector<64xf32>
    %1555 = vector.shape_cast %1554 : vector<64xf32> to vector<1x64xf32>
    %c4_371 = arith.constant 4 : index
    %c0_372 = arith.constant 0 : index
    %1556 = vector.load %arg33[%c4_371, %c0_372] : memref<6x64xf32, #tpu.memory_space<vmem>>, vector<1x64xf32>
    tpu.vector_store %arg33[%c4_371, %c0_372], %1555 {strides = array<i32>} : memref<6x64xf32, #tpu.memory_space<vmem>>, vector<1x64xf32>,
    %1557 = vector.broadcast %1506 : vector<1x64xf32> to vector<3x64xf32>
    %1558 = arith.subf %1494, %1557 : vector<3x64xf32>
    %1559 = vector.broadcast %1530 : vector<1x64xf32> to vector<3x64xf32>
    %1560 = arith.mulf %1558, %1559 : vector<3x64xf32>
    %1561 = vector.broadcast %19 : vector<1x64xf32> to vector<3x64xf32>
    %1562 = arith.mulf %1560, %1561 : vector<3x64xf32>
    %1563 = vector.broadcast %20 : vector<1x64xf32> to vector<3x64xf32>
    %1564 = arith.addf %1562, %1563 : vector<3x64xf32>
    %cst_373 = arith.constant 0.000000e+00 : f32
    %1565 = vector.broadcast %cst_373 : f32 to vector<3x64xf32>
    %1566 = arith.maximumf %1564, %1565 : vector<3x64xf32>
    %cst_374 = arith.constant dense<0xFF800000> : vector<64xf32>
    %1567 = vector.multi_reduction <maximumf>, %1566, %cst_374 [0] : vector<3x64xf32> to vector<64xf32>
    %1568 = vector.shape_cast %1567 : vector<64xf32> to vector<1x64xf32>
    %c5_375 = arith.constant 5 : index
    %c0_376 = arith.constant 0 : index
    %1569 = vector.load %arg33[%c5_375, %c0_376] : memref<6x64xf32, #tpu.memory_space<vmem>>, vector<1x64xf32>
    tpu.vector_store %arg33[%c5_375, %c0_376], %1568 {strides = array<i32>} : memref<6x64xf32, #tpu.memory_space<vmem>>, vector<1x64xf32>,
    %c0_377 = arith.constant 0 : index
    %c0_378 = arith.constant 0 : index
    %1570 = vector.load %arg33[%c0_377, %c0_378] : memref<6x64xf32, #tpu.memory_space<vmem>>, vector<6x64xf32>
    %cst_379 = arith.constant dense<0.000000e+00> : vector<6x64xf32>
    %1571 = tpu.matmul %1139, %21, %cst_379 {dimension_numbers = #tpu.dot_dimension_numbers<[1], [0], [0], [1], [0, 0, 1, 1], [], []>} : vector<6x32xf32>, vector<32x64xf32>, vector<6x64xf32> -> vector<6x64xf32>
    %cst_380 = arith.constant dense<0.000000e+00> : vector<6x64xf32>
    %1572 = tpu.matmul %1570, %22, %cst_380 {dimension_numbers = #tpu.dot_dimension_numbers<[1], [0], [0], [1], [0, 0, 1, 1], [], []>} : vector<6x64xf32>, vector<64x64xf32>, vector<6x64xf32> -> vector<6x64xf32>
    %1573 = arith.addf %1571, %1572 : vector<6x64xf32>
    %1574 = vector.broadcast %23 : vector<1x64xf32> to vector<6x64xf32>
    %1575 = arith.addf %1573, %1574 : vector<6x64xf32>
    %cst_381 = arith.constant dense<0.000000e+00> : vector<64xf32>
    %1576 = vector.multi_reduction <add>, %1575, %cst_381 [0] : vector<6x64xf32> to vector<64xf32>
    %1577 = vector.shape_cast %1576 : vector<64xf32> to vector<1x64xf32>
    %cst_382 = arith.constant 6.000000e+00 : f32
    %1578 = vector.broadcast %cst_382 : f32 to vector<1x64xf32>
    %1579 = arith.divf %1577, %1578 : vector<1x64xf32>
    %1580 = vector.broadcast %1579 : vector<1x64xf32> to vector<6x64xf32>
    %1581 = arith.subf %1575, %1580 : vector<6x64xf32>
    %1582 = arith.mulf %1581, %1581 : vector<6x64xf32>
    %cst_383 = arith.constant dense<0.000000e+00> : vector<64xf32>
    %1583 = vector.multi_reduction <add>, %1582, %cst_383 [0] : vector<6x64xf32> to vector<64xf32>
    %1584 = vector.shape_cast %1583 : vector<64xf32> to vector<1x64xf32>
    %cst_384 = arith.constant 6.000000e+00 : f32
    %1585 = vector.broadcast %cst_384 : f32 to vector<1x64xf32>
    %1586 = arith.divf %1584, %1585 : vector<1x64xf32>
    %1587 = vector.broadcast %1579 : vector<1x64xf32> to vector<6x64xf32>
    %1588 = arith.subf %1575, %1587 : vector<6x64xf32>
    %cst_385 = arith.constant 9.99999974E-6 : f32
    %1589 = vector.broadcast %cst_385 : f32 to vector<1x64xf32>
    %1590 = arith.addf %1586, %1589 : vector<1x64xf32>
    %1591 = math.rsqrt %1590 : vector<1x64xf32>
    %1592 = vector.broadcast %1591 : vector<1x64xf32> to vector<6x64xf32>
    %1593 = arith.mulf %1588, %1592 : vector<6x64xf32>
    %1594 = vector.broadcast %24 : vector<1x64xf32> to vector<6x64xf32>
    %1595 = arith.mulf %1593, %1594 : vector<6x64xf32>
    %1596 = vector.broadcast %25 : vector<1x64xf32> to vector<6x64xf32>
    %1597 = arith.addf %1595, %1596 : vector<6x64xf32>
    %cst_386 = arith.constant 0.000000e+00 : f32
    %1598 = vector.broadcast %cst_386 : f32 to vector<6x64xf32>
    %1599 = arith.maximumf %1597, %1598 : vector<6x64xf32>
    %cst_387 = arith.constant dense<0.000000e+00> : vector<6x32xf32>
    %1600 = tpu.matmul %1599, %26, %cst_387 {dimension_numbers = #tpu.dot_dimension_numbers<[1], [0], [0], [1], [0, 0, 1, 1], [], []>} : vector<6x64xf32>, vector<64x32xf32>, vector<6x32xf32> -> vector<6x32xf32>
    %1601 = vector.broadcast %27 : vector<1x32xf32> to vector<6x32xf32>
    %1602 = arith.addf %1600, %1601 : vector<6x32xf32>
    %cst_388 = arith.constant dense<0.000000e+00> : vector<32xf32>
    %1603 = vector.multi_reduction <add>, %1602, %cst_388 [0] : vector<6x32xf32> to vector<32xf32>
    %1604 = vector.shape_cast %1603 : vector<32xf32> to vector<1x32xf32>
    %cst_389 = arith.constant 6.000000e+00 : f32
    %1605 = vector.broadcast %cst_389 : f32 to vector<1x32xf32>
    %1606 = arith.divf %1604, %1605 : vector<1x32xf32>
    %1607 = vector.broadcast %1606 : vector<1x32xf32> to vector<6x32xf32>
    %1608 = arith.subf %1602, %1607 : vector<6x32xf32>
    %1609 = arith.mulf %1608, %1608 : vector<6x32xf32>
    %cst_390 = arith.constant dense<0.000000e+00> : vector<32xf32>
    %1610 = vector.multi_reduction <add>, %1609, %cst_390 [0] : vector<6x32xf32> to vector<32xf32>
    %1611 = vector.shape_cast %1610 : vector<32xf32> to vector<1x32xf32>
    %cst_391 = arith.constant 6.000000e+00 : f32
    %1612 = vector.broadcast %cst_391 : f32 to vector<1x32xf32>
    %1613 = arith.divf %1611, %1612 : vector<1x32xf32>
    %1614 = vector.broadcast %1606 : vector<1x32xf32> to vector<6x32xf32>
    %1615 = arith.subf %1602, %1614 : vector<6x32xf32>
    %cst_392 = arith.constant 9.99999974E-6 : f32
    %1616 = vector.broadcast %cst_392 : f32 to vector<1x32xf32>
    %1617 = arith.addf %1613, %1616 : vector<1x32xf32>
    %1618 = math.rsqrt %1617 : vector<1x32xf32>
    %1619 = vector.broadcast %1618 : vector<1x32xf32> to vector<6x32xf32>
    %1620 = arith.mulf %1615, %1619 : vector<6x32xf32>
    %1621 = vector.broadcast %28 : vector<1x32xf32> to vector<6x32xf32>
    %1622 = arith.mulf %1620, %1621 : vector<6x32xf32>
    %1623 = vector.broadcast %29 : vector<1x32xf32> to vector<6x32xf32>
    %1624 = arith.addf %1622, %1623 : vector<6x32xf32>
    %cst_393 = arith.constant 0.000000e+00 : f32
    %1625 = vector.broadcast %cst_393 : f32 to vector<6x32xf32>
    %1626 = arith.maximumf %1624, %1625 : vector<6x32xf32>
    %c2_394 = arith.constant 2 : index
    %c0_395 = arith.constant 0 : index
    %c0_396 = arith.constant 0 : index
    %1627 = vector.load %arg31[%c2_394, %c0_395, %c0_396] : memref<3x6x2xf32, #tpu.memory_space<vmem>>, vector<1x6x2xf32>
    %1628 = vector.shape_cast %1627 : vector<1x6x2xf32> to vector<6x2xf32>
    %1629 = vector.shape_cast %1142 : vector<6x2xf32> to vector<1x6x2xf32>
    tpu.vector_store %arg31[%c2_394, %c0_395, %c0_396], %1629 {strides = array<i32>} : memref<3x6x2xf32, #tpu.memory_space<vmem>>, vector<1x6x2xf32>,
    %c0_397 = arith.constant 0 : index
    %c0_398 = arith.constant 0 : index
    %1630 = vector.load %arg32[%c0_397, %c0_398] : memref<6x32xf32, #tpu.memory_space<vmem>>, vector<6x32xf32>
    tpu.vector_store %arg32[%c0_397, %c0_398], %1626 {strides = array<i32>} : memref<6x32xf32, #tpu.memory_space<vmem>>, vector<6x32xf32>,
    return
  }
}

</mosaic_0001>

<llo_original>
// kernel: decoder_multi_forward.1
$region0: #{decoder_multi_forward.1}
  #allocation0 [shape = 'u32[]', space=smem, size = 0x4, offset = 0x4, fixed_abs, tag = 'smem constant byte address 0x4 - core index']
  #allocation1 [shape = 'u32[144,128]{1,0:T(1,128)}', space=vmem, size = 0x12000, scoped, tag = 'internal scratch']
  #allocation2 [shape = 'f32[6,64]{1,0:T(8,128)}', space=vmem, size = 0x1000, scoped, tag = 'scratch operand']
  %s0 = inlined_call_operand.smem [shape: u32[33], index: -1, kind: input, shape index: {}]
  %s1 = sld [smem:[%s0]]
  %s2 = scalar_lea.smem %s0, 1
  %s3 = sld [smem:[%s2]]
  %s4 = scalar_lea.smem %s0, 2
  %s5 = sld [smem:[%s4]]
  %s6 = scalar_lea.smem %s0, 3
  %s7 = sld [smem:[%s6]]
  %s8 = scalar_lea.smem %s0, 4
  %s9 = sld [smem:[%s8]]
  %s10 = scalar_lea.smem %s0, 5
  %s11 = sld [smem:[%s10]]
  %s12 = scalar_lea.smem %s0, 6
  %s13 = sld [smem:[%s12]]
  %s14 = scalar_lea.smem %s0, 7
  %s15 = sld [smem:[%s14]]
  %s16 = scalar_lea.smem %s0, 8
  %s17 = sld [smem:[%s16]]
  %s18 = scalar_lea.smem %s0, 9
  %s19 = sld [smem:[%s18]]
  %s20 = scalar_lea.smem %s0, 10
  %s21 = sld [smem:[%s20]]
  %s22 = scalar_lea.smem %s0, 11
  %s23 = sld [smem:[%s22]]
  %s24 = scalar_lea.smem %s0, 12
  %s25 = sld [smem:[%s24]]
  %s26 = scalar_lea.smem %s0, 13
  %s27 = sld [smem:[%s26]]
  %s28 = scalar_lea.smem %s0, 14
  %s29 = sld [smem:[%s28]]
  %s30 = scalar_lea.smem %s0, 15
  %s31 = sld [smem:[%s30]]
  %s32 = scalar_lea.smem %s0, 16
  %s33 = sld [smem:[%s32]]
  %s34 = scalar_lea.smem %s0, 17
  %s35 = sld [smem:[%s34]]
  %s36 = scalar_lea.smem %s0, 18
  %s37 = sld [smem:[%s36]]
  %s38 = scalar_lea.smem %s0, 19
  %s39 = sld [smem:[%s38]]
  %s40 = scalar_lea.smem %s0, 20
  %s41 = sld [smem:[%s40]]
  %s42 = scalar_lea.smem %s0, 21
  %s43 = sld [smem:[%s42]]
  %s44 = scalar_lea.smem %s0, 22
  %s45 = sld [smem:[%s44]]
  %s46 = scalar_lea.smem %s0, 23
  %s47 = sld [smem:[%s46]]
  %s48 = scalar_lea.smem %s0, 24
  %s49 = sld [smem:[%s48]]
  %s50 = scalar_lea.smem %s0, 25
  %s51 = sld [smem:[%s50]]
  %s52 = scalar_lea.smem %s0, 26
  %s53 = sld [smem:[%s52]]
  %s54 = scalar_lea.smem %s0, 27
  %s55 = sld [smem:[%s54]]
  %s56 = scalar_lea.smem %s0, 28
  %s57 = sld [smem:[%s56]]
  %s58 = scalar_lea.smem %s0, 29
  %s59 = sld [smem:[%s58]]
  %s60 = scalar_lea.smem %s0, 30
  %s61 = sld [smem:[%s60]]
  %s62 = scalar_lea.smem %s0, 31
  %s63 = sld [smem:[%s62]]
  %s64 = scalar_lea.smem %s0, 32
  %s65 = sld [smem:[%s64]]
  %66 = xla_tuple %s63, %s65
  %s67 = sld [smem:[#allocation0]]
  $region142: #{decoder_multi_forward.1} parent=0
    _
  %s69 = ssub.s32 1, %s67
  %s70 = scalar_select 0, %s69, %s67
  // Predicated region
  $region2: #{decoder_multi_forward.1} parent=0 // pred_check
    _
  $region3: #{decoder_multi_forward.1} parent=0 // pred_check_branch
    %72 = sbr.rel (0) target = $region5
  $region4: #{decoder_multi_forward.1} parent=0 // pred_region
    _
  $region5: #{decoder_multi_forward.1} parent=0 // pred_fallthru
    _
  // Predicated region
  $region6: #{decoder_multi_forward.1} parent=0 // pred_check
    _
  $region7: #{decoder_multi_forward.1} parent=0 // pred_check_branch
    %74 = sbr.rel (0) target = $region9
  $region8: #{decoder_multi_forward.1} parent=0 // pred_region
    _
  $region9: #{decoder_multi_forward.1} parent=0 // pred_fallthru
    _
  // Predicated region
  $region10: #{decoder_multi_forward.1} parent=0 // pred_check
    _
  $region11: #{decoder_multi_forward.1} parent=0 // pred_check_branch
    %76 = sbr.rel (0) target = $region13
  $region12: #{decoder_multi_forward.1} parent=0 // pred_region
    _
  $region13: #{decoder_multi_forward.1} parent=0 // pred_fallthru
    _
  // Predicated region
  $region14: #{decoder_multi_forward.1} parent=0 // pred_check
    _
  $region15: #{decoder_multi_forward.1} parent=0 // pred_check_branch
    %78 = sbr.rel (0) target = $region17
  $region16: #{decoder_multi_forward.1} parent=0 // pred_region
    _
  $region17: #{decoder_multi_forward.1} parent=0 // pred_fallthru
    _
  // Predicated region
  $region18: #{decoder_multi_forward.1} parent=0 // pred_check
    _
  $region19: #{decoder_multi_forward.1} parent=0 // pred_check_branch
    %80 = sbr.rel (0) target = $region21
  $region20: #{decoder_multi_forward.1} parent=0 // pred_region
    _
  $region21: #{decoder_multi_forward.1} parent=0 // pred_fallthru
    _
  // Predicated region
  $region22: #{decoder_multi_forward.1} parent=0 // pred_check
    _
  $region23: #{decoder_multi_forward.1} parent=0 // pred_check_branch
    %82 = sbr.rel (0) target = $region25
  $region24: #{decoder_multi_forward.1} parent=0 // pred_region
    _
  $region25: #{decoder_multi_forward.1} parent=0 // pred_fallthru
    _
  // Predicated region
  $region26: #{decoder_multi_forward.1} parent=0 // pred_check
    _
  $region27: #{decoder_multi_forward.1} parent=0 // pred_check_branch
    %84 = sbr.rel (0) target = $region29
  $region28: #{decoder_multi_forward.1} parent=0 // pred_region
    _
  $region29: #{decoder_multi_forward.1} parent=0 // pred_fallthru
    _
  // Predicated region
  $region30: #{decoder_multi_forward.1} parent=0 // pred_check
    _
  $region31: #{decoder_multi_forward.1} parent=0 // pred_check_branch
    %86 = sbr.rel (0) target = $region33
  $region32: #{decoder_multi_forward.1} parent=0 // pred_region
    _
  $region33: #{decoder_multi_forward.1} parent=0 // pred_fallthru
    _
  // Predicated region
  $region34: #{decoder_multi_forward.1} parent=0 // pred_check
    _
  $region35: #{decoder_multi_forward.1} parent=0 // pred_check_branch
    %88 = sbr.rel (0) target = $region37
  $region36: #{decoder_multi_forward.1} parent=0 // pred_region
    _
  $region37: #{decoder_multi_forward.1} parent=0 // pred_fallthru
    _
  // Predicated region
  $region38: #{decoder_multi_forward.1} parent=0 // pred_check
    _
  $region39: #{decoder_multi_forward.1} parent=0 // pred_check_branch
    %90 = sbr.rel (0) target = $region41
  $region40: #{decoder_multi_forward.1} parent=0 // pred_region
    _
  $region41: #{decoder_multi_forward.1} parent=0 // pred_fallthru
    _
  // Predicated region
  $region42: #{decoder_multi_forward.1} parent=0 // pred_check
    _
  $region43: #{decoder_multi_forward.1} parent=0 // pred_check_branch
    %92 = sbr.rel (0) target = $region45
  $region44: #{decoder_multi_forward.1} parent=0 // pred_region
    _
  $region45: #{decoder_multi_forward.1} parent=0 // pred_fallthru
    _
  // Predicated region
  $region46: #{decoder_multi_forward.1} parent=0 // pred_check
    _
  $region47: #{decoder_multi_forward.1} parent=0 // pred_check_branch
    %94 = sbr.rel (0) target = $region49
  $region48: #{decoder_multi_forward.1} parent=0 // pred_region
    _
  $region49: #{decoder_multi_forward.1} parent=0 // pred_fallthru
    _
  // Predicated region
  $region50: #{decoder_multi_forward.1} parent=0 // pred_check
    _
  $region51: #{decoder_multi_forward.1} parent=0 // pred_check_branch
    %96 = sbr.rel (0) target = $region53
  $region52: #{decoder_multi_forward.1} parent=0 // pred_region
    _
  $region53: #{decoder_multi_forward.1} parent=0 // pred_fallthru
    _
  // Predicated region
  $region54: #{decoder_multi_forward.1} parent=0 // pred_check
    _
  $region55: #{decoder_multi_forward.1} parent=0 // pred_check_branch
    %98 = sbr.rel (0) target = $region57
  $region56: #{decoder_multi_forward.1} parent=0 // pred_region
    _
  $region57: #{decoder_multi_forward.1} parent=0 // pred_fallthru
    _
  // Predicated region
  $region58: #{decoder_multi_forward.1} parent=0 // pred_check
    _
  $region59: #{decoder_multi_forward.1} parent=0 // pred_check_branch
    %100 = sbr.rel (0) target = $region61
  $region60: #{decoder_multi_forward.1} parent=0 // pred_region
    _
  $region61: #{decoder_multi_forward.1} parent=0 // pred_fallthru
    _
  // Predicated region
  $region62: #{decoder_multi_forward.1} parent=0 // pred_check
    _
  $region63: #{decoder_multi_forward.1} parent=0 // pred_check_branch
    %102 = sbr.rel (0) target = $region65
  $region64: #{decoder_multi_forward.1} parent=0 // pred_region
    _
  $region65: #{decoder_multi_forward.1} parent=0 // pred_fallthru
    _
  // Predicated region
  $region66: #{decoder_multi_forward.1} parent=0 // pred_check
    _
  $region67: #{decoder_multi_forward.1} parent=0 // pred_check_branch
    %104 = sbr.rel (0) target = $region69
  $region68: #{decoder_multi_forward.1} parent=0 // pred_region
    _
  $region69: #{decoder_multi_forward.1} parent=0 // pred_fallthru
    _
  // Predicated region
  $region70: #{decoder_multi_forward.1} parent=0 // pred_check
    _
  $region71: #{decoder_multi_forward.1} parent=0 // pred_check_branch
    %106 = sbr.rel (0) target = $region73
  $region72: #{decoder_multi_forward.1} parent=0 // pred_region
    _
  $region73: #{decoder_multi_forward.1} parent=0 // pred_fallthru
    _
  // Predicated region
  $region74: #{decoder_multi_forward.1} parent=0 // pred_check
    _
  $region75: #{decoder_multi_forward.1} parent=0 // pred_check_branch
    %108 = sbr.rel (0) target = $region77
  $region76: #{decoder_multi_forward.1} parent=0 // pred_region
    _
  $region77: #{decoder_multi_forward.1} parent=0 // pred_fallthru
    _
  // Predicated region
  $region78: #{decoder_multi_forward.1} parent=0 // pred_check
    _
  $region79: #{decoder_multi_forward.1} parent=0 // pred_check_branch
    %110 = sbr.rel (0) target = $region81
  $region80: #{decoder_multi_forward.1} parent=0 // pred_region
    _
  $region81: #{decoder_multi_forward.1} parent=0 // pred_fallthru
    _
  // Predicated region
  $region82: #{decoder_multi_forward.1} parent=0 // pred_check
    _
  $region83: #{decoder_multi_forward.1} parent=0 // pred_check_branch
    %112 = sbr.rel (0) target = $region85
  $region84: #{decoder_multi_forward.1} parent=0 // pred_region
    _
  $region85: #{decoder_multi_forward.1} parent=0 // pred_fallthru
    _
  // Predicated region
  $region86: #{decoder_multi_forward.1} parent=0 // pred_check
    _
  $region87: #{decoder_multi_forward.1} parent=0 // pred_check_branch
    %114 = sbr.rel (0) target = $region89
  $region88: #{decoder_multi_forward.1} parent=0 // pred_region
    _
  $region89: #{decoder_multi_forward.1} parent=0 // pred_fallthru
    _
  // Predicated region
  $region90: #{decoder_multi_forward.1} parent=0 // pred_check
    _
  $region91: #{decoder_multi_forward.1} parent=0 // pred_check_branch
    %116 = sbr.rel (0) target = $region93
  $region92: #{decoder_multi_forward.1} parent=0 // pred_region
    _
  $region93: #{decoder_multi_forward.1} parent=0 // pred_fallthru
    _
  // Predicated region
  $region94: #{decoder_multi_forward.1} parent=0 // pred_check
    _
  $region95: #{decoder_multi_forward.1} parent=0 // pred_check_branch
    %118 = sbr.rel (0) target = $region97
  $region96: #{decoder_multi_forward.1} parent=0 // pred_region
    _
  $region97: #{decoder_multi_forward.1} parent=0 // pred_fallthru
    _
  // Predicated region
  $region98: #{decoder_multi_forward.1} parent=0 // pred_check
    _
  $region99: #{decoder_multi_forward.1} parent=0 // pred_check_branch
    %120 = sbr.rel (0) target = $region101
  $region100: #{decoder_multi_forward.1} parent=0 // pred_region
    _
  $region101: #{decoder_multi_forward.1} parent=0 // pred_fallthru
    _
  // Predicated region
  $region102: #{decoder_multi_forward.1} parent=0 // pred_check
    _
  $region103: #{decoder_multi_forward.1} parent=0 // pred_check_branch
    %122 = sbr.rel (0) target = $region105
  $region104: #{decoder_multi_forward.1} parent=0 // pred_region
    _
  $region105: #{decoder_multi_forward.1} parent=0 // pred_fallthru
    _
  // Predicated region
  $region106: #{decoder_multi_forward.1} parent=0 // pred_check
    _
  $region107: #{decoder_multi_forward.1} parent=0 // pred_check_branch
    %124 = sbr.rel (0) target = $region109
  $region108: #{decoder_multi_forward.1} parent=0 // pred_region
    _
  $region109: #{decoder_multi_forward.1} parent=0 // pred_fallthru
    _
  // Predicated region
  $region110: #{decoder_multi_forward.1} parent=0 // pred_check
    _
  $region111: #{decoder_multi_forward.1} parent=0 // pred_check_branch
    %126 = sbr.rel (0) target = $region113
  $region112: #{decoder_multi_forward.1} parent=0 // pred_region
    _
  $region113: #{decoder_multi_forward.1} parent=0 // pred_fallthru
    _
  // Predicated region
  $region114: #{decoder_multi_forward.1} parent=0 // pred_check
    _
  $region115: #{decoder_multi_forward.1} parent=0 // pred_check_branch
    %128 = sbr.rel (0) target = $region117
  $region116: #{decoder_multi_forward.1} parent=0 // pred_region
    _
  $region117: #{decoder_multi_forward.1} parent=0 // pred_fallthru
    _
  // Predicated region
  $region118: #{decoder_multi_forward.1} parent=0 // pred_check
    _
  $region119: #{decoder_multi_forward.1} parent=0 // pred_check_branch
    %130 = sbr.rel (0) target = $region121
  $region120: #{decoder_multi_forward.1} parent=0 // pred_region
    _
  $region121: #{decoder_multi_forward.1} parent=0 // pred_fallthru
    _
  // Predicated region
  $region122: #{decoder_multi_forward.1} parent=0 // pred_check
    _
  $region123: #{decoder_multi_forward.1} parent=0 // pred_check_branch
    %132 = sbr.rel (0) target = $region125
  $region124: #{decoder_multi_forward.1} parent=0 // pred_region
    _
  $region125: #{decoder_multi_forward.1} parent=0 // pred_fallthru
    _
  %v133 = vld [vmem:[%s1] sm:$0x3f]
  %v134 = vld [vmem:[%s5] sm:$0x3f]
  %v135 = vld [vmem:[%s7] sm:$0x3f]
  %v136 = vld [vmem:[%s9] sm:$0x3]
  %v137 = vld [vmem:[%s11] sm:$0x1]
  %v138 = vld [vmem:[%s13] sm:$0xff]
  %v139 = vld [vmem:[%s13 + $0x8] sm:$0xff]
  %v140 = vld [vmem:[%s13 + $0x10] sm:$0xff]
  %v141 = vld [vmem:[%s13 + $0x18] sm:$0xff]
  %v142 = vld [vmem:[%s15] sm:$0x1]
  %v143 = vld [vmem:[%s17] sm:$0xff]
  %v144 = vld [vmem:[%s17 + $0x8] sm:$0xff]
  %v145 = vld [vmem:[%s19] sm:$0xff]
  %v146 = vld [vmem:[%s19 + $0x8] sm:$0xff]
  %v147 = vld [vmem:[%s19 + $0x10] sm:$0xff]
  %v148 = vld [vmem:[%s19 + $0x18] sm:$0xff]
  %v149 = vld [vmem:[%s21] sm:$0x1]
  %v150 = vld [vmem:[%s23] sm:$0x3]
  %v151 = vld [vmem:[%s25] sm:$0x1]
  %v152 = vld [vmem:[%s27] sm:$0xff]
  %v153 = vld [vmem:[%s27 + $0x8] sm:$0xff]
  %v154 = vld [vmem:[%s29] sm:$0xff]
  %v155 = vld [vmem:[%s29 + $0x8] sm:$0xff]
  %v156 = vld [vmem:[%s29 + $0x10] sm:$0xff]
  %v157 = vld [vmem:[%s29 + $0x18] sm:$0xff]
  %v158 = vld [vmem:[%s31] sm:$0x1]
  %v159 = vld [vmem:[%s33] sm:$0x1]
  %v160 = vld [vmem:[%s35] sm:$0x1]
  %v161 = vld [vmem:[%s37] sm:$0xff]
  %v162 = vld [vmem:[%s37 + $0x8] sm:$0xff]
  %v163 = vld [vmem:[%s37 + $0x10] sm:$0xff]
  %v164 = vld [vmem:[%s37 + $0x18] sm:$0xff]
  %v165 = vld [vmem:[%s37 + $0x20] sm:$0xff]
  %v166 = vld [vmem:[%s37 + $0x28] sm:$0xff]
  %v167 = vld [vmem:[%s37 + $0x30] sm:$0xff]
  %v168 = vld [vmem:[%s37 + $0x38] sm:$0xff]
  %v169 = vld [vmem:[%s37 + $0x40] sm:$0xff]
  %v170 = vld [vmem:[%s37 + $0x48] sm:$0xff]
  %v171 = vld [vmem:[%s37 + $0x50] sm:$0xff]
  %v172 = vld [vmem:[%s37 + $0x58] sm:$0xff]
  %v173 = vld [vmem:[%s37 + $0x60] sm:$0xff]
  %v174 = vld [vmem:[%s37 + $0x68] sm:$0xff]
  %v175 = vld [vmem:[%s37 + $0x70] sm:$0xff]
  %v176 = vld [vmem:[%s37 + $0x78] sm:$0xff]
  %v177 = vld [vmem:[%s39] sm:$0x1]
  %v178 = vld [vmem:[%s41] sm:$0x1]
  %v179 = vld [vmem:[%s43] sm:$0x1]
  %v180 = vld [vmem:[%s45] sm:$0xff]
  %v181 = vld [vmem:[%s45 + $0x8] sm:$0xff]
  %v182 = vld [vmem:[%s45 + $0x10] sm:$0xff]
  %v183 = vld [vmem:[%s45 + $0x18] sm:$0xff]
  %v184 = vld [vmem:[%s47] sm:$0xff]
  %v185 = vld [vmem:[%s47 + $0x8] sm:$0xff]
  %v186 = vld [vmem:[%s47 + $0x10] sm:$0xff]
  %v187 = vld [vmem:[%s47 + $0x18] sm:$0xff]
  %v188 = vld [vmem:[%s47 + $0x20] sm:$0xff]
  %v189 = vld [vmem:[%s47 + $0x28] sm:$0xff]
  %v190 = vld [vmem:[%s47 + $0x30] sm:$0xff]
  %v191 = vld [vmem:[%s47 + $0x38] sm:$0xff]
  %v192 = vld [vmem:[%s49] sm:$0x1]
  %v193 = vld [vmem:[%s51] sm:$0x1]
  %v194 = vld [vmem:[%s53] sm:$0x1]
  %v195 = vld [vmem:[%s55] sm:$0xff]
  %v196 = vld [vmem:[%s55 + $0x8] sm:$0xff]
  %v197 = vld [vmem:[%s55 + $0x10] sm:$0xff]
  %v198 = vld [vmem:[%s55 + $0x18] sm:$0xff]
  %v199 = vld [vmem:[%s55 + $0x20] sm:$0xff]
  %v200 = vld [vmem:[%s55 + $0x28] sm:$0xff]
  %v201 = vld [vmem:[%s55 + $0x30] sm:$0xff]
  %v202 = vld [vmem:[%s55 + $0x38] sm:$0xff]
  %v203 = vld [vmem:[%s57] sm:$0x1]
  %v204 = vld [vmem:[%s59] sm:$0x1]
  %v205 = vld [vmem:[%s61] sm:$0x1]
  %v206 = vld [vmem:[%s3] sm:$0x3f]
  %208 = vset.pattern.permute.xlu0 0
  %209 = vperm.xlu0 %208, %v206
  %v210 = vpop.permute.xlu0 %209
  %v212 = vlaneseq
  %v213 = vshrl.u32 %v212, 7
  %v214 = vsub.s32 0, %v213
  %v215 = vrot.slane %v136, %v214
  %v216 = vmul.f32 %v210, %v215
  %217 = vset.pattern.permute.xlu0 1
  %218 = vperm.xlu0 %217, %v206
  %v219 = vpop.permute.xlu0 %218
  %v221 = vlaneseq
  %v222 = vshrl.u32 %v221, 7
  %v223 = vsub.s32 1, %v222
  %v224 = vrot.slane %v136, %v223
  %v225 = vmul.f32 %v219, %v224
  %v226 = vadd.f32 %v216, %v225
  %v228 = vlaneseq
  %v229 = vshrl.u32 %v228, 7
  %v230 = vsub.s32 0, %v229
  %v231 = vrot.slane %v137, %v230
  %v233 = vadd.f32 %v226, %v231
  %vm234 = vcmask 261120
  %v236 = vsel %vm234, %v134, 0
  %238 = vmatprep.subr.mxu0 0.0
  %239 = vmatpush1.msra.mxu0 0.0
  %240 = vmatprep.subr.mxu0 0.0
  %241 = vmatpush1.msra.mxu0 0.0
  %242 = vmatprep.subr.mxu0 0.0
  %243 = vmatpush1.msra.mxu0 0.0
  %244 = vmatprep.subr.mxu0 0.0
  %245 = vmatpush1.msra.mxu0 0.0
  %246 = vmatprep.subr.mxu0 0.0
  %247 = vmatpush1.msra.mxu0 0.0
  %248 = vmatprep.subr.mxu0 0.0
  %249 = vmatpush1.msra.mxu0 0.0
  %250 = vmatprep.subr.mxu0 0.0
  %251 = vmatpush1.msra.mxu0 0.0
  %252 = vmatprep.subr.mxu0 0.0
  %253 = vmatpush1.msra.mxu0 0.0
  %254 = vmatprep.subr.mxu0 0.0
  %255 = vmatpush1.msra.mxu0 0.0
  %256 = vmatprep.subr.mxu0 0.0
  %257 = vmatpush1.msra.mxu0 0.0
  %258 = vmatprep.subr.mxu0 0.0
  %259 = vmatpush1.msra.mxu0 0.0
  %260 = vmatprep.subr.mxu0 0.0
  %261 = vmatpush1.msra.mxu0 0.0
  %262 = vmatprep.subr.mxu0 0.0
  %263 = vmatpush1.msra.mxu0 %v148
  %264 = vmatprep.subr.mxu0 0.0
  %265 = vmatpush1.msra.mxu0 %v147
  %266 = vmatprep.subr.mxu0 0.0
  %267 = vmatpush1.msra.mxu0 %v146
  %268 = vmatprep.subr.mxu0 0.0
  %269 = vmatpush1.msra.mxu0 %v145
  %270 = vmatprep.subr.mxu0 0.0
  %271 = vmatpush2.msra.mxu0 0.0
  %272 = vmatprep.subr.mxu0 0.0
  %273 = vmatpush2.msra.mxu0 0.0
  %274 = vmatprep.subr.mxu0 0.0
  %275 = vmatpush2.msra.mxu0 0.0
  %276 = vmatprep.subr.mxu0 0.0
  %277 = vmatpush2.msra.mxu0 0.0
  %278 = vmatprep.subr.mxu0 0.0
  %279 = vmatpush2.msra.mxu0 0.0
  %280 = vmatprep.subr.mxu0 0.0
  %281 = vmatpush2.msra.mxu0 0.0
  %282 = vmatprep.subr.mxu0 0.0
  %283 = vmatpush2.msra.mxu0 0.0
  %284 = vmatprep.subr.mxu0 0.0
  %285 = vmatpush2.msra.mxu0 0.0
  %286 = vmatprep.subr.mxu0 0.0
  %287 = vmatpush2.msra.mxu0 0.0
  %288 = vmatprep.subr.mxu0 0.0
  %289 = vmatpush2.msra.mxu0 0.0
  %290 = vmatprep.subr.mxu0 0.0
  %291 = vmatpush2.msra.mxu0 0.0
  %292 = vmatprep.subr.mxu0 0.0
  %293 = vmatpush2.msra.mxu0 0.0
  %294 = vmatprep.subr.mxu0 0.0
  %295 = vmatpush2.msra.mxu0 0.0
  %296 = vmatprep.subr.mxu0 0.0
  %297 = vmatpush2.msra.mxu0 0.0
  %298 = vmatprep.subr.mxu0 0.0
  %299 = vmatpush2.msra.mxu0 0.0
  %300 = vmatprep.subr.mxu0 0.0
  %301 = vmatpush2.msra.mxu0 0.0
  %302 = vmatprep.mubr.f32.mxu0 0.0
  %303 = vmatmul.mubr.f32.gmra.mxu0 %v236
  %v304 = vpop.f32.mrf.mxu0
  %v305 = vadd.f32 0.0, %v304
  %v306 = vpop.f32.mrf.mxu0
  %307 = vdwg.mxu0
  %vm308 = vcmask 130048
  %v310 = vsel %vm308, %v233, 0
  %312 = vmatprep.subr.mxu0 0.0
  %313 = vmatpush1.msra.mxu0 0.0
  %314 = vmatprep.subr.mxu0 0.0
  %315 = vmatpush1.msra.mxu0 0.0
  %316 = vmatprep.subr.mxu0 0.0
  %317 = vmatpush1.msra.mxu0 0.0
  %318 = vmatprep.subr.mxu0 0.0
  %319 = vmatpush1.msra.mxu0 0.0
  %320 = vmatprep.subr.mxu0 0.0
  %321 = vmatpush1.msra.mxu0 0.0
  %322 = vmatprep.subr.mxu0 0.0
  %323 = vmatpush1.msra.mxu0 0.0
  %324 = vmatprep.subr.mxu0 0.0
  %325 = vmatpush1.msra.mxu0 0.0
  %326 = vmatprep.subr.mxu0 0.0
  %327 = vmatpush1.msra.mxu0 0.0
  %328 = vmatprep.subr.mxu0 0.0
  %329 = vmatpush1.msra.mxu0 0.0
  %330 = vmatprep.subr.mxu0 0.0
  %331 = vmatpush1.msra.mxu0 0.0
  %332 = vmatprep.subr.mxu0 0.0
  %333 = vmatpush1.msra.mxu0 0.0
  %334 = vmatprep.subr.mxu0 0.0
  %335 = vmatpush1.msra.mxu0 0.0
  %336 = vmatprep.subr.mxu0 0.0
  %337 = vmatpush1.msra.mxu0 0.0
  %338 = vmatprep.subr.mxu0 0.0
  %339 = vmatpush1.msra.mxu0 0.0
  %340 = vmatprep.subr.mxu0 0.0
  %341 = vmatpush1.msra.mxu0 %v144
  %342 = vmatprep.subr.mxu0 0.0
  %343 = vmatpush1.msra.mxu0 %v143
  %344 = vmatprep.subr.mxu0 0.0
  %345 = vmatpush2.msra.mxu0 0.0
  %346 = vmatprep.subr.mxu0 0.0
  %347 = vmatpush2.msra.mxu0 0.0
  %348 = vmatprep.subr.mxu0 0.0
  %349 = vmatpush2.msra.mxu0 0.0
  %350 = vmatprep.subr.mxu0 0.0
  %351 = vmatpush2.msra.mxu0 0.0
  %352 = vmatprep.subr.mxu0 0.0
  %353 = vmatpush2.msra.mxu0 0.0
  %354 = vmatprep.subr.mxu0 0.0
  %355 = vmatpush2.msra.mxu0 0.0
  %356 = vmatprep.subr.mxu0 0.0
  %357 = vmatpush2.msra.mxu0 0.0
  %358 = vmatprep.subr.mxu0 0.0
  %359 = vmatpush2.msra.mxu0 0.0
  %360 = vmatprep.subr.mxu0 0.0
  %361 = vmatpush2.msra.mxu0 0.0
  %362 = vmatprep.subr.mxu0 0.0
  %363 = vmatpush2.msra.mxu0 0.0
  %364 = vmatprep.subr.mxu0 0.0
  %365 = vmatpush2.msra.mxu0 0.0
  %366 = vmatprep.subr.mxu0 0.0
  %367 = vmatpush2.msra.mxu0 0.0
  %368 = vmatprep.subr.mxu0 0.0
  %369 = vmatpush2.msra.mxu0 0.0
  %370 = vmatprep.subr.mxu0 0.0
  %371 = vmatpush2.msra.mxu0 0.0
  %372 = vmatprep.subr.mxu0 0.0
  %373 = vmatpush2.msra.mxu0 0.0
  %374 = vmatprep.subr.mxu0 0.0
  %375 = vmatpush2.msra.mxu0 0.0
  %376 = vmatprep.mubr.f32.mxu0 0.0
  %377 = vmatmul.mubr.f32.gmra.mxu0 %v310
  %v378 = vpop.f32.mrf.mxu0
  %v379 = vadd.f32 %v305, %v378
  %v380 = vpop.f32.mrf.mxu0
  %381 = vdwg.mxu0
  %v383 = vlaneseq
  %v384 = vshrl.u32 %v383, 7
  %v385 = vsub.s32 0, %v384
  %v386 = vrot.slane %v149, %v385
  %v388 = vadd.f32 %v379, %v386
  %v389 = vxor.u32 %v388, 2147483648
  %v390 = vmul.f32 %v389, 1.442695
  %v391 = vpow.pop %v390
  %v392 = vadd.f32 %v391, 1.0
  %v393 = vrcp.pop %v392
  %v394 = vmul.f32 1.0, %v393
  %v395 = vtanh.pop %v388
  %397 = vrot.lane.b32.xlu0 %v135, 32
  %v398 = vpop.permute.xlu0 %397
  %v400 = vmul.f32 %v394, %v398
  %402 = vrot.lane.b32.xlu0 %v395, 64
  %v403 = vpop.permute.xlu0 %402
  %v405 = vmul.f32 %v394, %v403
  %407 = vrot.lane.b32.xlu0 %v405, 32
  %v408 = vpop.permute.xlu0 %407
  %v410 = vadd.f32 %v400, %v408
  %v411 = vtanh.pop %v410
  %413 = vrot.lane.b32.xlu0 %v411, 64
  %v414 = vpop.permute.xlu0 %413
  %v416 = vmul.f32 %v394, %v414
  %v418 = vlaneseq
  %v419 = vshrl.u32 %v418, 7
  %v420 = vsub.s32 0, %v419
  %v421 = vrot.slane %v142, %v420
  %424 = vrot.lane.b32.xlu0 %v416, 32
  %v425 = vpop.permute.xlu0 %424
  %v426 = vsel %vm234, %v425, 0
  %428 = vmatprep.subr.mxu0 0.0
  %429 = vmatpush1.msra.mxu0 0.0
  %430 = vmatprep.subr.mxu0 0.0
  %431 = vmatpush1.msra.mxu0 0.0
  %432 = vmatprep.subr.mxu0 0.0
  %433 = vmatpush1.msra.mxu0 0.0
  %434 = vmatprep.subr.mxu0 0.0
  %435 = vmatpush1.msra.mxu0 0.0
  %436 = vmatprep.subr.mxu0 0.0
  %437 = vmatpush1.msra.mxu0 0.0
  %438 = vmatprep.subr.mxu0 0.0
  %439 = vmatpush1.msra.mxu0 0.0
  %440 = vmatprep.subr.mxu0 0.0
  %441 = vmatpush1.msra.mxu0 0.0
  %442 = vmatprep.subr.mxu0 0.0
  %443 = vmatpush1.msra.mxu0 0.0
  %444 = vmatprep.subr.mxu0 0.0
  %445 = vmatpush1.msra.mxu0 0.0
  %446 = vmatprep.subr.mxu0 0.0
  %447 = vmatpush1.msra.mxu0 0.0
  %448 = vmatprep.subr.mxu0 0.0
  %449 = vmatpush1.msra.mxu0 0.0
  %450 = vmatprep.subr.mxu0 0.0
  %451 = vmatpush1.msra.mxu0 0.0
  %452 = vmatprep.subr.mxu0 0.0
  %453 = vmatpush1.msra.mxu0 %v141
  %454 = vmatprep.subr.mxu0 0.0
  %455 = vmatpush1.msra.mxu0 %v140
  %456 = vmatprep.subr.mxu0 0.0
  %457 = vmatpush1.msra.mxu0 %v139
  %458 = vmatprep.subr.mxu0 0.0
  %459 = vmatpush1.msra.mxu0 %v138
  %460 = vmatprep.subr.mxu0 0.0
  %461 = vmatpush2.msra.mxu0 0.0
  %462 = vmatprep.subr.mxu0 0.0
  %463 = vmatpush2.msra.mxu0 0.0
  %464 = vmatprep.subr.mxu0 0.0
  %465 = vmatpush2.msra.mxu0 0.0
  %466 = vmatprep.subr.mxu0 0.0
  %467 = vmatpush2.msra.mxu0 0.0
  %468 = vmatprep.subr.mxu0 0.0
  %469 = vmatpush2.msra.mxu0 0.0
  %470 = vmatprep.subr.mxu0 0.0
  %471 = vmatpush2.msra.mxu0 0.0
  %472 = vmatprep.subr.mxu0 0.0
  %473 = vmatpush2.msra.mxu0 0.0
  %474 = vmatprep.subr.mxu0 0.0
  %475 = vmatpush2.msra.mxu0 0.0
  %476 = vmatprep.subr.mxu0 0.0
  %477 = vmatpush2.msra.mxu0 0.0
  %478 = vmatprep.subr.mxu0 0.0
  %479 = vmatpush2.msra.mxu0 0.0
  %480 = vmatprep.subr.mxu0 0.0
  %481 = vmatpush2.msra.mxu0 0.0
  %482 = vmatprep.subr.mxu0 0.0
  %483 = vmatpush2.msra.mxu0 0.0
  %484 = vmatprep.subr.mxu0 0.0
  %485 = vmatpush2.msra.mxu0 0.0
  %486 = vmatprep.subr.mxu0 0.0
  %487 = vmatpush2.msra.mxu0 0.0
  %488 = vmatprep.subr.mxu0 0.0
  %489 = vmatpush2.msra.mxu0 0.0
  %490 = vmatprep.subr.mxu0 0.0
  %491 = vmatpush2.msra.mxu0 0.0
  %492 = vmatprep.mubr.f32.mxu0 0.0
  %493 = vmatmul.mubr.f32.gmra.mxu0 %v426
  %v494 = vpop.f32.mrf.mxu0
  %v495 = vadd.f32 %v421, %v494
  %v496 = vpop.f32.mrf.mxu0
  %497 = vdwg.mxu0
  %v498 = vadd.f32 %v495, %v133
  %499 = vmatprep.subr.mxu0 0.0
  %500 = vmatpush1.msra.mxu0 0.0
  %501 = vmatprep.subr.mxu0 0.0
  %502 = vmatpush1.msra.mxu0 0.0
  %503 = vmatprep.subr.mxu0 0.0
  %504 = vmatpush1.msra.mxu0 0.0
  %505 = vmatprep.subr.mxu0 0.0
  %506 = vmatpush1.msra.mxu0 0.0
  %507 = vmatprep.subr.mxu0 0.0
  %508 = vmatpush1.msra.mxu0 0.0
  %509 = vmatprep.subr.mxu0 0.0
  %510 = vmatpush1.msra.mxu0 0.0
  %511 = vmatprep.subr.mxu0 0.0
  %512 = vmatpush1.msra.mxu0 0.0
  %513 = vmatprep.subr.mxu0 0.0
  %514 = vmatpush1.msra.mxu0 0.0
  %515 = vmatprep.subr.mxu0 0.0
  %516 = vmatpush1.msra.mxu0 0.0
  %517 = vmatprep.subr.mxu0 0.0
  %518 = vmatpush1.msra.mxu0 0.0
  %519 = vmatprep.subr.mxu0 0.0
  %520 = vmatpush1.msra.mxu0 0.0
  %521 = vmatprep.subr.mxu0 0.0
  %522 = vmatpush1.msra.mxu0 0.0
  %523 = vmatprep.subr.mxu0 0.0
  %524 = vmatpush1.msra.mxu0 %v157
  %525 = vmatprep.subr.mxu0 0.0
  %526 = vmatpush1.msra.mxu0 %v156
  %527 = vmatprep.subr.mxu0 0.0
  %528 = vmatpush1.msra.mxu0 %v155
  %529 = vmatprep.subr.mxu0 0.0
  %530 = vmatpush1.msra.mxu0 %v154
  %531 = vmatprep.subr.mxu0 0.0
  %532 = vmatpush2.msra.mxu0 0.0
  %533 = vmatprep.subr.mxu0 0.0
  %534 = vmatpush2.msra.mxu0 0.0
  %535 = vmatprep.subr.mxu0 0.0
  %536 = vmatpush2.msra.mxu0 0.0
  %537 = vmatprep.subr.mxu0 0.0
  %538 = vmatpush2.msra.mxu0 0.0
  %539 = vmatprep.subr.mxu0 0.0
  %540 = vmatpush2.msra.mxu0 0.0
  %541 = vmatprep.subr.mxu0 0.0
  %542 = vmatpush2.msra.mxu0 0.0
  %543 = vmatprep.subr.mxu0 0.0
  %544 = vmatpush2.msra.mxu0 0.0
  %545 = vmatprep.subr.mxu0 0.0
  %546 = vmatpush2.msra.mxu0 0.0
  %547 = vmatprep.subr.mxu0 0.0
  %548 = vmatpush2.msra.mxu0 0.0
  %549 = vmatprep.subr.mxu0 0.0
  %550 = vmatpush2.msra.mxu0 0.0
  %551 = vmatprep.subr.mxu0 0.0
  %552 = vmatpush2.msra.mxu0 0.0
  %553 = vmatprep.subr.mxu0 0.0
  %554 = vmatpush2.msra.mxu0 0.0
  %555 = vmatprep.subr.mxu0 0.0
  %556 = vmatpush2.msra.mxu0 0.0
  %557 = vmatprep.subr.mxu0 0.0
  %558 = vmatpush2.msra.mxu0 0.0
  %559 = vmatprep.subr.mxu0 0.0
  %560 = vmatpush2.msra.mxu0 0.0
  %561 = vmatprep.subr.mxu0 0.0
  %562 = vmatpush2.msra.mxu0 0.0
  %563 = vmatprep.mubr.f32.mxu0 0.0
  %564 = vmatmul.mubr.f32.gmra.mxu0 %v426
  %v565 = vpop.f32.mrf.mxu0
  %v566 = vadd.f32 0.0, %v565
  %v567 = vpop.f32.mrf.mxu0
  %568 = vdwg.mxu0
  %v569 = vlaneseq
  %v570 = vshrl.u32 %v569, 7
  %v571 = vsub.s32 0, %v570
  %v572 = vrot.slane %v498, %v571
  %v573 = vsub.f32 %v498, %v572
  %575 = vset.pattern.permute.xlu0 0
  %576 = vperm.xlu0 %575, %v573
  %v577 = vpop.permute.xlu0 %576
  %v579 = vlaneseq
  %v580 = vshrl.u32 %v579, 7
  %v581 = vsub.s32 0, %v580
  %v582 = vrot.slane %v150, %v581
  %v583 = vmul.f32 %v577, %v582
  %584 = vset.pattern.permute.xlu0 1
  %585 = vperm.xlu0 %584, %v573
  %v586 = vpop.permute.xlu0 %585
  %v588 = vlaneseq
  %v589 = vshrl.u32 %v588, 7
  %v590 = vsub.s32 1, %v589
  %v591 = vrot.slane %v150, %v590
  %v592 = vmul.f32 %v586, %v591
  %v593 = vadd.f32 %v583, %v592
  %v595 = vlaneseq
  %v596 = vshrl.u32 %v595, 7
  %v597 = vsub.s32 0, %v596
  %v598 = vrot.slane %v151, %v597
  %v600 = vadd.f32 %v593, %v598
  %v602 = vsel %vm308, %v600, 0
  %604 = vmatprep.subr.mxu0 0.0
  %605 = vmatpush1.msra.mxu0 0.0
  %606 = vmatprep.subr.mxu0 0.0
  %607 = vmatpush1.msra.mxu0 0.0
  %608 = vmatprep.subr.mxu0 0.0
  %609 = vmatpush1.msra.mxu0 0.0
  %610 = vmatprep.subr.mxu0 0.0
  %611 = vmatpush1.msra.mxu0 0.0
  %612 = vmatprep.subr.mxu0 0.0
  %613 = vmatpush1.msra.mxu0 0.0
  %614 = vmatprep.subr.mxu0 0.0
  %615 = vmatpush1.msra.mxu0 0.0
  %616 = vmatprep.subr.mxu0 0.0
  %617 = vmatpush1.msra.mxu0 0.0
  %618 = vmatprep.subr.mxu0 0.0
  %619 = vmatpush1.msra.mxu0 0.0
  %620 = vmatprep.subr.mxu0 0.0
  %621 = vmatpush1.msra.mxu0 0.0
  %622 = vmatprep.subr.mxu0 0.0
  %623 = vmatpush1.msra.mxu0 0.0
  %624 = vmatprep.subr.mxu0 0.0
  %625 = vmatpush1.msra.mxu0 0.0
  %626 = vmatprep.subr.mxu0 0.0
  %627 = vmatpush1.msra.mxu0 0.0
  %628 = vmatprep.subr.mxu0 0.0
  %629 = vmatpush1.msra.mxu0 0.0
  %630 = vmatprep.subr.mxu0 0.0
  %631 = vmatpush1.msra.mxu0 0.0
  %632 = vmatprep.subr.mxu0 0.0
  %633 = vmatpush1.msra.mxu0 %v153
  %634 = vmatprep.subr.mxu0 0.0
  %635 = vmatpush1.msra.mxu0 %v152
  %636 = vmatprep.subr.mxu0 0.0
  %637 = vmatpush2.msra.mxu0 0.0
  %638 = vmatprep.subr.mxu0 0.0
  %639 = vmatpush2.msra.mxu0 0.0
  %640 = vmatprep.subr.mxu0 0.0
  %641 = vmatpush2.msra.mxu0 0.0
  %642 = vmatprep.subr.mxu0 0.0
  %643 = vmatpush2.msra.mxu0 0.0
  %644 = vmatprep.subr.mxu0 0.0
  %645 = vmatpush2.msra.mxu0 0.0
  %646 = vmatprep.subr.mxu0 0.0
  %647 = vmatpush2.msra.mxu0 0.0
  %648 = vmatprep.subr.mxu0 0.0
  %649 = vmatpush2.msra.mxu0 0.0
  %650 = vmatprep.subr.mxu0 0.0
  %651 = vmatpush2.msra.mxu0 0.0
  %652 = vmatprep.subr.mxu0 0.0
  %653 = vmatpush2.msra.mxu0 0.0
  %654 = vmatprep.subr.mxu0 0.0
  %655 = vmatpush2.msra.mxu0 0.0
  %656 = vmatprep.subr.mxu0 0.0
  %657 = vmatpush2.msra.mxu0 0.0
  %658 = vmatprep.subr.mxu0 0.0
  %659 = vmatpush2.msra.mxu0 0.0
  %660 = vmatprep.subr.mxu0 0.0
  %661 = vmatpush2.msra.mxu0 0.0
  %662 = vmatprep.subr.mxu0 0.0
  %663 = vmatpush2.msra.mxu0 0.0
  %664 = vmatprep.subr.mxu0 0.0
  %665 = vmatpush2.msra.mxu0 0.0
  %666 = vmatprep.subr.mxu0 0.0
  %667 = vmatpush2.msra.mxu0 0.0
  %668 = vmatprep.mubr.f32.mxu0 0.0
  %669 = vmatmul.mubr.f32.gmra.mxu0 %v602
  %v670 = vpop.f32.mrf.mxu0
  %v671 = vadd.f32 %v566, %v670
  %v672 = vpop.f32.mrf.mxu0
  %673 = vdwg.mxu0
  %v675 = vlaneseq
  %v676 = vshrl.u32 %v675, 7
  %v677 = vsub.s32 0, %v676
  %v678 = vrot.slane %v158, %v677
  %v680 = vadd.f32 %v671, %v678
  %v681 = vlaneseq
  %v682 = vshrl.u32 %v681, 7
  %v683 = vsub.s32 1, %v682
  %v684 = vrot.slane %v498, %v683
  %v685 = vsub.f32 %v498, %v684
  %687 = vset.pattern.permute.xlu0 0
  %688 = vperm.xlu0 %687, %v685
  %v689 = vpop.permute.xlu0 %688
  %v691 = vmul.f32 %v689, %v582
  %692 = vset.pattern.permute.xlu0 1
  %693 = vperm.xlu0 %692, %v685
  %v694 = vpop.permute.xlu0 %693
  %v696 = vmul.f32 %v694, %v591
  %v697 = vadd.f32 %v691, %v696
  %v698 = vadd.f32 %v697, %v598
  %v700 = vsel %vm308, %v698, 0
  %702 = vmatprep.subr.mxu0 0.0
  %703 = vmatpush1.msra.mxu0 0.0
  %704 = vmatprep.subr.mxu0 0.0
  %705 = vmatpush1.msra.mxu0 0.0
  %706 = vmatprep.subr.mxu0 0.0
  %707 = vmatpush1.msra.mxu0 0.0
  %708 = vmatprep.subr.mxu0 0.0
  %709 = vmatpush1.msra.mxu0 0.0
  %710 = vmatprep.subr.mxu0 0.0
  %711 = vmatpush1.msra.mxu0 0.0
  %712 = vmatprep.subr.mxu0 0.0
  %713 = vmatpush1.msra.mxu0 0.0
  %714 = vmatprep.subr.mxu0 0.0
  %715 = vmatpush1.msra.mxu0 0.0
  %716 = vmatprep.subr.mxu0 0.0
  %717 = vmatpush1.msra.mxu0 0.0
  %718 = vmatprep.subr.mxu0 0.0
  %719 = vmatpush1.msra.mxu0 0.0
  %720 = vmatprep.subr.mxu0 0.0
  %721 = vmatpush1.msra.mxu0 0.0
  %722 = vmatprep.subr.mxu0 0.0
  %723 = vmatpush1.msra.mxu0 0.0
  %724 = vmatprep.subr.mxu0 0.0
  %725 = vmatpush1.msra.mxu0 0.0
  %726 = vmatprep.subr.mxu0 0.0
  %727 = vmatpush1.msra.mxu0 0.0
  %728 = vmatprep.subr.mxu0 0.0
  %729 = vmatpush1.msra.mxu0 0.0
  %730 = vmatprep.subr.mxu0 0.0
  %731 = vmatpush1.msra.mxu0 %v153
  %732 = vmatprep.subr.mxu0 0.0
  %733 = vmatpush1.msra.mxu0 %v152
  %734 = vmatprep.subr.mxu0 0.0
  %735 = vmatpush2.msra.mxu0 0.0
  %736 = vmatprep.subr.mxu0 0.0
  %737 = vmatpush2.msra.mxu0 0.0
  %738 = vmatprep.subr.mxu0 0.0
  %739 = vmatpush2.msra.mxu0 0.0
  %740 = vmatprep.subr.mxu0 0.0
  %741 = vmatpush2.msra.mxu0 0.0
  %742 = vmatprep.subr.mxu0 0.0
  %743 = vmatpush2.msra.mxu0 0.0
  %744 = vmatprep.subr.mxu0 0.0
  %745 = vmatpush2.msra.mxu0 0.0
  %746 = vmatprep.subr.mxu0 0.0
  %747 = vmatpush2.msra.mxu0 0.0
  %748 = vmatprep.subr.mxu0 0.0
  %749 = vmatpush2.msra.mxu0 0.0
  %750 = vmatprep.subr.mxu0 0.0
  %751 = vmatpush2.msra.mxu0 0.0
  %752 = vmatprep.subr.mxu0 0.0
  %753 = vmatpush2.msra.mxu0 0.0
  %754 = vmatprep.subr.mxu0 0.0
  %755 = vmatpush2.msra.mxu0 0.0
  %756 = vmatprep.subr.mxu0 0.0
  %757 = vmatpush2.msra.mxu0 0.0
  %758 = vmatprep.subr.mxu0 0.0
  %759 = vmatpush2.msra.mxu0 0.0
  %760 = vmatprep.subr.mxu0 0.0
  %761 = vmatpush2.msra.mxu0 0.0
  %762 = vmatprep.subr.mxu0 0.0
  %763 = vmatpush2.msra.mxu0 0.0
  %764 = vmatprep.subr.mxu0 0.0
  %765 = vmatpush2.msra.mxu0 0.0
  %766 = vmatprep.mubr.f32.mxu0 0.0
  %767 = vmatmul.mubr.f32.gmra.mxu0 %v700
  %v768 = vpop.f32.mrf.mxu0
  %v769 = vadd.f32 %v566, %v768
  %v770 = vpop.f32.mrf.mxu0
  %771 = vdwg.mxu0
  %v772 = vadd.f32 %v769, %v678
  %v773 = vlaneseq
  %v774 = vshrl.u32 %v773, 7
  %v775 = vsub.s32 2, %v774
  %v776 = vrot.slane %v498, %v775
  %v777 = vsub.f32 %v498, %v776
  %779 = vset.pattern.permute.xlu0 0
  %780 = vperm.xlu0 %779, %v777
  %v781 = vpop.permute.xlu0 %780
  %v783 = vmul.f32 %v781, %v582
  %784 = vset.pattern.permute.xlu0 1
  %785 = vperm.xlu0 %784, %v777
  %v786 = vpop.permute.xlu0 %785
  %v788 = vmul.f32 %v786, %v591
  %v789 = vadd.f32 %v783, %v788
  %v790 = vadd.f32 %v789, %v598
  %v792 = vsel %vm308, %v790, 0
  %794 = vmatprep.subr.mxu0 0.0
  %795 = vmatpush1.msra.mxu0 0.0
  %796 = vmatprep.subr.mxu0 0.0
  %797 = vmatpush1.msra.mxu0 0.0
  %798 = vmatprep.subr.mxu0 0.0
  %799 = vmatpush1.msra.mxu0 0.0
  %800 = vmatprep.subr.mxu0 0.0
  %801 = vmatpush1.msra.mxu0 0.0
  %802 = vmatprep.subr.mxu0 0.0
  %803 = vmatpush1.msra.mxu0 0.0
  %804 = vmatprep.subr.mxu0 0.0
  %805 = vmatpush1.msra.mxu0 0.0
  %806 = vmatprep.subr.mxu0 0.0
  %807 = vmatpush1.msra.mxu0 0.0
  %808 = vmatprep.subr.mxu0 0.0
  %809 = vmatpush1.msra.mxu0 0.0
  %810 = vmatprep.subr.mxu0 0.0
  %811 = vmatpush1.msra.mxu0 0.0
  %812 = vmatprep.subr.mxu0 0.0
  %813 = vmatpush1.msra.mxu0 0.0
  %814 = vmatprep.subr.mxu0 0.0
  %815 = vmatpush1.msra.mxu0 0.0
  %816 = vmatprep.subr.mxu0 0.0
  %817 = vmatpush1.msra.mxu0 0.0
  %818 = vmatprep.subr.mxu0 0.0
  %819 = vmatpush1.msra.mxu0 0.0
  %820 = vmatprep.subr.mxu0 0.0
  %821 = vmatpush1.msra.mxu0 0.0
  %822 = vmatprep.subr.mxu0 0.0
  %823 = vmatpush1.msra.mxu0 %v153
  %824 = vmatprep.subr.mxu0 0.0
  %825 = vmatpush1.msra.mxu0 %v152
  %826 = vmatprep.subr.mxu0 0.0
  %827 = vmatpush2.msra.mxu0 0.0
  %828 = vmatprep.subr.mxu0 0.0
  %829 = vmatpush2.msra.mxu0 0.0
  %830 = vmatprep.subr.mxu0 0.0
  %831 = vmatpush2.msra.mxu0 0.0
  %832 = vmatprep.subr.mxu0 0.0
  %833 = vmatpush2.msra.mxu0 0.0
  %834 = vmatprep.subr.mxu0 0.0
  %835 = vmatpush2.msra.mxu0 0.0
  %836 = vmatprep.subr.mxu0 0.0
  %837 = vmatpush2.msra.mxu0 0.0
  %838 = vmatprep.subr.mxu0 0.0
  %839 = vmatpush2.msra.mxu0 0.0
  %840 = vmatprep.subr.mxu0 0.0
  %841 = vmatpush2.msra.mxu0 0.0
  %842 = vmatprep.subr.mxu0 0.0
  %843 = vmatpush2.msra.mxu0 0.0
  %844 = vmatprep.subr.mxu0 0.0
  %845 = vmatpush2.msra.mxu0 0.0
  %846 = vmatprep.subr.mxu0 0.0
  %847 = vmatpush2.msra.mxu0 0.0
  %848 = vmatprep.subr.mxu0 0.0
  %849 = vmatpush2.msra.mxu0 0.0
  %850 = vmatprep.subr.mxu0 0.0
  %851 = vmatpush2.msra.mxu0 0.0
  %852 = vmatprep.subr.mxu0 0.0
  %853 = vmatpush2.msra.mxu0 0.0
  %854 = vmatprep.subr.mxu0 0.0
  %855 = vmatpush2.msra.mxu0 0.0
  %856 = vmatprep.subr.mxu0 0.0
  %857 = vmatpush2.msra.mxu0 0.0
  %858 = vmatprep.mubr.f32.mxu0 0.0
  %859 = vmatmul.mubr.f32.gmra.mxu0 %v792
  %v860 = vpop.f32.mrf.mxu0
  %v861 = vadd.f32 %v566, %v860
  %v862 = vpop.f32.mrf.mxu0
  %863 = vdwg.mxu0
  %v864 = vadd.f32 %v861, %v678
  %vm865 = vcmask 1042432
  %v866 = vsel %vm865, %v680, 0.0
  %v867 = vrot.slane %v866, 4
  %v868 = vadd.f32 %v866, %v867
  %v869 = vrot.slane %v868, 2
  %v870 = vadd.f32 %v868, %v869
  %v871 = vrot.slane %v870, 1
  %v872 = vadd.f32 %v870, %v871
  %v873 = vadd.f32 %v872, 0.0
  %v874 = vsel %vm865, %v772, 0.0
  %v875 = vrot.slane %v874, 4
  %v876 = vadd.f32 %v874, %v875
  %v877 = vrot.slane %v876, 2
  %v878 = vadd.f32 %v876, %v877
  %v879 = vrot.slane %v878, 1
  %v880 = vadd.f32 %v878, %v879
  %v881 = vadd.f32 %v873, %v880
  %v882 = vsel %vm865, %v864, 0.0
  %v883 = vrot.slane %v882, 4
  %v884 = vadd.f32 %v882, %v883
  %v885 = vrot.slane %v884, 2
  %v886 = vadd.f32 %v884, %v885
  %v887 = vrot.slane %v886, 1
  %v888 = vadd.f32 %v886, %v887
  %v889 = vadd.f32 %v881, %v888
  %v890 = vrcp.pop 9.0
  %v891 = vmul.f32 %v889, %v890
  %v892 = vsub.f32 %v680, %v891
  %v893 = vmul.f32 %v892, %v892
  %v894 = vsel %vm865, %v893, 0.0
  %v895 = vrot.slane %v894, 4
  %v896 = vadd.f32 %v894, %v895
  %v897 = vrot.slane %v896, 2
  %v898 = vadd.f32 %v896, %v897
  %v899 = vrot.slane %v898, 1
  %v900 = vadd.f32 %v898, %v899
  %v901 = vadd.f32 %v900, 0.0
  %v902 = vsub.f32 %v772, %v891
  %v903 = vmul.f32 %v902, %v902
  %v904 = vsel %vm865, %v903, 0.0
  %v905 = vrot.slane %v904, 4
  %v906 = vadd.f32 %v904, %v905
  %v907 = vrot.slane %v906, 2
  %v908 = vadd.f32 %v906, %v907
  %v909 = vrot.slane %v908, 1
  %v910 = vadd.f32 %v908, %v909
  %v911 = vadd.f32 %v901, %v910
  %v912 = vsub.f32 %v864, %v891
  %v913 = vmul.f32 %v912, %v912
  %v914 = vsel %vm865, %v913, 0.0
  %v915 = vrot.slane %v914, 4
  %v916 = vadd.f32 %v914, %v915
  %v917 = vrot.slane %v916, 2
  %v918 = vadd.f32 %v916, %v917
  %v919 = vrot.slane %v918, 1
  %v920 = vadd.f32 %v918, %v919
  %v921 = vadd.f32 %v911, %v920
  %v922 = vmul.f32 %v921, %v890
  %v923 = vadd.f32 %v922, 1e-05
  %v924 = vrsqrt.pop %v923
  %v925 = vmul.f32 %v892, %v924
  %v927 = vlaneseq
  %v928 = vshrl.u32 %v927, 7
  %v929 = vsub.s32 0, %v928
  %v930 = vrot.slane %v159, %v929
  %v932 = vmul.f32 %v925, %v930
  %v934 = vlaneseq
  %v935 = vshrl.u32 %v934, 7
  %v936 = vsub.s32 0, %v935
  %v937 = vrot.slane %v160, %v936
  %v939 = vadd.f32 %v932, %v937
  %v940 = vmax.f32 %v939, 0.0
  %v942 = vlaneseq
  %v943 = vshrl.u32 %v942, 7
  %v944 = vsub.s32 0, %v943
  %v945 = vrot.slane %v177, %v944
  %947 = vmatprep.subr.mxu0 0.0
  %948 = vmatpush1.msra.mxu0 %v176
  %949 = vmatprep.subr.mxu0 0.0
  %950 = vmatpush1.msra.mxu0 %v175
  %951 = vmatprep.subr.mxu0 0.0
  %952 = vmatpush1.msra.mxu0 %v174
  %953 = vmatprep.subr.mxu0 0.0
  %954 = vmatpush1.msra.mxu0 %v173
  %955 = vmatprep.subr.mxu0 0.0
  %956 = vmatpush1.msra.mxu0 %v172
  %957 = vmatprep.subr.mxu0 0.0
  %958 = vmatpush1.msra.mxu0 %v171
  %959 = vmatprep.subr.mxu0 0.0
  %960 = vmatpush1.msra.mxu0 %v170
  %961 = vmatprep.subr.mxu0 0.0
  %962 = vmatpush1.msra.mxu0 %v169
  %963 = vmatprep.subr.mxu0 0.0
  %964 = vmatpush1.msra.mxu0 %v168
  %965 = vmatprep.subr.mxu0 0.0
  %966 = vmatpush1.msra.mxu0 %v167
  %967 = vmatprep.subr.mxu0 0.0
  %968 = vmatpush1.msra.mxu0 %v166
  %969 = vmatprep.subr.mxu0 0.0
  %970 = vmatpush1.msra.mxu0 %v165
  %971 = vmatprep.subr.mxu0 0.0
  %972 = vmatpush1.msra.mxu0 %v164
  %973 = vmatprep.subr.mxu0 0.0
  %974 = vmatpush1.msra.mxu0 %v163
  %975 = vmatprep.subr.mxu0 0.0
  %976 = vmatpush1.msra.mxu0 %v162
  %977 = vmatprep.subr.mxu0 0.0
  %978 = vmatpush1.msra.mxu0 %v161
  %979 = vmatprep.subr.mxu0 0.0
  %980 = vmatpush2.msra.mxu0 0.0
  %981 = vmatprep.subr.mxu0 0.0
  %982 = vmatpush2.msra.mxu0 0.0
  %983 = vmatprep.subr.mxu0 0.0
  %984 = vmatpush2.msra.mxu0 0.0
  %985 = vmatprep.subr.mxu0 0.0
  %986 = vmatpush2.msra.mxu0 0.0
  %987 = vmatprep.subr.mxu0 0.0
  %988 = vmatpush2.msra.mxu0 0.0
  %989 = vmatprep.subr.mxu0 0.0
  %990 = vmatpush2.msra.mxu0 0.0
  %991 = vmatprep.subr.mxu0 0.0
  %992 = vmatpush2.msra.mxu0 0.0
  %993 = vmatprep.subr.mxu0 0.0
  %994 = vmatpush2.msra.mxu0 0.0
  %995 = vmatprep.subr.mxu0 0.0
  %996 = vmatpush2.msra.mxu0 0.0
  %997 = vmatprep.subr.mxu0 0.0
  %998 = vmatpush2.msra.mxu0 0.0
  %999 = vmatprep.subr.mxu0 0.0
  %1000 = vmatpush2.msra.mxu0 0.0
  %1001 = vmatprep.subr.mxu0 0.0
  %1002 = vmatpush2.msra.mxu0 0.0
  %1003 = vmatprep.subr.mxu0 0.0
  %1004 = vmatpush2.msra.mxu0 0.0
  %1005 = vmatprep.subr.mxu0 0.0
  %1006 = vmatpush2.msra.mxu0 0.0
  %1007 = vmatprep.subr.mxu0 0.0
  %1008 = vmatpush2.msra.mxu0 0.0
  %1009 = vmatprep.subr.mxu0 0.0
  %1010 = vmatpush2.msra.mxu0 0.0
  %1011 = vmatprep.mubr.f32.mxu0 0.0
  %1012 = vmatmul.mubr.f32.gmra.mxu0 %v940
  %v1013 = vpop.f32.mrf.mxu0
  %v1014 = vadd.f32 %v945, %v1013
  %v1015 = vpop.f32.mrf.mxu0
  %1016 = vdwg.mxu0
  %v1017 = vmul.f32 %v902, %v924
  %v1018 = vmul.f32 %v1017, %v930
  %v1019 = vadd.f32 %v1018, %v937
  %v1020 = vmax.f32 %v1019, 0.0
  %1021 = vmatprep.subr.mxu0 0.0
  %1022 = vmatpush1.msra.mxu0 %v176
  %1023 = vmatprep.subr.mxu0 0.0
  %1024 = vmatpush1.msra.mxu0 %v175
  %1025 = vmatprep.subr.mxu0 0.0
  %1026 = vmatpush1.msra.mxu0 %v174
  %1027 = vmatprep.subr.mxu0 0.0
  %1028 = vmatpush1.msra.mxu0 %v173
  %1029 = vmatprep.subr.mxu0 0.0
  %1030 = vmatpush1.msra.mxu0 %v172
  %1031 = vmatprep.subr.mxu0 0.0
  %1032 = vmatpush1.msra.mxu0 %v171
  %1033 = vmatprep.subr.mxu0 0.0
  %1034 = vmatpush1.msra.mxu0 %v170
  %1035 = vmatprep.subr.mxu0 0.0
  %1036 = vmatpush1.msra.mxu0 %v169
  %1037 = vmatprep.subr.mxu0 0.0
  %1038 = vmatpush1.msra.mxu0 %v168
  %1039 = vmatprep.subr.mxu0 0.0
  %1040 = vmatpush1.msra.mxu0 %v167
  %1041 = vmatprep.subr.mxu0 0.0
  %1042 = vmatpush1.msra.mxu0 %v166
  %1043 = vmatprep.subr.mxu0 0.0
  %1044 = vmatpush1.msra.mxu0 %v165
  %1045 = vmatprep.subr.mxu0 0.0
  %1046 = vmatpush1.msra.mxu0 %v164
  %1047 = vmatprep.subr.mxu0 0.0
  %1048 = vmatpush1.msra.mxu0 %v163
  %1049 = vmatprep.subr.mxu0 0.0
  %1050 = vmatpush1.msra.mxu0 %v162
  %1051 = vmatprep.subr.mxu0 0.0
  %1052 = vmatpush1.msra.mxu0 %v161
  %1053 = vmatprep.subr.mxu0 0.0
  %1054 = vmatpush2.msra.mxu0 0.0
  %1055 = vmatprep.subr.mxu0 0.0
  %1056 = vmatpush2.msra.mxu0 0.0
  %1057 = vmatprep.subr.mxu0 0.0
  %1058 = vmatpush2.msra.mxu0 0.0
  %1059 = vmatprep.subr.mxu0 0.0
  %1060 = vmatpush2.msra.mxu0 0.0
  %1061 = vmatprep.subr.mxu0 0.0
  %1062 = vmatpush2.msra.mxu0 0.0
  %1063 = vmatprep.subr.mxu0 0.0
  %1064 = vmatpush2.msra.mxu0 0.0
  %1065 = vmatprep.subr.mxu0 0.0
  %1066 = vmatpush2.msra.mxu0 0.0
  %1067 = vmatprep.subr.mxu0 0.0
  %1068 = vmatpush2.msra.mxu0 0.0
  %1069 = vmatprep.subr.mxu0 0.0
  %1070 = vmatpush2.msra.mxu0 0.0
  %1071 = vmatprep.subr.mxu0 0.0
  %1072 = vmatpush2.msra.mxu0 0.0
  %1073 = vmatprep.subr.mxu0 0.0
  %1074 = vmatpush2.msra.mxu0 0.0
  %1075 = vmatprep.subr.mxu0 0.0
  %1076 = vmatpush2.msra.mxu0 0.0
  %1077 = vmatprep.subr.mxu0 0.0
  %1078 = vmatpush2.msra.mxu0 0.0
  %1079 = vmatprep.subr.mxu0 0.0
  %1080 = vmatpush2.msra.mxu0 0.0
  %1081 = vmatprep.subr.mxu0 0.0
  %1082 = vmatpush2.msra.mxu0 0.0
  %1083 = vmatprep.subr.mxu0 0.0
  %1084 = vmatpush2.msra.mxu0 0.0
  %1085 = vmatprep.mubr.f32.mxu0 0.0
  %1086 = vmatmul.mubr.f32.gmra.mxu0 %v1020
  %v1087 = vpop.f32.mrf.mxu0
  %v1088 = vadd.f32 %v945, %v1087
  %v1089 = vpop.f32.mrf.mxu0
  %1090 = vdwg.mxu0
  %v1091 = vmul.f32 %v912, %v924
  %v1092 = vmul.f32 %v1091, %v930
  %v1093 = vadd.f32 %v1092, %v937
  %v1094 = vmax.f32 %v1093, 0.0
  %1095 = vmatprep.subr.mxu0 0.0
  %1096 = vmatpush1.msra.mxu0 %v176
  %1097 = vmatprep.subr.mxu0 0.0
  %1098 = vmatpush1.msra.mxu0 %v175
  %1099 = vmatprep.subr.mxu0 0.0
  %1100 = vmatpush1.msra.mxu0 %v174
  %1101 = vmatprep.subr.mxu0 0.0
  %1102 = vmatpush1.msra.mxu0 %v173
  %1103 = vmatprep.subr.mxu0 0.0
  %1104 = vmatpush1.msra.mxu0 %v172
  %1105 = vmatprep.subr.mxu0 0.0
  %1106 = vmatpush1.msra.mxu0 %v171
  %1107 = vmatprep.subr.mxu0 0.0
  %1108 = vmatpush1.msra.mxu0 %v170
  %1109 = vmatprep.subr.mxu0 0.0
  %1110 = vmatpush1.msra.mxu0 %v169
  %1111 = vmatprep.subr.mxu0 0.0
  %1112 = vmatpush1.msra.mxu0 %v168
  %1113 = vmatprep.subr.mxu0 0.0
  %1114 = vmatpush1.msra.mxu0 %v167
  %1115 = vmatprep.subr.mxu0 0.0
  %1116 = vmatpush1.msra.mxu0 %v166
  %1117 = vmatprep.subr.mxu0 0.0
  %1118 = vmatpush1.msra.mxu0 %v165
  %1119 = vmatprep.subr.mxu0 0.0
  %1120 = vmatpush1.msra.mxu0 %v164
  %1121 = vmatprep.subr.mxu0 0.0
  %1122 = vmatpush1.msra.mxu0 %v163
  %1123 = vmatprep.subr.mxu0 0.0
  %1124 = vmatpush1.msra.mxu0 %v162
  %1125 = vmatprep.subr.mxu0 0.0
  %1126 = vmatpush1.msra.mxu0 %v161
  %1127 = vmatprep.subr.mxu0 0.0
  %1128 = vmatpush2.msra.mxu0 0.0
  %1129 = vmatprep.subr.mxu0 0.0
  %1130 = vmatpush2.msra.mxu0 0.0
  %1131 = vmatprep.subr.mxu0 0.0
  %1132 = vmatpush2.msra.mxu0 0.0
  %1133 = vmatprep.subr.mxu0 0.0
  %1134 = vmatpush2.msra.mxu0 0.0
  %1135 = vmatprep.subr.mxu0 0.0
  %1136 = vmatpush2.msra.mxu0 0.0
  %1137 = vmatprep.subr.mxu0 0.0
  %1138 = vmatpush2.msra.mxu0 0.0
  %1139 = vmatprep.subr.mxu0 0.0
  %1140 = vmatpush2.msra.mxu0 0.0
  %1141 = vmatprep.subr.mxu0 0.0
  %1142 = vmatpush2.msra.mxu0 0.0
  %1143 = vmatprep.subr.mxu0 0.0
  %1144 = vmatpush2.msra.mxu0 0.0
  %1145 = vmatprep.subr.mxu0 0.0
  %1146 = vmatpush2.msra.mxu0 0.0
  %1147 = vmatprep.subr.mxu0 0.0
  %1148 = vmatpush2.msra.mxu0 0.0
  %1149 = vmatprep.subr.mxu0 0.0
  %1150 = vmatpush2.msra.mxu0 0.0
  %1151 = vmatprep.subr.mxu0 0.0
  %1152 = vmatpush2.msra.mxu0 0.0
  %1153 = vmatprep.subr.mxu0 0.0
  %1154 = vmatpush2.msra.mxu0 0.0
  %1155 = vmatprep.subr.mxu0 0.0
  %1156 = vmatpush2.msra.mxu0 0.0
  %1157 = vmatprep.subr.mxu0 0.0
  %1158 = vmatpush2.msra.mxu0 0.0
  %1159 = vmatprep.mubr.f32.mxu0 0.0
  %1160 = vmatmul.mubr.f32.gmra.mxu0 %v1094
  %v1161 = vpop.f32.mrf.mxu0
  %v1162 = vadd.f32 %v945, %v1161
  %v1163 = vpop.f32.mrf.mxu0
  %1164 = vdwg.mxu0
  %vm1165 = vcmask 518144
  %v1166 = vsel %vm1165, %v1014, 0.0
  %v1167 = vrot.slane %v1166, 4
  %v1168 = vadd.f32 %v1166, %v1167
  %v1169 = vrot.slane %v1168, 2
  %v1170 = vadd.f32 %v1168, %v1169
  %v1171 = vrot.slane %v1170, 1
  %v1172 = vadd.f32 %v1170, %v1171
  %v1173 = vadd.f32 %v1172, 0.0
  %v1174 = vsel %vm1165, %v1088, 0.0
  %v1175 = vrot.slane %v1174, 4
  %v1176 = vadd.f32 %v1174, %v1175
  %v1177 = vrot.slane %v1176, 2
  %v1178 = vadd.f32 %v1176, %v1177
  %v1179 = vrot.slane %v1178, 1
  %v1180 = vadd.f32 %v1178, %v1179
  %v1181 = vadd.f32 %v1173, %v1180
  %v1182 = vsel %vm1165, %v1162, 0.0
  %v1183 = vrot.slane %v1182, 4
  %v1184 = vadd.f32 %v1182, %v1183
  %v1185 = vrot.slane %v1184, 2
  %v1186 = vadd.f32 %v1184, %v1185
  %v1187 = vrot.slane %v1186, 1
  %v1188 = vadd.f32 %v1186, %v1187
  %v1189 = vadd.f32 %v1181, %v1188
  %v1190 = vmul.f32 %v1189, %v890
  %v1191 = vsub.f32 %v1014, %v1190
  %v1192 = vmul.f32 %v1191, %v1191
  %v1193 = vsel %vm1165, %v1192, 0.0
  %v1194 = vrot.slane %v1193, 4
  %v1195 = vadd.f32 %v1193, %v1194
  %v1196 = vrot.slane %v1195, 2
  %v1197 = vadd.f32 %v1195, %v1196
  %v1198 = vrot.slane %v1197, 1
  %v1199 = vadd.f32 %v1197, %v1198
  %v1200 = vadd.f32 %v1199, 0.0
  %v1201 = vsub.f32 %v1088, %v1190
  %v1202 = vmul.f32 %v1201, %v1201
  %v1203 = vsel %vm1165, %v1202, 0.0
  %v1204 = vrot.slane %v1203, 4
  %v1205 = vadd.f32 %v1203, %v1204
  %v1206 = vrot.slane %v1205, 2
  %v1207 = vadd.f32 %v1205, %v1206
  %v1208 = vrot.slane %v1207, 1
  %v1209 = vadd.f32 %v1207, %v1208
  %v1210 = vadd.f32 %v1200, %v1209
  %v1211 = vsub.f32 %v1162, %v1190
  %v1212 = vmul.f32 %v1211, %v1211
  %v1213 = vsel %vm1165, %v1212, 0.0
  %v1214 = vrot.slane %v1213, 4
  %v1215 = vadd.f32 %v1213, %v1214
  %v1216 = vrot.slane %v1215, 2
  %v1217 = vadd.f32 %v1215, %v1216
  %v1218 = vrot.slane %v1217, 1
  %v1219 = vadd.f32 %v1217, %v1218
  %v1220 = vadd.f32 %v1210, %v1219
  %v1221 = vmul.f32 %v1220, %v890
  %v1222 = vadd.f32 %v1221, 1e-05
  %v1223 = vrsqrt.pop %v1222
  %v1224 = vmul.f32 %v1191, %v1223
  %v1226 = vlaneseq
  %v1227 = vshrl.u32 %v1226, 7
  %v1228 = vsub.s32 0, %v1227
  %v1229 = vrot.slane %v178, %v1228
  %v1231 = vmul.f32 %v1224, %v1229
  %v1233 = vlaneseq
  %v1234 = vshrl.u32 %v1233, 7
  %v1235 = vsub.s32 0, %v1234
  %v1236 = vrot.slane %v179, %v1235
  %v1238 = vadd.f32 %v1231, %v1236
  %v1239 = vmax.f32 %v1238, 0.0
  %v1240 = vsel %vm1165, %v1239, -inf
  %v1241 = vrot.slane %v1240, 4
  %v1242 = vmax.f32 %v1240, %v1241
  %v1243 = vrot.slane %v1242, 2
  %v1244 = vmax.f32 %v1242, %v1243
  %v1245 = vrot.slane %v1244, 1
  %v1246 = vmax.f32 %v1244, %v1245
  %vm1247 = vcmask 516096
  %1248 = vst.msk [vmem:[#allocation2] sm:$0x1] %vm1247, %v1246
  %v1249 = vmul.f32 %v1201, %v1223
  %v1250 = vmul.f32 %v1249, %v1229
  %v1251 = vadd.f32 %v1250, %v1236
  %v1252 = vmax.f32 %v1251, 0.0
  %v1253 = vsel %vm1165, %v1252, -inf
  %v1254 = vrot.slane %v1253, 4
  %v1255 = vmax.f32 %v1253, %v1254
  %v1256 = vrot.slane %v1255, 2
  %v1257 = vmax.f32 %v1255, %v1256
  %v1258 = vrot.slane %v1257, 1
  %v1259 = vmax.f32 %v1257, %v1258
  %1260 = vst.msk [vmem:[#allocation2 + $0x1] sm:$0x1] %vm1247, %v1259
  %v1261 = vmul.f32 %v1211, %v1223
  %v1262 = vmul.f32 %v1261, %v1229
  %v1263 = vadd.f32 %v1262, %v1236
  %v1264 = vmax.f32 %v1263, 0.0
  %v1265 = vsel %vm1165, %v1264, -inf
  %v1266 = vrot.slane %v1265, 4
  %v1267 = vmax.f32 %v1265, %v1266
  %v1268 = vrot.slane %v1267, 2
  %v1269 = vmax.f32 %v1267, %v1268
  %v1270 = vrot.slane %v1269, 1
  %v1271 = vmax.f32 %v1269, %v1270
  %1272 = vst.msk [vmem:[#allocation2 + $0x2] sm:$0x1] %vm1247, %v1271
  %v1273 = vrot.slane %v416, 3
  %1274 = vrot.lane.b32.xlu0 %v1273, 32
  %v1275 = vpop.permute.xlu0 %1274
  %v1276 = vsel %vm234, %v1275, 0
  %1278 = vmatprep.subr.mxu0 0.0
  %1279 = vmatpush1.msra.mxu0 0.0
  %1280 = vmatprep.subr.mxu0 0.0
  %1281 = vmatpush1.msra.mxu0 0.0
  %1282 = vmatprep.subr.mxu0 0.0
  %1283 = vmatpush1.msra.mxu0 0.0
  %1284 = vmatprep.subr.mxu0 0.0
  %1285 = vmatpush1.msra.mxu0 0.0
  %1286 = vmatprep.subr.mxu0 0.0
  %1287 = vmatpush1.msra.mxu0 0.0
  %1288 = vmatprep.subr.mxu0 0.0
  %1289 = vmatpush1.msra.mxu0 0.0
  %1290 = vmatprep.subr.mxu0 0.0
  %1291 = vmatpush1.msra.mxu0 0.0
  %1292 = vmatprep.subr.mxu0 0.0
  %1293 = vmatpush1.msra.mxu0 0.0
  %1294 = vmatprep.subr.mxu0 0.0
  %1295 = vmatpush1.msra.mxu0 0.0
  %1296 = vmatprep.subr.mxu0 0.0
  %1297 = vmatpush1.msra.mxu0 0.0
  %1298 = vmatprep.subr.mxu0 0.0
  %1299 = vmatpush1.msra.mxu0 0.0
  %1300 = vmatprep.subr.mxu0 0.0
  %1301 = vmatpush1.msra.mxu0 0.0
  %1302 = vmatprep.subr.mxu0 0.0
  %1303 = vmatpush1.msra.mxu0 %v157
  %1304 = vmatprep.subr.mxu0 0.0
  %1305 = vmatpush1.msra.mxu0 %v156
  %1306 = vmatprep.subr.mxu0 0.0
  %1307 = vmatpush1.msra.mxu0 %v155
  %1308 = vmatprep.subr.mxu0 0.0
  %1309 = vmatpush1.msra.mxu0 %v154
  %1310 = vmatprep.subr.mxu0 0.0
  %1311 = vmatpush2.msra.mxu0 0.0
  %1312 = vmatprep.subr.mxu0 0.0
  %1313 = vmatpush2.msra.mxu0 0.0
  %1314 = vmatprep.subr.mxu0 0.0
  %1315 = vmatpush2.msra.mxu0 0.0
  %1316 = vmatprep.subr.mxu0 0.0
  %1317 = vmatpush2.msra.mxu0 0.0
  %1318 = vmatprep.subr.mxu0 0.0
  %1319 = vmatpush2.msra.mxu0 0.0
  %1320 = vmatprep.subr.mxu0 0.0
  %1321 = vmatpush2.msra.mxu0 0.0
  %1322 = vmatprep.subr.mxu0 0.0
  %1323 = vmatpush2.msra.mxu0 0.0
  %1324 = vmatprep.subr.mxu0 0.0
  %1325 = vmatpush2.msra.mxu0 0.0
  %1326 = vmatprep.subr.mxu0 0.0
  %1327 = vmatpush2.msra.mxu0 0.0
  %1328 = vmatprep.subr.mxu0 0.0
  %1329 = vmatpush2.msra.mxu0 0.0
  %1330 = vmatprep.subr.mxu0 0.0
  %1331 = vmatpush2.msra.mxu0 0.0
  %1332 = vmatprep.subr.mxu0 0.0
  %1333 = vmatpush2.msra.mxu0 0.0
  %1334 = vmatprep.subr.mxu0 0.0
  %1335 = vmatpush2.msra.mxu0 0.0
  %1336 = vmatprep.subr.mxu0 0.0
  %1337 = vmatpush2.msra.mxu0 0.0
  %1338 = vmatprep.subr.mxu0 0.0
  %1339 = vmatpush2.msra.mxu0 0.0
  %1340 = vmatprep.subr.mxu0 0.0
  %1341 = vmatpush2.msra.mxu0 0.0
  %1342 = vmatprep.mubr.f32.mxu0 0.0
  %1343 = vmatmul.mubr.f32.gmra.mxu0 %v1276
  %v1344 = vpop.f32.mrf.mxu0
  %v1345 = vadd.f32 0.0, %v1344
  %v1346 = vpop.f32.mrf.mxu0
  %1347 = vdwg.mxu0
  %v1348 = vlaneseq
  %v1349 = vshrl.u32 %v1348, 7
  %v1350 = vsub.s32 3, %v1349
  %v1351 = vrot.slane %v498, %v1350
  %v1352 = vsub.f32 %v498, %v1351
  %1354 = vset.pattern.permute.xlu0 0
  %1355 = vperm.xlu0 %1354, %v1352
  %v1356 = vpop.permute.xlu0 %1355
  %v1358 = vmul.f32 %v1356, %v582
  %1359 = vset.pattern.permute.xlu0 1
  %1360 = vperm.xlu0 %1359, %v1352
  %v1361 = vpop.permute.xlu0 %1360
  %v1363 = vmul.f32 %v1361, %v591
  %v1364 = vadd.f32 %v1358, %v1363
  %v1365 = vadd.f32 %v1364, %v598
  %v1367 = vrot.slane %v1365, 3
  %v1368 = vsel %vm308, %v1367, 0
  %1370 = vmatprep.subr.mxu0 0.0
  %1371 = vmatpush1.msra.mxu0 0.0
  %1372 = vmatprep.subr.mxu0 0.0
  %1373 = vmatpush1.msra.mxu0 0.0
  %1374 = vmatprep.subr.mxu0 0.0
  %1375 = vmatpush1.msra.mxu0 0.0
  %1376 = vmatprep.subr.mxu0 0.0
  %1377 = vmatpush1.msra.mxu0 0.0
  %1378 = vmatprep.subr.mxu0 0.0
  %1379 = vmatpush1.msra.mxu0 0.0
  %1380 = vmatprep.subr.mxu0 0.0
  %1381 = vmatpush1.msra.mxu0 0.0
  %1382 = vmatprep.subr.mxu0 0.0
  %1383 = vmatpush1.msra.mxu0 0.0
  %1384 = vmatprep.subr.mxu0 0.0
  %1385 = vmatpush1.msra.mxu0 0.0
  %1386 = vmatprep.subr.mxu0 0.0
  %1387 = vmatpush1.msra.mxu0 0.0
  %1388 = vmatprep.subr.mxu0 0.0
  %1389 = vmatpush1.msra.mxu0 0.0
  %1390 = vmatprep.subr.mxu0 0.0
  %1391 = vmatpush1.msra.mxu0 0.0
  %1392 = vmatprep.subr.mxu0 0.0
  %1393 = vmatpush1.msra.mxu0 0.0
  %1394 = vmatprep.subr.mxu0 0.0
  %1395 = vmatpush1.msra.mxu0 0.0
  %1396 = vmatprep.subr.mxu0 0.0
  %1397 = vmatpush1.msra.mxu0 0.0
  %1398 = vmatprep.subr.mxu0 0.0
  %1399 = vmatpush1.msra.mxu0 %v153
  %1400 = vmatprep.subr.mxu0 0.0
  %1401 = vmatpush1.msra.mxu0 %v152
  %1402 = vmatprep.subr.mxu0 0.0
  %1403 = vmatpush2.msra.mxu0 0.0
  %1404 = vmatprep.subr.mxu0 0.0
  %1405 = vmatpush2.msra.mxu0 0.0
  %1406 = vmatprep.subr.mxu0 0.0
  %1407 = vmatpush2.msra.mxu0 0.0
  %1408 = vmatprep.subr.mxu0 0.0
  %1409 = vmatpush2.msra.mxu0 0.0
  %1410 = vmatprep.subr.mxu0 0.0
  %1411 = vmatpush2.msra.mxu0 0.0
  %1412 = vmatprep.subr.mxu0 0.0
  %1413 = vmatpush2.msra.mxu0 0.0
  %1414 = vmatprep.subr.mxu0 0.0
  %1415 = vmatpush2.msra.mxu0 0.0
  %1416 = vmatprep.subr.mxu0 0.0
  %1417 = vmatpush2.msra.mxu0 0.0
  %1418 = vmatprep.subr.mxu0 0.0
  %1419 = vmatpush2.msra.mxu0 0.0
  %1420 = vmatprep.subr.mxu0 0.0
  %1421 = vmatpush2.msra.mxu0 0.0
  %1422 = vmatprep.subr.mxu0 0.0
  %1423 = vmatpush2.msra.mxu0 0.0
  %1424 = vmatprep.subr.mxu0 0.0
  %1425 = vmatpush2.msra.mxu0 0.0
  %1426 = vmatprep.subr.mxu0 0.0
  %1427 = vmatpush2.msra.mxu0 0.0
  %1428 = vmatprep.subr.mxu0 0.0
  %1429 = vmatpush2.msra.mxu0 0.0
  %1430 = vmatprep.subr.mxu0 0.0
  %1431 = vmatpush2.msra.mxu0 0.0
  %1432 = vmatprep.subr.mxu0 0.0
  %1433 = vmatpush2.msra.mxu0 0.0
  %1434 = vmatprep.mubr.f32.mxu0 0.0
  %1435 = vmatmul.mubr.f32.gmra.mxu0 %v1368
  %v1436 = vpop.f32.mrf.mxu0
  %v1437 = vadd.f32 %v1345, %v1436
  %v1438 = vpop.f32.mrf.mxu0
  %1439 = vdwg.mxu0
  %v1440 = vadd.f32 %v1437, %v678
  %v1441 = vlaneseq
  %v1442 = vshrl.u32 %v1441, 7
  %v1443 = vsub.s32 4, %v1442
  %v1444 = vrot.slane %v498, %v1443
  %v1445 = vsub.f32 %v498, %v1444
  %1447 = vset.pattern.permute.xlu0 0
  %1448 = vperm.xlu0 %1447, %v1445
  %v1449 = vpop.permute.xlu0 %1448
  %v1451 = vmul.f32 %v1449, %v582
  %1452 = vset.pattern.permute.xlu0 1
  %1453 = vperm.xlu0 %1452, %v1445
  %v1454 = vpop.permute.xlu0 %1453
  %v1456 = vmul.f32 %v1454, %v591
  %v1457 = vadd.f32 %v1451, %v1456
  %v1458 = vadd.f32 %v1457, %v598
  %v1460 = vrot.slane %v1458, 3
  %v1461 = vsel %vm308, %v1460, 0
  %1463 = vmatprep.subr.mxu0 0.0
  %1464 = vmatpush1.msra.mxu0 0.0
  %1465 = vmatprep.subr.mxu0 0.0
  %1466 = vmatpush1.msra.mxu0 0.0
  %1467 = vmatprep.subr.mxu0 0.0
  %1468 = vmatpush1.msra.mxu0 0.0
  %1469 = vmatprep.subr.mxu0 0.0
  %1470 = vmatpush1.msra.mxu0 0.0
  %1471 = vmatprep.subr.mxu0 0.0
  %1472 = vmatpush1.msra.mxu0 0.0
  %1473 = vmatprep.subr.mxu0 0.0
  %1474 = vmatpush1.msra.mxu0 0.0
  %1475 = vmatprep.subr.mxu0 0.0
  %1476 = vmatpush1.msra.mxu0 0.0
  %1477 = vmatprep.subr.mxu0 0.0
  %1478 = vmatpush1.msra.mxu0 0.0
  %1479 = vmatprep.subr.mxu0 0.0
  %1480 = vmatpush1.msra.mxu0 0.0
  %1481 = vmatprep.subr.mxu0 0.0
  %1482 = vmatpush1.msra.mxu0 0.0
  %1483 = vmatprep.subr.mxu0 0.0
  %1484 = vmatpush1.msra.mxu0 0.0
  %1485 = vmatprep.subr.mxu0 0.0
  %1486 = vmatpush1.msra.mxu0 0.0
  %1487 = vmatprep.subr.mxu0 0.0
  %1488 = vmatpush1.msra.mxu0 0.0
  %1489 = vmatprep.subr.mxu0 0.0
  %1490 = vmatpush1.msra.mxu0 0.0
  %1491 = vmatprep.subr.mxu0 0.0
  %1492 = vmatpush1.msra.mxu0 %v153
  %1493 = vmatprep.subr.mxu0 0.0
  %1494 = vmatpush1.msra.mxu0 %v152
  %1495 = vmatprep.subr.mxu0 0.0
  %1496 = vmatpush2.msra.mxu0 0.0
  %1497 = vmatprep.subr.mxu0 0.0
  %1498 = vmatpush2.msra.mxu0 0.0
  %1499 = vmatprep.subr.mxu0 0.0
  %1500 = vmatpush2.msra.mxu0 0.0
  %1501 = vmatprep.subr.mxu0 0.0
  %1502 = vmatpush2.msra.mxu0 0.0
  %1503 = vmatprep.subr.mxu0 0.0
  %1504 = vmatpush2.msra.mxu0 0.0
  %1505 = vmatprep.subr.mxu0 0.0
  %1506 = vmatpush2.msra.mxu0 0.0
  %1507 = vmatprep.subr.mxu0 0.0
  %1508 = vmatpush2.msra.mxu0 0.0
  %1509 = vmatprep.subr.mxu0 0.0
  %1510 = vmatpush2.msra.mxu0 0.0
  %1511 = vmatprep.subr.mxu0 0.0
  %1512 = vmatpush2.msra.mxu0 0.0
  %1513 = vmatprep.subr.mxu0 0.0
  %1514 = vmatpush2.msra.mxu0 0.0
  %1515 = vmatprep.subr.mxu0 0.0
  %1516 = vmatpush2.msra.mxu0 0.0
  %1517 = vmatprep.subr.mxu0 0.0
  %1518 = vmatpush2.msra.mxu0 0.0
  %1519 = vmatprep.subr.mxu0 0.0
  %1520 = vmatpush2.msra.mxu0 0.0
  %1521 = vmatprep.subr.mxu0 0.0
  %1522 = vmatpush2.msra.mxu0 0.0
  %1523 = vmatprep.subr.mxu0 0.0
  %1524 = vmatpush2.msra.mxu0 0.0
  %1525 = vmatprep.subr.mxu0 0.0
  %1526 = vmatpush2.msra.mxu0 0.0
  %1527 = vmatprep.mubr.f32.mxu0 0.0
  %1528 = vmatmul.mubr.f32.gmra.mxu0 %v1461
  %v1529 = vpop.f32.mrf.mxu0
  %v1530 = vadd.f32 %v1345, %v1529
  %v1531 = vpop.f32.mrf.mxu0
  %1532 = vdwg.mxu0
  %v1533 = vadd.f32 %v1530, %v678
  %v1534 = vlaneseq
  %v1535 = vshrl.u32 %v1534, 7
  %v1536 = vsub.s32 5, %v1535
  %v1537 = vrot.slane %v498, %v1536
  %v1538 = vsub.f32 %v498, %v1537
  %1540 = vset.pattern.permute.xlu0 0
  %1541 = vperm.xlu0 %1540, %v1538
  %v1542 = vpop.permute.xlu0 %1541
  %v1544 = vmul.f32 %v1542, %v582
  %1545 = vset.pattern.permute.xlu0 1
  %1546 = vperm.xlu0 %1545, %v1538
  %v1547 = vpop.permute.xlu0 %1546
  %v1549 = vmul.f32 %v1547, %v591
  %v1550 = vadd.f32 %v1544, %v1549
  %v1551 = vadd.f32 %v1550, %v598
  %v1553 = vrot.slane %v1551, 3
  %v1554 = vsel %vm308, %v1553, 0
  %1556 = vmatprep.subr.mxu0 0.0
  %1557 = vmatpush1.msra.mxu0 0.0
  %1558 = vmatprep.subr.mxu0 0.0
  %1559 = vmatpush1.msra.mxu0 0.0
  %1560 = vmatprep.subr.mxu0 0.0
  %1561 = vmatpush1.msra.mxu0 0.0
  %1562 = vmatprep.subr.mxu0 0.0
  %1563 = vmatpush1.msra.mxu0 0.0
  %1564 = vmatprep.subr.mxu0 0.0
  %1565 = vmatpush1.msra.mxu0 0.0
  %1566 = vmatprep.subr.mxu0 0.0
  %1567 = vmatpush1.msra.mxu0 0.0
  %1568 = vmatprep.subr.mxu0 0.0
  %1569 = vmatpush1.msra.mxu0 0.0
  %1570 = vmatprep.subr.mxu0 0.0
  %1571 = vmatpush1.msra.mxu0 0.0
  %1572 = vmatprep.subr.mxu0 0.0
  %1573 = vmatpush1.msra.mxu0 0.0
  %1574 = vmatprep.subr.mxu0 0.0
  %1575 = vmatpush1.msra.mxu0 0.0
  %1576 = vmatprep.subr.mxu0 0.0
  %1577 = vmatpush1.msra.mxu0 0.0
  %1578 = vmatprep.subr.mxu0 0.0
  %1579 = vmatpush1.msra.mxu0 0.0
  %1580 = vmatprep.subr.mxu0 0.0
  %1581 = vmatpush1.msra.mxu0 0.0
  %1582 = vmatprep.subr.mxu0 0.0
  %1583 = vmatpush1.msra.mxu0 0.0
  %1584 = vmatprep.subr.mxu0 0.0
  %1585 = vmatpush1.msra.mxu0 %v153
  %1586 = vmatprep.subr.mxu0 0.0
  %1587 = vmatpush1.msra.mxu0 %v152
  %1588 = vmatprep.subr.mxu0 0.0
  %1589 = vmatpush2.msra.mxu0 0.0
  %1590 = vmatprep.subr.mxu0 0.0
  %1591 = vmatpush2.msra.mxu0 0.0
  %1592 = vmatprep.subr.mxu0 0.0
  %1593 = vmatpush2.msra.mxu0 0.0
  %1594 = vmatprep.subr.mxu0 0.0
  %1595 = vmatpush2.msra.mxu0 0.0
  %1596 = vmatprep.subr.mxu0 0.0
  %1597 = vmatpush2.msra.mxu0 0.0
  %1598 = vmatprep.subr.mxu0 0.0
  %1599 = vmatpush2.msra.mxu0 0.0
  %1600 = vmatprep.subr.mxu0 0.0
  %1601 = vmatpush2.msra.mxu0 0.0
  %1602 = vmatprep.subr.mxu0 0.0
  %1603 = vmatpush2.msra.mxu0 0.0
  %1604 = vmatprep.subr.mxu0 0.0
  %1605 = vmatpush2.msra.mxu0 0.0
  %1606 = vmatprep.subr.mxu0 0.0
  %1607 = vmatpush2.msra.mxu0 0.0
  %1608 = vmatprep.subr.mxu0 0.0
  %1609 = vmatpush2.msra.mxu0 0.0
  %1610 = vmatprep.subr.mxu0 0.0
  %1611 = vmatpush2.msra.mxu0 0.0
  %1612 = vmatprep.subr.mxu0 0.0
  %1613 = vmatpush2.msra.mxu0 0.0
  %1614 = vmatprep.subr.mxu0 0.0
  %1615 = vmatpush2.msra.mxu0 0.0
  %1616 = vmatprep.subr.mxu0 0.0
  %1617 = vmatpush2.msra.mxu0 0.0
  %1618 = vmatprep.subr.mxu0 0.0
  %1619 = vmatpush2.msra.mxu0 0.0
  %1620 = vmatprep.mubr.f32.mxu0 0.0
  %1621 = vmatmul.mubr.f32.gmra.mxu0 %v1554
  %v1622 = vpop.f32.mrf.mxu0
  %v1623 = vadd.f32 %v1345, %v1622
  %v1624 = vpop.f32.mrf.mxu0
  %1625 = vdwg.mxu0
  %v1626 = vadd.f32 %v1623, %v678
  %v1627 = vsel %vm865, %v1440, 0.0
  %v1628 = vrot.slane %v1627, 4
  %v1629 = vadd.f32 %v1627, %v1628
  %v1630 = vrot.slane %v1629, 2
  %v1631 = vadd.f32 %v1629, %v1630
  %v1632 = vrot.slane %v1631, 1
  %v1633 = vadd.f32 %v1631, %v1632
  %v1634 = vadd.f32 %v1633, 0.0
  %v1635 = vsel %vm865, %v1533, 0.0
  %v1636 = vrot.slane %v1635, 4
  %v1637 = vadd.f32 %v1635, %v1636
  %v1638 = vrot.slane %v1637, 2
  %v1639 = vadd.f32 %v1637, %v1638
  %v1640 = vrot.slane %v1639, 1
  %v1641 = vadd.f32 %v1639, %v1640
  %v1642 = vadd.f32 %v1634, %v1641
  %v1643 = vsel %vm865, %v1626, 0.0
  %v1644 = vrot.slane %v1643, 4
  %v1645 = vadd.f32 %v1643, %v1644
  %v1646 = vrot.slane %v1645, 2
  %v1647 = vadd.f32 %v1645, %v1646
  %v1648 = vrot.slane %v1647, 1
  %v1649 = vadd.f32 %v1647, %v1648
  %v1650 = vadd.f32 %v1642, %v1649
  %v1651 = vmul.f32 %v1650, %v890
  %v1652 = vsub.f32 %v1440, %v1651
  %v1653 = vmul.f32 %v1652, %v1652
  %v1654 = vsel %vm865, %v1653, 0.0
  %v1655 = vrot.slane %v1654, 4
  %v1656 = vadd.f32 %v1654, %v1655
  %v1657 = vrot.slane %v1656, 2
  %v1658 = vadd.f32 %v1656, %v1657
  %v1659 = vrot.slane %v1658, 1
  %v1660 = vadd.f32 %v1658, %v1659
  %v1661 = vadd.f32 %v1660, 0.0
  %v1662 = vsub.f32 %v1533, %v1651
  %v1663 = vmul.f32 %v1662, %v1662
  %v1664 = vsel %vm865, %v1663, 0.0
  %v1665 = vrot.slane %v1664, 4
  %v1666 = vadd.f32 %v1664, %v1665
  %v1667 = vrot.slane %v1666, 2
  %v1668 = vadd.f32 %v1666, %v1667
  %v1669 = vrot.slane %v1668, 1
  %v1670 = vadd.f32 %v1668, %v1669
  %v1671 = vadd.f32 %v1661, %v1670
  %v1672 = vsub.f32 %v1626, %v1651
  %v1673 = vmul.f32 %v1672, %v1672
  %v1674 = vsel %vm865, %v1673, 0.0
  %v1675 = vrot.slane %v1674, 4
  %v1676 = vadd.f32 %v1674, %v1675
  %v1677 = vrot.slane %v1676, 2
  %v1678 = vadd.f32 %v1676, %v1677
  %v1679 = vrot.slane %v1678, 1
  %v1680 = vadd.f32 %v1678, %v1679
  %v1681 = vadd.f32 %v1671, %v1680
  %v1682 = vmul.f32 %v1681, %v890
  %v1683 = vadd.f32 %v1682, 1e-05
  %v1684 = vrsqrt.pop %v1683
  %v1685 = vmul.f32 %v1652, %v1684
  %v1686 = vmul.f32 %v1685, %v930
  %v1687 = vadd.f32 %v1686, %v937
  %v1688 = vmax.f32 %v1687, 0.0
  %1689 = vmatprep.subr.mxu0 0.0
  %1690 = vmatpush1.msra.mxu0 %v176
  %1691 = vmatprep.subr.mxu0 0.0
  %1692 = vmatpush1.msra.mxu0 %v175
  %1693 = vmatprep.subr.mxu0 0.0
  %1694 = vmatpush1.msra.mxu0 %v174
  %1695 = vmatprep.subr.mxu0 0.0
  %1696 = vmatpush1.msra.mxu0 %v173
  %1697 = vmatprep.subr.mxu0 0.0
  %1698 = vmatpush1.msra.mxu0 %v172
  %1699 = vmatprep.subr.mxu0 0.0
  %1700 = vmatpush1.msra.mxu0 %v171
  %1701 = vmatprep.subr.mxu0 0.0
  %1702 = vmatpush1.msra.mxu0 %v170
  %1703 = vmatprep.subr.mxu0 0.0
  %1704 = vmatpush1.msra.mxu0 %v169
  %1705 = vmatprep.subr.mxu0 0.0
  %1706 = vmatpush1.msra.mxu0 %v168
  %1707 = vmatprep.subr.mxu0 0.0
  %1708 = vmatpush1.msra.mxu0 %v167
  %1709 = vmatprep.subr.mxu0 0.0
  %1710 = vmatpush1.msra.mxu0 %v166
  %1711 = vmatprep.subr.mxu0 0.0
  %1712 = vmatpush1.msra.mxu0 %v165
  %1713 = vmatprep.subr.mxu0 0.0
  %1714 = vmatpush1.msra.mxu0 %v164
  %1715 = vmatprep.subr.mxu0 0.0
  %1716 = vmatpush1.msra.mxu0 %v163
  %1717 = vmatprep.subr.mxu0 0.0
  %1718 = vmatpush1.msra.mxu0 %v162
  %1719 = vmatprep.subr.mxu0 0.0
  %1720 = vmatpush1.msra.mxu0 %v161
  %1721 = vmatprep.subr.mxu0 0.0
  %1722 = vmatpush2.msra.mxu0 0.0
  %1723 = vmatprep.subr.mxu0 0.0
  %1724 = vmatpush2.msra.mxu0 0.0
  %1725 = vmatprep.subr.mxu0 0.0
  %1726 = vmatpush2.msra.mxu0 0.0
  %1727 = vmatprep.subr.mxu0 0.0
  %1728 = vmatpush2.msra.mxu0 0.0
  %1729 = vmatprep.subr.mxu0 0.0
  %1730 = vmatpush2.msra.mxu0 0.0
  %1731 = vmatprep.subr.mxu0 0.0
  %1732 = vmatpush2.msra.mxu0 0.0
  %1733 = vmatprep.subr.mxu0 0.0
  %1734 = vmatpush2.msra.mxu0 0.0
  %1735 = vmatprep.subr.mxu0 0.0
  %1736 = vmatpush2.msra.mxu0 0.0
  %1737 = vmatprep.subr.mxu0 0.0
  %1738 = vmatpush2.msra.mxu0 0.0
  %1739 = vmatprep.subr.mxu0 0.0
  %1740 = vmatpush2.msra.mxu0 0.0
  %1741 = vmatprep.subr.mxu0 0.0
  %1742 = vmatpush2.msra.mxu0 0.0
  %1743 = vmatprep.subr.mxu0 0.0
  %1744 = vmatpush2.msra.mxu0 0.0
  %1745 = vmatprep.subr.mxu0 0.0
  %1746 = vmatpush2.msra.mxu0 0.0
  %1747 = vmatprep.subr.mxu0 0.0
  %1748 = vmatpush2.msra.mxu0 0.0
  %1749 = vmatprep.subr.mxu0 0.0
  %1750 = vmatpush2.msra.mxu0 0.0
  %1751 = vmatprep.subr.mxu0 0.0
  %1752 = vmatpush2.msra.mxu0 0.0
  %1753 = vmatprep.mubr.f32.mxu0 0.0
  %1754 = vmatmul.mubr.f32.gmra.mxu0 %v1688
  %v1755 = vpop.f32.mrf.mxu0
  %v1756 = vadd.f32 %v945, %v1755
  %v1757 = vpop.f32.mrf.mxu0
  %1758 = vdwg.mxu0
  %v1759 = vmul.f32 %v1662, %v1684
  %v1760 = vmul.f32 %v1759, %v930
  %v1761 = vadd.f32 %v1760, %v937
  %v1762 = vmax.f32 %v1761, 0.0
  %1763 = vmatprep.subr.mxu0 0.0
  %1764 = vmatpush1.msra.mxu0 %v176
  %1765 = vmatprep.subr.mxu0 0.0
  %1766 = vmatpush1.msra.mxu0 %v175
  %1767 = vmatprep.subr.mxu0 0.0
  %1768 = vmatpush1.msra.mxu0 %v174
  %1769 = vmatprep.subr.mxu0 0.0
  %1770 = vmatpush1.msra.mxu0 %v173
  %1771 = vmatprep.subr.mxu0 0.0
  %1772 = vmatpush1.msra.mxu0 %v172
  %1773 = vmatprep.subr.mxu0 0.0
  %1774 = vmatpush1.msra.mxu0 %v171
  %1775 = vmatprep.subr.mxu0 0.0
  %1776 = vmatpush1.msra.mxu0 %v170
  %1777 = vmatprep.subr.mxu0 0.0
  %1778 = vmatpush1.msra.mxu0 %v169
  %1779 = vmatprep.subr.mxu0 0.0
  %1780 = vmatpush1.msra.mxu0 %v168
  %1781 = vmatprep.subr.mxu0 0.0
  %1782 = vmatpush1.msra.mxu0 %v167
  %1783 = vmatprep.subr.mxu0 0.0
  %1784 = vmatpush1.msra.mxu0 %v166
  %1785 = vmatprep.subr.mxu0 0.0
  %1786 = vmatpush1.msra.mxu0 %v165
  %1787 = vmatprep.subr.mxu0 0.0
  %1788 = vmatpush1.msra.mxu0 %v164
  %1789 = vmatprep.subr.mxu0 0.0
  %1790 = vmatpush1.msra.mxu0 %v163
  %1791 = vmatprep.subr.mxu0 0.0
  %1792 = vmatpush1.msra.mxu0 %v162
  %1793 = vmatprep.subr.mxu0 0.0
  %1794 = vmatpush1.msra.mxu0 %v161
  %1795 = vmatprep.subr.mxu0 0.0
  %1796 = vmatpush2.msra.mxu0 0.0
  %1797 = vmatprep.subr.mxu0 0.0
  %1798 = vmatpush2.msra.mxu0 0.0
  %1799 = vmatprep.subr.mxu0 0.0
  %1800 = vmatpush2.msra.mxu0 0.0
  %1801 = vmatprep.subr.mxu0 0.0
  %1802 = vmatpush2.msra.mxu0 0.0
  %1803 = vmatprep.subr.mxu0 0.0
  %1804 = vmatpush2.msra.mxu0 0.0
  %1805 = vmatprep.subr.mxu0 0.0
  %1806 = vmatpush2.msra.mxu0 0.0
  %1807 = vmatprep.subr.mxu0 0.0
  %1808 = vmatpush2.msra.mxu0 0.0
  %1809 = vmatprep.subr.mxu0 0.0
  %1810 = vmatpush2.msra.mxu0 0.0
  %1811 = vmatprep.subr.mxu0 0.0
  %1812 = vmatpush2.msra.mxu0 0.0
  %1813 = vmatprep.subr.mxu0 0.0
  %1814 = vmatpush2.msra.mxu0 0.0
  %1815 = vmatprep.subr.mxu0 0.0
  %1816 = vmatpush2.msra.mxu0 0.0
  %1817 = vmatprep.subr.mxu0 0.0
  %1818 = vmatpush2.msra.mxu0 0.0
  %1819 = vmatprep.subr.mxu0 0.0
  %1820 = vmatpush2.msra.mxu0 0.0
  %1821 = vmatprep.subr.mxu0 0.0
  %1822 = vmatpush2.msra.mxu0 0.0
  %1823 = vmatprep.subr.mxu0 0.0
  %1824 = vmatpush2.msra.mxu0 0.0
  %1825 = vmatprep.subr.mxu0 0.0
  %1826 = vmatpush2.msra.mxu0 0.0
  %1827 = vmatprep.mubr.f32.mxu0 0.0
  %1828 = vmatmul.mubr.f32.gmra.mxu0 %v1762
  %v1829 = vpop.f32.mrf.mxu0
  %v1830 = vadd.f32 %v945, %v1829
  %v1831 = vpop.f32.mrf.mxu0
  %1832 = vdwg.mxu0
  %v1833 = vmul.f32 %v1672, %v1684
  %v1834 = vmul.f32 %v1833, %v930
  %v1835 = vadd.f32 %v1834, %v937
  %v1836 = vmax.f32 %v1835, 0.0
  %1837 = vmatprep.subr.mxu0 0.0
  %1838 = vmatpush1.msra.mxu0 %v176
  %1839 = vmatprep.subr.mxu0 0.0
  %1840 = vmatpush1.msra.mxu0 %v175
  %1841 = vmatprep.subr.mxu0 0.0
  %1842 = vmatpush1.msra.mxu0 %v174
  %1843 = vmatprep.subr.mxu0 0.0
  %1844 = vmatpush1.msra.mxu0 %v173
  %1845 = vmatprep.subr.mxu0 0.0
  %1846 = vmatpush1.msra.mxu0 %v172
  %1847 = vmatprep.subr.mxu0 0.0
  %1848 = vmatpush1.msra.mxu0 %v171
  %1849 = vmatprep.subr.mxu0 0.0
  %1850 = vmatpush1.msra.mxu0 %v170
  %1851 = vmatprep.subr.mxu0 0.0
  %1852 = vmatpush1.msra.mxu0 %v169
  %1853 = vmatprep.subr.mxu0 0.0
  %1854 = vmatpush1.msra.mxu0 %v168
  %1855 = vmatprep.subr.mxu0 0.0
  %1856 = vmatpush1.msra.mxu0 %v167
  %1857 = vmatprep.subr.mxu0 0.0
  %1858 = vmatpush1.msra.mxu0 %v166
  %1859 = vmatprep.subr.mxu0 0.0
  %1860 = vmatpush1.msra.mxu0 %v165
  %1861 = vmatprep.subr.mxu0 0.0
  %1862 = vmatpush1.msra.mxu0 %v164
  %1863 = vmatprep.subr.mxu0 0.0
  %1864 = vmatpush1.msra.mxu0 %v163
  %1865 = vmatprep.subr.mxu0 0.0
  %1866 = vmatpush1.msra.mxu0 %v162
  %1867 = vmatprep.subr.mxu0 0.0
  %1868 = vmatpush1.msra.mxu0 %v161
  %1869 = vmatprep.subr.mxu0 0.0
  %1870 = vmatpush2.msra.mxu0 0.0
  %1871 = vmatprep.subr.mxu0 0.0
  %1872 = vmatpush2.msra.mxu0 0.0
  %1873 = vmatprep.subr.mxu0 0.0
  %1874 = vmatpush2.msra.mxu0 0.0
  %1875 = vmatprep.subr.mxu0 0.0
  %1876 = vmatpush2.msra.mxu0 0.0
  %1877 = vmatprep.subr.mxu0 0.0
  %1878 = vmatpush2.msra.mxu0 0.0
  %1879 = vmatprep.subr.mxu0 0.0
  %1880 = vmatpush2.msra.mxu0 0.0
  %1881 = vmatprep.subr.mxu0 0.0
  %1882 = vmatpush2.msra.mxu0 0.0
  %1883 = vmatprep.subr.mxu0 0.0
  %1884 = vmatpush2.msra.mxu0 0.0
  %1885 = vmatprep.subr.mxu0 0.0
  %1886 = vmatpush2.msra.mxu0 0.0
  %1887 = vmatprep.subr.mxu0 0.0
  %1888 = vmatpush2.msra.mxu0 0.0
  %1889 = vmatprep.subr.mxu0 0.0
  %1890 = vmatpush2.msra.mxu0 0.0
  %1891 = vmatprep.subr.mxu0 0.0
  %1892 = vmatpush2.msra.mxu0 0.0
  %1893 = vmatprep.subr.mxu0 0.0
  %1894 = vmatpush2.msra.mxu0 0.0
  %1895 = vmatprep.subr.mxu0 0.0
  %1896 = vmatpush2.msra.mxu0 0.0
  %1897 = vmatprep.subr.mxu0 0.0
  %1898 = vmatpush2.msra.mxu0 0.0
  %1899 = vmatprep.subr.mxu0 0.0
  %1900 = vmatpush2.msra.mxu0 0.0
  %1901 = vmatprep.mubr.f32.mxu0 0.0
  %1902 = vmatmul.mubr.f32.gmra.mxu0 %v1836
  %v1903 = vpop.f32.mrf.mxu0
  %v1904 = vadd.f32 %v945, %v1903
  %v1905 = vpop.f32.mrf.mxu0
  %1906 = vdwg.mxu0
  %v1907 = vsel %vm1165, %v1756, 0.0
  %v1908 = vrot.slane %v1907, 4
  %v1909 = vadd.f32 %v1907, %v1908
  %v1910 = vrot.slane %v1909, 2
  %v1911 = vadd.f32 %v1909, %v1910
  %v1912 = vrot.slane %v1911, 1
  %v1913 = vadd.f32 %v1911, %v1912
  %v1914 = vadd.f32 %v1913, 0.0
  %v1915 = vsel %vm1165, %v1830, 0.0
  %v1916 = vrot.slane %v1915, 4
  %v1917 = vadd.f32 %v1915, %v1916
  %v1918 = vrot.slane %v1917, 2
  %v1919 = vadd.f32 %v1917, %v1918
  %v1920 = vrot.slane %v1919, 1
  %v1921 = vadd.f32 %v1919, %v1920
  %v1922 = vadd.f32 %v1914, %v1921
  %v1923 = vsel %vm1165, %v1904, 0.0
  %v1924 = vrot.slane %v1923, 4
  %v1925 = vadd.f32 %v1923, %v1924
  %v1926 = vrot.slane %v1925, 2
  %v1927 = vadd.f32 %v1925, %v1926
  %v1928 = vrot.slane %v1927, 1
  %v1929 = vadd.f32 %v1927, %v1928
  %v1930 = vadd.f32 %v1922, %v1929
  %v1931 = vmul.f32 %v1930, %v890
  %v1932 = vsub.f32 %v1756, %v1931
  %v1933 = vmul.f32 %v1932, %v1932
  %v1934 = vsel %vm1165, %v1933, 0.0
  %v1935 = vrot.slane %v1934, 4
  %v1936 = vadd.f32 %v1934, %v1935
  %v1937 = vrot.slane %v1936, 2
  %v1938 = vadd.f32 %v1936, %v1937
  %v1939 = vrot.slane %v1938, 1
  %v1940 = vadd.f32 %v1938, %v1939
  %v1941 = vadd.f32 %v1940, 0.0
  %v1942 = vsub.f32 %v1830, %v1931
  %v1943 = vmul.f32 %v1942, %v1942
  %v1944 = vsel %vm1165, %v1943, 0.0
  %v1945 = vrot.slane %v1944, 4
  %v1946 = vadd.f32 %v1944, %v1945
  %v1947 = vrot.slane %v1946, 2
  %v1948 = vadd.f32 %v1946, %v1947
  %v1949 = vrot.slane %v1948, 1
  %v1950 = vadd.f32 %v1948, %v1949
  %v1951 = vadd.f32 %v1941, %v1950
  %v1952 = vsub.f32 %v1904, %v1931
  %v1953 = vmul.f32 %v1952, %v1952
  %v1954 = vsel %vm1165, %v1953, 0.0
  %v1955 = vrot.slane %v1954, 4
  %v1956 = vadd.f32 %v1954, %v1955
  %v1957 = vrot.slane %v1956, 2
  %v1958 = vadd.f32 %v1956, %v1957
  %v1959 = vrot.slane %v1958, 1
  %v1960 = vadd.f32 %v1958, %v1959
  %v1961 = vadd.f32 %v1951, %v1960
  %v1962 = vmul.f32 %v1961, %v890
  %v1963 = vadd.f32 %v1962, 1e-05
  %v1964 = vrsqrt.pop %v1963
  %v1965 = vmul.f32 %v1932, %v1964
  %v1966 = vmul.f32 %v1965, %v1229
  %v1967 = vadd.f32 %v1966, %v1236
  %v1968 = vmax.f32 %v1967, 0.0
  %v1969 = vsel %vm1165, %v1968, -inf
  %v1970 = vrot.slane %v1969, 4
  %v1971 = vmax.f32 %v1969, %v1970
  %v1972 = vrot.slane %v1971, 2
  %v1973 = vmax.f32 %v1971, %v1972
  %v1974 = vrot.slane %v1973, 1
  %v1975 = vmax.f32 %v1973, %v1974
  %1976 = vst.msk [vmem:[#allocation2 + $0x3] sm:$0x1] %vm1247, %v1975
  %v1977 = vmul.f32 %v1942, %v1964
  %v1978 = vmul.f32 %v1977, %v1229
  %v1979 = vadd.f32 %v1978, %v1236
  %v1980 = vmax.f32 %v1979, 0.0
  %v1981 = vsel %vm1165, %v1980, -inf
  %v1982 = vrot.slane %v1981, 4
  %v1983 = vmax.f32 %v1981, %v1982
  %v1984 = vrot.slane %v1983, 2
  %v1985 = vmax.f32 %v1983, %v1984
  %v1986 = vrot.slane %v1985, 1
  %v1987 = vmax.f32 %v1985, %v1986
  %1988 = vst.msk [vmem:[#allocation2 + $0x4] sm:$0x1] %vm1247, %v1987
  %v1989 = vmul.f32 %v1952, %v1964
  %v1990 = vmul.f32 %v1989, %v1229
  %v1991 = vadd.f32 %v1990, %v1236
  %v1992 = vmax.f32 %v1991, 0.0
  %v1993 = vsel %vm1165, %v1992, -inf
  %v1994 = vrot.slane %v1993, 4
  %v1995 = vmax.f32 %v1993, %v1994
  %v1996 = vrot.slane %v1995, 2
  %v1997 = vmax.f32 %v1995, %v1996
  %v1998 = vrot.slane %v1997, 1
  %v1999 = vmax.f32 %v1997, %v1998
  %2000 = vst.msk [vmem:[#allocation2 + $0x5] sm:$0x1] %vm1247, %v1999
  %v2001 = vld [vmem:[#allocation2] sm:$0x3f]
  %vm2002 = vcmask 523264
  %v2004 = vsel %vm2002, %v2001, 0
  %2006 = vmatprep.subr.mxu0 0.0
  %2007 = vmatpush1.msra.mxu0 0.0
  %2008 = vmatprep.subr.mxu0 0.0
  %2009 = vmatpush1.msra.mxu0 0.0
  %2010 = vmatprep.subr.mxu0 0.0
  %2011 = vmatpush1.msra.mxu0 0.0
  %2012 = vmatprep.subr.mxu0 0.0
  %2013 = vmatpush1.msra.mxu0 0.0
  %2014 = vmatprep.subr.mxu0 0.0
  %2015 = vmatpush1.msra.mxu0 0.0
  %2016 = vmatprep.subr.mxu0 0.0
  %2017 = vmatpush1.msra.mxu0 0.0
  %2018 = vmatprep.subr.mxu0 0.0
  %2019 = vmatpush1.msra.mxu0 0.0
  %2020 = vmatprep.subr.mxu0 0.0
  %2021 = vmatpush1.msra.mxu0 0.0
  %2022 = vmatprep.subr.mxu0 0.0
  %2023 = vmatpush1.msra.mxu0 %v191
  %2024 = vmatprep.subr.mxu0 0.0
  %2025 = vmatpush1.msra.mxu0 %v190
  %2026 = vmatprep.subr.mxu0 0.0
  %2027 = vmatpush1.msra.mxu0 %v189
  %2028 = vmatprep.subr.mxu0 0.0
  %2029 = vmatpush1.msra.mxu0 %v188
  %2030 = vmatprep.subr.mxu0 0.0
  %2031 = vmatpush1.msra.mxu0 %v187
  %2032 = vmatprep.subr.mxu0 0.0
  %2033 = vmatpush1.msra.mxu0 %v186
  %2034 = vmatprep.subr.mxu0 0.0
  %2035 = vmatpush1.msra.mxu0 %v185
  %2036 = vmatprep.subr.mxu0 0.0
  %2037 = vmatpush1.msra.mxu0 %v184
  %2038 = vmatprep.subr.mxu0 0.0
  %2039 = vmatpush2.msra.mxu0 0.0
  %2040 = vmatprep.subr.mxu0 0.0
  %2041 = vmatpush2.msra.mxu0 0.0
  %2042 = vmatprep.subr.mxu0 0.0
  %2043 = vmatpush2.msra.mxu0 0.0
  %2044 = vmatprep.subr.mxu0 0.0
  %2045 = vmatpush2.msra.mxu0 0.0
  %2046 = vmatprep.subr.mxu0 0.0
  %2047 = vmatpush2.msra.mxu0 0.0
  %2048 = vmatprep.subr.mxu0 0.0
  %2049 = vmatpush2.msra.mxu0 0.0
  %2050 = vmatprep.subr.mxu0 0.0
  %2051 = vmatpush2.msra.mxu0 0.0
  %2052 = vmatprep.subr.mxu0 0.0
  %2053 = vmatpush2.msra.mxu0 0.0
  %2054 = vmatprep.subr.mxu0 0.0
  %2055 = vmatpush2.msra.mxu0 0.0
  %2056 = vmatprep.subr.mxu0 0.0
  %2057 = vmatpush2.msra.mxu0 0.0
  %2058 = vmatprep.subr.mxu0 0.0
  %2059 = vmatpush2.msra.mxu0 0.0
  %2060 = vmatprep.subr.mxu0 0.0
  %2061 = vmatpush2.msra.mxu0 0.0
  %2062 = vmatprep.subr.mxu0 0.0
  %2063 = vmatpush2.msra.mxu0 0.0
  %2064 = vmatprep.subr.mxu0 0.0
  %2065 = vmatpush2.msra.mxu0 0.0
  %2066 = vmatprep.subr.mxu0 0.0
  %2067 = vmatpush2.msra.mxu0 0.0
  %2068 = vmatprep.subr.mxu0 0.0
  %2069 = vmatpush2.msra.mxu0 0.0
  %2070 = vmatprep.mubr.f32.mxu0 0.0
  %2071 = vmatmul.mubr.f32.gmra.mxu0 %v2004
  %v2072 = vpop.f32.mrf.mxu0
  %v2073 = vadd.f32 0.0, %v2072
  %v2074 = vpop.f32.mrf.mxu0
  %2075 = vdwg.mxu0
  %2076 = vmatprep.subr.mxu0 0.0
  %2077 = vmatpush1.msra.mxu0 0.0
  %2078 = vmatprep.subr.mxu0 0.0
  %2079 = vmatpush1.msra.mxu0 0.0
  %2080 = vmatprep.subr.mxu0 0.0
  %2081 = vmatpush1.msra.mxu0 0.0
  %2082 = vmatprep.subr.mxu0 0.0
  %2083 = vmatpush1.msra.mxu0 0.0
  %2084 = vmatprep.subr.mxu0 0.0
  %2085 = vmatpush1.msra.mxu0 0.0
  %2086 = vmatprep.subr.mxu0 0.0
  %2087 = vmatpush1.msra.mxu0 0.0
  %2088 = vmatprep.subr.mxu0 0.0
  %2089 = vmatpush1.msra.mxu0 0.0
  %2090 = vmatprep.subr.mxu0 0.0
  %2091 = vmatpush1.msra.mxu0 0.0
  %2092 = vmatprep.subr.mxu0 0.0
  %2093 = vmatpush1.msra.mxu0 0.0
  %2094 = vmatprep.subr.mxu0 0.0
  %2095 = vmatpush1.msra.mxu0 0.0
  %2096 = vmatprep.subr.mxu0 0.0
  %2097 = vmatpush1.msra.mxu0 0.0
  %2098 = vmatprep.subr.mxu0 0.0
  %2099 = vmatpush1.msra.mxu0 0.0
  %2100 = vmatprep.subr.mxu0 0.0
  %2101 = vmatpush1.msra.mxu0 %v183
  %2102 = vmatprep.subr.mxu0 0.0
  %2103 = vmatpush1.msra.mxu0 %v182
  %2104 = vmatprep.subr.mxu0 0.0
  %2105 = vmatpush1.msra.mxu0 %v181
  %2106 = vmatprep.subr.mxu0 0.0
  %2107 = vmatpush1.msra.mxu0 %v180
  %2108 = vmatprep.subr.mxu0 0.0
  %2109 = vmatpush2.msra.mxu0 0.0
  %2110 = vmatprep.subr.mxu0 0.0
  %2111 = vmatpush2.msra.mxu0 0.0
  %2112 = vmatprep.subr.mxu0 0.0
  %2113 = vmatpush2.msra.mxu0 0.0
  %2114 = vmatprep.subr.mxu0 0.0
  %2115 = vmatpush2.msra.mxu0 0.0
  %2116 = vmatprep.subr.mxu0 0.0
  %2117 = vmatpush2.msra.mxu0 0.0
  %2118 = vmatprep.subr.mxu0 0.0
  %2119 = vmatpush2.msra.mxu0 0.0
  %2120 = vmatprep.subr.mxu0 0.0
  %2121 = vmatpush2.msra.mxu0 0.0
  %2122 = vmatprep.subr.mxu0 0.0
  %2123 = vmatpush2.msra.mxu0 0.0
  %2124 = vmatprep.subr.mxu0 0.0
  %2125 = vmatpush2.msra.mxu0 0.0
  %2126 = vmatprep.subr.mxu0 0.0
  %2127 = vmatpush2.msra.mxu0 0.0
  %2128 = vmatprep.subr.mxu0 0.0
  %2129 = vmatpush2.msra.mxu0 0.0
  %2130 = vmatprep.subr.mxu0 0.0
  %2131 = vmatpush2.msra.mxu0 0.0
  %2132 = vmatprep.subr.mxu0 0.0
  %2133 = vmatpush2.msra.mxu0 0.0
  %2134 = vmatprep.subr.mxu0 0.0
  %2135 = vmatpush2.msra.mxu0 0.0
  %2136 = vmatprep.subr.mxu0 0.0
  %2137 = vmatpush2.msra.mxu0 0.0
  %2138 = vmatprep.subr.mxu0 0.0
  %2139 = vmatpush2.msra.mxu0 0.0
  %2140 = vmatprep.mubr.f32.mxu0 0.0
  %2141 = vmatmul.mubr.f32.gmra.mxu0 %v426
  %v2142 = vpop.f32.mrf.mxu0
  %v2143 = vadd.f32 %v2073, %v2142
  %v2144 = vpop.f32.mrf.mxu0
  %2145 = vdwg.mxu0
  %v2147 = vlaneseq
  %v2148 = vshrl.u32 %v2147, 7
  %v2149 = vsub.s32 0, %v2148
  %v2150 = vrot.slane %v192, %v2149
  %v2152 = vadd.f32 %v2143, %v2150
  %vm2153 = vcmask 521216
  %v2154 = vsel %vm2153, %v2152, 0.0
  %v2155 = vrot.slane %v2154, 4
  %v2156 = vadd.f32 %v2154, %v2155
  %v2157 = vrot.slane %v2156, 2
  %v2158 = vadd.f32 %v2156, %v2157
  %v2159 = vrot.slane %v2158, 1
  %v2160 = vadd.f32 %v2158, %v2159
  %v2161 = vrcp.pop 6.0
  %v2162 = vmul.f32 %v2160, %v2161
  %v2163 = vsub.f32 %v2152, %v2162
  %v2164 = vmul.f32 %v2163, %v2163
  %v2165 = vsel %vm2153, %v2164, 0.0
  %v2166 = vrot.slane %v2165, 4
  %v2167 = vadd.f32 %v2165, %v2166
  %v2168 = vrot.slane %v2167, 2
  %v2169 = vadd.f32 %v2167, %v2168
  %v2170 = vrot.slane %v2169, 1
  %v2171 = vadd.f32 %v2169, %v2170
  %v2172 = vmul.f32 %v2171, %v2161
  %v2173 = vadd.f32 %v2172, 1e-05
  %v2174 = vrsqrt.pop %v2173
  %v2175 = vmul.f32 %v2163, %v2174
  %v2177 = vlaneseq
  %v2178 = vshrl.u32 %v2177, 7
  %v2179 = vsub.s32 0, %v2178
  %v2180 = vrot.slane %v193, %v2179
  %v2182 = vmul.f32 %v2175, %v2180
  %v2184 = vlaneseq
  %v2185 = vshrl.u32 %v2184, 7
  %v2186 = vsub.s32 0, %v2185
  %v2187 = vrot.slane %v194, %v2186
  %v2189 = vadd.f32 %v2182, %v2187
  %v2190 = vmax.f32 %v2189, 0.0
  %v2192 = vlaneseq
  %v2193 = vshrl.u32 %v2192, 7
  %v2194 = vsub.s32 0, %v2193
  %v2195 = vrot.slane %v203, %v2194
  %v2198 = vsel %vm2002, %v2190, 0
  %2200 = vmatprep.subr.mxu0 0.0
  %2201 = vmatpush1.msra.mxu0 0.0
  %2202 = vmatprep.subr.mxu0 0.0
  %2203 = vmatpush1.msra.mxu0 0.0
  %2204 = vmatprep.subr.mxu0 0.0
  %2205 = vmatpush1.msra.mxu0 0.0
  %2206 = vmatprep.subr.mxu0 0.0
  %2207 = vmatpush1.msra.mxu0 0.0
  %2208 = vmatprep.subr.mxu0 0.0
  %2209 = vmatpush1.msra.mxu0 0.0
  %2210 = vmatprep.subr.mxu0 0.0
  %2211 = vmatpush1.msra.mxu0 0.0
  %2212 = vmatprep.subr.mxu0 0.0
  %2213 = vmatpush1.msra.mxu0 0.0
  %2214 = vmatprep.subr.mxu0 0.0
  %2215 = vmatpush1.msra.mxu0 0.0
  %2216 = vmatprep.subr.mxu0 0.0
  %2217 = vmatpush1.msra.mxu0 %v202
  %2218 = vmatprep.subr.mxu0 0.0
  %2219 = vmatpush1.msra.mxu0 %v201
  %2220 = vmatprep.subr.mxu0 0.0
  %2221 = vmatpush1.msra.mxu0 %v200
  %2222 = vmatprep.subr.mxu0 0.0
  %2223 = vmatpush1.msra.mxu0 %v199
  %2224 = vmatprep.subr.mxu0 0.0
  %2225 = vmatpush1.msra.mxu0 %v198
  %2226 = vmatprep.subr.mxu0 0.0
  %2227 = vmatpush1.msra.mxu0 %v197
  %2228 = vmatprep.subr.mxu0 0.0
  %2229 = vmatpush1.msra.mxu0 %v196
  %2230 = vmatprep.subr.mxu0 0.0
  %2231 = vmatpush1.msra.mxu0 %v195
  %2232 = vmatprep.subr.mxu0 0.0
  %2233 = vmatpush2.msra.mxu0 0.0
  %2234 = vmatprep.subr.mxu0 0.0
  %2235 = vmatpush2.msra.mxu0 0.0
  %2236 = vmatprep.subr.mxu0 0.0
  %2237 = vmatpush2.msra.mxu0 0.0
  %2238 = vmatprep.subr.mxu0 0.0
  %2239 = vmatpush2.msra.mxu0 0.0
  %2240 = vmatprep.subr.mxu0 0.0
  %2241 = vmatpush2.msra.mxu0 0.0
  %2242 = vmatprep.subr.mxu0 0.0
  %2243 = vmatpush2.msra.mxu0 0.0
  %2244 = vmatprep.subr.mxu0 0.0
  %2245 = vmatpush2.msra.mxu0 0.0
  %2246 = vmatprep.subr.mxu0 0.0
  %2247 = vmatpush2.msra.mxu0 0.0
  %2248 = vmatprep.subr.mxu0 0.0
  %2249 = vmatpush2.msra.mxu0 0.0
  %2250 = vmatprep.subr.mxu0 0.0
  %2251 = vmatpush2.msra.mxu0 0.0
  %2252 = vmatprep.subr.mxu0 0.0
  %2253 = vmatpush2.msra.mxu0 0.0
  %2254 = vmatprep.subr.mxu0 0.0
  %2255 = vmatpush2.msra.mxu0 0.0
  %2256 = vmatprep.subr.mxu0 0.0
  %2257 = vmatpush2.msra.mxu0 0.0
  %2258 = vmatprep.subr.mxu0 0.0
  %2259 = vmatpush2.msra.mxu0 0.0
  %2260 = vmatprep.subr.mxu0 0.0
  %2261 = vmatpush2.msra.mxu0 0.0
  %2262 = vmatprep.subr.mxu0 0.0
  %2263 = vmatpush2.msra.mxu0 0.0
  %2264 = vmatprep.mubr.f32.mxu0 0.0
  %2265 = vmatmul.mubr.f32.gmra.mxu0 %v2198
  %v2266 = vpop.f32.mrf.mxu0
  %v2267 = vadd.f32 %v2195, %v2266
  %v2268 = vpop.f32.mrf.mxu0
  %2269 = vdwg.mxu0
  %vm2270 = vcmask 259072
  %v2271 = vsel %vm2270, %v2267, 0.0
  %v2272 = vrot.slane %v2271, 4
  %v2273 = vadd.f32 %v2271, %v2272
  %v2274 = vrot.slane %v2273, 2
  %v2275 = vadd.f32 %v2273, %v2274
  %v2276 = vrot.slane %v2275, 1
  %v2277 = vadd.f32 %v2275, %v2276
  %v2278 = vmul.f32 %v2277, %v2161
  %v2279 = vsub.f32 %v2267, %v2278
  %v2280 = vmul.f32 %v2279, %v2279
  %v2281 = vsel %vm2270, %v2280, 0.0
  %v2282 = vrot.slane %v2281, 4
  %v2283 = vadd.f32 %v2281, %v2282
  %v2284 = vrot.slane %v2283, 2
  %v2285 = vadd.f32 %v2283, %v2284
  %v2286 = vrot.slane %v2285, 1
  %v2287 = vadd.f32 %v2285, %v2286
  %v2288 = vmul.f32 %v2287, %v2161
  %v2289 = vadd.f32 %v2288, 1e-05
  %v2290 = vrsqrt.pop %v2289
  %v2291 = vmul.f32 %v2279, %v2290
  %v2293 = vlaneseq
  %v2294 = vshrl.u32 %v2293, 7
  %v2295 = vsub.s32 0, %v2294
  %v2296 = vrot.slane %v204, %v2295
  %v2298 = vmul.f32 %v2291, %v2296
  %v2300 = vlaneseq
  %v2301 = vshrl.u32 %v2300, 7
  %v2302 = vsub.s32 0, %v2301
  %v2303 = vrot.slane %v205, %v2302
  %v2305 = vadd.f32 %v2298, %v2303
  %v2306 = vmax.f32 %v2305, 0.0
  %2308 = vset.pattern.permute.xlu0 0
  %2309 = vperm.xlu0 %2308, %v495
  %v2310 = vpop.permute.xlu0 %2309
  %v2312 = vmul.f32 %v2310, %v215
  %2313 = vset.pattern.permute.xlu0 1
  %2314 = vperm.xlu0 %2313, %v495
  %v2315 = vpop.permute.xlu0 %2314
  %v2317 = vmul.f32 %v2315, %v224
  %v2318 = vadd.f32 %v2312, %v2317
  %v2319 = vadd.f32 %v2318, %v231
  %vm2320 = vcmask 13312
  %2321 = vst.msk [vmem:[%s63] sm:$0x3f] %vm2320, %v495
  %v2323 = vsel %vm234, %v2306, 0
  %2325 = vmatprep.subr.mxu0 0.0
  %2326 = vmatpush1.msra.mxu0 0.0
  %2327 = vmatprep.subr.mxu0 0.0
  %2328 = vmatpush1.msra.mxu0 0.0
  %2329 = vmatprep.subr.mxu0 0.0
  %2330 = vmatpush1.msra.mxu0 0.0
  %2331 = vmatprep.subr.mxu0 0.0
  %2332 = vmatpush1.msra.mxu0 0.0
  %2333 = vmatprep.subr.mxu0 0.0
  %2334 = vmatpush1.msra.mxu0 0.0
  %2335 = vmatprep.subr.mxu0 0.0
  %2336 = vmatpush1.msra.mxu0 0.0
  %2337 = vmatprep.subr.mxu0 0.0
  %2338 = vmatpush1.msra.mxu0 0.0
  %2339 = vmatprep.subr.mxu0 0.0
  %2340 = vmatpush1.msra.mxu0 0.0
  %2341 = vmatprep.subr.mxu0 0.0
  %2342 = vmatpush1.msra.mxu0 0.0
  %2343 = vmatprep.subr.mxu0 0.0
  %2344 = vmatpush1.msra.mxu0 0.0
  %2345 = vmatprep.subr.mxu0 0.0
  %2346 = vmatpush1.msra.mxu0 0.0
  %2347 = vmatprep.subr.mxu0 0.0
  %2348 = vmatpush1.msra.mxu0 0.0
  %2349 = vmatprep.subr.mxu0 0.0
  %2350 = vmatpush1.msra.mxu0 %v148
  %2351 = vmatprep.subr.mxu0 0.0
  %2352 = vmatpush1.msra.mxu0 %v147
  %2353 = vmatprep.subr.mxu0 0.0
  %2354 = vmatpush1.msra.mxu0 %v146
  %2355 = vmatprep.subr.mxu0 0.0
  %2356 = vmatpush1.msra.mxu0 %v145
  %2357 = vmatprep.subr.mxu0 0.0
  %2358 = vmatpush2.msra.mxu0 0.0
  %2359 = vmatprep.subr.mxu0 0.0
  %2360 = vmatpush2.msra.mxu0 0.0
  %2361 = vmatprep.subr.mxu0 0.0
  %2362 = vmatpush2.msra.mxu0 0.0
  %2363 = vmatprep.subr.mxu0 0.0
  %2364 = vmatpush2.msra.mxu0 0.0
  %2365 = vmatprep.subr.mxu0 0.0
  %2366 = vmatpush2.msra.mxu0 0.0
  %2367 = vmatprep.subr.mxu0 0.0
  %2368 = vmatpush2.msra.mxu0 0.0
  %2369 = vmatprep.subr.mxu0 0.0
  %2370 = vmatpush2.msra.mxu0 0.0
  %2371 = vmatprep.subr.mxu0 0.0
  %2372 = vmatpush2.msra.mxu0 0.0
  %2373 = vmatprep.subr.mxu0 0.0
  %2374 = vmatpush2.msra.mxu0 0.0
  %2375 = vmatprep.subr.mxu0 0.0
  %2376 = vmatpush2.msra.mxu0 0.0
  %2377 = vmatprep.subr.mxu0 0.0
  %2378 = vmatpush2.msra.mxu0 0.0
  %2379 = vmatprep.subr.mxu0 0.0
  %2380 = vmatpush2.msra.mxu0 0.0
  %2381 = vmatprep.subr.mxu0 0.0
  %2382 = vmatpush2.msra.mxu0 0.0
  %2383 = vmatprep.subr.mxu0 0.0
  %2384 = vmatpush2.msra.mxu0 0.0
  %2385 = vmatprep.subr.mxu0 0.0
  %2386 = vmatpush2.msra.mxu0 0.0
  %2387 = vmatprep.subr.mxu0 0.0
  %2388 = vmatpush2.msra.mxu0 0.0
  %2389 = vmatprep.mubr.f32.mxu0 0.0
  %2390 = vmatmul.mubr.f32.gmra.mxu0 %v2323
  %v2391 = vpop.f32.mrf.mxu0
  %v2392 = vadd.f32 0.0, %v2391
  %v2393 = vpop.f32.mrf.mxu0
  %2394 = vdwg.mxu0
  %v2396 = vsel %vm308, %v2319, 0
  %2398 = vmatprep.subr.mxu0 0.0
  %2399 = vmatpush1.msra.mxu0 0.0
  %2400 = vmatprep.subr.mxu0 0.0
  %2401 = vmatpush1.msra.mxu0 0.0
  %2402 = vmatprep.subr.mxu0 0.0
  %2403 = vmatpush1.msra.mxu0 0.0
  %2404 = vmatprep.subr.mxu0 0.0
  %2405 = vmatpush1.msra.mxu0 0.0
  %2406 = vmatprep.subr.mxu0 0.0
  %2407 = vmatpush1.msra.mxu0 0.0
  %2408 = vmatprep.subr.mxu0 0.0
  %2409 = vmatpush1.msra.mxu0 0.0
  %2410 = vmatprep.subr.mxu0 0.0
  %2411 = vmatpush1.msra.mxu0 0.0
  %2412 = vmatprep.subr.mxu0 0.0
  %2413 = vmatpush1.msra.mxu0 0.0
  %2414 = vmatprep.subr.mxu0 0.0
  %2415 = vmatpush1.msra.mxu0 0.0
  %2416 = vmatprep.subr.mxu0 0.0
  %2417 = vmatpush1.msra.mxu0 0.0
  %2418 = vmatprep.subr.mxu0 0.0
  %2419 = vmatpush1.msra.mxu0 0.0
  %2420 = vmatprep.subr.mxu0 0.0
  %2421 = vmatpush1.msra.mxu0 0.0
  %2422 = vmatprep.subr.mxu0 0.0
  %2423 = vmatpush1.msra.mxu0 0.0
  %2424 = vmatprep.subr.mxu0 0.0
  %2425 = vmatpush1.msra.mxu0 0.0
  %2426 = vmatprep.subr.mxu0 0.0
  %2427 = vmatpush1.msra.mxu0 %v144
  %2428 = vmatprep.subr.mxu0 0.0
  %2429 = vmatpush1.msra.mxu0 %v143
  %2430 = vmatprep.subr.mxu0 0.0
  %2431 = vmatpush2.msra.mxu0 0.0
  %2432 = vmatprep.subr.mxu0 0.0
  %2433 = vmatpush2.msra.mxu0 0.0
  %2434 = vmatprep.subr.mxu0 0.0
  %2435 = vmatpush2.msra.mxu0 0.0
  %2436 = vmatprep.subr.mxu0 0.0
  %2437 = vmatpush2.msra.mxu0 0.0
  %2438 = vmatprep.subr.mxu0 0.0
  %2439 = vmatpush2.msra.mxu0 0.0
  %2440 = vmatprep.subr.mxu0 0.0
  %2441 = vmatpush2.msra.mxu0 0.0
  %2442 = vmatprep.subr.mxu0 0.0
  %2443 = vmatpush2.msra.mxu0 0.0
  %2444 = vmatprep.subr.mxu0 0.0
  %2445 = vmatpush2.msra.mxu0 0.0
  %2446 = vmatprep.subr.mxu0 0.0
  %2447 = vmatpush2.msra.mxu0 0.0
  %2448 = vmatprep.subr.mxu0 0.0
  %2449 = vmatpush2.msra.mxu0 0.0
  %2450 = vmatprep.subr.mxu0 0.0
  %2451 = vmatpush2.msra.mxu0 0.0
  %2452 = vmatprep.subr.mxu0 0.0
  %2453 = vmatpush2.msra.mxu0 0.0
  %2454 = vmatprep.subr.mxu0 0.0
  %2455 = vmatpush2.msra.mxu0 0.0
  %2456 = vmatprep.subr.mxu0 0.0
  %2457 = vmatpush2.msra.mxu0 0.0
  %2458 = vmatprep.subr.mxu0 0.0
  %2459 = vmatpush2.msra.mxu0 0.0
  %2460 = vmatprep.subr.mxu0 0.0
  %2461 = vmatpush2.msra.mxu0 0.0
  %2462 = vmatprep.mubr.f32.mxu0 0.0
  %2463 = vmatmul.mubr.f32.gmra.mxu0 %v2396
  %v2464 = vpop.f32.mrf.mxu0
  %v2465 = vadd.f32 %v2392, %v2464
  %v2466 = vpop.f32.mrf.mxu0
  %2467 = vdwg.mxu0
  %v2468 = vadd.f32 %v2465, %v386
  %v2469 = vxor.u32 %v2468, 2147483648
  %v2470 = vmul.f32 %v2469, 1.442695
  %v2471 = vpow.pop %v2470
  %v2472 = vadd.f32 %v2471, 1.0
  %v2473 = vrcp.pop %v2472
  %v2474 = vmul.f32 1.0, %v2473
  %v2475 = vtanh.pop %v2468
  %v2476 = vmul.f32 %v2474, %v410
  %2478 = vrot.lane.b32.xlu0 %v2475, 64
  %v2479 = vpop.permute.xlu0 %2478
  %v2481 = vmul.f32 %v2474, %v2479
  %2483 = vrot.lane.b32.xlu0 %v2481, 32
  %v2484 = vpop.permute.xlu0 %2483
  %v2486 = vadd.f32 %v2476, %v2484
  %v2487 = vtanh.pop %v2486
  %2489 = vrot.lane.b32.xlu0 %v2487, 64
  %v2490 = vpop.permute.xlu0 %2489
  %v2492 = vmul.f32 %v2474, %v2490
  %2494 = vrot.lane.b32.xlu0 %v2492, 32
  %v2495 = vpop.permute.xlu0 %2494
  %v2496 = vsel %vm234, %v2495, 0
  %2498 = vmatprep.subr.mxu0 0.0
  %2499 = vmatpush1.msra.mxu0 0.0
  %2500 = vmatprep.subr.mxu0 0.0
  %2501 = vmatpush1.msra.mxu0 0.0
  %2502 = vmatprep.subr.mxu0 0.0
  %2503 = vmatpush1.msra.mxu0 0.0
  %2504 = vmatprep.subr.mxu0 0.0
  %2505 = vmatpush1.msra.mxu0 0.0
  %2506 = vmatprep.subr.mxu0 0.0
  %2507 = vmatpush1.msra.mxu0 0.0
  %2508 = vmatprep.subr.mxu0 0.0
  %2509 = vmatpush1.msra.mxu0 0.0
  %2510 = vmatprep.subr.mxu0 0.0
  %2511 = vmatpush1.msra.mxu0 0.0
  %2512 = vmatprep.subr.mxu0 0.0
  %2513 = vmatpush1.msra.mxu0 0.0
  %2514 = vmatprep.subr.mxu0 0.0
  %2515 = vmatpush1.msra.mxu0 0.0
  %2516 = vmatprep.subr.mxu0 0.0
  %2517 = vmatpush1.msra.mxu0 0.0
  %2518 = vmatprep.subr.mxu0 0.0
  %2519 = vmatpush1.msra.mxu0 0.0
  %2520 = vmatprep.subr.mxu0 0.0
  %2521 = vmatpush1.msra.mxu0 0.0
  %2522 = vmatprep.subr.mxu0 0.0
  %2523 = vmatpush1.msra.mxu0 %v141
  %2524 = vmatprep.subr.mxu0 0.0
  %2525 = vmatpush1.msra.mxu0 %v140
  %2526 = vmatprep.subr.mxu0 0.0
  %2527 = vmatpush1.msra.mxu0 %v139
  %2528 = vmatprep.subr.mxu0 0.0
  %2529 = vmatpush1.msra.mxu0 %v138
  %2530 = vmatprep.subr.mxu0 0.0
  %2531 = vmatpush2.msra.mxu0 0.0
  %2532 = vmatprep.subr.mxu0 0.0
  %2533 = vmatpush2.msra.mxu0 0.0
  %2534 = vmatprep.subr.mxu0 0.0
  %2535 = vmatpush2.msra.mxu0 0.0
  %2536 = vmatprep.subr.mxu0 0.0
  %2537 = vmatpush2.msra.mxu0 0.0
  %2538 = vmatprep.subr.mxu0 0.0
  %2539 = vmatpush2.msra.mxu0 0.0
  %2540 = vmatprep.subr.mxu0 0.0
  %2541 = vmatpush2.msra.mxu0 0.0
  %2542 = vmatprep.subr.mxu0 0.0
  %2543 = vmatpush2.msra.mxu0 0.0
  %2544 = vmatprep.subr.mxu0 0.0
  %2545 = vmatpush2.msra.mxu0 0.0
  %2546 = vmatprep.subr.mxu0 0.0
  %2547 = vmatpush2.msra.mxu0 0.0
  %2548 = vmatprep.subr.mxu0 0.0
  %2549 = vmatpush2.msra.mxu0 0.0
  %2550 = vmatprep.subr.mxu0 0.0
  %2551 = vmatpush2.msra.mxu0 0.0
  %2552 = vmatprep.subr.mxu0 0.0
  %2553 = vmatpush2.msra.mxu0 0.0
  %2554 = vmatprep.subr.mxu0 0.0
  %2555 = vmatpush2.msra.mxu0 0.0
  %2556 = vmatprep.subr.mxu0 0.0
  %2557 = vmatpush2.msra.mxu0 0.0
  %2558 = vmatprep.subr.mxu0 0.0
  %2559 = vmatpush2.msra.mxu0 0.0
  %2560 = vmatprep.subr.mxu0 0.0
  %2561 = vmatpush2.msra.mxu0 0.0
  %2562 = vmatprep.mubr.f32.mxu0 0.0
  %2563 = vmatmul.mubr.f32.gmra.mxu0 %v2496
  %v2564 = vpop.f32.mrf.mxu0
  %v2565 = vadd.f32 %v421, %v2564
  %v2566 = vpop.f32.mrf.mxu0
  %2567 = vdwg.mxu0
  %v2568 = vadd.f32 %v2565, %v498
  %2569 = vmatprep.subr.mxu0 0.0
  %2570 = vmatpush1.msra.mxu0 0.0
  %2571 = vmatprep.subr.mxu0 0.0
  %2572 = vmatpush1.msra.mxu0 0.0
  %2573 = vmatprep.subr.mxu0 0.0
  %2574 = vmatpush1.msra.mxu0 0.0
  %2575 = vmatprep.subr.mxu0 0.0
  %2576 = vmatpush1.msra.mxu0 0.0
  %2577 = vmatprep.subr.mxu0 0.0
  %2578 = vmatpush1.msra.mxu0 0.0
  %2579 = vmatprep.subr.mxu0 0.0
  %2580 = vmatpush1.msra.mxu0 0.0
  %2581 = vmatprep.subr.mxu0 0.0
  %2582 = vmatpush1.msra.mxu0 0.0
  %2583 = vmatprep.subr.mxu0 0.0
  %2584 = vmatpush1.msra.mxu0 0.0
  %2585 = vmatprep.subr.mxu0 0.0
  %2586 = vmatpush1.msra.mxu0 0.0
  %2587 = vmatprep.subr.mxu0 0.0
  %2588 = vmatpush1.msra.mxu0 0.0
  %2589 = vmatprep.subr.mxu0 0.0
  %2590 = vmatpush1.msra.mxu0 0.0
  %2591 = vmatprep.subr.mxu0 0.0
  %2592 = vmatpush1.msra.mxu0 0.0
  %2593 = vmatprep.subr.mxu0 0.0
  %2594 = vmatpush1.msra.mxu0 %v157
  %2595 = vmatprep.subr.mxu0 0.0
  %2596 = vmatpush1.msra.mxu0 %v156
  %2597 = vmatprep.subr.mxu0 0.0
  %2598 = vmatpush1.msra.mxu0 %v155
  %2599 = vmatprep.subr.mxu0 0.0
  %2600 = vmatpush1.msra.mxu0 %v154
  %2601 = vmatprep.subr.mxu0 0.0
  %2602 = vmatpush2.msra.mxu0 0.0
  %2603 = vmatprep.subr.mxu0 0.0
  %2604 = vmatpush2.msra.mxu0 0.0
  %2605 = vmatprep.subr.mxu0 0.0
  %2606 = vmatpush2.msra.mxu0 0.0
  %2607 = vmatprep.subr.mxu0 0.0
  %2608 = vmatpush2.msra.mxu0 0.0
  %2609 = vmatprep.subr.mxu0 0.0
  %2610 = vmatpush2.msra.mxu0 0.0
  %2611 = vmatprep.subr.mxu0 0.0
  %2612 = vmatpush2.msra.mxu0 0.0
  %2613 = vmatprep.subr.mxu0 0.0
  %2614 = vmatpush2.msra.mxu0 0.0
  %2615 = vmatprep.subr.mxu0 0.0
  %2616 = vmatpush2.msra.mxu0 0.0
  %2617 = vmatprep.subr.mxu0 0.0
  %2618 = vmatpush2.msra.mxu0 0.0
  %2619 = vmatprep.subr.mxu0 0.0
  %2620 = vmatpush2.msra.mxu0 0.0
  %2621 = vmatprep.subr.mxu0 0.0
  %2622 = vmatpush2.msra.mxu0 0.0
  %2623 = vmatprep.subr.mxu0 0.0
  %2624 = vmatpush2.msra.mxu0 0.0
  %2625 = vmatprep.subr.mxu0 0.0
  %2626 = vmatpush2.msra.mxu0 0.0
  %2627 = vmatprep.subr.mxu0 0.0
  %2628 = vmatpush2.msra.mxu0 0.0
  %2629 = vmatprep.subr.mxu0 0.0
  %2630 = vmatpush2.msra.mxu0 0.0
  %2631 = vmatprep.subr.mxu0 0.0
  %2632 = vmatpush2.msra.mxu0 0.0
  %2633 = vmatprep.mubr.f32.mxu0 0.0
  %2634 = vmatmul.mubr.f32.gmra.mxu0 %v2496
  %v2635 = vpop.f32.mrf.mxu0
  %v2636 = vadd.f32 0.0, %v2635
  %v2637 = vpop.f32.mrf.mxu0
  %2638 = vdwg.mxu0
  %v2639 = vlaneseq
  %v2640 = vshrl.u32 %v2639, 7
  %v2641 = vsub.s32 0, %v2640
  %v2642 = vrot.slane %v2568, %v2641
  %v2643 = vsub.f32 %v2568, %v2642
  %2645 = vset.pattern.permute.xlu0 0
  %2646 = vperm.xlu0 %2645, %v2643
  %v2647 = vpop.permute.xlu0 %2646
  %v2649 = vmul.f32 %v2647, %v582
  %2650 = vset.pattern.permute.xlu0 1
  %2651 = vperm.xlu0 %2650, %v2643
  %v2652 = vpop.permute.xlu0 %2651
  %v2654 = vmul.f32 %v2652, %v591
  %v2655 = vadd.f32 %v2649, %v2654
  %v2656 = vadd.f32 %v2655, %v598
  %v2658 = vsel %vm308, %v2656, 0
  %2660 = vmatprep.subr.mxu0 0.0
  %2661 = vmatpush1.msra.mxu0 0.0
  %2662 = vmatprep.subr.mxu0 0.0
  %2663 = vmatpush1.msra.mxu0 0.0
  %2664 = vmatprep.subr.mxu0 0.0
  %2665 = vmatpush1.msra.mxu0 0.0
  %2666 = vmatprep.subr.mxu0 0.0
  %2667 = vmatpush1.msra.mxu0 0.0
  %2668 = vmatprep.subr.mxu0 0.0
  %2669 = vmatpush1.msra.mxu0 0.0
  %2670 = vmatprep.subr.mxu0 0.0
  %2671 = vmatpush1.msra.mxu0 0.0
  %2672 = vmatprep.subr.mxu0 0.0
  %2673 = vmatpush1.msra.mxu0 0.0
  %2674 = vmatprep.subr.mxu0 0.0
  %2675 = vmatpush1.msra.mxu0 0.0
  %2676 = vmatprep.subr.mxu0 0.0
  %2677 = vmatpush1.msra.mxu0 0.0
  %2678 = vmatprep.subr.mxu0 0.0
  %2679 = vmatpush1.msra.mxu0 0.0
  %2680 = vmatprep.subr.mxu0 0.0
  %2681 = vmatpush1.msra.mxu0 0.0
  %2682 = vmatprep.subr.mxu0 0.0
  %2683 = vmatpush1.msra.mxu0 0.0
  %2684 = vmatprep.subr.mxu0 0.0
  %2685 = vmatpush1.msra.mxu0 0.0
  %2686 = vmatprep.subr.mxu0 0.0
  %2687 = vmatpush1.msra.mxu0 0.0
  %2688 = vmatprep.subr.mxu0 0.0
  %2689 = vmatpush1.msra.mxu0 %v153
  %2690 = vmatprep.subr.mxu0 0.0
  %2691 = vmatpush1.msra.mxu0 %v152
  %2692 = vmatprep.subr.mxu0 0.0
  %2693 = vmatpush2.msra.mxu0 0.0
  %2694 = vmatprep.subr.mxu0 0.0
  %2695 = vmatpush2.msra.mxu0 0.0
  %2696 = vmatprep.subr.mxu0 0.0
  %2697 = vmatpush2.msra.mxu0 0.0
  %2698 = vmatprep.subr.mxu0 0.0
  %2699 = vmatpush2.msra.mxu0 0.0
  %2700 = vmatprep.subr.mxu0 0.0
  %2701 = vmatpush2.msra.mxu0 0.0
  %2702 = vmatprep.subr.mxu0 0.0
  %2703 = vmatpush2.msra.mxu0 0.0
  %2704 = vmatprep.subr.mxu0 0.0
  %2705 = vmatpush2.msra.mxu0 0.0
  %2706 = vmatprep.subr.mxu0 0.0
  %2707 = vmatpush2.msra.mxu0 0.0
  %2708 = vmatprep.subr.mxu0 0.0
  %2709 = vmatpush2.msra.mxu0 0.0
  %2710 = vmatprep.subr.mxu0 0.0
  %2711 = vmatpush2.msra.mxu0 0.0
  %2712 = vmatprep.subr.mxu0 0.0
  %2713 = vmatpush2.msra.mxu0 0.0
  %2714 = vmatprep.subr.mxu0 0.0
  %2715 = vmatpush2.msra.mxu0 0.0
  %2716 = vmatprep.subr.mxu0 0.0
  %2717 = vmatpush2.msra.mxu0 0.0
  %2718 = vmatprep.subr.mxu0 0.0
  %2719 = vmatpush2.msra.mxu0 0.0
  %2720 = vmatprep.subr.mxu0 0.0
  %2721 = vmatpush2.msra.mxu0 0.0
  %2722 = vmatprep.subr.mxu0 0.0
  %2723 = vmatpush2.msra.mxu0 0.0
  %2724 = vmatprep.mubr.f32.mxu0 0.0
  %2725 = vmatmul.mubr.f32.gmra.mxu0 %v2658
  %v2726 = vpop.f32.mrf.mxu0
  %v2727 = vadd.f32 %v2636, %v2726
  %v2728 = vpop.f32.mrf.mxu0
  %2729 = vdwg.mxu0
  %v2730 = vadd.f32 %v2727, %v678
  %v2731 = vlaneseq
  %v2732 = vshrl.u32 %v2731, 7
  %v2733 = vsub.s32 1, %v2732
  %v2734 = vrot.slane %v2568, %v2733
  %v2735 = vsub.f32 %v2568, %v2734
  %2737 = vset.pattern.permute.xlu0 0
  %2738 = vperm.xlu0 %2737, %v2735
  %v2739 = vpop.permute.xlu0 %2738
  %v2741 = vmul.f32 %v2739, %v582
  %2742 = vset.pattern.permute.xlu0 1
  %2743 = vperm.xlu0 %2742, %v2735
  %v2744 = vpop.permute.xlu0 %2743
  %v2746 = vmul.f32 %v2744, %v591
  %v2747 = vadd.f32 %v2741, %v2746
  %v2748 = vadd.f32 %v2747, %v598
  %v2750 = vsel %vm308, %v2748, 0
  %2752 = vmatprep.subr.mxu0 0.0
  %2753 = vmatpush1.msra.mxu0 0.0
  %2754 = vmatprep.subr.mxu0 0.0
  %2755 = vmatpush1.msra.mxu0 0.0
  %2756 = vmatprep.subr.mxu0 0.0
  %2757 = vmatpush1.msra.mxu0 0.0
  %2758 = vmatprep.subr.mxu0 0.0
  %2759 = vmatpush1.msra.mxu0 0.0
  %2760 = vmatprep.subr.mxu0 0.0
  %2761 = vmatpush1.msra.mxu0 0.0
  %2762 = vmatprep.subr.mxu0 0.0
  %2763 = vmatpush1.msra.mxu0 0.0
  %2764 = vmatprep.subr.mxu0 0.0
  %2765 = vmatpush1.msra.mxu0 0.0
  %2766 = vmatprep.subr.mxu0 0.0
  %2767 = vmatpush1.msra.mxu0 0.0
  %2768 = vmatprep.subr.mxu0 0.0
  %2769 = vmatpush1.msra.mxu0 0.0
  %2770 = vmatprep.subr.mxu0 0.0
  %2771 = vmatpush1.msra.mxu0 0.0
  %2772 = vmatprep.subr.mxu0 0.0
  %2773 = vmatpush1.msra.mxu0 0.0
  %2774 = vmatprep.subr.mxu0 0.0
  %2775 = vmatpush1.msra.mxu0 0.0
  %2776 = vmatprep.subr.mxu0 0.0
  %2777 = vmatpush1.msra.mxu0 0.0
  %2778 = vmatprep.subr.mxu0 0.0
  %2779 = vmatpush1.msra.mxu0 0.0
  %2780 = vmatprep.subr.mxu0 0.0
  %2781 = vmatpush1.msra.mxu0 %v153
  %2782 = vmatprep.subr.mxu0 0.0
  %2783 = vmatpush1.msra.mxu0 %v152
  %2784 = vmatprep.subr.mxu0 0.0
  %2785 = vmatpush2.msra.mxu0 0.0
  %2786 = vmatprep.subr.mxu0 0.0
  %2787 = vmatpush2.msra.mxu0 0.0
  %2788 = vmatprep.subr.mxu0 0.0
  %2789 = vmatpush2.msra.mxu0 0.0
  %2790 = vmatprep.subr.mxu0 0.0
  %2791 = vmatpush2.msra.mxu0 0.0
  %2792 = vmatprep.subr.mxu0 0.0
  %2793 = vmatpush2.msra.mxu0 0.0
  %2794 = vmatprep.subr.mxu0 0.0
  %2795 = vmatpush2.msra.mxu0 0.0
  %2796 = vmatprep.subr.mxu0 0.0
  %2797 = vmatpush2.msra.mxu0 0.0
  %2798 = vmatprep.subr.mxu0 0.0
  %2799 = vmatpush2.msra.mxu0 0.0
  %2800 = vmatprep.subr.mxu0 0.0
  %2801 = vmatpush2.msra.mxu0 0.0
  %2802 = vmatprep.subr.mxu0 0.0
  %2803 = vmatpush2.msra.mxu0 0.0
  %2804 = vmatprep.subr.mxu0 0.0
  %2805 = vmatpush2.msra.mxu0 0.0
  %2806 = vmatprep.subr.mxu0 0.0
  %2807 = vmatpush2.msra.mxu0 0.0
  %2808 = vmatprep.subr.mxu0 0.0
  %2809 = vmatpush2.msra.mxu0 0.0
  %2810 = vmatprep.subr.mxu0 0.0
  %2811 = vmatpush2.msra.mxu0 0.0
  %2812 = vmatprep.subr.mxu0 0.0
  %2813 = vmatpush2.msra.mxu0 0.0
  %2814 = vmatprep.subr.mxu0 0.0
  %2815 = vmatpush2.msra.mxu0 0.0
  %2816 = vmatprep.mubr.f32.mxu0 0.0
  %2817 = vmatmul.mubr.f32.gmra.mxu0 %v2750
  %v2818 = vpop.f32.mrf.mxu0
  %v2819 = vadd.f32 %v2636, %v2818
  %v2820 = vpop.f32.mrf.mxu0
  %2821 = vdwg.mxu0
  %v2822 = vadd.f32 %v2819, %v678
  %v2823 = vlaneseq
  %v2824 = vshrl.u32 %v2823, 7
  %v2825 = vsub.s32 2, %v2824
  %v2826 = vrot.slane %v2568, %v2825
  %v2827 = vsub.f32 %v2568, %v2826
  %2829 = vset.pattern.permute.xlu0 0
  %2830 = vperm.xlu0 %2829, %v2827
  %v2831 = vpop.permute.xlu0 %2830
  %v2833 = vmul.f32 %v2831, %v582
  %2834 = vset.pattern.permute.xlu0 1
  %2835 = vperm.xlu0 %2834, %v2827
  %v2836 = vpop.permute.xlu0 %2835
  %v2838 = vmul.f32 %v2836, %v591
  %v2839 = vadd.f32 %v2833, %v2838
  %v2840 = vadd.f32 %v2839, %v598
  %v2842 = vsel %vm308, %v2840, 0
  %2844 = vmatprep.subr.mxu0 0.0
  %2845 = vmatpush1.msra.mxu0 0.0
  %2846 = vmatprep.subr.mxu0 0.0
  %2847 = vmatpush1.msra.mxu0 0.0
  %2848 = vmatprep.subr.mxu0 0.0
  %2849 = vmatpush1.msra.mxu0 0.0
  %2850 = vmatprep.subr.mxu0 0.0
  %2851 = vmatpush1.msra.mxu0 0.0
  %2852 = vmatprep.subr.mxu0 0.0
  %2853 = vmatpush1.msra.mxu0 0.0
  %2854 = vmatprep.subr.mxu0 0.0
  %2855 = vmatpush1.msra.mxu0 0.0
  %2856 = vmatprep.subr.mxu0 0.0
  %2857 = vmatpush1.msra.mxu0 0.0
  %2858 = vmatprep.subr.mxu0 0.0
  %2859 = vmatpush1.msra.mxu0 0.0
  %2860 = vmatprep.subr.mxu0 0.0
  %2861 = vmatpush1.msra.mxu0 0.0
  %2862 = vmatprep.subr.mxu0 0.0
  %2863 = vmatpush1.msra.mxu0 0.0
  %2864 = vmatprep.subr.mxu0 0.0
  %2865 = vmatpush1.msra.mxu0 0.0
  %2866 = vmatprep.subr.mxu0 0.0
  %2867 = vmatpush1.msra.mxu0 0.0
  %2868 = vmatprep.subr.mxu0 0.0
  %2869 = vmatpush1.msra.mxu0 0.0
  %2870 = vmatprep.subr.mxu0 0.0
  %2871 = vmatpush1.msra.mxu0 0.0
  %2872 = vmatprep.subr.mxu0 0.0
  %2873 = vmatpush1.msra.mxu0 %v153
  %2874 = vmatprep.subr.mxu0 0.0
  %2875 = vmatpush1.msra.mxu0 %v152
  %2876 = vmatprep.subr.mxu0 0.0
  %2877 = vmatpush2.msra.mxu0 0.0
  %2878 = vmatprep.subr.mxu0 0.0
  %2879 = vmatpush2.msra.mxu0 0.0
  %2880 = vmatprep.subr.mxu0 0.0
  %2881 = vmatpush2.msra.mxu0 0.0
  %2882 = vmatprep.subr.mxu0 0.0
  %2883 = vmatpush2.msra.mxu0 0.0
  %2884 = vmatprep.subr.mxu0 0.0
  %2885 = vmatpush2.msra.mxu0 0.0
  %2886 = vmatprep.subr.mxu0 0.0
  %2887 = vmatpush2.msra.mxu0 0.0
  %2888 = vmatprep.subr.mxu0 0.0
  %2889 = vmatpush2.msra.mxu0 0.0
  %2890 = vmatprep.subr.mxu0 0.0
  %2891 = vmatpush2.msra.mxu0 0.0
  %2892 = vmatprep.subr.mxu0 0.0
  %2893 = vmatpush2.msra.mxu0 0.0
  %2894 = vmatprep.subr.mxu0 0.0
  %2895 = vmatpush2.msra.mxu0 0.0
  %2896 = vmatprep.subr.mxu0 0.0
  %2897 = vmatpush2.msra.mxu0 0.0
  %2898 = vmatprep.subr.mxu0 0.0
  %2899 = vmatpush2.msra.mxu0 0.0
  %2900 = vmatprep.subr.mxu0 0.0
  %2901 = vmatpush2.msra.mxu0 0.0
  %2902 = vmatprep.subr.mxu0 0.0
  %2903 = vmatpush2.msra.mxu0 0.0
  %2904 = vmatprep.subr.mxu0 0.0
  %2905 = vmatpush2.msra.mxu0 0.0
  %2906 = vmatprep.subr.mxu0 0.0
  %2907 = vmatpush2.msra.mxu0 0.0
  %2908 = vmatprep.mubr.f32.mxu0 0.0
  %2909 = vmatmul.mubr.f32.gmra.mxu0 %v2842
  %v2910 = vpop.f32.mrf.mxu0
  %v2911 = vadd.f32 %v2636, %v2910
  %v2912 = vpop.f32.mrf.mxu0
  %2913 = vdwg.mxu0
  %v2914 = vadd.f32 %v2911, %v678
  %v2915 = vsel %vm865, %v2730, 0.0
  %v2916 = vrot.slane %v2915, 4
  %v2917 = vadd.f32 %v2915, %v2916
  %v2918 = vrot.slane %v2917, 2
  %v2919 = vadd.f32 %v2917, %v2918
  %v2920 = vrot.slane %v2919, 1
  %v2921 = vadd.f32 %v2919, %v2920
  %v2922 = vadd.f32 %v2921, 0.0
  %v2923 = vsel %vm865, %v2822, 0.0
  %v2924 = vrot.slane %v2923, 4
  %v2925 = vadd.f32 %v2923, %v2924
  %v2926 = vrot.slane %v2925, 2
  %v2927 = vadd.f32 %v2925, %v2926
  %v2928 = vrot.slane %v2927, 1
  %v2929 = vadd.f32 %v2927, %v2928
  %v2930 = vadd.f32 %v2922, %v2929
  %v2931 = vsel %vm865, %v2914, 0.0
  %v2932 = vrot.slane %v2931, 4
  %v2933 = vadd.f32 %v2931, %v2932
  %v2934 = vrot.slane %v2933, 2
  %v2935 = vadd.f32 %v2933, %v2934
  %v2936 = vrot.slane %v2935, 1
  %v2937 = vadd.f32 %v2935, %v2936
  %v2938 = vadd.f32 %v2930, %v2937
  %v2939 = vmul.f32 %v2938, %v890
  %v2940 = vsub.f32 %v2730, %v2939
  %v2941 = vmul.f32 %v2940, %v2940
  %v2942 = vsel %vm865, %v2941, 0.0
  %v2943 = vrot.slane %v2942, 4
  %v2944 = vadd.f32 %v2942, %v2943
  %v2945 = vrot.slane %v2944, 2
  %v2946 = vadd.f32 %v2944, %v2945
  %v2947 = vrot.slane %v2946, 1
  %v2948 = vadd.f32 %v2946, %v2947
  %v2949 = vadd.f32 %v2948, 0.0
  %v2950 = vsub.f32 %v2822, %v2939
  %v2951 = vmul.f32 %v2950, %v2950
  %v2952 = vsel %vm865, %v2951, 0.0
  %v2953 = vrot.slane %v2952, 4
  %v2954 = vadd.f32 %v2952, %v2953
  %v2955 = vrot.slane %v2954, 2
  %v2956 = vadd.f32 %v2954, %v2955
  %v2957 = vrot.slane %v2956, 1
  %v2958 = vadd.f32 %v2956, %v2957
  %v2959 = vadd.f32 %v2949, %v2958
  %v2960 = vsub.f32 %v2914, %v2939
  %v2961 = vmul.f32 %v2960, %v2960
  %v2962 = vsel %vm865, %v2961, 0.0
  %v2963 = vrot.slane %v2962, 4
  %v2964 = vadd.f32 %v2962, %v2963
  %v2965 = vrot.slane %v2964, 2
  %v2966 = vadd.f32 %v2964, %v2965
  %v2967 = vrot.slane %v2966, 1
  %v2968 = vadd.f32 %v2966, %v2967
  %v2969 = vadd.f32 %v2959, %v2968
  %v2970 = vmul.f32 %v2969, %v890
  %v2971 = vadd.f32 %v2970, 1e-05
  %v2972 = vrsqrt.pop %v2971
  %v2973 = vmul.f32 %v2940, %v2972
  %v2974 = vmul.f32 %v2973, %v930
  %v2975 = vadd.f32 %v2974, %v937
  %v2976 = vmax.f32 %v2975, 0.0
  %2977 = vmatprep.subr.mxu0 0.0
  %2978 = vmatpush1.msra.mxu0 %v176
  %2979 = vmatprep.subr.mxu0 0.0
  %2980 = vmatpush1.msra.mxu0 %v175
  %2981 = vmatprep.subr.mxu0 0.0
  %2982 = vmatpush1.msra.mxu0 %v174
  %2983 = vmatprep.subr.mxu0 0.0
  %2984 = vmatpush1.msra.mxu0 %v173
  %2985 = vmatprep.subr.mxu0 0.0
  %2986 = vmatpush1.msra.mxu0 %v172
  %2987 = vmatprep.subr.mxu0 0.0
  %2988 = vmatpush1.msra.mxu0 %v171
  %2989 = vmatprep.subr.mxu0 0.0
  %2990 = vmatpush1.msra.mxu0 %v170
  %2991 = vmatprep.subr.mxu0 0.0
  %2992 = vmatpush1.msra.mxu0 %v169
  %2993 = vmatprep.subr.mxu0 0.0
  %2994 = vmatpush1.msra.mxu0 %v168
  %2995 = vmatprep.subr.mxu0 0.0
  %2996 = vmatpush1.msra.mxu0 %v167
  %2997 = vmatprep.subr.mxu0 0.0
  %2998 = vmatpush1.msra.mxu0 %v166
  %2999 = vmatprep.subr.mxu0 0.0
  %3000 = vmatpush1.msra.mxu0 %v165
  %3001 = vmatprep.subr.mxu0 0.0
  %3002 = vmatpush1.msra.mxu0 %v164
  %3003 = vmatprep.subr.mxu0 0.0
  %3004 = vmatpush1.msra.mxu0 %v163
  %3005 = vmatprep.subr.mxu0 0.0
  %3006 = vmatpush1.msra.mxu0 %v162
  %3007 = vmatprep.subr.mxu0 0.0
  %3008 = vmatpush1.msra.mxu0 %v161
  %3009 = vmatprep.subr.mxu0 0.0
  %3010 = vmatpush2.msra.mxu0 0.0
  %3011 = vmatprep.subr.mxu0 0.0
  %3012 = vmatpush2.msra.mxu0 0.0
  %3013 = vmatprep.subr.mxu0 0.0
  %3014 = vmatpush2.msra.mxu0 0.0
  %3015 = vmatprep.subr.mxu0 0.0
  %3016 = vmatpush2.msra.mxu0 0.0
  %3017 = vmatprep.subr.mxu0 0.0
  %3018 = vmatpush2.msra.mxu0 0.0
  %3019 = vmatprep.subr.mxu0 0.0
  %3020 = vmatpush2.msra.mxu0 0.0
  %3021 = vmatprep.subr.mxu0 0.0
  %3022 = vmatpush2.msra.mxu0 0.0
  %3023 = vmatprep.subr.mxu0 0.0
  %3024 = vmatpush2.msra.mxu0 0.0
  %3025 = vmatprep.subr.mxu0 0.0
  %3026 = vmatpush2.msra.mxu0 0.0
  %3027 = vmatprep.subr.mxu0 0.0
  %3028 = vmatpush2.msra.mxu0 0.0
  %3029 = vmatprep.subr.mxu0 0.0
  %3030 = vmatpush2.msra.mxu0 0.0
  %3031 = vmatprep.subr.mxu0 0.0
  %3032 = vmatpush2.msra.mxu0 0.0
  %3033 = vmatprep.subr.mxu0 0.0
  %3034 = vmatpush2.msra.mxu0 0.0
  %3035 = vmatprep.subr.mxu0 0.0
  %3036 = vmatpush2.msra.mxu0 0.0
  %3037 = vmatprep.subr.mxu0 0.0
  %3038 = vmatpush2.msra.mxu0 0.0
  %3039 = vmatprep.subr.mxu0 0.0
  %3040 = vmatpush2.msra.mxu0 0.0
  %3041 = vmatprep.mubr.f32.mxu0 0.0
  %3042 = vmatmul.mubr.f32.gmra.mxu0 %v2976
  %v3043 = vpop.f32.mrf.mxu0
  %v3044 = vadd.f32 %v945, %v3043
  %v3045 = vpop.f32.mrf.mxu0
  %3046 = vdwg.mxu0
  %v3047 = vmul.f32 %v2950, %v2972
  %v3048 = vmul.f32 %v3047, %v930
  %v3049 = vadd.f32 %v3048, %v937
  %v3050 = vmax.f32 %v3049, 0.0
  %3051 = vmatprep.subr.mxu0 0.0
  %3052 = vmatpush1.msra.mxu0 %v176
  %3053 = vmatprep.subr.mxu0 0.0
  %3054 = vmatpush1.msra.mxu0 %v175
  %3055 = vmatprep.subr.mxu0 0.0
  %3056 = vmatpush1.msra.mxu0 %v174
  %3057 = vmatprep.subr.mxu0 0.0
  %3058 = vmatpush1.msra.mxu0 %v173
  %3059 = vmatprep.subr.mxu0 0.0
  %3060 = vmatpush1.msra.mxu0 %v172
  %3061 = vmatprep.subr.mxu0 0.0
  %3062 = vmatpush1.msra.mxu0 %v171
  %3063 = vmatprep.subr.mxu0 0.0
  %3064 = vmatpush1.msra.mxu0 %v170
  %3065 = vmatprep.subr.mxu0 0.0
  %3066 = vmatpush1.msra.mxu0 %v169
  %3067 = vmatprep.subr.mxu0 0.0
  %3068 = vmatpush1.msra.mxu0 %v168
  %3069 = vmatprep.subr.mxu0 0.0
  %3070 = vmatpush1.msra.mxu0 %v167
  %3071 = vmatprep.subr.mxu0 0.0
  %3072 = vmatpush1.msra.mxu0 %v166
  %3073 = vmatprep.subr.mxu0 0.0
  %3074 = vmatpush1.msra.mxu0 %v165
  %3075 = vmatprep.subr.mxu0 0.0
  %3076 = vmatpush1.msra.mxu0 %v164
  %3077 = vmatprep.subr.mxu0 0.0
  %3078 = vmatpush1.msra.mxu0 %v163
  %3079 = vmatprep.subr.mxu0 0.0
  %3080 = vmatpush1.msra.mxu0 %v162
  %3081 = vmatprep.subr.mxu0 0.0
  %3082 = vmatpush1.msra.mxu0 %v161
  %3083 = vmatprep.subr.mxu0 0.0
  %3084 = vmatpush2.msra.mxu0 0.0
  %3085 = vmatprep.subr.mxu0 0.0
  %3086 = vmatpush2.msra.mxu0 0.0
  %3087 = vmatprep.subr.mxu0 0.0
  %3088 = vmatpush2.msra.mxu0 0.0
  %3089 = vmatprep.subr.mxu0 0.0
  %3090 = vmatpush2.msra.mxu0 0.0
  %3091 = vmatprep.subr.mxu0 0.0
  %3092 = vmatpush2.msra.mxu0 0.0
  %3093 = vmatprep.subr.mxu0 0.0
  %3094 = vmatpush2.msra.mxu0 0.0
  %3095 = vmatprep.subr.mxu0 0.0
  %3096 = vmatpush2.msra.mxu0 0.0
  %3097 = vmatprep.subr.mxu0 0.0
  %3098 = vmatpush2.msra.mxu0 0.0
  %3099 = vmatprep.subr.mxu0 0.0
  %3100 = vmatpush2.msra.mxu0 0.0
  %3101 = vmatprep.subr.mxu0 0.0
  %3102 = vmatpush2.msra.mxu0 0.0
  %3103 = vmatprep.subr.mxu0 0.0
  %3104 = vmatpush2.msra.mxu0 0.0
  %3105 = vmatprep.subr.mxu0 0.0
  %3106 = vmatpush2.msra.mxu0 0.0
  %3107 = vmatprep.subr.mxu0 0.0
  %3108 = vmatpush2.msra.mxu0 0.0
  %3109 = vmatprep.subr.mxu0 0.0
  %3110 = vmatpush2.msra.mxu0 0.0
  %3111 = vmatprep.subr.mxu0 0.0
  %3112 = vmatpush2.msra.mxu0 0.0
  %3113 = vmatprep.subr.mxu0 0.0
  %3114 = vmatpush2.msra.mxu0 0.0
  %3115 = vmatprep.mubr.f32.mxu0 0.0
  %3116 = vmatmul.mubr.f32.gmra.mxu0 %v3050
  %v3117 = vpop.f32.mrf.mxu0
  %v3118 = vadd.f32 %v945, %v3117
  %v3119 = vpop.f32.mrf.mxu0
  %3120 = vdwg.mxu0
  %v3121 = vmul.f32 %v2960, %v2972
  %v3122 = vmul.f32 %v3121, %v930
  %v3123 = vadd.f32 %v3122, %v937
  %v3124 = vmax.f32 %v3123, 0.0
  %3125 = vmatprep.subr.mxu0 0.0
  %3126 = vmatpush1.msra.mxu0 %v176
  %3127 = vmatprep.subr.mxu0 0.0
  %3128 = vmatpush1.msra.mxu0 %v175
  %3129 = vmatprep.subr.mxu0 0.0
  %3130 = vmatpush1.msra.mxu0 %v174
  %3131 = vmatprep.subr.mxu0 0.0
  %3132 = vmatpush1.msra.mxu0 %v173
  %3133 = vmatprep.subr.mxu0 0.0
  %3134 = vmatpush1.msra.mxu0 %v172
  %3135 = vmatprep.subr.mxu0 0.0
  %3136 = vmatpush1.msra.mxu0 %v171
  %3137 = vmatprep.subr.mxu0 0.0
  %3138 = vmatpush1.msra.mxu0 %v170
  %3139 = vmatprep.subr.mxu0 0.0
  %3140 = vmatpush1.msra.mxu0 %v169
  %3141 = vmatprep.subr.mxu0 0.0
  %3142 = vmatpush1.msra.mxu0 %v168
  %3143 = vmatprep.subr.mxu0 0.0
  %3144 = vmatpush1.msra.mxu0 %v167
  %3145 = vmatprep.subr.mxu0 0.0
  %3146 = vmatpush1.msra.mxu0 %v166
  %3147 = vmatprep.subr.mxu0 0.0
  %3148 = vmatpush1.msra.mxu0 %v165
  %3149 = vmatprep.subr.mxu0 0.0
  %3150 = vmatpush1.msra.mxu0 %v164
  %3151 = vmatprep.subr.mxu0 0.0
  %3152 = vmatpush1.msra.mxu0 %v163
  %3153 = vmatprep.subr.mxu0 0.0
  %3154 = vmatpush1.msra.mxu0 %v162
  %3155 = vmatprep.subr.mxu0 0.0
  %3156 = vmatpush1.msra.mxu0 %v161
  %3157 = vmatprep.subr.mxu0 0.0
  %3158 = vmatpush2.msra.mxu0 0.0
  %3159 = vmatprep.subr.mxu0 0.0
  %3160 = vmatpush2.msra.mxu0 0.0
  %3161 = vmatprep.subr.mxu0 0.0
  %3162 = vmatpush2.msra.mxu0 0.0
  %3163 = vmatprep.subr.mxu0 0.0
  %3164 = vmatpush2.msra.mxu0 0.0
  %3165 = vmatprep.subr.mxu0 0.0
  %3166 = vmatpush2.msra.mxu0 0.0
  %3167 = vmatprep.subr.mxu0 0.0
  %3168 = vmatpush2.msra.mxu0 0.0
  %3169 = vmatprep.subr.mxu0 0.0
  %3170 = vmatpush2.msra.mxu0 0.0
  %3171 = vmatprep.subr.mxu0 0.0
  %3172 = vmatpush2.msra.mxu0 0.0
  %3173 = vmatprep.subr.mxu0 0.0
  %3174 = vmatpush2.msra.mxu0 0.0
  %3175 = vmatprep.subr.mxu0 0.0
  %3176 = vmatpush2.msra.mxu0 0.0
  %3177 = vmatprep.subr.mxu0 0.0
  %3178 = vmatpush2.msra.mxu0 0.0
  %3179 = vmatprep.subr.mxu0 0.0
  %3180 = vmatpush2.msra.mxu0 0.0
  %3181 = vmatprep.subr.mxu0 0.0
  %3182 = vmatpush2.msra.mxu0 0.0
  %3183 = vmatprep.subr.mxu0 0.0
  %3184 = vmatpush2.msra.mxu0 0.0
  %3185 = vmatprep.subr.mxu0 0.0
  %3186 = vmatpush2.msra.mxu0 0.0
  %3187 = vmatprep.subr.mxu0 0.0
  %3188 = vmatpush2.msra.mxu0 0.0
  %3189 = vmatprep.mubr.f32.mxu0 0.0
  %3190 = vmatmul.mubr.f32.gmra.mxu0 %v3124
  %v3191 = vpop.f32.mrf.mxu0
  %v3192 = vadd.f32 %v945, %v3191
  %v3193 = vpop.f32.mrf.mxu0
  %3194 = vdwg.mxu0
  %v3195 = vsel %vm1165, %v3044, 0.0
  %v3196 = vrot.slane %v3195, 4
  %v3197 = vadd.f32 %v3195, %v3196
  %v3198 = vrot.slane %v3197, 2
  %v3199 = vadd.f32 %v3197, %v3198
  %v3200 = vrot.slane %v3199, 1
  %v3201 = vadd.f32 %v3199, %v3200
  %v3202 = vadd.f32 %v3201, 0.0
  %v3203 = vsel %vm1165, %v3118, 0.0
  %v3204 = vrot.slane %v3203, 4
  %v3205 = vadd.f32 %v3203, %v3204
  %v3206 = vrot.slane %v3205, 2
  %v3207 = vadd.f32 %v3205, %v3206
  %v3208 = vrot.slane %v3207, 1
  %v3209 = vadd.f32 %v3207, %v3208
  %v3210 = vadd.f32 %v3202, %v3209
  %v3211 = vsel %vm1165, %v3192, 0.0
  %v3212 = vrot.slane %v3211, 4
  %v3213 = vadd.f32 %v3211, %v3212
  %v3214 = vrot.slane %v3213, 2
  %v3215 = vadd.f32 %v3213, %v3214
  %v3216 = vrot.slane %v3215, 1
  %v3217 = vadd.f32 %v3215, %v3216
  %v3218 = vadd.f32 %v3210, %v3217
  %v3219 = vmul.f32 %v3218, %v890
  %v3220 = vsub.f32 %v3044, %v3219
  %v3221 = vmul.f32 %v3220, %v3220
  %v3222 = vsel %vm1165, %v3221, 0.0
  %v3223 = vrot.slane %v3222, 4
  %v3224 = vadd.f32 %v3222, %v3223
  %v3225 = vrot.slane %v3224, 2
  %v3226 = vadd.f32 %v3224, %v3225
  %v3227 = vrot.slane %v3226, 1
  %v3228 = vadd.f32 %v3226, %v3227
  %v3229 = vadd.f32 %v3228, 0.0
  %v3230 = vsub.f32 %v3118, %v3219
  %v3231 = vmul.f32 %v3230, %v3230
  %v3232 = vsel %vm1165, %v3231, 0.0
  %v3233 = vrot.slane %v3232, 4
  %v3234 = vadd.f32 %v3232, %v3233
  %v3235 = vrot.slane %v3234, 2
  %v3236 = vadd.f32 %v3234, %v3235
  %v3237 = vrot.slane %v3236, 1
  %v3238 = vadd.f32 %v3236, %v3237
  %v3239 = vadd.f32 %v3229, %v3238
  %v3240 = vsub.f32 %v3192, %v3219
  %v3241 = vmul.f32 %v3240, %v3240
  %v3242 = vsel %vm1165, %v3241, 0.0
  %v3243 = vrot.slane %v3242, 4
  %v3244 = vadd.f32 %v3242, %v3243
  %v3245 = vrot.slane %v3244, 2
  %v3246 = vadd.f32 %v3244, %v3245
  %v3247 = vrot.slane %v3246, 1
  %v3248 = vadd.f32 %v3246, %v3247
  %v3249 = vadd.f32 %v3239, %v3248
  %v3250 = vmul.f32 %v3249, %v890
  %v3251 = vadd.f32 %v3250, 1e-05
  %v3252 = vrsqrt.pop %v3251
  %v3253 = vmul.f32 %v3220, %v3252
  %v3254 = vmul.f32 %v3253, %v1229
  %v3255 = vadd.f32 %v3254, %v1236
  %v3256 = vmax.f32 %v3255, 0.0
  %v3257 = vsel %vm1165, %v3256, -inf
  %v3258 = vrot.slane %v3257, 4
  %v3259 = vmax.f32 %v3257, %v3258
  %v3260 = vrot.slane %v3259, 2
  %v3261 = vmax.f32 %v3259, %v3260
  %v3262 = vrot.slane %v3261, 1
  %v3263 = vmax.f32 %v3261, %v3262
  %3264 = vst.msk [vmem:[#allocation2] sm:$0x1] %vm1247, %v3263
  %v3265 = vmul.f32 %v3230, %v3252
  %v3266 = vmul.f32 %v3265, %v1229
  %v3267 = vadd.f32 %v3266, %v1236
  %v3268 = vmax.f32 %v3267, 0.0
  %v3269 = vsel %vm1165, %v3268, -inf
  %v3270 = vrot.slane %v3269, 4
  %v3271 = vmax.f32 %v3269, %v3270
  %v3272 = vrot.slane %v3271, 2
  %v3273 = vmax.f32 %v3271, %v3272
  %v3274 = vrot.slane %v3273, 1
  %v3275 = vmax.f32 %v3273, %v3274
  %3276 = vst.msk [vmem:[#allocation2 + $0x1] sm:$0x1] %vm1247, %v3275
  %v3277 = vmul.f32 %v3240, %v3252
  %v3278 = vmul.f32 %v3277, %v1229
  %v3279 = vadd.f32 %v3278, %v1236
  %v3280 = vmax.f32 %v3279, 0.0
  %v3281 = vsel %vm1165, %v3280, -inf
  %v3282 = vrot.slane %v3281, 4
  %v3283 = vmax.f32 %v3281, %v3282
  %v3284 = vrot.slane %v3283, 2
  %v3285 = vmax.f32 %v3283, %v3284
  %v3286 = vrot.slane %v3285, 1
  %v3287 = vmax.f32 %v3285, %v3286
  %3288 = vst.msk [vmem:[#allocation2 + $0x2] sm:$0x1] %vm1247, %v3287
  %v3289 = vrot.slane %v2492, 3
  %3290 = vrot.lane.b32.xlu0 %v3289, 32
  %v3291 = vpop.permute.xlu0 %3290
  %v3292 = vsel %vm234, %v3291, 0
  %3294 = vmatprep.subr.mxu0 0.0
  %3295 = vmatpush1.msra.mxu0 0.0
  %3296 = vmatprep.subr.mxu0 0.0
  %3297 = vmatpush1.msra.mxu0 0.0
  %3298 = vmatprep.subr.mxu0 0.0
  %3299 = vmatpush1.msra.mxu0 0.0
  %3300 = vmatprep.subr.mxu0 0.0
  %3301 = vmatpush1.msra.mxu0 0.0
  %3302 = vmatprep.subr.mxu0 0.0
  %3303 = vmatpush1.msra.mxu0 0.0
  %3304 = vmatprep.subr.mxu0 0.0
  %3305 = vmatpush1.msra.mxu0 0.0
  %3306 = vmatprep.subr.mxu0 0.0
  %3307 = vmatpush1.msra.mxu0 0.0
  %3308 = vmatprep.subr.mxu0 0.0
  %3309 = vmatpush1.msra.mxu0 0.0
  %3310 = vmatprep.subr.mxu0 0.0
  %3311 = vmatpush1.msra.mxu0 0.0
  %3312 = vmatprep.subr.mxu0 0.0
  %3313 = vmatpush1.msra.mxu0 0.0
  %3314 = vmatprep.subr.mxu0 0.0
  %3315 = vmatpush1.msra.mxu0 0.0
  %3316 = vmatprep.subr.mxu0 0.0
  %3317 = vmatpush1.msra.mxu0 0.0
  %3318 = vmatprep.subr.mxu0 0.0
  %3319 = vmatpush1.msra.mxu0 %v157
  %3320 = vmatprep.subr.mxu0 0.0
  %3321 = vmatpush1.msra.mxu0 %v156
  %3322 = vmatprep.subr.mxu0 0.0
  %3323 = vmatpush1.msra.mxu0 %v155
  %3324 = vmatprep.subr.mxu0 0.0
  %3325 = vmatpush1.msra.mxu0 %v154
  %3326 = vmatprep.subr.mxu0 0.0
  %3327 = vmatpush2.msra.mxu0 0.0
  %3328 = vmatprep.subr.mxu0 0.0
  %3329 = vmatpush2.msra.mxu0 0.0
  %3330 = vmatprep.subr.mxu0 0.0
  %3331 = vmatpush2.msra.mxu0 0.0
  %3332 = vmatprep.subr.mxu0 0.0
  %3333 = vmatpush2.msra.mxu0 0.0
  %3334 = vmatprep.subr.mxu0 0.0
  %3335 = vmatpush2.msra.mxu0 0.0
  %3336 = vmatprep.subr.mxu0 0.0
  %3337 = vmatpush2.msra.mxu0 0.0
  %3338 = vmatprep.subr.mxu0 0.0
  %3339 = vmatpush2.msra.mxu0 0.0
  %3340 = vmatprep.subr.mxu0 0.0
  %3341 = vmatpush2.msra.mxu0 0.0
  %3342 = vmatprep.subr.mxu0 0.0
  %3343 = vmatpush2.msra.mxu0 0.0
  %3344 = vmatprep.subr.mxu0 0.0
  %3345 = vmatpush2.msra.mxu0 0.0
  %3346 = vmatprep.subr.mxu0 0.0
  %3347 = vmatpush2.msra.mxu0 0.0
  %3348 = vmatprep.subr.mxu0 0.0
  %3349 = vmatpush2.msra.mxu0 0.0
  %3350 = vmatprep.subr.mxu0 0.0
  %3351 = vmatpush2.msra.mxu0 0.0
  %3352 = vmatprep.subr.mxu0 0.0
  %3353 = vmatpush2.msra.mxu0 0.0
  %3354 = vmatprep.subr.mxu0 0.0
  %3355 = vmatpush2.msra.mxu0 0.0
  %3356 = vmatprep.subr.mxu0 0.0
  %3357 = vmatpush2.msra.mxu0 0.0
  %3358 = vmatprep.mubr.f32.mxu0 0.0
  %3359 = vmatmul.mubr.f32.gmra.mxu0 %v3292
  %v3360 = vpop.f32.mrf.mxu0
  %v3361 = vadd.f32 0.0, %v3360
  %v3362 = vpop.f32.mrf.mxu0
  %3363 = vdwg.mxu0
  %v3364 = vlaneseq
  %v3365 = vshrl.u32 %v3364, 7
  %v3366 = vsub.s32 3, %v3365
  %v3367 = vrot.slane %v2568, %v3366
  %v3368 = vsub.f32 %v2568, %v3367
  %3370 = vset.pattern.permute.xlu0 0
  %3371 = vperm.xlu0 %3370, %v3368
  %v3372 = vpop.permute.xlu0 %3371
  %v3374 = vmul.f32 %v3372, %v582
  %3375 = vset.pattern.permute.xlu0 1
  %3376 = vperm.xlu0 %3375, %v3368
  %v3377 = vpop.permute.xlu0 %3376
  %v3379 = vmul.f32 %v3377, %v591
  %v3380 = vadd.f32 %v3374, %v3379
  %v3381 = vadd.f32 %v3380, %v598
  %v3383 = vrot.slane %v3381, 3
  %v3384 = vsel %vm308, %v3383, 0
  %3386 = vmatprep.subr.mxu0 0.0
  %3387 = vmatpush1.msra.mxu0 0.0
  %3388 = vmatprep.subr.mxu0 0.0
  %3389 = vmatpush1.msra.mxu0 0.0
  %3390 = vmatprep.subr.mxu0 0.0
  %3391 = vmatpush1.msra.mxu0 0.0
  %3392 = vmatprep.subr.mxu0 0.0
  %3393 = vmatpush1.msra.mxu0 0.0
  %3394 = vmatprep.subr.mxu0 0.0
  %3395 = vmatpush1.msra.mxu0 0.0
  %3396 = vmatprep.subr.mxu0 0.0
  %3397 = vmatpush1.msra.mxu0 0.0
  %3398 = vmatprep.subr.mxu0 0.0
  %3399 = vmatpush1.msra.mxu0 0.0
  %3400 = vmatprep.subr.mxu0 0.0
  %3401 = vmatpush1.msra.mxu0 0.0
  %3402 = vmatprep.subr.mxu0 0.0
  %3403 = vmatpush1.msra.mxu0 0.0
  %3404 = vmatprep.subr.mxu0 0.0
  %3405 = vmatpush1.msra.mxu0 0.0
  %3406 = vmatprep.subr.mxu0 0.0
  %3407 = vmatpush1.msra.mxu0 0.0
  %3408 = vmatprep.subr.mxu0 0.0
  %3409 = vmatpush1.msra.mxu0 0.0
  %3410 = vmatprep.subr.mxu0 0.0
  %3411 = vmatpush1.msra.mxu0 0.0
  %3412 = vmatprep.subr.mxu0 0.0
  %3413 = vmatpush1.msra.mxu0 0.0
  %3414 = vmatprep.subr.mxu0 0.0
  %3415 = vmatpush1.msra.mxu0 %v153
  %3416 = vmatprep.subr.mxu0 0.0
  %3417 = vmatpush1.msra.mxu0 %v152
  %3418 = vmatprep.subr.mxu0 0.0
  %3419 = vmatpush2.msra.mxu0 0.0
  %3420 = vmatprep.subr.mxu0 0.0
  %3421 = vmatpush2.msra.mxu0 0.0
  %3422 = vmatprep.subr.mxu0 0.0
  %3423 = vmatpush2.msra.mxu0 0.0
  %3424 = vmatprep.subr.mxu0 0.0
  %3425 = vmatpush2.msra.mxu0 0.0
  %3426 = vmatprep.subr.mxu0 0.0
  %3427 = vmatpush2.msra.mxu0 0.0
  %3428 = vmatprep.subr.mxu0 0.0
  %3429 = vmatpush2.msra.mxu0 0.0
  %3430 = vmatprep.subr.mxu0 0.0
  %3431 = vmatpush2.msra.mxu0 0.0
  %3432 = vmatprep.subr.mxu0 0.0
  %3433 = vmatpush2.msra.mxu0 0.0
  %3434 = vmatprep.subr.mxu0 0.0
  %3435 = vmatpush2.msra.mxu0 0.0
  %3436 = vmatprep.subr.mxu0 0.0
  %3437 = vmatpush2.msra.mxu0 0.0
  %3438 = vmatprep.subr.mxu0 0.0
  %3439 = vmatpush2.msra.mxu0 0.0
  %3440 = vmatprep.subr.mxu0 0.0
  %3441 = vmatpush2.msra.mxu0 0.0
  %3442 = vmatprep.subr.mxu0 0.0
  %3443 = vmatpush2.msra.mxu0 0.0
  %3444 = vmatprep.subr.mxu0 0.0
  %3445 = vmatpush2.msra.mxu0 0.0
  %3446 = vmatprep.subr.mxu0 0.0
  %3447 = vmatpush2.msra.mxu0 0.0
  %3448 = vmatprep.subr.mxu0 0.0
  %3449 = vmatpush2.msra.mxu0 0.0
  %3450 = vmatprep.mubr.f32.mxu0 0.0
  %3451 = vmatmul.mubr.f32.gmra.mxu0 %v3384
  %v3452 = vpop.f32.mrf.mxu0
  %v3453 = vadd.f32 %v3361, %v3452
  %v3454 = vpop.f32.mrf.mxu0
  %3455 = vdwg.mxu0
  %v3456 = vadd.f32 %v3453, %v678
  %v3457 = vlaneseq
  %v3458 = vshrl.u32 %v3457, 7
  %v3459 = vsub.s32 4, %v3458
  %v3460 = vrot.slane %v2568, %v3459
  %v3461 = vsub.f32 %v2568, %v3460
  %3463 = vset.pattern.permute.xlu0 0
  %3464 = vperm.xlu0 %3463, %v3461
  %v3465 = vpop.permute.xlu0 %3464
  %v3467 = vmul.f32 %v3465, %v582
  %3468 = vset.pattern.permute.xlu0 1
  %3469 = vperm.xlu0 %3468, %v3461
  %v3470 = vpop.permute.xlu0 %3469
  %v3472 = vmul.f32 %v3470, %v591
  %v3473 = vadd.f32 %v3467, %v3472
  %v3474 = vadd.f32 %v3473, %v598
  %v3476 = vrot.slane %v3474, 3
  %v3477 = vsel %vm308, %v3476, 0
  %3479 = vmatprep.subr.mxu0 0.0
  %3480 = vmatpush1.msra.mxu0 0.0
  %3481 = vmatprep.subr.mxu0 0.0
  %3482 = vmatpush1.msra.mxu0 0.0
  %3483 = vmatprep.subr.mxu0 0.0
  %3484 = vmatpush1.msra.mxu0 0.0
  %3485 = vmatprep.subr.mxu0 0.0
  %3486 = vmatpush1.msra.mxu0 0.0
  %3487 = vmatprep.subr.mxu0 0.0
  %3488 = vmatpush1.msra.mxu0 0.0
  %3489 = vmatprep.subr.mxu0 0.0
  %3490 = vmatpush1.msra.mxu0 0.0
  %3491 = vmatprep.subr.mxu0 0.0
  %3492 = vmatpush1.msra.mxu0 0.0
  %3493 = vmatprep.subr.mxu0 0.0
  %3494 = vmatpush1.msra.mxu0 0.0
  %3495 = vmatprep.subr.mxu0 0.0
  %3496 = vmatpush1.msra.mxu0 0.0
  %3497 = vmatprep.subr.mxu0 0.0
  %3498 = vmatpush1.msra.mxu0 0.0
  %3499 = vmatprep.subr.mxu0 0.0
  %3500 = vmatpush1.msra.mxu0 0.0
  %3501 = vmatprep.subr.mxu0 0.0
  %3502 = vmatpush1.msra.mxu0 0.0
  %3503 = vmatprep.subr.mxu0 0.0
  %3504 = vmatpush1.msra.mxu0 0.0
  %3505 = vmatprep.subr.mxu0 0.0
  %3506 = vmatpush1.msra.mxu0 0.0
  %3507 = vmatprep.subr.mxu0 0.0
  %3508 = vmatpush1.msra.mxu0 %v153
  %3509 = vmatprep.subr.mxu0 0.0
  %3510 = vmatpush1.msra.mxu0 %v152
  %3511 = vmatprep.subr.mxu0 0.0
  %3512 = vmatpush2.msra.mxu0 0.0
  %3513 = vmatprep.subr.mxu0 0.0
  %3514 = vmatpush2.msra.mxu0 0.0
  %3515 = vmatprep.subr.mxu0 0.0
  %3516 = vmatpush2.msra.mxu0 0.0
  %3517 = vmatprep.subr.mxu0 0.0
  %3518 = vmatpush2.msra.mxu0 0.0
  %3519 = vmatprep.subr.mxu0 0.0
  %3520 = vmatpush2.msra.mxu0 0.0
  %3521 = vmatprep.subr.mxu0 0.0
  %3522 = vmatpush2.msra.mxu0 0.0
  %3523 = vmatprep.subr.mxu0 0.0
  %3524 = vmatpush2.msra.mxu0 0.0
  %3525 = vmatprep.subr.mxu0 0.0
  %3526 = vmatpush2.msra.mxu0 0.0
  %3527 = vmatprep.subr.mxu0 0.0
  %3528 = vmatpush2.msra.mxu0 0.0
  %3529 = vmatprep.subr.mxu0 0.0
  %3530 = vmatpush2.msra.mxu0 0.0
  %3531 = vmatprep.subr.mxu0 0.0
  %3532 = vmatpush2.msra.mxu0 0.0
  %3533 = vmatprep.subr.mxu0 0.0
  %3534 = vmatpush2.msra.mxu0 0.0
  %3535 = vmatprep.subr.mxu0 0.0
  %3536 = vmatpush2.msra.mxu0 0.0
  %3537 = vmatprep.subr.mxu0 0.0
  %3538 = vmatpush2.msra.mxu0 0.0
  %3539 = vmatprep.subr.mxu0 0.0
  %3540 = vmatpush2.msra.mxu0 0.0
  %3541 = vmatprep.subr.mxu0 0.0
  %3542 = vmatpush2.msra.mxu0 0.0
  %3543 = vmatprep.mubr.f32.mxu0 0.0
  %3544 = vmatmul.mubr.f32.gmra.mxu0 %v3477
  %v3545 = vpop.f32.mrf.mxu0
  %v3546 = vadd.f32 %v3361, %v3545
  %v3547 = vpop.f32.mrf.mxu0
  %3548 = vdwg.mxu0
  %v3549 = vadd.f32 %v3546, %v678
  %v3550 = vlaneseq
  %v3551 = vshrl.u32 %v3550, 7
  %v3552 = vsub.s32 5, %v3551
  %v3553 = vrot.slane %v2568, %v3552
  %v3554 = vsub.f32 %v2568, %v3553
  %3556 = vset.pattern.permute.xlu0 0
  %3557 = vperm.xlu0 %3556, %v3554
  %v3558 = vpop.permute.xlu0 %3557
  %v3560 = vmul.f32 %v3558, %v582
  %3561 = vset.pattern.permute.xlu0 1
  %3562 = vperm.xlu0 %3561, %v3554
  %v3563 = vpop.permute.xlu0 %3562
  %v3565 = vmul.f32 %v3563, %v591
  %v3566 = vadd.f32 %v3560, %v3565
  %v3567 = vadd.f32 %v3566, %v598
  %v3569 = vrot.slane %v3567, 3
  %v3570 = vsel %vm308, %v3569, 0
  %3572 = vmatprep.subr.mxu0 0.0
  %3573 = vmatpush1.msra.mxu0 0.0
  %3574 = vmatprep.subr.mxu0 0.0
  %3575 = vmatpush1.msra.mxu0 0.0
  %3576 = vmatprep.subr.mxu0 0.0
  %3577 = vmatpush1.msra.mxu0 0.0
  %3578 = vmatprep.subr.mxu0 0.0
  %3579 = vmatpush1.msra.mxu0 0.0
  %3580 = vmatprep.subr.mxu0 0.0
  %3581 = vmatpush1.msra.mxu0 0.0
  %3582 = vmatprep.subr.mxu0 0.0
  %3583 = vmatpush1.msra.mxu0 0.0
  %3584 = vmatprep.subr.mxu0 0.0
  %3585 = vmatpush1.msra.mxu0 0.0
  %3586 = vmatprep.subr.mxu0 0.0
  %3587 = vmatpush1.msra.mxu0 0.0
  %3588 = vmatprep.subr.mxu0 0.0
  %3589 = vmatpush1.msra.mxu0 0.0
  %3590 = vmatprep.subr.mxu0 0.0
  %3591 = vmatpush1.msra.mxu0 0.0
  %3592 = vmatprep.subr.mxu0 0.0
  %3593 = vmatpush1.msra.mxu0 0.0
  %3594 = vmatprep.subr.mxu0 0.0
  %3595 = vmatpush1.msra.mxu0 0.0
  %3596 = vmatprep.subr.mxu0 0.0
  %3597 = vmatpush1.msra.mxu0 0.0
  %3598 = vmatprep.subr.mxu0 0.0
  %3599 = vmatpush1.msra.mxu0 0.0
  %3600 = vmatprep.subr.mxu0 0.0
  %3601 = vmatpush1.msra.mxu0 %v153
  %3602 = vmatprep.subr.mxu0 0.0
  %3603 = vmatpush1.msra.mxu0 %v152
  %3604 = vmatprep.subr.mxu0 0.0
  %3605 = vmatpush2.msra.mxu0 0.0
  %3606 = vmatprep.subr.mxu0 0.0
  %3607 = vmatpush2.msra.mxu0 0.0
  %3608 = vmatprep.subr.mxu0 0.0
  %3609 = vmatpush2.msra.mxu0 0.0
  %3610 = vmatprep.subr.mxu0 0.0
  %3611 = vmatpush2.msra.mxu0 0.0
  %3612 = vmatprep.subr.mxu0 0.0
  %3613 = vmatpush2.msra.mxu0 0.0
  %3614 = vmatprep.subr.mxu0 0.0
  %3615 = vmatpush2.msra.mxu0 0.0
  %3616 = vmatprep.subr.mxu0 0.0
  %3617 = vmatpush2.msra.mxu0 0.0
  %3618 = vmatprep.subr.mxu0 0.0
  %3619 = vmatpush2.msra.mxu0 0.0
  %3620 = vmatprep.subr.mxu0 0.0
  %3621 = vmatpush2.msra.mxu0 0.0
  %3622 = vmatprep.subr.mxu0 0.0
  %3623 = vmatpush2.msra.mxu0 0.0
  %3624 = vmatprep.subr.mxu0 0.0
  %3625 = vmatpush2.msra.mxu0 0.0
  %3626 = vmatprep.subr.mxu0 0.0
  %3627 = vmatpush2.msra.mxu0 0.0
  %3628 = vmatprep.subr.mxu0 0.0
  %3629 = vmatpush2.msra.mxu0 0.0
  %3630 = vmatprep.subr.mxu0 0.0
  %3631 = vmatpush2.msra.mxu0 0.0
  %3632 = vmatprep.subr.mxu0 0.0
  %3633 = vmatpush2.msra.mxu0 0.0
  %3634 = vmatprep.subr.mxu0 0.0
  %3635 = vmatpush2.msra.mxu0 0.0
  %3636 = vmatprep.mubr.f32.mxu0 0.0
  %3637 = vmatmul.mubr.f32.gmra.mxu0 %v3570
  %v3638 = vpop.f32.mrf.mxu0
  %v3639 = vadd.f32 %v3361, %v3638
  %v3640 = vpop.f32.mrf.mxu0
  %3641 = vdwg.mxu0
  %v3642 = vadd.f32 %v3639, %v678
  %v3643 = vsel %vm865, %v3456, 0.0
  %v3644 = vrot.slane %v3643, 4
  %v3645 = vadd.f32 %v3643, %v3644
  %v3646 = vrot.slane %v3645, 2
  %v3647 = vadd.f32 %v3645, %v3646
  %v3648 = vrot.slane %v3647, 1
  %v3649 = vadd.f32 %v3647, %v3648
  %v3650 = vadd.f32 %v3649, 0.0
  %v3651 = vsel %vm865, %v3549, 0.0
  %v3652 = vrot.slane %v3651, 4
  %v3653 = vadd.f32 %v3651, %v3652
  %v3654 = vrot.slane %v3653, 2
  %v3655 = vadd.f32 %v3653, %v3654
  %v3656 = vrot.slane %v3655, 1
  %v3657 = vadd.f32 %v3655, %v3656
  %v3658 = vadd.f32 %v3650, %v3657
  %v3659 = vsel %vm865, %v3642, 0.0
  %v3660 = vrot.slane %v3659, 4
  %v3661 = vadd.f32 %v3659, %v3660
  %v3662 = vrot.slane %v3661, 2
  %v3663 = vadd.f32 %v3661, %v3662
  %v3664 = vrot.slane %v3663, 1
  %v3665 = vadd.f32 %v3663, %v3664
  %v3666 = vadd.f32 %v3658, %v3665
  %v3667 = vmul.f32 %v3666, %v890
  %v3668 = vsub.f32 %v3456, %v3667
  %v3669 = vmul.f32 %v3668, %v3668
  %v3670 = vsel %vm865, %v3669, 0.0
  %v3671 = vrot.slane %v3670, 4
  %v3672 = vadd.f32 %v3670, %v3671
  %v3673 = vrot.slane %v3672, 2
  %v3674 = vadd.f32 %v3672, %v3673
  %v3675 = vrot.slane %v3674, 1
  %v3676 = vadd.f32 %v3674, %v3675
  %v3677 = vadd.f32 %v3676, 0.0
  %v3678 = vsub.f32 %v3549, %v3667
  %v3679 = vmul.f32 %v3678, %v3678
  %v3680 = vsel %vm865, %v3679, 0.0
  %v3681 = vrot.slane %v3680, 4
  %v3682 = vadd.f32 %v3680, %v3681
  %v3683 = vrot.slane %v3682, 2
  %v3684 = vadd.f32 %v3682, %v3683
  %v3685 = vrot.slane %v3684, 1
  %v3686 = vadd.f32 %v3684, %v3685
  %v3687 = vadd.f32 %v3677, %v3686
  %v3688 = vsub.f32 %v3642, %v3667
  %v3689 = vmul.f32 %v3688, %v3688
  %v3690 = vsel %vm865, %v3689, 0.0
  %v3691 = vrot.slane %v3690, 4
  %v3692 = vadd.f32 %v3690, %v3691
  %v3693 = vrot.slane %v3692, 2
  %v3694 = vadd.f32 %v3692, %v3693
  %v3695 = vrot.slane %v3694, 1
  %v3696 = vadd.f32 %v3694, %v3695
  %v3697 = vadd.f32 %v3687, %v3696
  %v3698 = vmul.f32 %v3697, %v890
  %v3699 = vadd.f32 %v3698, 1e-05
  %v3700 = vrsqrt.pop %v3699
  %v3701 = vmul.f32 %v3668, %v3700
  %v3702 = vmul.f32 %v3701, %v930
  %v3703 = vadd.f32 %v3702, %v937
  %v3704 = vmax.f32 %v3703, 0.0
  %3705 = vmatprep.subr.mxu0 0.0
  %3706 = vmatpush1.msra.mxu0 %v176
  %3707 = vmatprep.subr.mxu0 0.0
  %3708 = vmatpush1.msra.mxu0 %v175
  %3709 = vmatprep.subr.mxu0 0.0
  %3710 = vmatpush1.msra.mxu0 %v174
  %3711 = vmatprep.subr.mxu0 0.0
  %3712 = vmatpush1.msra.mxu0 %v173
  %3713 = vmatprep.subr.mxu0 0.0
  %3714 = vmatpush1.msra.mxu0 %v172
  %3715 = vmatprep.subr.mxu0 0.0
  %3716 = vmatpush1.msra.mxu0 %v171
  %3717 = vmatprep.subr.mxu0 0.0
  %3718 = vmatpush1.msra.mxu0 %v170
  %3719 = vmatprep.subr.mxu0 0.0
  %3720 = vmatpush1.msra.mxu0 %v169
  %3721 = vmatprep.subr.mxu0 0.0
  %3722 = vmatpush1.msra.mxu0 %v168
  %3723 = vmatprep.subr.mxu0 0.0
  %3724 = vmatpush1.msra.mxu0 %v167
  %3725 = vmatprep.subr.mxu0 0.0
  %3726 = vmatpush1.msra.mxu0 %v166
  %3727 = vmatprep.subr.mxu0 0.0
  %3728 = vmatpush1.msra.mxu0 %v165
  %3729 = vmatprep.subr.mxu0 0.0
  %3730 = vmatpush1.msra.mxu0 %v164
  %3731 = vmatprep.subr.mxu0 0.0
  %3732 = vmatpush1.msra.mxu0 %v163
  %3733 = vmatprep.subr.mxu0 0.0
  %3734 = vmatpush1.msra.mxu0 %v162
  %3735 = vmatprep.subr.mxu0 0.0
  %3736 = vmatpush1.msra.mxu0 %v161
  %3737 = vmatprep.subr.mxu0 0.0
  %3738 = vmatpush2.msra.mxu0 0.0
  %3739 = vmatprep.subr.mxu0 0.0
  %3740 = vmatpush2.msra.mxu0 0.0
  %3741 = vmatprep.subr.mxu0 0.0
  %3742 = vmatpush2.msra.mxu0 0.0
  %3743 = vmatprep.subr.mxu0 0.0
  %3744 = vmatpush2.msra.mxu0 0.0
  %3745 = vmatprep.subr.mxu0 0.0
  %3746 = vmatpush2.msra.mxu0 0.0
  %3747 = vmatprep.subr.mxu0 0.0
  %3748 = vmatpush2.msra.mxu0 0.0
  %3749 = vmatprep.subr.mxu0 0.0
  %3750 = vmatpush2.msra.mxu0 0.0
  %3751 = vmatprep.subr.mxu0 0.0
  %3752 = vmatpush2.msra.mxu0 0.0
  %3753 = vmatprep.subr.mxu0 0.0
  %3754 = vmatpush2.msra.mxu0 0.0
  %3755 = vmatprep.subr.mxu0 0.0
  %3756 = vmatpush2.msra.mxu0 0.0
  %3757 = vmatprep.subr.mxu0 0.0
  %3758 = vmatpush2.msra.mxu0 0.0
  %3759 = vmatprep.subr.mxu0 0.0
  %3760 = vmatpush2.msra.mxu0 0.0
  %3761 = vmatprep.subr.mxu0 0.0
  %3762 = vmatpush2.msra.mxu0 0.0
  %3763 = vmatprep.subr.mxu0 0.0
  %3764 = vmatpush2.msra.mxu0 0.0
  %3765 = vmatprep.subr.mxu0 0.0
  %3766 = vmatpush2.msra.mxu0 0.0
  %3767 = vmatprep.subr.mxu0 0.0
  %3768 = vmatpush2.msra.mxu0 0.0
  %3769 = vmatprep.mubr.f32.mxu0 0.0
  %3770 = vmatmul.mubr.f32.gmra.mxu0 %v3704
  %v3771 = vpop.f32.mrf.mxu0
  %v3772 = vadd.f32 %v945, %v3771
  %v3773 = vpop.f32.mrf.mxu0
  %3774 = vdwg.mxu0
  %v3775 = vmul.f32 %v3678, %v3700
  %v3776 = vmul.f32 %v3775, %v930
  %v3777 = vadd.f32 %v3776, %v937
  %v3778 = vmax.f32 %v3777, 0.0
  %3779 = vmatprep.subr.mxu0 0.0
  %3780 = vmatpush1.msra.mxu0 %v176
  %3781 = vmatprep.subr.mxu0 0.0
  %3782 = vmatpush1.msra.mxu0 %v175
  %3783 = vmatprep.subr.mxu0 0.0
  %3784 = vmatpush1.msra.mxu0 %v174
  %3785 = vmatprep.subr.mxu0 0.0
  %3786 = vmatpush1.msra.mxu0 %v173
  %3787 = vmatprep.subr.mxu0 0.0
  %3788 = vmatpush1.msra.mxu0 %v172
  %3789 = vmatprep.subr.mxu0 0.0
  %3790 = vmatpush1.msra.mxu0 %v171
  %3791 = vmatprep.subr.mxu0 0.0
  %3792 = vmatpush1.msra.mxu0 %v170
  %3793 = vmatprep.subr.mxu0 0.0
  %3794 = vmatpush1.msra.mxu0 %v169
  %3795 = vmatprep.subr.mxu0 0.0
  %3796 = vmatpush1.msra.mxu0 %v168
  %3797 = vmatprep.subr.mxu0 0.0
  %3798 = vmatpush1.msra.mxu0 %v167
  %3799 = vmatprep.subr.mxu0 0.0
  %3800 = vmatpush1.msra.mxu0 %v166
  %3801 = vmatprep.subr.mxu0 0.0
  %3802 = vmatpush1.msra.mxu0 %v165
  %3803 = vmatprep.subr.mxu0 0.0
  %3804 = vmatpush1.msra.mxu0 %v164
  %3805 = vmatprep.subr.mxu0 0.0
  %3806 = vmatpush1.msra.mxu0 %v163
  %3807 = vmatprep.subr.mxu0 0.0
  %3808 = vmatpush1.msra.mxu0 %v162
  %3809 = vmatprep.subr.mxu0 0.0
  %3810 = vmatpush1.msra.mxu0 %v161
  %3811 = vmatprep.subr.mxu0 0.0
  %3812 = vmatpush2.msra.mxu0 0.0
  %3813 = vmatprep.subr.mxu0 0.0
  %3814 = vmatpush2.msra.mxu0 0.0
  %3815 = vmatprep.subr.mxu0 0.0
  %3816 = vmatpush2.msra.mxu0 0.0
  %3817 = vmatprep.subr.mxu0 0.0
  %3818 = vmatpush2.msra.mxu0 0.0
  %3819 = vmatprep.subr.mxu0 0.0
  %3820 = vmatpush2.msra.mxu0 0.0
  %3821 = vmatprep.subr.mxu0 0.0
  %3822 = vmatpush2.msra.mxu0 0.0
  %3823 = vmatprep.subr.mxu0 0.0
  %3824 = vmatpush2.msra.mxu0 0.0
  %3825 = vmatprep.subr.mxu0 0.0
  %3826 = vmatpush2.msra.mxu0 0.0
  %3827 = vmatprep.subr.mxu0 0.0
  %3828 = vmatpush2.msra.mxu0 0.0
  %3829 = vmatprep.subr.mxu0 0.0
  %3830 = vmatpush2.msra.mxu0 0.0
  %3831 = vmatprep.subr.mxu0 0.0
  %3832 = vmatpush2.msra.mxu0 0.0
  %3833 = vmatprep.subr.mxu0 0.0
  %3834 = vmatpush2.msra.mxu0 0.0
  %3835 = vmatprep.subr.mxu0 0.0
  %3836 = vmatpush2.msra.mxu0 0.0
  %3837 = vmatprep.subr.mxu0 0.0
  %3838 = vmatpush2.msra.mxu0 0.0
  %3839 = vmatprep.subr.mxu0 0.0
  %3840 = vmatpush2.msra.mxu0 0.0
  %3841 = vmatprep.subr.mxu0 0.0
  %3842 = vmatpush2.msra.mxu0 0.0
  %3843 = vmatprep.mubr.f32.mxu0 0.0
  %3844 = vmatmul.mubr.f32.gmra.mxu0 %v3778
  %v3845 = vpop.f32.mrf.mxu0
  %v3846 = vadd.f32 %v945, %v3845
  %v3847 = vpop.f32.mrf.mxu0
  %3848 = vdwg.mxu0
  %v3849 = vmul.f32 %v3688, %v3700
  %v3850 = vmul.f32 %v3849, %v930
  %v3851 = vadd.f32 %v3850, %v937
  %v3852 = vmax.f32 %v3851, 0.0
  %3853 = vmatprep.subr.mxu0 0.0
  %3854 = vmatpush1.msra.mxu0 %v176
  %3855 = vmatprep.subr.mxu0 0.0
  %3856 = vmatpush1.msra.mxu0 %v175
  %3857 = vmatprep.subr.mxu0 0.0
  %3858 = vmatpush1.msra.mxu0 %v174
  %3859 = vmatprep.subr.mxu0 0.0
  %3860 = vmatpush1.msra.mxu0 %v173
  %3861 = vmatprep.subr.mxu0 0.0
  %3862 = vmatpush1.msra.mxu0 %v172
  %3863 = vmatprep.subr.mxu0 0.0
  %3864 = vmatpush1.msra.mxu0 %v171
  %3865 = vmatprep.subr.mxu0 0.0
  %3866 = vmatpush1.msra.mxu0 %v170
  %3867 = vmatprep.subr.mxu0 0.0
  %3868 = vmatpush1.msra.mxu0 %v169
  %3869 = vmatprep.subr.mxu0 0.0
  %3870 = vmatpush1.msra.mxu0 %v168
  %3871 = vmatprep.subr.mxu0 0.0
  %3872 = vmatpush1.msra.mxu0 %v167
  %3873 = vmatprep.subr.mxu0 0.0
  %3874 = vmatpush1.msra.mxu0 %v166
  %3875 = vmatprep.subr.mxu0 0.0
  %3876 = vmatpush1.msra.mxu0 %v165
  %3877 = vmatprep.subr.mxu0 0.0
  %3878 = vmatpush1.msra.mxu0 %v164
  %3879 = vmatprep.subr.mxu0 0.0
  %3880 = vmatpush1.msra.mxu0 %v163
  %3881 = vmatprep.subr.mxu0 0.0
  %3882 = vmatpush1.msra.mxu0 %v162
  %3883 = vmatprep.subr.mxu0 0.0
  %3884 = vmatpush1.msra.mxu0 %v161
  %3885 = vmatprep.subr.mxu0 0.0
  %3886 = vmatpush2.msra.mxu0 0.0
  %3887 = vmatprep.subr.mxu0 0.0
  %3888 = vmatpush2.msra.mxu0 0.0
  %3889 = vmatprep.subr.mxu0 0.0
  %3890 = vmatpush2.msra.mxu0 0.0
  %3891 = vmatprep.subr.mxu0 0.0
  %3892 = vmatpush2.msra.mxu0 0.0
  %3893 = vmatprep.subr.mxu0 0.0
  %3894 = vmatpush2.msra.mxu0 0.0
  %3895 = vmatprep.subr.mxu0 0.0
  %3896 = vmatpush2.msra.mxu0 0.0
  %3897 = vmatprep.subr.mxu0 0.0
  %3898 = vmatpush2.msra.mxu0 0.0
  %3899 = vmatprep.subr.mxu0 0.0
  %3900 = vmatpush2.msra.mxu0 0.0
  %3901 = vmatprep.subr.mxu0 0.0
  %3902 = vmatpush2.msra.mxu0 0.0
  %3903 = vmatprep.subr.mxu0 0.0
  %3904 = vmatpush2.msra.mxu0 0.0
  %3905 = vmatprep.subr.mxu0 0.0
  %3906 = vmatpush2.msra.mxu0 0.0
  %3907 = vmatprep.subr.mxu0 0.0
  %3908 = vmatpush2.msra.mxu0 0.0
  %3909 = vmatprep.subr.mxu0 0.0
  %3910 = vmatpush2.msra.mxu0 0.0
  %3911 = vmatprep.subr.mxu0 0.0
  %3912 = vmatpush2.msra.mxu0 0.0
  %3913 = vmatprep.subr.mxu0 0.0
  %3914 = vmatpush2.msra.mxu0 0.0
  %3915 = vmatprep.subr.mxu0 0.0
  %3916 = vmatpush2.msra.mxu0 0.0
  %3917 = vmatprep.mubr.f32.mxu0 0.0
  %3918 = vmatmul.mubr.f32.gmra.mxu0 %v3852
  %v3919 = vpop.f32.mrf.mxu0
  %v3920 = vadd.f32 %v945, %v3919
  %v3921 = vpop.f32.mrf.mxu0
  %3922 = vdwg.mxu0
  %v3923 = vsel %vm1165, %v3772, 0.0
  %v3924 = vrot.slane %v3923, 4
  %v3925 = vadd.f32 %v3923, %v3924
  %v3926 = vrot.slane %v3925, 2
  %v3927 = vadd.f32 %v3925, %v3926
  %v3928 = vrot.slane %v3927, 1
  %v3929 = vadd.f32 %v3927, %v3928
  %v3930 = vadd.f32 %v3929, 0.0
  %v3931 = vsel %vm1165, %v3846, 0.0
  %v3932 = vrot.slane %v3931, 4
  %v3933 = vadd.f32 %v3931, %v3932
  %v3934 = vrot.slane %v3933, 2
  %v3935 = vadd.f32 %v3933, %v3934
  %v3936 = vrot.slane %v3935, 1
  %v3937 = vadd.f32 %v3935, %v3936
  %v3938 = vadd.f32 %v3930, %v3937
  %v3939 = vsel %vm1165, %v3920, 0.0
  %v3940 = vrot.slane %v3939, 4
  %v3941 = vadd.f32 %v3939, %v3940
  %v3942 = vrot.slane %v3941, 2
  %v3943 = vadd.f32 %v3941, %v3942
  %v3944 = vrot.slane %v3943, 1
  %v3945 = vadd.f32 %v3943, %v3944
  %v3946 = vadd.f32 %v3938, %v3945
  %v3947 = vmul.f32 %v3946, %v890
  %v3948 = vsub.f32 %v3772, %v3947
  %v3949 = vmul.f32 %v3948, %v3948
  %v3950 = vsel %vm1165, %v3949, 0.0
  %v3951 = vrot.slane %v3950, 4
  %v3952 = vadd.f32 %v3950, %v3951
  %v3953 = vrot.slane %v3952, 2
  %v3954 = vadd.f32 %v3952, %v3953
  %v3955 = vrot.slane %v3954, 1
  %v3956 = vadd.f32 %v3954, %v3955
  %v3957 = vadd.f32 %v3956, 0.0
  %v3958 = vsub.f32 %v3846, %v3947
  %v3959 = vmul.f32 %v3958, %v3958
  %v3960 = vsel %vm1165, %v3959, 0.0
  %v3961 = vrot.slane %v3960, 4
  %v3962 = vadd.f32 %v3960, %v3961
  %v3963 = vrot.slane %v3962, 2
  %v3964 = vadd.f32 %v3962, %v3963
  %v3965 = vrot.slane %v3964, 1
  %v3966 = vadd.f32 %v3964, %v3965
  %v3967 = vadd.f32 %v3957, %v3966
  %v3968 = vsub.f32 %v3920, %v3947
  %v3969 = vmul.f32 %v3968, %v3968
  %v3970 = vsel %vm1165, %v3969, 0.0
  %v3971 = vrot.slane %v3970, 4
  %v3972 = vadd.f32 %v3970, %v3971
  %v3973 = vrot.slane %v3972, 2
  %v3974 = vadd.f32 %v3972, %v3973
  %v3975 = vrot.slane %v3974, 1
  %v3976 = vadd.f32 %v3974, %v3975
  %v3977 = vadd.f32 %v3967, %v3976
  %v3978 = vmul.f32 %v3977, %v890
  %v3979 = vadd.f32 %v3978, 1e-05
  %v3980 = vrsqrt.pop %v3979
  %v3981 = vmul.f32 %v3948, %v3980
  %v3982 = vmul.f32 %v3981, %v1229
  %v3983 = vadd.f32 %v3982, %v1236
  %v3984 = vmax.f32 %v3983, 0.0
  %v3985 = vsel %vm1165, %v3984, -inf
  %v3986 = vrot.slane %v3985, 4
  %v3987 = vmax.f32 %v3985, %v3986
  %v3988 = vrot.slane %v3987, 2
  %v3989 = vmax.f32 %v3987, %v3988
  %v3990 = vrot.slane %v3989, 1
  %v3991 = vmax.f32 %v3989, %v3990
  %3992 = vst.msk [vmem:[#allocation2 + $0x3] sm:$0x1] %vm1247, %v3991
  %v3993 = vmul.f32 %v3958, %v3980
  %v3994 = vmul.f32 %v3993, %v1229
  %v3995 = vadd.f32 %v3994, %v1236
  %v3996 = vmax.f32 %v3995, 0.0
  %v3997 = vsel %vm1165, %v3996, -inf
  %v3998 = vrot.slane %v3997, 4
  %v3999 = vmax.f32 %v3997, %v3998
  %v4000 = vrot.slane %v3999, 2
  %v4001 = vmax.f32 %v3999, %v4000
  %v4002 = vrot.slane %v4001, 1
  %v4003 = vmax.f32 %v4001, %v4002
  %4004 = vst.msk [vmem:[#allocation2 + $0x4] sm:$0x1] %vm1247, %v4003
  %v4005 = vmul.f32 %v3968, %v3980
  %v4006 = vmul.f32 %v4005, %v1229
  %v4007 = vadd.f32 %v4006, %v1236
  %v4008 = vmax.f32 %v4007, 0.0
  %v4009 = vsel %vm1165, %v4008, -inf
  %v4010 = vrot.slane %v4009, 4
  %v4011 = vmax.f32 %v4009, %v4010
  %v4012 = vrot.slane %v4011, 2
  %v4013 = vmax.f32 %v4011, %v4012
  %v4014 = vrot.slane %v4013, 1
  %v4015 = vmax.f32 %v4013, %v4014
  %4016 = vst.msk [vmem:[#allocation2 + $0x5] sm:$0x1] %vm1247, %v4015
  %v4017 = vld [vmem:[#allocation2] sm:$0x3f]
  %v4019 = vsel %vm2002, %v4017, 0
  %4021 = vmatprep.subr.mxu0 0.0
  %4022 = vmatpush1.msra.mxu0 0.0
  %4023 = vmatprep.subr.mxu0 0.0
  %4024 = vmatpush1.msra.mxu0 0.0
  %4025 = vmatprep.subr.mxu0 0.0
  %4026 = vmatpush1.msra.mxu0 0.0
  %4027 = vmatprep.subr.mxu0 0.0
  %4028 = vmatpush1.msra.mxu0 0.0
  %4029 = vmatprep.subr.mxu0 0.0
  %4030 = vmatpush1.msra.mxu0 0.0
  %4031 = vmatprep.subr.mxu0 0.0
  %4032 = vmatpush1.msra.mxu0 0.0
  %4033 = vmatprep.subr.mxu0 0.0
  %4034 = vmatpush1.msra.mxu0 0.0
  %4035 = vmatprep.subr.mxu0 0.0
  %4036 = vmatpush1.msra.mxu0 0.0
  %4037 = vmatprep.subr.mxu0 0.0
  %4038 = vmatpush1.msra.mxu0 %v191
  %4039 = vmatprep.subr.mxu0 0.0
  %4040 = vmatpush1.msra.mxu0 %v190
  %4041 = vmatprep.subr.mxu0 0.0
  %4042 = vmatpush1.msra.mxu0 %v189
  %4043 = vmatprep.subr.mxu0 0.0
  %4044 = vmatpush1.msra.mxu0 %v188
  %4045 = vmatprep.subr.mxu0 0.0
  %4046 = vmatpush1.msra.mxu0 %v187
  %4047 = vmatprep.subr.mxu0 0.0
  %4048 = vmatpush1.msra.mxu0 %v186
  %4049 = vmatprep.subr.mxu0 0.0
  %4050 = vmatpush1.msra.mxu0 %v185
  %4051 = vmatprep.subr.mxu0 0.0
  %4052 = vmatpush1.msra.mxu0 %v184
  %4053 = vmatprep.subr.mxu0 0.0
  %4054 = vmatpush2.msra.mxu0 0.0
  %4055 = vmatprep.subr.mxu0 0.0
  %4056 = vmatpush2.msra.mxu0 0.0
  %4057 = vmatprep.subr.mxu0 0.0
  %4058 = vmatpush2.msra.mxu0 0.0
  %4059 = vmatprep.subr.mxu0 0.0
  %4060 = vmatpush2.msra.mxu0 0.0
  %4061 = vmatprep.subr.mxu0 0.0
  %4062 = vmatpush2.msra.mxu0 0.0
  %4063 = vmatprep.subr.mxu0 0.0
  %4064 = vmatpush2.msra.mxu0 0.0
  %4065 = vmatprep.subr.mxu0 0.0
  %4066 = vmatpush2.msra.mxu0 0.0
  %4067 = vmatprep.subr.mxu0 0.0
  %4068 = vmatpush2.msra.mxu0 0.0
  %4069 = vmatprep.subr.mxu0 0.0
  %4070 = vmatpush2.msra.mxu0 0.0
  %4071 = vmatprep.subr.mxu0 0.0
  %4072 = vmatpush2.msra.mxu0 0.0
  %4073 = vmatprep.subr.mxu0 0.0
  %4074 = vmatpush2.msra.mxu0 0.0
  %4075 = vmatprep.subr.mxu0 0.0
  %4076 = vmatpush2.msra.mxu0 0.0
  %4077 = vmatprep.subr.mxu0 0.0
  %4078 = vmatpush2.msra.mxu0 0.0
  %4079 = vmatprep.subr.mxu0 0.0
  %4080 = vmatpush2.msra.mxu0 0.0
  %4081 = vmatprep.subr.mxu0 0.0
  %4082 = vmatpush2.msra.mxu0 0.0
  %4083 = vmatprep.subr.mxu0 0.0
  %4084 = vmatpush2.msra.mxu0 0.0
  %4085 = vmatprep.mubr.f32.mxu0 0.0
  %4086 = vmatmul.mubr.f32.gmra.mxu0 %v4019
  %v4087 = vpop.f32.mrf.mxu0
  %v4088 = vadd.f32 0.0, %v4087
  %v4089 = vpop.f32.mrf.mxu0
  %4090 = vdwg.mxu0
  %4091 = vmatprep.subr.mxu0 0.0
  %4092 = vmatpush1.msra.mxu0 0.0
  %4093 = vmatprep.subr.mxu0 0.0
  %4094 = vmatpush1.msra.mxu0 0.0
  %4095 = vmatprep.subr.mxu0 0.0
  %4096 = vmatpush1.msra.mxu0 0.0
  %4097 = vmatprep.subr.mxu0 0.0
  %4098 = vmatpush1.msra.mxu0 0.0
  %4099 = vmatprep.subr.mxu0 0.0
  %4100 = vmatpush1.msra.mxu0 0.0
  %4101 = vmatprep.subr.mxu0 0.0
  %4102 = vmatpush1.msra.mxu0 0.0
  %4103 = vmatprep.subr.mxu0 0.0
  %4104 = vmatpush1.msra.mxu0 0.0
  %4105 = vmatprep.subr.mxu0 0.0
  %4106 = vmatpush1.msra.mxu0 0.0
  %4107 = vmatprep.subr.mxu0 0.0
  %4108 = vmatpush1.msra.mxu0 0.0
  %4109 = vmatprep.subr.mxu0 0.0
  %4110 = vmatpush1.msra.mxu0 0.0
  %4111 = vmatprep.subr.mxu0 0.0
  %4112 = vmatpush1.msra.mxu0 0.0
  %4113 = vmatprep.subr.mxu0 0.0
  %4114 = vmatpush1.msra.mxu0 0.0
  %4115 = vmatprep.subr.mxu0 0.0
  %4116 = vmatpush1.msra.mxu0 %v183
  %4117 = vmatprep.subr.mxu0 0.0
  %4118 = vmatpush1.msra.mxu0 %v182
  %4119 = vmatprep.subr.mxu0 0.0
  %4120 = vmatpush1.msra.mxu0 %v181
  %4121 = vmatprep.subr.mxu0 0.0
  %4122 = vmatpush1.msra.mxu0 %v180
  %4123 = vmatprep.subr.mxu0 0.0
  %4124 = vmatpush2.msra.mxu0 0.0
  %4125 = vmatprep.subr.mxu0 0.0
  %4126 = vmatpush2.msra.mxu0 0.0
  %4127 = vmatprep.subr.mxu0 0.0
  %4128 = vmatpush2.msra.mxu0 0.0
  %4129 = vmatprep.subr.mxu0 0.0
  %4130 = vmatpush2.msra.mxu0 0.0
  %4131 = vmatprep.subr.mxu0 0.0
  %4132 = vmatpush2.msra.mxu0 0.0
  %4133 = vmatprep.subr.mxu0 0.0
  %4134 = vmatpush2.msra.mxu0 0.0
  %4135 = vmatprep.subr.mxu0 0.0
  %4136 = vmatpush2.msra.mxu0 0.0
  %4137 = vmatprep.subr.mxu0 0.0
  %4138 = vmatpush2.msra.mxu0 0.0
  %4139 = vmatprep.subr.mxu0 0.0
  %4140 = vmatpush2.msra.mxu0 0.0
  %4141 = vmatprep.subr.mxu0 0.0
  %4142 = vmatpush2.msra.mxu0 0.0
  %4143 = vmatprep.subr.mxu0 0.0
  %4144 = vmatpush2.msra.mxu0 0.0
  %4145 = vmatprep.subr.mxu0 0.0
  %4146 = vmatpush2.msra.mxu0 0.0
  %4147 = vmatprep.subr.mxu0 0.0
  %4148 = vmatpush2.msra.mxu0 0.0
  %4149 = vmatprep.subr.mxu0 0.0
  %4150 = vmatpush2.msra.mxu0 0.0
  %4151 = vmatprep.subr.mxu0 0.0
  %4152 = vmatpush2.msra.mxu0 0.0
  %4153 = vmatprep.subr.mxu0 0.0
  %4154 = vmatpush2.msra.mxu0 0.0
  %4155 = vmatprep.mubr.f32.mxu0 0.0
  %4156 = vmatmul.mubr.f32.gmra.mxu0 %v2496
  %v4157 = vpop.f32.mrf.mxu0
  %v4158 = vadd.f32 %v4088, %v4157
  %v4159 = vpop.f32.mrf.mxu0
  %4160 = vdwg.mxu0
  %v4161 = vadd.f32 %v4158, %v2150
  %v4162 = vsel %vm2153, %v4161, 0.0
  %v4163 = vrot.slane %v4162, 4
  %v4164 = vadd.f32 %v4162, %v4163
  %v4165 = vrot.slane %v4164, 2
  %v4166 = vadd.f32 %v4164, %v4165
  %v4167 = vrot.slane %v4166, 1
  %v4168 = vadd.f32 %v4166, %v4167
  %v4169 = vmul.f32 %v4168, %v2161
  %v4170 = vsub.f32 %v4161, %v4169
  %v4171 = vmul.f32 %v4170, %v4170
  %v4172 = vsel %vm2153, %v4171, 0.0
  %v4173 = vrot.slane %v4172, 4
  %v4174 = vadd.f32 %v4172, %v4173
  %v4175 = vrot.slane %v4174, 2
  %v4176 = vadd.f32 %v4174, %v4175
  %v4177 = vrot.slane %v4176, 1
  %v4178 = vadd.f32 %v4176, %v4177
  %v4179 = vmul.f32 %v4178, %v2161
  %v4180 = vadd.f32 %v4179, 1e-05
  %v4181 = vrsqrt.pop %v4180
  %v4182 = vmul.f32 %v4170, %v4181
  %v4183 = vmul.f32 %v4182, %v2180
  %v4184 = vadd.f32 %v4183, %v2187
  %v4185 = vmax.f32 %v4184, 0.0
  %v4187 = vsel %vm2002, %v4185, 0
  %4189 = vmatprep.subr.mxu0 0.0
  %4190 = vmatpush1.msra.mxu0 0.0
  %4191 = vmatprep.subr.mxu0 0.0
  %4192 = vmatpush1.msra.mxu0 0.0
  %4193 = vmatprep.subr.mxu0 0.0
  %4194 = vmatpush1.msra.mxu0 0.0
  %4195 = vmatprep.subr.mxu0 0.0
  %4196 = vmatpush1.msra.mxu0 0.0
  %4197 = vmatprep.subr.mxu0 0.0
  %4198 = vmatpush1.msra.mxu0 0.0
  %4199 = vmatprep.subr.mxu0 0.0
  %4200 = vmatpush1.msra.mxu0 0.0
  %4201 = vmatprep.subr.mxu0 0.0
  %4202 = vmatpush1.msra.mxu0 0.0
  %4203 = vmatprep.subr.mxu0 0.0
  %4204 = vmatpush1.msra.mxu0 0.0
  %4205 = vmatprep.subr.mxu0 0.0
  %4206 = vmatpush1.msra.mxu0 %v202
  %4207 = vmatprep.subr.mxu0 0.0
  %4208 = vmatpush1.msra.mxu0 %v201
  %4209 = vmatprep.subr.mxu0 0.0
  %4210 = vmatpush1.msra.mxu0 %v200
  %4211 = vmatprep.subr.mxu0 0.0
  %4212 = vmatpush1.msra.mxu0 %v199
  %4213 = vmatprep.subr.mxu0 0.0
  %4214 = vmatpush1.msra.mxu0 %v198
  %4215 = vmatprep.subr.mxu0 0.0
  %4216 = vmatpush1.msra.mxu0 %v197
  %4217 = vmatprep.subr.mxu0 0.0
  %4218 = vmatpush1.msra.mxu0 %v196
  %4219 = vmatprep.subr.mxu0 0.0
  %4220 = vmatpush1.msra.mxu0 %v195
  %4221 = vmatprep.subr.mxu0 0.0
  %4222 = vmatpush2.msra.mxu0 0.0
  %4223 = vmatprep.subr.mxu0 0.0
  %4224 = vmatpush2.msra.mxu0 0.0
  %4225 = vmatprep.subr.mxu0 0.0
  %4226 = vmatpush2.msra.mxu0 0.0
  %4227 = vmatprep.subr.mxu0 0.0
  %4228 = vmatpush2.msra.mxu0 0.0
  %4229 = vmatprep.subr.mxu0 0.0
  %4230 = vmatpush2.msra.mxu0 0.0
  %4231 = vmatprep.subr.mxu0 0.0
  %4232 = vmatpush2.msra.mxu0 0.0
  %4233 = vmatprep.subr.mxu0 0.0
  %4234 = vmatpush2.msra.mxu0 0.0
  %4235 = vmatprep.subr.mxu0 0.0
  %4236 = vmatpush2.msra.mxu0 0.0
  %4237 = vmatprep.subr.mxu0 0.0
  %4238 = vmatpush2.msra.mxu0 0.0
  %4239 = vmatprep.subr.mxu0 0.0
  %4240 = vmatpush2.msra.mxu0 0.0
  %4241 = vmatprep.subr.mxu0 0.0
  %4242 = vmatpush2.msra.mxu0 0.0
  %4243 = vmatprep.subr.mxu0 0.0
  %4244 = vmatpush2.msra.mxu0 0.0
  %4245 = vmatprep.subr.mxu0 0.0
  %4246 = vmatpush2.msra.mxu0 0.0
  %4247 = vmatprep.subr.mxu0 0.0
  %4248 = vmatpush2.msra.mxu0 0.0
  %4249 = vmatprep.subr.mxu0 0.0
  %4250 = vmatpush2.msra.mxu0 0.0
  %4251 = vmatprep.subr.mxu0 0.0
  %4252 = vmatpush2.msra.mxu0 0.0
  %4253 = vmatprep.mubr.f32.mxu0 0.0
  %4254 = vmatmul.mubr.f32.gmra.mxu0 %v4187
  %v4255 = vpop.f32.mrf.mxu0
  %v4256 = vadd.f32 %v2195, %v4255
  %v4257 = vpop.f32.mrf.mxu0
  %4258 = vdwg.mxu0
  %v4259 = vsel %vm2270, %v4256, 0.0
  %v4260 = vrot.slane %v4259, 4
  %v4261 = vadd.f32 %v4259, %v4260
  %v4262 = vrot.slane %v4261, 2
  %v4263 = vadd.f32 %v4261, %v4262
  %v4264 = vrot.slane %v4263, 1
  %v4265 = vadd.f32 %v4263, %v4264
  %v4266 = vmul.f32 %v4265, %v2161
  %v4267 = vsub.f32 %v4256, %v4266
  %v4268 = vmul.f32 %v4267, %v4267
  %v4269 = vsel %vm2270, %v4268, 0.0
  %v4270 = vrot.slane %v4269, 4
  %v4271 = vadd.f32 %v4269, %v4270
  %v4272 = vrot.slane %v4271, 2
  %v4273 = vadd.f32 %v4271, %v4272
  %v4274 = vrot.slane %v4273, 1
  %v4275 = vadd.f32 %v4273, %v4274
  %v4276 = vmul.f32 %v4275, %v2161
  %v4277 = vadd.f32 %v4276, 1e-05
  %v4278 = vrsqrt.pop %v4277
  %v4279 = vmul.f32 %v4267, %v4278
  %v4280 = vmul.f32 %v4279, %v2296
  %v4281 = vadd.f32 %v4280, %v2303
  %v4282 = vmax.f32 %v4281, 0.0
  %4284 = vset.pattern.permute.xlu0 0
  %4285 = vperm.xlu0 %4284, %v2565
  %v4286 = vpop.permute.xlu0 %4285
  %v4288 = vmul.f32 %v4286, %v215
  %4289 = vset.pattern.permute.xlu0 1
  %4290 = vperm.xlu0 %4289, %v2565
  %v4291 = vpop.permute.xlu0 %4290
  %v4293 = vmul.f32 %v4291, %v224
  %v4294 = vadd.f32 %v4288, %v4293
  %v4295 = vadd.f32 %v4294, %v231
  %s4296 = scalar_lea.vmem %s63, 8
  %4297 = vst.msk [vmem:[%s4296] sm:$0x3f] %vm2320, %v2565
  %v4299 = vsel %vm234, %v4282, 0
  %4301 = vmatprep.subr.mxu0 0.0
  %4302 = vmatpush1.msra.mxu0 0.0
  %4303 = vmatprep.subr.mxu0 0.0
  %4304 = vmatpush1.msra.mxu0 0.0
  %4305 = vmatprep.subr.mxu0 0.0
  %4306 = vmatpush1.msra.mxu0 0.0
  %4307 = vmatprep.subr.mxu0 0.0
  %4308 = vmatpush1.msra.mxu0 0.0
  %4309 = vmatprep.subr.mxu0 0.0
  %4310 = vmatpush1.msra.mxu0 0.0
  %4311 = vmatprep.subr.mxu0 0.0
  %4312 = vmatpush1.msra.mxu0 0.0
  %4313 = vmatprep.subr.mxu0 0.0
  %4314 = vmatpush1.msra.mxu0 0.0
  %4315 = vmatprep.subr.mxu0 0.0
  %4316 = vmatpush1.msra.mxu0 0.0
  %4317 = vmatprep.subr.mxu0 0.0
  %4318 = vmatpush1.msra.mxu0 0.0
  %4319 = vmatprep.subr.mxu0 0.0
  %4320 = vmatpush1.msra.mxu0 0.0
  %4321 = vmatprep.subr.mxu0 0.0
  %4322 = vmatpush1.msra.mxu0 0.0
  %4323 = vmatprep.subr.mxu0 0.0
  %4324 = vmatpush1.msra.mxu0 0.0
  %4325 = vmatprep.subr.mxu0 0.0
  %4326 = vmatpush1.msra.mxu0 %v148
  %4327 = vmatprep.subr.mxu0 0.0
  %4328 = vmatpush1.msra.mxu0 %v147
  %4329 = vmatprep.subr.mxu0 0.0
  %4330 = vmatpush1.msra.mxu0 %v146
  %4331 = vmatprep.subr.mxu0 0.0
  %4332 = vmatpush1.msra.mxu0 %v145
  %4333 = vmatprep.subr.mxu0 0.0
  %4334 = vmatpush2.msra.mxu0 0.0
  %4335 = vmatprep.subr.mxu0 0.0
  %4336 = vmatpush2.msra.mxu0 0.0
  %4337 = vmatprep.subr.mxu0 0.0
  %4338 = vmatpush2.msra.mxu0 0.0
  %4339 = vmatprep.subr.mxu0 0.0
  %4340 = vmatpush2.msra.mxu0 0.0
  %4341 = vmatprep.subr.mxu0 0.0
  %4342 = vmatpush2.msra.mxu0 0.0
  %4343 = vmatprep.subr.mxu0 0.0
  %4344 = vmatpush2.msra.mxu0 0.0
  %4345 = vmatprep.subr.mxu0 0.0
  %4346 = vmatpush2.msra.mxu0 0.0
  %4347 = vmatprep.subr.mxu0 0.0
  %4348 = vmatpush2.msra.mxu0 0.0
  %4349 = vmatprep.subr.mxu0 0.0
  %4350 = vmatpush2.msra.mxu0 0.0
  %4351 = vmatprep.subr.mxu0 0.0
  %4352 = vmatpush2.msra.mxu0 0.0
  %4353 = vmatprep.subr.mxu0 0.0
  %4354 = vmatpush2.msra.mxu0 0.0
  %4355 = vmatprep.subr.mxu0 0.0
  %4356 = vmatpush2.msra.mxu0 0.0
  %4357 = vmatprep.subr.mxu0 0.0
  %4358 = vmatpush2.msra.mxu0 0.0
  %4359 = vmatprep.subr.mxu0 0.0
  %4360 = vmatpush2.msra.mxu0 0.0
  %4361 = vmatprep.subr.mxu0 0.0
  %4362 = vmatpush2.msra.mxu0 0.0
  %4363 = vmatprep.subr.mxu0 0.0
  %4364 = vmatpush2.msra.mxu0 0.0
  %4365 = vmatprep.mubr.f32.mxu0 0.0
  %4366 = vmatmul.mubr.f32.gmra.mxu0 %v4299
  %v4367 = vpop.f32.mrf.mxu0
  %v4368 = vadd.f32 0.0, %v4367
  %v4369 = vpop.f32.mrf.mxu0
  %4370 = vdwg.mxu0
  %v4372 = vsel %vm308, %v4295, 0
  %4374 = vmatprep.subr.mxu0 0.0
  %4375 = vmatpush1.msra.mxu0 0.0
  %4376 = vmatprep.subr.mxu0 0.0
  %4377 = vmatpush1.msra.mxu0 0.0
  %4378 = vmatprep.subr.mxu0 0.0
  %4379 = vmatpush1.msra.mxu0 0.0
  %4380 = vmatprep.subr.mxu0 0.0
  %4381 = vmatpush1.msra.mxu0 0.0
  %4382 = vmatprep.subr.mxu0 0.0
  %4383 = vmatpush1.msra.mxu0 0.0
  %4384 = vmatprep.subr.mxu0 0.0
  %4385 = vmatpush1.msra.mxu0 0.0
  %4386 = vmatprep.subr.mxu0 0.0
  %4387 = vmatpush1.msra.mxu0 0.0
  %4388 = vmatprep.subr.mxu0 0.0
  %4389 = vmatpush1.msra.mxu0 0.0
  %4390 = vmatprep.subr.mxu0 0.0
  %4391 = vmatpush1.msra.mxu0 0.0
  %4392 = vmatprep.subr.mxu0 0.0
  %4393 = vmatpush1.msra.mxu0 0.0
  %4394 = vmatprep.subr.mxu0 0.0
  %4395 = vmatpush1.msra.mxu0 0.0
  %4396 = vmatprep.subr.mxu0 0.0
  %4397 = vmatpush1.msra.mxu0 0.0
  %4398 = vmatprep.subr.mxu0 0.0
  %4399 = vmatpush1.msra.mxu0 0.0
  %4400 = vmatprep.subr.mxu0 0.0
  %4401 = vmatpush1.msra.mxu0 0.0
  %4402 = vmatprep.subr.mxu0 0.0
  %4403 = vmatpush1.msra.mxu0 %v144
  %4404 = vmatprep.subr.mxu0 0.0
  %4405 = vmatpush1.msra.mxu0 %v143
  %4406 = vmatprep.subr.mxu0 0.0
  %4407 = vmatpush2.msra.mxu0 0.0
  %4408 = vmatprep.subr.mxu0 0.0
  %4409 = vmatpush2.msra.mxu0 0.0
  %4410 = vmatprep.subr.mxu0 0.0
  %4411 = vmatpush2.msra.mxu0 0.0
  %4412 = vmatprep.subr.mxu0 0.0
  %4413 = vmatpush2.msra.mxu0 0.0
  %4414 = vmatprep.subr.mxu0 0.0
  %4415 = vmatpush2.msra.mxu0 0.0
  %4416 = vmatprep.subr.mxu0 0.0
  %4417 = vmatpush2.msra.mxu0 0.0
  %4418 = vmatprep.subr.mxu0 0.0
  %4419 = vmatpush2.msra.mxu0 0.0
  %4420 = vmatprep.subr.mxu0 0.0
  %4421 = vmatpush2.msra.mxu0 0.0
  %4422 = vmatprep.subr.mxu0 0.0
  %4423 = vmatpush2.msra.mxu0 0.0
  %4424 = vmatprep.subr.mxu0 0.0
  %4425 = vmatpush2.msra.mxu0 0.0
  %4426 = vmatprep.subr.mxu0 0.0
  %4427 = vmatpush2.msra.mxu0 0.0
  %4428 = vmatprep.subr.mxu0 0.0
  %4429 = vmatpush2.msra.mxu0 0.0
  %4430 = vmatprep.subr.mxu0 0.0
  %4431 = vmatpush2.msra.mxu0 0.0
  %4432 = vmatprep.subr.mxu0 0.0
  %4433 = vmatpush2.msra.mxu0 0.0
  %4434 = vmatprep.subr.mxu0 0.0
  %4435 = vmatpush2.msra.mxu0 0.0
  %4436 = vmatprep.subr.mxu0 0.0
  %4437 = vmatpush2.msra.mxu0 0.0
  %4438 = vmatprep.mubr.f32.mxu0 0.0
  %4439 = vmatmul.mubr.f32.gmra.mxu0 %v4372
  %v4440 = vpop.f32.mrf.mxu0
  %v4441 = vadd.f32 %v4368, %v4440
  %v4442 = vpop.f32.mrf.mxu0
  %4443 = vdwg.mxu0
  %v4444 = vadd.f32 %v4441, %v386
  %v4445 = vxor.u32 %v4444, 2147483648
  %v4446 = vmul.f32 %v4445, 1.442695
  %v4447 = vpow.pop %v4446
  %v4448 = vadd.f32 %v4447, 1.0
  %v4449 = vrcp.pop %v4448
  %v4450 = vmul.f32 1.0, %v4449
  %v4451 = vtanh.pop %v4444
  %v4452 = vmul.f32 %v4450, %v2486
  %4454 = vrot.lane.b32.xlu0 %v4451, 64
  %v4455 = vpop.permute.xlu0 %4454
  %v4457 = vmul.f32 %v4450, %v4455
  %4459 = vrot.lane.b32.xlu0 %v4457, 32
  %v4460 = vpop.permute.xlu0 %4459
  %v4462 = vadd.f32 %v4452, %v4460
  %v4463 = vtanh.pop %v4462
  %4465 = vrot.lane.b32.xlu0 %v4463, 64
  %v4466 = vpop.permute.xlu0 %4465
  %v4468 = vmul.f32 %v4450, %v4466
  %4470 = vrot.lane.b32.xlu0 %v4468, 32
  %v4471 = vpop.permute.xlu0 %4470
  %v4472 = vsel %vm234, %v4471, 0
  %4474 = vmatprep.subr.mxu0 0.0
  %4475 = vmatpush1.msra.mxu0 0.0
  %4476 = vmatprep.subr.mxu0 0.0
  %4477 = vmatpush1.msra.mxu0 0.0
  %4478 = vmatprep.subr.mxu0 0.0
  %4479 = vmatpush1.msra.mxu0 0.0
  %4480 = vmatprep.subr.mxu0 0.0
  %4481 = vmatpush1.msra.mxu0 0.0
  %4482 = vmatprep.subr.mxu0 0.0
  %4483 = vmatpush1.msra.mxu0 0.0
  %4484 = vmatprep.subr.mxu0 0.0
  %4485 = vmatpush1.msra.mxu0 0.0
  %4486 = vmatprep.subr.mxu0 0.0
  %4487 = vmatpush1.msra.mxu0 0.0
  %4488 = vmatprep.subr.mxu0 0.0
  %4489 = vmatpush1.msra.mxu0 0.0
  %4490 = vmatprep.subr.mxu0 0.0
  %4491 = vmatpush1.msra.mxu0 0.0
  %4492 = vmatprep.subr.mxu0 0.0
  %4493 = vmatpush1.msra.mxu0 0.0
  %4494 = vmatprep.subr.mxu0 0.0
  %4495 = vmatpush1.msra.mxu0 0.0
  %4496 = vmatprep.subr.mxu0 0.0
  %4497 = vmatpush1.msra.mxu0 0.0
  %4498 = vmatprep.subr.mxu0 0.0
  %4499 = vmatpush1.msra.mxu0 %v141
  %4500 = vmatprep.subr.mxu0 0.0
  %4501 = vmatpush1.msra.mxu0 %v140
  %4502 = vmatprep.subr.mxu0 0.0
  %4503 = vmatpush1.msra.mxu0 %v139
  %4504 = vmatprep.subr.mxu0 0.0
  %4505 = vmatpush1.msra.mxu0 %v138
  %4506 = vmatprep.subr.mxu0 0.0
  %4507 = vmatpush2.msra.mxu0 0.0
  %4508 = vmatprep.subr.mxu0 0.0
  %4509 = vmatpush2.msra.mxu0 0.0
  %4510 = vmatprep.subr.mxu0 0.0
  %4511 = vmatpush2.msra.mxu0 0.0
  %4512 = vmatprep.subr.mxu0 0.0
  %4513 = vmatpush2.msra.mxu0 0.0
  %4514 = vmatprep.subr.mxu0 0.0
  %4515 = vmatpush2.msra.mxu0 0.0
  %4516 = vmatprep.subr.mxu0 0.0
  %4517 = vmatpush2.msra.mxu0 0.0
  %4518 = vmatprep.subr.mxu0 0.0
  %4519 = vmatpush2.msra.mxu0 0.0
  %4520 = vmatprep.subr.mxu0 0.0
  %4521 = vmatpush2.msra.mxu0 0.0
  %4522 = vmatprep.subr.mxu0 0.0
  %4523 = vmatpush2.msra.mxu0 0.0
  %4524 = vmatprep.subr.mxu0 0.0
  %4525 = vmatpush2.msra.mxu0 0.0
  %4526 = vmatprep.subr.mxu0 0.0
  %4527 = vmatpush2.msra.mxu0 0.0
  %4528 = vmatprep.subr.mxu0 0.0
  %4529 = vmatpush2.msra.mxu0 0.0
  %4530 = vmatprep.subr.mxu0 0.0
  %4531 = vmatpush2.msra.mxu0 0.0
  %4532 = vmatprep.subr.mxu0 0.0
  %4533 = vmatpush2.msra.mxu0 0.0
  %4534 = vmatprep.subr.mxu0 0.0
  %4535 = vmatpush2.msra.mxu0 0.0
  %4536 = vmatprep.subr.mxu0 0.0
  %4537 = vmatpush2.msra.mxu0 0.0
  %4538 = vmatprep.mubr.f32.mxu0 0.0
  %4539 = vmatmul.mubr.f32.gmra.mxu0 %v4472
  %v4540 = vpop.f32.mrf.mxu0
  %v4541 = vadd.f32 %v421, %v4540
  %v4542 = vpop.f32.mrf.mxu0
  %4543 = vdwg.mxu0
  %v4544 = vadd.f32 %v4541, %v2568
  %4545 = vmatprep.subr.mxu0 0.0
  %4546 = vmatpush1.msra.mxu0 0.0
  %4547 = vmatprep.subr.mxu0 0.0
  %4548 = vmatpush1.msra.mxu0 0.0
  %4549 = vmatprep.subr.mxu0 0.0
  %4550 = vmatpush1.msra.mxu0 0.0
  %4551 = vmatprep.subr.mxu0 0.0
  %4552 = vmatpush1.msra.mxu0 0.0
  %4553 = vmatprep.subr.mxu0 0.0
  %4554 = vmatpush1.msra.mxu0 0.0
  %4555 = vmatprep.subr.mxu0 0.0
  %4556 = vmatpush1.msra.mxu0 0.0
  %4557 = vmatprep.subr.mxu0 0.0
  %4558 = vmatpush1.msra.mxu0 0.0
  %4559 = vmatprep.subr.mxu0 0.0
  %4560 = vmatpush1.msra.mxu0 0.0
  %4561 = vmatprep.subr.mxu0 0.0
  %4562 = vmatpush1.msra.mxu0 0.0
  %4563 = vmatprep.subr.mxu0 0.0
  %4564 = vmatpush1.msra.mxu0 0.0
  %4565 = vmatprep.subr.mxu0 0.0
  %4566 = vmatpush1.msra.mxu0 0.0
  %4567 = vmatprep.subr.mxu0 0.0
  %4568 = vmatpush1.msra.mxu0 0.0
  %4569 = vmatprep.subr.mxu0 0.0
  %4570 = vmatpush1.msra.mxu0 %v157
  %4571 = vmatprep.subr.mxu0 0.0
  %4572 = vmatpush1.msra.mxu0 %v156
  %4573 = vmatprep.subr.mxu0 0.0
  %4574 = vmatpush1.msra.mxu0 %v155
  %4575 = vmatprep.subr.mxu0 0.0
  %4576 = vmatpush1.msra.mxu0 %v154
  %4577 = vmatprep.subr.mxu0 0.0
  %4578 = vmatpush2.msra.mxu0 0.0
  %4579 = vmatprep.subr.mxu0 0.0
  %4580 = vmatpush2.msra.mxu0 0.0
  %4581 = vmatprep.subr.mxu0 0.0
  %4582 = vmatpush2.msra.mxu0 0.0
  %4583 = vmatprep.subr.mxu0 0.0
  %4584 = vmatpush2.msra.mxu0 0.0
  %4585 = vmatprep.subr.mxu0 0.0
  %4586 = vmatpush2.msra.mxu0 0.0
  %4587 = vmatprep.subr.mxu0 0.0
  %4588 = vmatpush2.msra.mxu0 0.0
  %4589 = vmatprep.subr.mxu0 0.0
  %4590 = vmatpush2.msra.mxu0 0.0
  %4591 = vmatprep.subr.mxu0 0.0
  %4592 = vmatpush2.msra.mxu0 0.0
  %4593 = vmatprep.subr.mxu0 0.0
  %4594 = vmatpush2.msra.mxu0 0.0
  %4595 = vmatprep.subr.mxu0 0.0
  %4596 = vmatpush2.msra.mxu0 0.0
  %4597 = vmatprep.subr.mxu0 0.0
  %4598 = vmatpush2.msra.mxu0 0.0
  %4599 = vmatprep.subr.mxu0 0.0
  %4600 = vmatpush2.msra.mxu0 0.0
  %4601 = vmatprep.subr.mxu0 0.0
  %4602 = vmatpush2.msra.mxu0 0.0
  %4603 = vmatprep.subr.mxu0 0.0
  %4604 = vmatpush2.msra.mxu0 0.0
  %4605 = vmatprep.subr.mxu0 0.0
  %4606 = vmatpush2.msra.mxu0 0.0
  %4607 = vmatprep.subr.mxu0 0.0
  %4608 = vmatpush2.msra.mxu0 0.0
  %4609 = vmatprep.mubr.f32.mxu0 0.0
  %4610 = vmatmul.mubr.f32.gmra.mxu0 %v4472
  %v4611 = vpop.f32.mrf.mxu0
  %v4612 = vadd.f32 0.0, %v4611
  %v4613 = vpop.f32.mrf.mxu0
  %4614 = vdwg.mxu0
  %v4615 = vlaneseq
  %v4616 = vshrl.u32 %v4615, 7
  %v4617 = vsub.s32 0, %v4616
  %v4618 = vrot.slane %v4544, %v4617
  %v4619 = vsub.f32 %v4544, %v4618
  %4621 = vset.pattern.permute.xlu0 0
  %4622 = vperm.xlu0 %4621, %v4619
  %v4623 = vpop.permute.xlu0 %4622
  %v4625 = vmul.f32 %v4623, %v582
  %4626 = vset.pattern.permute.xlu0 1
  %4627 = vperm.xlu0 %4626, %v4619
  %v4628 = vpop.permute.xlu0 %4627
  %v4630 = vmul.f32 %v4628, %v591
  %v4631 = vadd.f32 %v4625, %v4630
  %v4632 = vadd.f32 %v4631, %v598
  %v4634 = vsel %vm308, %v4632, 0
  %4636 = vmatprep.subr.mxu0 0.0
  %4637 = vmatpush1.msra.mxu0 0.0
  %4638 = vmatprep.subr.mxu0 0.0
  %4639 = vmatpush1.msra.mxu0 0.0
  %4640 = vmatprep.subr.mxu0 0.0
  %4641 = vmatpush1.msra.mxu0 0.0
  %4642 = vmatprep.subr.mxu0 0.0
  %4643 = vmatpush1.msra.mxu0 0.0
  %4644 = vmatprep.subr.mxu0 0.0
  %4645 = vmatpush1.msra.mxu0 0.0
  %4646 = vmatprep.subr.mxu0 0.0
  %4647 = vmatpush1.msra.mxu0 0.0
  %4648 = vmatprep.subr.mxu0 0.0
  %4649 = vmatpush1.msra.mxu0 0.0
  %4650 = vmatprep.subr.mxu0 0.0
  %4651 = vmatpush1.msra.mxu0 0.0
  %4652 = vmatprep.subr.mxu0 0.0
  %4653 = vmatpush1.msra.mxu0 0.0
  %4654 = vmatprep.subr.mxu0 0.0
  %4655 = vmatpush1.msra.mxu0 0.0
  %4656 = vmatprep.subr.mxu0 0.0
  %4657 = vmatpush1.msra.mxu0 0.0
  %4658 = vmatprep.subr.mxu0 0.0
  %4659 = vmatpush1.msra.mxu0 0.0
  %4660 = vmatprep.subr.mxu0 0.0
  %4661 = vmatpush1.msra.mxu0 0.0
  %4662 = vmatprep.subr.mxu0 0.0
  %4663 = vmatpush1.msra.mxu0 0.0
  %4664 = vmatprep.subr.mxu0 0.0
  %4665 = vmatpush1.msra.mxu0 %v153
  %4666 = vmatprep.subr.mxu0 0.0
  %4667 = vmatpush1.msra.mxu0 %v152
  %4668 = vmatprep.subr.mxu0 0.0
  %4669 = vmatpush2.msra.mxu0 0.0
  %4670 = vmatprep.subr.mxu0 0.0
  %4671 = vmatpush2.msra.mxu0 0.0
  %4672 = vmatprep.subr.mxu0 0.0
  %4673 = vmatpush2.msra.mxu0 0.0
  %4674 = vmatprep.subr.mxu0 0.0
  %4675 = vmatpush2.msra.mxu0 0.0
  %4676 = vmatprep.subr.mxu0 0.0
  %4677 = vmatpush2.msra.mxu0 0.0
  %4678 = vmatprep.subr.mxu0 0.0
  %4679 = vmatpush2.msra.mxu0 0.0
  %4680 = vmatprep.subr.mxu0 0.0
  %4681 = vmatpush2.msra.mxu0 0.0
  %4682 = vmatprep.subr.mxu0 0.0
  %4683 = vmatpush2.msra.mxu0 0.0
  %4684 = vmatprep.subr.mxu0 0.0
  %4685 = vmatpush2.msra.mxu0 0.0
  %4686 = vmatprep.subr.mxu0 0.0
  %4687 = vmatpush2.msra.mxu0 0.0
  %4688 = vmatprep.subr.mxu0 0.0
  %4689 = vmatpush2.msra.mxu0 0.0
  %4690 = vmatprep.subr.mxu0 0.0
  %4691 = vmatpush2.msra.mxu0 0.0
  %4692 = vmatprep.subr.mxu0 0.0
  %4693 = vmatpush2.msra.mxu0 0.0
  %4694 = vmatprep.subr.mxu0 0.0
  %4695 = vmatpush2.msra.mxu0 0.0
  %4696 = vmatprep.subr.mxu0 0.0
  %4697 = vmatpush2.msra.mxu0 0.0
  %4698 = vmatprep.subr.mxu0 0.0
  %4699 = vmatpush2.msra.mxu0 0.0
  %4700 = vmatprep.mubr.f32.mxu0 0.0
  %4701 = vmatmul.mubr.f32.gmra.mxu0 %v4634
  %v4702 = vpop.f32.mrf.mxu0
  %v4703 = vadd.f32 %v4612, %v4702
  %v4704 = vpop.f32.mrf.mxu0
  %4705 = vdwg.mxu0
  %v4706 = vadd.f32 %v4703, %v678
  %v4707 = vlaneseq
  %v4708 = vshrl.u32 %v4707, 7
  %v4709 = vsub.s32 1, %v4708
  %v4710 = vrot.slane %v4544, %v4709
  %v4711 = vsub.f32 %v4544, %v4710
  %4713 = vset.pattern.permute.xlu0 0
  %4714 = vperm.xlu0 %4713, %v4711
  %v4715 = vpop.permute.xlu0 %4714
  %v4717 = vmul.f32 %v4715, %v582
  %4718 = vset.pattern.permute.xlu0 1
  %4719 = vperm.xlu0 %4718, %v4711
  %v4720 = vpop.permute.xlu0 %4719
  %v4722 = vmul.f32 %v4720, %v591
  %v4723 = vadd.f32 %v4717, %v4722
  %v4724 = vadd.f32 %v4723, %v598
  %v4726 = vsel %vm308, %v4724, 0
  %4728 = vmatprep.subr.mxu0 0.0
  %4729 = vmatpush1.msra.mxu0 0.0
  %4730 = vmatprep.subr.mxu0 0.0
  %4731 = vmatpush1.msra.mxu0 0.0
  %4732 = vmatprep.subr.mxu0 0.0
  %4733 = vmatpush1.msra.mxu0 0.0
  %4734 = vmatprep.subr.mxu0 0.0
  %4735 = vmatpush1.msra.mxu0 0.0
  %4736 = vmatprep.subr.mxu0 0.0
  %4737 = vmatpush1.msra.mxu0 0.0
  %4738 = vmatprep.subr.mxu0 0.0
  %4739 = vmatpush1.msra.mxu0 0.0
  %4740 = vmatprep.subr.mxu0 0.0
  %4741 = vmatpush1.msra.mxu0 0.0
  %4742 = vmatprep.subr.mxu0 0.0
  %4743 = vmatpush1.msra.mxu0 0.0
  %4744 = vmatprep.subr.mxu0 0.0
  %4745 = vmatpush1.msra.mxu0 0.0
  %4746 = vmatprep.subr.mxu0 0.0
  %4747 = vmatpush1.msra.mxu0 0.0
  %4748 = vmatprep.subr.mxu0 0.0
  %4749 = vmatpush1.msra.mxu0 0.0
  %4750 = vmatprep.subr.mxu0 0.0
  %4751 = vmatpush1.msra.mxu0 0.0
  %4752 = vmatprep.subr.mxu0 0.0
  %4753 = vmatpush1.msra.mxu0 0.0
  %4754 = vmatprep.subr.mxu0 0.0
  %4755 = vmatpush1.msra.mxu0 0.0
  %4756 = vmatprep.subr.mxu0 0.0
  %4757 = vmatpush1.msra.mxu0 %v153
  %4758 = vmatprep.subr.mxu0 0.0
  %4759 = vmatpush1.msra.mxu0 %v152
  %4760 = vmatprep.subr.mxu0 0.0
  %4761 = vmatpush2.msra.mxu0 0.0
  %4762 = vmatprep.subr.mxu0 0.0
  %4763 = vmatpush2.msra.mxu0 0.0
  %4764 = vmatprep.subr.mxu0 0.0
  %4765 = vmatpush2.msra.mxu0 0.0
  %4766 = vmatprep.subr.mxu0 0.0
  %4767 = vmatpush2.msra.mxu0 0.0
  %4768 = vmatprep.subr.mxu0 0.0
  %4769 = vmatpush2.msra.mxu0 0.0
  %4770 = vmatprep.subr.mxu0 0.0
  %4771 = vmatpush2.msra.mxu0 0.0
  %4772 = vmatprep.subr.mxu0 0.0
  %4773 = vmatpush2.msra.mxu0 0.0
  %4774 = vmatprep.subr.mxu0 0.0
  %4775 = vmatpush2.msra.mxu0 0.0
  %4776 = vmatprep.subr.mxu0 0.0
  %4777 = vmatpush2.msra.mxu0 0.0
  %4778 = vmatprep.subr.mxu0 0.0
  %4779 = vmatpush2.msra.mxu0 0.0
  %4780 = vmatprep.subr.mxu0 0.0
  %4781 = vmatpush2.msra.mxu0 0.0
  %4782 = vmatprep.subr.mxu0 0.0
  %4783 = vmatpush2.msra.mxu0 0.0
  %4784 = vmatprep.subr.mxu0 0.0
  %4785 = vmatpush2.msra.mxu0 0.0
  %4786 = vmatprep.subr.mxu0 0.0
  %4787 = vmatpush2.msra.mxu0 0.0
  %4788 = vmatprep.subr.mxu0 0.0
  %4789 = vmatpush2.msra.mxu0 0.0
  %4790 = vmatprep.subr.mxu0 0.0
  %4791 = vmatpush2.msra.mxu0 0.0
  %4792 = vmatprep.mubr.f32.mxu0 0.0
  %4793 = vmatmul.mubr.f32.gmra.mxu0 %v4726
  %v4794 = vpop.f32.mrf.mxu0
  %v4795 = vadd.f32 %v4612, %v4794
  %v4796 = vpop.f32.mrf.mxu0
  %4797 = vdwg.mxu0
  %v4798 = vadd.f32 %v4795, %v678
  %v4799 = vlaneseq
  %v4800 = vshrl.u32 %v4799, 7
  %v4801 = vsub.s32 2, %v4800
  %v4802 = vrot.slane %v4544, %v4801
  %v4803 = vsub.f32 %v4544, %v4802
  %4805 = vset.pattern.permute.xlu0 0
  %4806 = vperm.xlu0 %4805, %v4803
  %v4807 = vpop.permute.xlu0 %4806
  %v4809 = vmul.f32 %v4807, %v582
  %4810 = vset.pattern.permute.xlu0 1
  %4811 = vperm.xlu0 %4810, %v4803
  %v4812 = vpop.permute.xlu0 %4811
  %v4814 = vmul.f32 %v4812, %v591
  %v4815 = vadd.f32 %v4809, %v4814
  %v4816 = vadd.f32 %v4815, %v598
  %v4818 = vsel %vm308, %v4816, 0
  %4820 = vmatprep.subr.mxu0 0.0
  %4821 = vmatpush1.msra.mxu0 0.0
  %4822 = vmatprep.subr.mxu0 0.0
  %4823 = vmatpush1.msra.mxu0 0.0
  %4824 = vmatprep.subr.mxu0 0.0
  %4825 = vmatpush1.msra.mxu0 0.0
  %4826 = vmatprep.subr.mxu0 0.0
  %4827 = vmatpush1.msra.mxu0 0.0
  %4828 = vmatprep.subr.mxu0 0.0
  %4829 = vmatpush1.msra.mxu0 0.0
  %4830 = vmatprep.subr.mxu0 0.0
  %4831 = vmatpush1.msra.mxu0 0.0
  %4832 = vmatprep.subr.mxu0 0.0
  %4833 = vmatpush1.msra.mxu0 0.0
  %4834 = vmatprep.subr.mxu0 0.0
  %4835 = vmatpush1.msra.mxu0 0.0
  %4836 = vmatprep.subr.mxu0 0.0
  %4837 = vmatpush1.msra.mxu0 0.0
  %4838 = vmatprep.subr.mxu0 0.0
  %4839 = vmatpush1.msra.mxu0 0.0
  %4840 = vmatprep.subr.mxu0 0.0
  %4841 = vmatpush1.msra.mxu0 0.0
  %4842 = vmatprep.subr.mxu0 0.0
  %4843 = vmatpush1.msra.mxu0 0.0
  %4844 = vmatprep.subr.mxu0 0.0
  %4845 = vmatpush1.msra.mxu0 0.0
  %4846 = vmatprep.subr.mxu0 0.0
  %4847 = vmatpush1.msra.mxu0 0.0
  %4848 = vmatprep.subr.mxu0 0.0
  %4849 = vmatpush1.msra.mxu0 %v153
  %4850 = vmatprep.subr.mxu0 0.0
  %4851 = vmatpush1.msra.mxu0 %v152
  %4852 = vmatprep.subr.mxu0 0.0
  %4853 = vmatpush2.msra.mxu0 0.0
  %4854 = vmatprep.subr.mxu0 0.0
  %4855 = vmatpush2.msra.mxu0 0.0
  %4856 = vmatprep.subr.mxu0 0.0
  %4857 = vmatpush2.msra.mxu0 0.0
  %4858 = vmatprep.subr.mxu0 0.0
  %4859 = vmatpush2.msra.mxu0 0.0
  %4860 = vmatprep.subr.mxu0 0.0
  %4861 = vmatpush2.msra.mxu0 0.0
  %4862 = vmatprep.subr.mxu0 0.0
  %4863 = vmatpush2.msra.mxu0 0.0
  %4864 = vmatprep.subr.mxu0 0.0
  %4865 = vmatpush2.msra.mxu0 0.0
  %4866 = vmatprep.subr.mxu0 0.0
  %4867 = vmatpush2.msra.mxu0 0.0
  %4868 = vmatprep.subr.mxu0 0.0
  %4869 = vmatpush2.msra.mxu0 0.0
  %4870 = vmatprep.subr.mxu0 0.0
  %4871 = vmatpush2.msra.mxu0 0.0
  %4872 = vmatprep.subr.mxu0 0.0
  %4873 = vmatpush2.msra.mxu0 0.0
  %4874 = vmatprep.subr.mxu0 0.0
  %4875 = vmatpush2.msra.mxu0 0.0
  %4876 = vmatprep.subr.mxu0 0.0
  %4877 = vmatpush2.msra.mxu0 0.0
  %4878 = vmatprep.subr.mxu0 0.0
  %4879 = vmatpush2.msra.mxu0 0.0
  %4880 = vmatprep.subr.mxu0 0.0
  %4881 = vmatpush2.msra.mxu0 0.0
  %4882 = vmatprep.subr.mxu0 0.0
  %4883 = vmatpush2.msra.mxu0 0.0
  %4884 = vmatprep.mubr.f32.mxu0 0.0
  %4885 = vmatmul.mubr.f32.gmra.mxu0 %v4818
  %v4886 = vpop.f32.mrf.mxu0
  %v4887 = vadd.f32 %v4612, %v4886
  %v4888 = vpop.f32.mrf.mxu0
  %4889 = vdwg.mxu0
  %v4890 = vadd.f32 %v4887, %v678
  %v4891 = vsel %vm865, %v4706, 0.0
  %v4892 = vrot.slane %v4891, 4
  %v4893 = vadd.f32 %v4891, %v4892
  %v4894 = vrot.slane %v4893, 2
  %v4895 = vadd.f32 %v4893, %v4894
  %v4896 = vrot.slane %v4895, 1
  %v4897 = vadd.f32 %v4895, %v4896
  %v4898 = vadd.f32 %v4897, 0.0
  %v4899 = vsel %vm865, %v4798, 0.0
  %v4900 = vrot.slane %v4899, 4
  %v4901 = vadd.f32 %v4899, %v4900
  %v4902 = vrot.slane %v4901, 2
  %v4903 = vadd.f32 %v4901, %v4902
  %v4904 = vrot.slane %v4903, 1
  %v4905 = vadd.f32 %v4903, %v4904
  %v4906 = vadd.f32 %v4898, %v4905
  %v4907 = vsel %vm865, %v4890, 0.0
  %v4908 = vrot.slane %v4907, 4
  %v4909 = vadd.f32 %v4907, %v4908
  %v4910 = vrot.slane %v4909, 2
  %v4911 = vadd.f32 %v4909, %v4910
  %v4912 = vrot.slane %v4911, 1
  %v4913 = vadd.f32 %v4911, %v4912
  %v4914 = vadd.f32 %v4906, %v4913
  %v4915 = vmul.f32 %v4914, %v890
  %v4916 = vsub.f32 %v4706, %v4915
  %v4917 = vmul.f32 %v4916, %v4916
  %v4918 = vsel %vm865, %v4917, 0.0
  %v4919 = vrot.slane %v4918, 4
  %v4920 = vadd.f32 %v4918, %v4919
  %v4921 = vrot.slane %v4920, 2
  %v4922 = vadd.f32 %v4920, %v4921
  %v4923 = vrot.slane %v4922, 1
  %v4924 = vadd.f32 %v4922, %v4923
  %v4925 = vadd.f32 %v4924, 0.0
  %v4926 = vsub.f32 %v4798, %v4915
  %v4927 = vmul.f32 %v4926, %v4926
  %v4928 = vsel %vm865, %v4927, 0.0
  %v4929 = vrot.slane %v4928, 4
  %v4930 = vadd.f32 %v4928, %v4929
  %v4931 = vrot.slane %v4930, 2
  %v4932 = vadd.f32 %v4930, %v4931
  %v4933 = vrot.slane %v4932, 1
  %v4934 = vadd.f32 %v4932, %v4933
  %v4935 = vadd.f32 %v4925, %v4934
  %v4936 = vsub.f32 %v4890, %v4915
  %v4937 = vmul.f32 %v4936, %v4936
  %v4938 = vsel %vm865, %v4937, 0.0
  %v4939 = vrot.slane %v4938, 4
  %v4940 = vadd.f32 %v4938, %v4939
  %v4941 = vrot.slane %v4940, 2
  %v4942 = vadd.f32 %v4940, %v4941
  %v4943 = vrot.slane %v4942, 1
  %v4944 = vadd.f32 %v4942, %v4943
  %v4945 = vadd.f32 %v4935, %v4944
  %v4946 = vmul.f32 %v4945, %v890
  %v4947 = vadd.f32 %v4946, 1e-05
  %v4948 = vrsqrt.pop %v4947
  %v4949 = vmul.f32 %v4916, %v4948
  %v4950 = vmul.f32 %v4949, %v930
  %v4951 = vadd.f32 %v4950, %v937
  %v4952 = vmax.f32 %v4951, 0.0
  %4953 = vmatprep.subr.mxu0 0.0
  %4954 = vmatpush1.msra.mxu0 %v176
  %4955 = vmatprep.subr.mxu0 0.0
  %4956 = vmatpush1.msra.mxu0 %v175
  %4957 = vmatprep.subr.mxu0 0.0
  %4958 = vmatpush1.msra.mxu0 %v174
  %4959 = vmatprep.subr.mxu0 0.0
  %4960 = vmatpush1.msra.mxu0 %v173
  %4961 = vmatprep.subr.mxu0 0.0
  %4962 = vmatpush1.msra.mxu0 %v172
  %4963 = vmatprep.subr.mxu0 0.0
  %4964 = vmatpush1.msra.mxu0 %v171
  %4965 = vmatprep.subr.mxu0 0.0
  %4966 = vmatpush1.msra.mxu0 %v170
  %4967 = vmatprep.subr.mxu0 0.0
  %4968 = vmatpush1.msra.mxu0 %v169
  %4969 = vmatprep.subr.mxu0 0.0
  %4970 = vmatpush1.msra.mxu0 %v168
  %4971 = vmatprep.subr.mxu0 0.0
  %4972 = vmatpush1.msra.mxu0 %v167
  %4973 = vmatprep.subr.mxu0 0.0
  %4974 = vmatpush1.msra.mxu0 %v166
  %4975 = vmatprep.subr.mxu0 0.0
  %4976 = vmatpush1.msra.mxu0 %v165
  %4977 = vmatprep.subr.mxu0 0.0
  %4978 = vmatpush1.msra.mxu0 %v164
  %4979 = vmatprep.subr.mxu0 0.0
  %4980 = vmatpush1.msra.mxu0 %v163
  %4981 = vmatprep.subr.mxu0 0.0
  %4982 = vmatpush1.msra.mxu0 %v162
  %4983 = vmatprep.subr.mxu0 0.0
  %4984 = vmatpush1.msra.mxu0 %v161
  %4985 = vmatprep.subr.mxu0 0.0
  %4986 = vmatpush2.msra.mxu0 0.0
  %4987 = vmatprep.subr.mxu0 0.0
  %4988 = vmatpush2.msra.mxu0 0.0
  %4989 = vmatprep.subr.mxu0 0.0
  %4990 = vmatpush2.msra.mxu0 0.0
  %4991 = vmatprep.subr.mxu0 0.0
  %4992 = vmatpush2.msra.mxu0 0.0
  %4993 = vmatprep.subr.mxu0 0.0
  %4994 = vmatpush2.msra.mxu0 0.0
  %4995 = vmatprep.subr.mxu0 0.0
  %4996 = vmatpush2.msra.mxu0 0.0
  %4997 = vmatprep.subr.mxu0 0.0
  %4998 = vmatpush2.msra.mxu0 0.0
  %4999 = vmatprep.subr.mxu0 0.0
  %5000 = vmatpush2.msra.mxu0 0.0
  %5001 = vmatprep.subr.mxu0 0.0
  %5002 = vmatpush2.msra.mxu0 0.0
  %5003 = vmatprep.subr.mxu0 0.0
  %5004 = vmatpush2.msra.mxu0 0.0
  %5005 = vmatprep.subr.mxu0 0.0
  %5006 = vmatpush2.msra.mxu0 0.0
  %5007 = vmatprep.subr.mxu0 0.0
  %5008 = vmatpush2.msra.mxu0 0.0
  %5009 = vmatprep.subr.mxu0 0.0
  %5010 = vmatpush2.msra.mxu0 0.0
  %5011 = vmatprep.subr.mxu0 0.0
  %5012 = vmatpush2.msra.mxu0 0.0
  %5013 = vmatprep.subr.mxu0 0.0
  %5014 = vmatpush2.msra.mxu0 0.0
  %5015 = vmatprep.subr.mxu0 0.0
  %5016 = vmatpush2.msra.mxu0 0.0
  %5017 = vmatprep.mubr.f32.mxu0 0.0
  %5018 = vmatmul.mubr.f32.gmra.mxu0 %v4952
  %v5019 = vpop.f32.mrf.mxu0
  %v5020 = vadd.f32 %v945, %v5019
  %v5021 = vpop.f32.mrf.mxu0
  %5022 = vdwg.mxu0
  %v5023 = vmul.f32 %v4926, %v4948
  %v5024 = vmul.f32 %v5023, %v930
  %v5025 = vadd.f32 %v5024, %v937
  %v5026 = vmax.f32 %v5025, 0.0
  %5027 = vmatprep.subr.mxu0 0.0
  %5028 = vmatpush1.msra.mxu0 %v176
  %5029 = vmatprep.subr.mxu0 0.0
  %5030 = vmatpush1.msra.mxu0 %v175
  %5031 = vmatprep.subr.mxu0 0.0
  %5032 = vmatpush1.msra.mxu0 %v174
  %5033 = vmatprep.subr.mxu0 0.0
  %5034 = vmatpush1.msra.mxu0 %v173
  %5035 = vmatprep.subr.mxu0 0.0
  %5036 = vmatpush1.msra.mxu0 %v172
  %5037 = vmatprep.subr.mxu0 0.0
  %5038 = vmatpush1.msra.mxu0 %v171
  %5039 = vmatprep.subr.mxu0 0.0
  %5040 = vmatpush1.msra.mxu0 %v170
  %5041 = vmatprep.subr.mxu0 0.0
  %5042 = vmatpush1.msra.mxu0 %v169
  %5043 = vmatprep.subr.mxu0 0.0
  %5044 = vmatpush1.msra.mxu0 %v168
  %5045 = vmatprep.subr.mxu0 0.0
  %5046 = vmatpush1.msra.mxu0 %v167
  %5047 = vmatprep.subr.mxu0 0.0
  %5048 = vmatpush1.msra.mxu0 %v166
  %5049 = vmatprep.subr.mxu0 0.0
  %5050 = vmatpush1.msra.mxu0 %v165
  %5051 = vmatprep.subr.mxu0 0.0
  %5052 = vmatpush1.msra.mxu0 %v164
  %5053 = vmatprep.subr.mxu0 0.0
  %5054 = vmatpush1.msra.mxu0 %v163
  %5055 = vmatprep.subr.mxu0 0.0
  %5056 = vmatpush1.msra.mxu0 %v162
  %5057 = vmatprep.subr.mxu0 0.0
  %5058 = vmatpush1.msra.mxu0 %v161
  %5059 = vmatprep.subr.mxu0 0.0
  %5060 = vmatpush2.msra.mxu0 0.0
  %5061 = vmatprep.subr.mxu0 0.0
  %5062 = vmatpush2.msra.mxu0 0.0
  %5063 = vmatprep.subr.mxu0 0.0
  %5064 = vmatpush2.msra.mxu0 0.0
  %5065 = vmatprep.subr.mxu0 0.0
  %5066 = vmatpush2.msra.mxu0 0.0
  %5067 = vmatprep.subr.mxu0 0.0
  %5068 = vmatpush2.msra.mxu0 0.0
  %5069 = vmatprep.subr.mxu0 0.0
  %5070 = vmatpush2.msra.mxu0 0.0
  %5071 = vmatprep.subr.mxu0 0.0
  %5072 = vmatpush2.msra.mxu0 0.0
  %5073 = vmatprep.subr.mxu0 0.0
  %5074 = vmatpush2.msra.mxu0 0.0
  %5075 = vmatprep.subr.mxu0 0.0
  %5076 = vmatpush2.msra.mxu0 0.0
  %5077 = vmatprep.subr.mxu0 0.0
  %5078 = vmatpush2.msra.mxu0 0.0
  %5079 = vmatprep.subr.mxu0 0.0
  %5080 = vmatpush2.msra.mxu0 0.0
  %5081 = vmatprep.subr.mxu0 0.0
  %5082 = vmatpush2.msra.mxu0 0.0
  %5083 = vmatprep.subr.mxu0 0.0
  %5084 = vmatpush2.msra.mxu0 0.0
  %5085 = vmatprep.subr.mxu0 0.0
  %5086 = vmatpush2.msra.mxu0 0.0
  %5087 = vmatprep.subr.mxu0 0.0
  %5088 = vmatpush2.msra.mxu0 0.0
  %5089 = vmatprep.subr.mxu0 0.0
  %5090 = vmatpush2.msra.mxu0 0.0
  %5091 = vmatprep.mubr.f32.mxu0 0.0
  %5092 = vmatmul.mubr.f32.gmra.mxu0 %v5026
  %v5093 = vpop.f32.mrf.mxu0
  %v5094 = vadd.f32 %v945, %v5093
  %v5095 = vpop.f32.mrf.mxu0
  %5096 = vdwg.mxu0
  %v5097 = vmul.f32 %v4936, %v4948
  %v5098 = vmul.f32 %v5097, %v930
  %v5099 = vadd.f32 %v5098, %v937
  %v5100 = vmax.f32 %v5099, 0.0
  %5101 = vmatprep.subr.mxu0 0.0
  %5102 = vmatpush1.msra.mxu0 %v176
  %5103 = vmatprep.subr.mxu0 0.0
  %5104 = vmatpush1.msra.mxu0 %v175
  %5105 = vmatprep.subr.mxu0 0.0
  %5106 = vmatpush1.msra.mxu0 %v174
  %5107 = vmatprep.subr.mxu0 0.0
  %5108 = vmatpush1.msra.mxu0 %v173
  %5109 = vmatprep.subr.mxu0 0.0
  %5110 = vmatpush1.msra.mxu0 %v172
  %5111 = vmatprep.subr.mxu0 0.0
  %5112 = vmatpush1.msra.mxu0 %v171
  %5113 = vmatprep.subr.mxu0 0.0
  %5114 = vmatpush1.msra.mxu0 %v170
  %5115 = vmatprep.subr.mxu0 0.0
  %5116 = vmatpush1.msra.mxu0 %v169
  %5117 = vmatprep.subr.mxu0 0.0
  %5118 = vmatpush1.msra.mxu0 %v168
  %5119 = vmatprep.subr.mxu0 0.0
  %5120 = vmatpush1.msra.mxu0 %v167
  %5121 = vmatprep.subr.mxu0 0.0
  %5122 = vmatpush1.msra.mxu0 %v166
  %5123 = vmatprep.subr.mxu0 0.0
  %5124 = vmatpush1.msra.mxu0 %v165
  %5125 = vmatprep.subr.mxu0 0.0
  %5126 = vmatpush1.msra.mxu0 %v164
  %5127 = vmatprep.subr.mxu0 0.0
  %5128 = vmatpush1.msra.mxu0 %v163
  %5129 = vmatprep.subr.mxu0 0.0
  %5130 = vmatpush1.msra.mxu0 %v162
  %5131 = vmatprep.subr.mxu0 0.0
  %5132 = vmatpush1.msra.mxu0 %v161
  %5133 = vmatprep.subr.mxu0 0.0
  %5134 = vmatpush2.msra.mxu0 0.0
  %5135 = vmatprep.subr.mxu0 0.0
  %5136 = vmatpush2.msra.mxu0 0.0
  %5137 = vmatprep.subr.mxu0 0.0
  %5138 = vmatpush2.msra.mxu0 0.0
  %5139 = vmatprep.subr.mxu0 0.0
  %5140 = vmatpush2.msra.mxu0 0.0
  %5141 = vmatprep.subr.mxu0 0.0
  %5142 = vmatpush2.msra.mxu0 0.0
  %5143 = vmatprep.subr.mxu0 0.0
  %5144 = vmatpush2.msra.mxu0 0.0
  %5145 = vmatprep.subr.mxu0 0.0
  %5146 = vmatpush2.msra.mxu0 0.0
  %5147 = vmatprep.subr.mxu0 0.0
  %5148 = vmatpush2.msra.mxu0 0.0
  %5149 = vmatprep.subr.mxu0 0.0
  %5150 = vmatpush2.msra.mxu0 0.0
  %5151 = vmatprep.subr.mxu0 0.0
  %5152 = vmatpush2.msra.mxu0 0.0
  %5153 = vmatprep.subr.mxu0 0.0
  %5154 = vmatpush2.msra.mxu0 0.0
  %5155 = vmatprep.subr.mxu0 0.0
  %5156 = vmatpush2.msra.mxu0 0.0
  %5157 = vmatprep.subr.mxu0 0.0
  %5158 = vmatpush2.msra.mxu0 0.0
  %5159 = vmatprep.subr.mxu0 0.0
  %5160 = vmatpush2.msra.mxu0 0.0
  %5161 = vmatprep.subr.mxu0 0.0
  %5162 = vmatpush2.msra.mxu0 0.0
  %5163 = vmatprep.subr.mxu0 0.0
  %5164 = vmatpush2.msra.mxu0 0.0
  %5165 = vmatprep.mubr.f32.mxu0 0.0
  %5166 = vmatmul.mubr.f32.gmra.mxu0 %v5100
  %v5167 = vpop.f32.mrf.mxu0
  %v5168 = vadd.f32 %v945, %v5167
  %v5169 = vpop.f32.mrf.mxu0
  %5170 = vdwg.mxu0
  %v5171 = vsel %vm1165, %v5020, 0.0
  %v5172 = vrot.slane %v5171, 4
  %v5173 = vadd.f32 %v5171, %v5172
  %v5174 = vrot.slane %v5173, 2
  %v5175 = vadd.f32 %v5173, %v5174
  %v5176 = vrot.slane %v5175, 1
  %v5177 = vadd.f32 %v5175, %v5176
  %v5178 = vadd.f32 %v5177, 0.0
  %v5179 = vsel %vm1165, %v5094, 0.0
  %v5180 = vrot.slane %v5179, 4
  %v5181 = vadd.f32 %v5179, %v5180
  %v5182 = vrot.slane %v5181, 2
  %v5183 = vadd.f32 %v5181, %v5182
  %v5184 = vrot.slane %v5183, 1
  %v5185 = vadd.f32 %v5183, %v5184
  %v5186 = vadd.f32 %v5178, %v5185
  %v5187 = vsel %vm1165, %v5168, 0.0
  %v5188 = vrot.slane %v5187, 4
  %v5189 = vadd.f32 %v5187, %v5188
  %v5190 = vrot.slane %v5189, 2
  %v5191 = vadd.f32 %v5189, %v5190
  %v5192 = vrot.slane %v5191, 1
  %v5193 = vadd.f32 %v5191, %v5192
  %v5194 = vadd.f32 %v5186, %v5193
  %v5195 = vmul.f32 %v5194, %v890
  %v5196 = vsub.f32 %v5020, %v5195
  %v5197 = vmul.f32 %v5196, %v5196
  %v5198 = vsel %vm1165, %v5197, 0.0
  %v5199 = vrot.slane %v5198, 4
  %v5200 = vadd.f32 %v5198, %v5199
  %v5201 = vrot.slane %v5200, 2
  %v5202 = vadd.f32 %v5200, %v5201
  %v5203 = vrot.slane %v5202, 1
  %v5204 = vadd.f32 %v5202, %v5203
  %v5205 = vadd.f32 %v5204, 0.0
  %v5206 = vsub.f32 %v5094, %v5195
  %v5207 = vmul.f32 %v5206, %v5206
  %v5208 = vsel %vm1165, %v5207, 0.0
  %v5209 = vrot.slane %v5208, 4
  %v5210 = vadd.f32 %v5208, %v5209
  %v5211 = vrot.slane %v5210, 2
  %v5212 = vadd.f32 %v5210, %v5211
  %v5213 = vrot.slane %v5212, 1
  %v5214 = vadd.f32 %v5212, %v5213
  %v5215 = vadd.f32 %v5205, %v5214
  %v5216 = vsub.f32 %v5168, %v5195
  %v5217 = vmul.f32 %v5216, %v5216
  %v5218 = vsel %vm1165, %v5217, 0.0
  %v5219 = vrot.slane %v5218, 4
  %v5220 = vadd.f32 %v5218, %v5219
  %v5221 = vrot.slane %v5220, 2
  %v5222 = vadd.f32 %v5220, %v5221
  %v5223 = vrot.slane %v5222, 1
  %v5224 = vadd.f32 %v5222, %v5223
  %v5225 = vadd.f32 %v5215, %v5224
  %v5226 = vmul.f32 %v5225, %v890
  %v5227 = vadd.f32 %v5226, 1e-05
  %v5228 = vrsqrt.pop %v5227
  %v5229 = vmul.f32 %v5196, %v5228
  %v5230 = vmul.f32 %v5229, %v1229
  %v5231 = vadd.f32 %v5230, %v1236
  %v5232 = vmax.f32 %v5231, 0.0
  %v5233 = vsel %vm1165, %v5232, -inf
  %v5234 = vrot.slane %v5233, 4
  %v5235 = vmax.f32 %v5233, %v5234
  %v5236 = vrot.slane %v5235, 2
  %v5237 = vmax.f32 %v5235, %v5236
  %v5238 = vrot.slane %v5237, 1
  %v5239 = vmax.f32 %v5237, %v5238
  %5240 = vst.msk [vmem:[#allocation2] sm:$0x1] %vm1247, %v5239
  %v5241 = vmul.f32 %v5206, %v5228
  %v5242 = vmul.f32 %v5241, %v1229
  %v5243 = vadd.f32 %v5242, %v1236
  %v5244 = vmax.f32 %v5243, 0.0
  %v5245 = vsel %vm1165, %v5244, -inf
  %v5246 = vrot.slane %v5245, 4
  %v5247 = vmax.f32 %v5245, %v5246
  %v5248 = vrot.slane %v5247, 2
  %v5249 = vmax.f32 %v5247, %v5248
  %v5250 = vrot.slane %v5249, 1
  %v5251 = vmax.f32 %v5249, %v5250
  %5252 = vst.msk [vmem:[#allocation2 + $0x1] sm:$0x1] %vm1247, %v5251
  %v5253 = vmul.f32 %v5216, %v5228
  %v5254 = vmul.f32 %v5253, %v1229
  %v5255 = vadd.f32 %v5254, %v1236
  %v5256 = vmax.f32 %v5255, 0.0
  %v5257 = vsel %vm1165, %v5256, -inf
  %v5258 = vrot.slane %v5257, 4
  %v5259 = vmax.f32 %v5257, %v5258
  %v5260 = vrot.slane %v5259, 2
  %v5261 = vmax.f32 %v5259, %v5260
  %v5262 = vrot.slane %v5261, 1
  %v5263 = vmax.f32 %v5261, %v5262
  %5264 = vst.msk [vmem:[#allocation2 + $0x2] sm:$0x1] %vm1247, %v5263
  %v5265 = vrot.slane %v4468, 3
  %5266 = vrot.lane.b32.xlu0 %v5265, 32
  %v5267 = vpop.permute.xlu0 %5266
  %v5268 = vsel %vm234, %v5267, 0
  %5270 = vmatprep.subr.mxu0 0.0
  %5271 = vmatpush1.msra.mxu0 0.0
  %5272 = vmatprep.subr.mxu0 0.0
  %5273 = vmatpush1.msra.mxu0 0.0
  %5274 = vmatprep.subr.mxu0 0.0
  %5275 = vmatpush1.msra.mxu0 0.0
  %5276 = vmatprep.subr.mxu0 0.0
  %5277 = vmatpush1.msra.mxu0 0.0
  %5278 = vmatprep.subr.mxu0 0.0
  %5279 = vmatpush1.msra.mxu0 0.0
  %5280 = vmatprep.subr.mxu0 0.0
  %5281 = vmatpush1.msra.mxu0 0.0
  %5282 = vmatprep.subr.mxu0 0.0
  %5283 = vmatpush1.msra.mxu0 0.0
  %5284 = vmatprep.subr.mxu0 0.0
  %5285 = vmatpush1.msra.mxu0 0.0
  %5286 = vmatprep.subr.mxu0 0.0
  %5287 = vmatpush1.msra.mxu0 0.0
  %5288 = vmatprep.subr.mxu0 0.0
  %5289 = vmatpush1.msra.mxu0 0.0
  %5290 = vmatprep.subr.mxu0 0.0
  %5291 = vmatpush1.msra.mxu0 0.0
  %5292 = vmatprep.subr.mxu0 0.0
  %5293 = vmatpush1.msra.mxu0 0.0
  %5294 = vmatprep.subr.mxu0 0.0
  %5295 = vmatpush1.msra.mxu0 %v157
  %5296 = vmatprep.subr.mxu0 0.0
  %5297 = vmatpush1.msra.mxu0 %v156
  %5298 = vmatprep.subr.mxu0 0.0
  %5299 = vmatpush1.msra.mxu0 %v155
  %5300 = vmatprep.subr.mxu0 0.0
  %5301 = vmatpush1.msra.mxu0 %v154
  %5302 = vmatprep.subr.mxu0 0.0
  %5303 = vmatpush2.msra.mxu0 0.0
  %5304 = vmatprep.subr.mxu0 0.0
  %5305 = vmatpush2.msra.mxu0 0.0
  %5306 = vmatprep.subr.mxu0 0.0
  %5307 = vmatpush2.msra.mxu0 0.0
  %5308 = vmatprep.subr.mxu0 0.0
  %5309 = vmatpush2.msra.mxu0 0.0
  %5310 = vmatprep.subr.mxu0 0.0
  %5311 = vmatpush2.msra.mxu0 0.0
  %5312 = vmatprep.subr.mxu0 0.0
  %5313 = vmatpush2.msra.mxu0 0.0
  %5314 = vmatprep.subr.mxu0 0.0
  %5315 = vmatpush2.msra.mxu0 0.0
  %5316 = vmatprep.subr.mxu0 0.0
  %5317 = vmatpush2.msra.mxu0 0.0
  %5318 = vmatprep.subr.mxu0 0.0
  %5319 = vmatpush2.msra.mxu0 0.0
  %5320 = vmatprep.subr.mxu0 0.0
  %5321 = vmatpush2.msra.mxu0 0.0
  %5322 = vmatprep.subr.mxu0 0.0
  %5323 = vmatpush2.msra.mxu0 0.0
  %5324 = vmatprep.subr.mxu0 0.0
  %5325 = vmatpush2.msra.mxu0 0.0
  %5326 = vmatprep.subr.mxu0 0.0
  %5327 = vmatpush2.msra.mxu0 0.0
  %5328 = vmatprep.subr.mxu0 0.0
  %5329 = vmatpush2.msra.mxu0 0.0
  %5330 = vmatprep.subr.mxu0 0.0
  %5331 = vmatpush2.msra.mxu0 0.0
  %5332 = vmatprep.subr.mxu0 0.0
  %5333 = vmatpush2.msra.mxu0 0.0
  %5334 = vmatprep.mubr.f32.mxu0 0.0
  %5335 = vmatmul.mubr.f32.gmra.mxu0 %v5268
  %v5336 = vpop.f32.mrf.mxu0
  %v5337 = vadd.f32 0.0, %v5336
  %v5338 = vpop.f32.mrf.mxu0
  %5339 = vdwg.mxu0
  %v5340 = vlaneseq
  %v5341 = vshrl.u32 %v5340, 7
  %v5342 = vsub.s32 3, %v5341
  %v5343 = vrot.slane %v4544, %v5342
  %v5344 = vsub.f32 %v4544, %v5343
  %5346 = vset.pattern.permute.xlu0 0
  %5347 = vperm.xlu0 %5346, %v5344
  %v5348 = vpop.permute.xlu0 %5347
  %v5350 = vmul.f32 %v5348, %v582
  %5351 = vset.pattern.permute.xlu0 1
  %5352 = vperm.xlu0 %5351, %v5344
  %v5353 = vpop.permute.xlu0 %5352
  %v5355 = vmul.f32 %v5353, %v591
  %v5356 = vadd.f32 %v5350, %v5355
  %v5357 = vadd.f32 %v5356, %v598
  %v5359 = vrot.slane %v5357, 3
  %v5360 = vsel %vm308, %v5359, 0
  %5362 = vmatprep.subr.mxu0 0.0
  %5363 = vmatpush1.msra.mxu0 0.0
  %5364 = vmatprep.subr.mxu0 0.0
  %5365 = vmatpush1.msra.mxu0 0.0
  %5366 = vmatprep.subr.mxu0 0.0
  %5367 = vmatpush1.msra.mxu0 0.0
  %5368 = vmatprep.subr.mxu0 0.0
  %5369 = vmatpush1.msra.mxu0 0.0
  %5370 = vmatprep.subr.mxu0 0.0
  %5371 = vmatpush1.msra.mxu0 0.0
  %5372 = vmatprep.subr.mxu0 0.0
  %5373 = vmatpush1.msra.mxu0 0.0
  %5374 = vmatprep.subr.mxu0 0.0
  %5375 = vmatpush1.msra.mxu0 0.0
  %5376 = vmatprep.subr.mxu0 0.0
  %5377 = vmatpush1.msra.mxu0 0.0
  %5378 = vmatprep.subr.mxu0 0.0
  %5379 = vmatpush1.msra.mxu0 0.0
  %5380 = vmatprep.subr.mxu0 0.0
  %5381 = vmatpush1.msra.mxu0 0.0
  %5382 = vmatprep.subr.mxu0 0.0
  %5383 = vmatpush1.msra.mxu0 0.0
  %5384 = vmatprep.subr.mxu0 0.0
  %5385 = vmatpush1.msra.mxu0 0.0
  %5386 = vmatprep.subr.mxu0 0.0
  %5387 = vmatpush1.msra.mxu0 0.0
  %5388 = vmatprep.subr.mxu0 0.0
  %5389 = vmatpush1.msra.mxu0 0.0
  %5390 = vmatprep.subr.mxu0 0.0
  %5391 = vmatpush1.msra.mxu0 %v153
  %5392 = vmatprep.subr.mxu0 0.0
  %5393 = vmatpush1.msra.mxu0 %v152
  %5394 = vmatprep.subr.mxu0 0.0
  %5395 = vmatpush2.msra.mxu0 0.0
  %5396 = vmatprep.subr.mxu0 0.0
  %5397 = vmatpush2.msra.mxu0 0.0
  %5398 = vmatprep.subr.mxu0 0.0
  %5399 = vmatpush2.msra.mxu0 0.0
  %5400 = vmatprep.subr.mxu0 0.0
  %5401 = vmatpush2.msra.mxu0 0.0
  %5402 = vmatprep.subr.mxu0 0.0
  %5403 = vmatpush2.msra.mxu0 0.0
  %5404 = vmatprep.subr.mxu0 0.0
  %5405 = vmatpush2.msra.mxu0 0.0
  %5406 = vmatprep.subr.mxu0 0.0
  %5407 = vmatpush2.msra.mxu0 0.0
  %5408 = vmatprep.subr.mxu0 0.0
  %5409 = vmatpush2.msra.mxu0 0.0
  %5410 = vmatprep.subr.mxu0 0.0
  %5411 = vmatpush2.msra.mxu0 0.0
  %5412 = vmatprep.subr.mxu0 0.0
  %5413 = vmatpush2.msra.mxu0 0.0
  %5414 = vmatprep.subr.mxu0 0.0
  %5415 = vmatpush2.msra.mxu0 0.0
  %5416 = vmatprep.subr.mxu0 0.0
  %5417 = vmatpush2.msra.mxu0 0.0
  %5418 = vmatprep.subr.mxu0 0.0
  %5419 = vmatpush2.msra.mxu0 0.0
  %5420 = vmatprep.subr.mxu0 0.0
  %5421 = vmatpush2.msra.mxu0 0.0
  %5422 = vmatprep.subr.mxu0 0.0
  %5423 = vmatpush2.msra.mxu0 0.0
  %5424 = vmatprep.subr.mxu0 0.0
  %5425 = vmatpush2.msra.mxu0 0.0
  %5426 = vmatprep.mubr.f32.mxu0 0.0
  %5427 = vmatmul.mubr.f32.gmra.mxu0 %v5360
  %v5428 = vpop.f32.mrf.mxu0
  %v5429 = vadd.f32 %v5337, %v5428
  %v5430 = vpop.f32.mrf.mxu0
  %5431 = vdwg.mxu0
  %v5432 = vadd.f32 %v5429, %v678
  %v5433 = vlaneseq
  %v5434 = vshrl.u32 %v5433, 7
  %v5435 = vsub.s32 4, %v5434
  %v5436 = vrot.slane %v4544, %v5435
  %v5437 = vsub.f32 %v4544, %v5436
  %5439 = vset.pattern.permute.xlu0 0
  %5440 = vperm.xlu0 %5439, %v5437
  %v5441 = vpop.permute.xlu0 %5440
  %v5443 = vmul.f32 %v5441, %v582
  %5444 = vset.pattern.permute.xlu0 1
  %5445 = vperm.xlu0 %5444, %v5437
  %v5446 = vpop.permute.xlu0 %5445
  %v5448 = vmul.f32 %v5446, %v591
  %v5449 = vadd.f32 %v5443, %v5448
  %v5450 = vadd.f32 %v5449, %v598
  %v5452 = vrot.slane %v5450, 3
  %v5453 = vsel %vm308, %v5452, 0
  %5455 = vmatprep.subr.mxu0 0.0
  %5456 = vmatpush1.msra.mxu0 0.0
  %5457 = vmatprep.subr.mxu0 0.0
  %5458 = vmatpush1.msra.mxu0 0.0
  %5459 = vmatprep.subr.mxu0 0.0
  %5460 = vmatpush1.msra.mxu0 0.0
  %5461 = vmatprep.subr.mxu0 0.0
  %5462 = vmatpush1.msra.mxu0 0.0
  %5463 = vmatprep.subr.mxu0 0.0
  %5464 = vmatpush1.msra.mxu0 0.0
  %5465 = vmatprep.subr.mxu0 0.0
  %5466 = vmatpush1.msra.mxu0 0.0
  %5467 = vmatprep.subr.mxu0 0.0
  %5468 = vmatpush1.msra.mxu0 0.0
  %5469 = vmatprep.subr.mxu0 0.0
  %5470 = vmatpush1.msra.mxu0 0.0
  %5471 = vmatprep.subr.mxu0 0.0
  %5472 = vmatpush1.msra.mxu0 0.0
  %5473 = vmatprep.subr.mxu0 0.0
  %5474 = vmatpush1.msra.mxu0 0.0
  %5475 = vmatprep.subr.mxu0 0.0
  %5476 = vmatpush1.msra.mxu0 0.0
  %5477 = vmatprep.subr.mxu0 0.0
  %5478 = vmatpush1.msra.mxu0 0.0
  %5479 = vmatprep.subr.mxu0 0.0
  %5480 = vmatpush1.msra.mxu0 0.0
  %5481 = vmatprep.subr.mxu0 0.0
  %5482 = vmatpush1.msra.mxu0 0.0
  %5483 = vmatprep.subr.mxu0 0.0
  %5484 = vmatpush1.msra.mxu0 %v153
  %5485 = vmatprep.subr.mxu0 0.0
  %5486 = vmatpush1.msra.mxu0 %v152
  %5487 = vmatprep.subr.mxu0 0.0
  %5488 = vmatpush2.msra.mxu0 0.0
  %5489 = vmatprep.subr.mxu0 0.0
  %5490 = vmatpush2.msra.mxu0 0.0
  %5491 = vmatprep.subr.mxu0 0.0
  %5492 = vmatpush2.msra.mxu0 0.0
  %5493 = vmatprep.subr.mxu0 0.0
  %5494 = vmatpush2.msra.mxu0 0.0
  %5495 = vmatprep.subr.mxu0 0.0
  %5496 = vmatpush2.msra.mxu0 0.0
  %5497 = vmatprep.subr.mxu0 0.0
  %5498 = vmatpush2.msra.mxu0 0.0
  %5499 = vmatprep.subr.mxu0 0.0
  %5500 = vmatpush2.msra.mxu0 0.0
  %5501 = vmatprep.subr.mxu0 0.0
  %5502 = vmatpush2.msra.mxu0 0.0
  %5503 = vmatprep.subr.mxu0 0.0
  %5504 = vmatpush2.msra.mxu0 0.0
  %5505 = vmatprep.subr.mxu0 0.0
  %5506 = vmatpush2.msra.mxu0 0.0
  %5507 = vmatprep.subr.mxu0 0.0
  %5508 = vmatpush2.msra.mxu0 0.0
  %5509 = vmatprep.subr.mxu0 0.0
  %5510 = vmatpush2.msra.mxu0 0.0
  %5511 = vmatprep.subr.mxu0 0.0
  %5512 = vmatpush2.msra.mxu0 0.0
  %5513 = vmatprep.subr.mxu0 0.0
  %5514 = vmatpush2.msra.mxu0 0.0
  %5515 = vmatprep.subr.mxu0 0.0
  %5516 = vmatpush2.msra.mxu0 0.0
  %5517 = vmatprep.subr.mxu0 0.0
  %5518 = vmatpush2.msra.mxu0 0.0
  %5519 = vmatprep.mubr.f32.mxu0 0.0
  %5520 = vmatmul.mubr.f32.gmra.mxu0 %v5453
  %v5521 = vpop.f32.mrf.mxu0
  %v5522 = vadd.f32 %v5337, %v5521
  %v5523 = vpop.f32.mrf.mxu0
  %5524 = vdwg.mxu0
  %v5525 = vadd.f32 %v5522, %v678
  %v5526 = vlaneseq
  %v5527 = vshrl.u32 %v5526, 7
  %v5528 = vsub.s32 5, %v5527
  %v5529 = vrot.slane %v4544, %v5528
  %v5530 = vsub.f32 %v4544, %v5529
  %5532 = vset.pattern.permute.xlu0 0
  %5533 = vperm.xlu0 %5532, %v5530
  %v5534 = vpop.permute.xlu0 %5533
  %v5536 = vmul.f32 %v5534, %v582
  %5537 = vset.pattern.permute.xlu0 1
  %5538 = vperm.xlu0 %5537, %v5530
  %v5539 = vpop.permute.xlu0 %5538
  %v5541 = vmul.f32 %v5539, %v591
  %v5542 = vadd.f32 %v5536, %v5541
  %v5543 = vadd.f32 %v5542, %v598
  %v5545 = vrot.slane %v5543, 3
  %v5546 = vsel %vm308, %v5545, 0
  %5548 = vmatprep.subr.mxu0 0.0
  %5549 = vmatpush1.msra.mxu0 0.0
  %5550 = vmatprep.subr.mxu0 0.0
  %5551 = vmatpush1.msra.mxu0 0.0
  %5552 = vmatprep.subr.mxu0 0.0
  %5553 = vmatpush1.msra.mxu0 0.0
  %5554 = vmatprep.subr.mxu0 0.0
  %5555 = vmatpush1.msra.mxu0 0.0
  %5556 = vmatprep.subr.mxu0 0.0
  %5557 = vmatpush1.msra.mxu0 0.0
  %5558 = vmatprep.subr.mxu0 0.0
  %5559 = vmatpush1.msra.mxu0 0.0
  %5560 = vmatprep.subr.mxu0 0.0
  %5561 = vmatpush1.msra.mxu0 0.0
  %5562 = vmatprep.subr.mxu0 0.0
  %5563 = vmatpush1.msra.mxu0 0.0
  %5564 = vmatprep.subr.mxu0 0.0
  %5565 = vmatpush1.msra.mxu0 0.0
  %5566 = vmatprep.subr.mxu0 0.0
  %5567 = vmatpush1.msra.mxu0 0.0
  %5568 = vmatprep.subr.mxu0 0.0
  %5569 = vmatpush1.msra.mxu0 0.0
  %5570 = vmatprep.subr.mxu0 0.0
  %5571 = vmatpush1.msra.mxu0 0.0
  %5572 = vmatprep.subr.mxu0 0.0
  %5573 = vmatpush1.msra.mxu0 0.0
  %5574 = vmatprep.subr.mxu0 0.0
  %5575 = vmatpush1.msra.mxu0 0.0
  %5576 = vmatprep.subr.mxu0 0.0
  %5577 = vmatpush1.msra.mxu0 %v153
  %5578 = vmatprep.subr.mxu0 0.0
  %5579 = vmatpush1.msra.mxu0 %v152
  %5580 = vmatprep.subr.mxu0 0.0
  %5581 = vmatpush2.msra.mxu0 0.0
  %5582 = vmatprep.subr.mxu0 0.0
  %5583 = vmatpush2.msra.mxu0 0.0
  %5584 = vmatprep.subr.mxu0 0.0
  %5585 = vmatpush2.msra.mxu0 0.0
  %5586 = vmatprep.subr.mxu0 0.0
  %5587 = vmatpush2.msra.mxu0 0.0
  %5588 = vmatprep.subr.mxu0 0.0
  %5589 = vmatpush2.msra.mxu0 0.0
  %5590 = vmatprep.subr.mxu0 0.0
  %5591 = vmatpush2.msra.mxu0 0.0
  %5592 = vmatprep.subr.mxu0 0.0
  %5593 = vmatpush2.msra.mxu0 0.0
  %5594 = vmatprep.subr.mxu0 0.0
  %5595 = vmatpush2.msra.mxu0 0.0
  %5596 = vmatprep.subr.mxu0 0.0
  %5597 = vmatpush2.msra.mxu0 0.0
  %5598 = vmatprep.subr.mxu0 0.0
  %5599 = vmatpush2.msra.mxu0 0.0
  %5600 = vmatprep.subr.mxu0 0.0
  %5601 = vmatpush2.msra.mxu0 0.0
  %5602 = vmatprep.subr.mxu0 0.0
  %5603 = vmatpush2.msra.mxu0 0.0
  %5604 = vmatprep.subr.mxu0 0.0
  %5605 = vmatpush2.msra.mxu0 0.0
  %5606 = vmatprep.subr.mxu0 0.0
  %5607 = vmatpush2.msra.mxu0 0.0
  %5608 = vmatprep.subr.mxu0 0.0
  %5609 = vmatpush2.msra.mxu0 0.0
  %5610 = vmatprep.subr.mxu0 0.0
  %5611 = vmatpush2.msra.mxu0 0.0
  %5612 = vmatprep.mubr.f32.mxu0 0.0
  %5613 = vmatmul.mubr.f32.gmra.mxu0 %v5546
  %v5614 = vpop.f32.mrf.mxu0
  %v5615 = vadd.f32 %v5337, %v5614
  %v5616 = vpop.f32.mrf.mxu0
  %5617 = vdwg.mxu0
  %v5618 = vadd.f32 %v5615, %v678
  %v5619 = vsel %vm865, %v5432, 0.0
  %v5620 = vrot.slane %v5619, 4
  %v5621 = vadd.f32 %v5619, %v5620
  %v5622 = vrot.slane %v5621, 2
  %v5623 = vadd.f32 %v5621, %v5622
  %v5624 = vrot.slane %v5623, 1
  %v5625 = vadd.f32 %v5623, %v5624
  %v5626 = vadd.f32 %v5625, 0.0
  %v5627 = vsel %vm865, %v5525, 0.0
  %v5628 = vrot.slane %v5627, 4
  %v5629 = vadd.f32 %v5627, %v5628
  %v5630 = vrot.slane %v5629, 2
  %v5631 = vadd.f32 %v5629, %v5630
  %v5632 = vrot.slane %v5631, 1
  %v5633 = vadd.f32 %v5631, %v5632
  %v5634 = vadd.f32 %v5626, %v5633
  %v5635 = vsel %vm865, %v5618, 0.0
  %v5636 = vrot.slane %v5635, 4
  %v5637 = vadd.f32 %v5635, %v5636
  %v5638 = vrot.slane %v5637, 2
  %v5639 = vadd.f32 %v5637, %v5638
  %v5640 = vrot.slane %v5639, 1
  %v5641 = vadd.f32 %v5639, %v5640
  %v5642 = vadd.f32 %v5634, %v5641
  %v5643 = vmul.f32 %v5642, %v890
  %v5644 = vsub.f32 %v5432, %v5643
  %v5645 = vmul.f32 %v5644, %v5644
  %v5646 = vsel %vm865, %v5645, 0.0
  %v5647 = vrot.slane %v5646, 4
  %v5648 = vadd.f32 %v5646, %v5647
  %v5649 = vrot.slane %v5648, 2
  %v5650 = vadd.f32 %v5648, %v5649
  %v5651 = vrot.slane %v5650, 1
  %v5652 = vadd.f32 %v5650, %v5651
  %v5653 = vadd.f32 %v5652, 0.0
  %v5654 = vsub.f32 %v5525, %v5643
  %v5655 = vmul.f32 %v5654, %v5654
  %v5656 = vsel %vm865, %v5655, 0.0
  %v5657 = vrot.slane %v5656, 4
  %v5658 = vadd.f32 %v5656, %v5657
  %v5659 = vrot.slane %v5658, 2
  %v5660 = vadd.f32 %v5658, %v5659
  %v5661 = vrot.slane %v5660, 1
  %v5662 = vadd.f32 %v5660, %v5661
  %v5663 = vadd.f32 %v5653, %v5662
  %v5664 = vsub.f32 %v5618, %v5643
  %v5665 = vmul.f32 %v5664, %v5664
  %v5666 = vsel %vm865, %v5665, 0.0
  %v5667 = vrot.slane %v5666, 4
  %v5668 = vadd.f32 %v5666, %v5667
  %v5669 = vrot.slane %v5668, 2
  %v5670 = vadd.f32 %v5668, %v5669
  %v5671 = vrot.slane %v5670, 1
  %v5672 = vadd.f32 %v5670, %v5671
  %v5673 = vadd.f32 %v5663, %v5672
  %v5674 = vmul.f32 %v5673, %v890
  %v5675 = vadd.f32 %v5674, 1e-05
  %v5676 = vrsqrt.pop %v5675
  %v5677 = vmul.f32 %v5644, %v5676
  %v5678 = vmul.f32 %v5677, %v930
  %v5679 = vadd.f32 %v5678, %v937
  %v5680 = vmax.f32 %v5679, 0.0
  %5681 = vmatprep.subr.mxu0 0.0
  %5682 = vmatpush1.msra.mxu0 %v176
  %5683 = vmatprep.subr.mxu0 0.0
  %5684 = vmatpush1.msra.mxu0 %v175
  %5685 = vmatprep.subr.mxu0 0.0
  %5686 = vmatpush1.msra.mxu0 %v174
  %5687 = vmatprep.subr.mxu0 0.0
  %5688 = vmatpush1.msra.mxu0 %v173
  %5689 = vmatprep.subr.mxu0 0.0
  %5690 = vmatpush1.msra.mxu0 %v172
  %5691 = vmatprep.subr.mxu0 0.0
  %5692 = vmatpush1.msra.mxu0 %v171
  %5693 = vmatprep.subr.mxu0 0.0
  %5694 = vmatpush1.msra.mxu0 %v170
  %5695 = vmatprep.subr.mxu0 0.0
  %5696 = vmatpush1.msra.mxu0 %v169
  %5697 = vmatprep.subr.mxu0 0.0
  %5698 = vmatpush1.msra.mxu0 %v168
  %5699 = vmatprep.subr.mxu0 0.0
  %5700 = vmatpush1.msra.mxu0 %v167
  %5701 = vmatprep.subr.mxu0 0.0
  %5702 = vmatpush1.msra.mxu0 %v166
  %5703 = vmatprep.subr.mxu0 0.0
  %5704 = vmatpush1.msra.mxu0 %v165
  %5705 = vmatprep.subr.mxu0 0.0
  %5706 = vmatpush1.msra.mxu0 %v164
  %5707 = vmatprep.subr.mxu0 0.0
  %5708 = vmatpush1.msra.mxu0 %v163
  %5709 = vmatprep.subr.mxu0 0.0
  %5710 = vmatpush1.msra.mxu0 %v162
  %5711 = vmatprep.subr.mxu0 0.0
  %5712 = vmatpush1.msra.mxu0 %v161
  %5713 = vmatprep.subr.mxu0 0.0
  %5714 = vmatpush2.msra.mxu0 0.0
  %5715 = vmatprep.subr.mxu0 0.0
  %5716 = vmatpush2.msra.mxu0 0.0
  %5717 = vmatprep.subr.mxu0 0.0
  %5718 = vmatpush2.msra.mxu0 0.0
  %5719 = vmatprep.subr.mxu0 0.0
  %5720 = vmatpush2.msra.mxu0 0.0
  %5721 = vmatprep.subr.mxu0 0.0
  %5722 = vmatpush2.msra.mxu0 0.0
  %5723 = vmatprep.subr.mxu0 0.0
  %5724 = vmatpush2.msra.mxu0 0.0
  %5725 = vmatprep.subr.mxu0 0.0
  %5726 = vmatpush2.msra.mxu0 0.0
  %5727 = vmatprep.subr.mxu0 0.0
  %5728 = vmatpush2.msra.mxu0 0.0
  %5729 = vmatprep.subr.mxu0 0.0
  %5730 = vmatpush2.msra.mxu0 0.0
  %5731 = vmatprep.subr.mxu0 0.0
  %5732 = vmatpush2.msra.mxu0 0.0
  %5733 = vmatprep.subr.mxu0 0.0
  %5734 = vmatpush2.msra.mxu0 0.0
  %5735 = vmatprep.subr.mxu0 0.0
  %5736 = vmatpush2.msra.mxu0 0.0
  %5737 = vmatprep.subr.mxu0 0.0
  %5738 = vmatpush2.msra.mxu0 0.0
  %5739 = vmatprep.subr.mxu0 0.0
  %5740 = vmatpush2.msra.mxu0 0.0
  %5741 = vmatprep.subr.mxu0 0.0
  %5742 = vmatpush2.msra.mxu0 0.0
  %5743 = vmatprep.subr.mxu0 0.0
  %5744 = vmatpush2.msra.mxu0 0.0
  %5745 = vmatprep.mubr.f32.mxu0 0.0
  %5746 = vmatmul.mubr.f32.gmra.mxu0 %v5680
  %v5747 = vpop.f32.mrf.mxu0
  %v5748 = vadd.f32 %v945, %v5747
  %v5749 = vpop.f32.mrf.mxu0
  %5750 = vdwg.mxu0
  %v5751 = vmul.f32 %v5654, %v5676
  %v5752 = vmul.f32 %v5751, %v930
  %v5753 = vadd.f32 %v5752, %v937
  %v5754 = vmax.f32 %v5753, 0.0
  %5755 = vmatprep.subr.mxu0 0.0
  %5756 = vmatpush1.msra.mxu0 %v176
  %5757 = vmatprep.subr.mxu0 0.0
  %5758 = vmatpush1.msra.mxu0 %v175
  %5759 = vmatprep.subr.mxu0 0.0
  %5760 = vmatpush1.msra.mxu0 %v174
  %5761 = vmatprep.subr.mxu0 0.0
  %5762 = vmatpush1.msra.mxu0 %v173
  %5763 = vmatprep.subr.mxu0 0.0
  %5764 = vmatpush1.msra.mxu0 %v172
  %5765 = vmatprep.subr.mxu0 0.0
  %5766 = vmatpush1.msra.mxu0 %v171
  %5767 = vmatprep.subr.mxu0 0.0
  %5768 = vmatpush1.msra.mxu0 %v170
  %5769 = vmatprep.subr.mxu0 0.0
  %5770 = vmatpush1.msra.mxu0 %v169
  %5771 = vmatprep.subr.mxu0 0.0
  %5772 = vmatpush1.msra.mxu0 %v168
  %5773 = vmatprep.subr.mxu0 0.0
  %5774 = vmatpush1.msra.mxu0 %v167
  %5775 = vmatprep.subr.mxu0 0.0
  %5776 = vmatpush1.msra.mxu0 %v166
  %5777 = vmatprep.subr.mxu0 0.0
  %5778 = vmatpush1.msra.mxu0 %v165
  %5779 = vmatprep.subr.mxu0 0.0
  %5780 = vmatpush1.msra.mxu0 %v164
  %5781 = vmatprep.subr.mxu0 0.0
  %5782 = vmatpush1.msra.mxu0 %v163
  %5783 = vmatprep.subr.mxu0 0.0
  %5784 = vmatpush1.msra.mxu0 %v162
  %5785 = vmatprep.subr.mxu0 0.0
  %5786 = vmatpush1.msra.mxu0 %v161
  %5787 = vmatprep.subr.mxu0 0.0
  %5788 = vmatpush2.msra.mxu0 0.0
  %5789 = vmatprep.subr.mxu0 0.0
  %5790 = vmatpush2.msra.mxu0 0.0
  %5791 = vmatprep.subr.mxu0 0.0
  %5792 = vmatpush2.msra.mxu0 0.0
  %5793 = vmatprep.subr.mxu0 0.0
  %5794 = vmatpush2.msra.mxu0 0.0
  %5795 = vmatprep.subr.mxu0 0.0
  %5796 = vmatpush2.msra.mxu0 0.0
  %5797 = vmatprep.subr.mxu0 0.0
  %5798 = vmatpush2.msra.mxu0 0.0
  %5799 = vmatprep.subr.mxu0 0.0
  %5800 = vmatpush2.msra.mxu0 0.0
  %5801 = vmatprep.subr.mxu0 0.0
  %5802 = vmatpush2.msra.mxu0 0.0
  %5803 = vmatprep.subr.mxu0 0.0
  %5804 = vmatpush2.msra.mxu0 0.0
  %5805 = vmatprep.subr.mxu0 0.0
  %5806 = vmatpush2.msra.mxu0 0.0
  %5807 = vmatprep.subr.mxu0 0.0
  %5808 = vmatpush2.msra.mxu0 0.0
  %5809 = vmatprep.subr.mxu0 0.0
  %5810 = vmatpush2.msra.mxu0 0.0
  %5811 = vmatprep.subr.mxu0 0.0
  %5812 = vmatpush2.msra.mxu0 0.0
  %5813 = vmatprep.subr.mxu0 0.0
  %5814 = vmatpush2.msra.mxu0 0.0
  %5815 = vmatprep.subr.mxu0 0.0
  %5816 = vmatpush2.msra.mxu0 0.0
  %5817 = vmatprep.subr.mxu0 0.0
  %5818 = vmatpush2.msra.mxu0 0.0
  %5819 = vmatprep.mubr.f32.mxu0 0.0
  %5820 = vmatmul.mubr.f32.gmra.mxu0 %v5754
  %v5821 = vpop.f32.mrf.mxu0
  %v5822 = vadd.f32 %v945, %v5821
  %v5823 = vpop.f32.mrf.mxu0
  %5824 = vdwg.mxu0
  %v5825 = vmul.f32 %v5664, %v5676
  %v5826 = vmul.f32 %v5825, %v930
  %v5827 = vadd.f32 %v5826, %v937
  %v5828 = vmax.f32 %v5827, 0.0
  %5829 = vmatprep.subr.mxu0 0.0
  %5830 = vmatpush1.msra.mxu0 %v176
  %5831 = vmatprep.subr.mxu0 0.0
  %5832 = vmatpush1.msra.mxu0 %v175
  %5833 = vmatprep.subr.mxu0 0.0
  %5834 = vmatpush1.msra.mxu0 %v174
  %5835 = vmatprep.subr.mxu0 0.0
  %5836 = vmatpush1.msra.mxu0 %v173
  %5837 = vmatprep.subr.mxu0 0.0
  %5838 = vmatpush1.msra.mxu0 %v172
  %5839 = vmatprep.subr.mxu0 0.0
  %5840 = vmatpush1.msra.mxu0 %v171
  %5841 = vmatprep.subr.mxu0 0.0
  %5842 = vmatpush1.msra.mxu0 %v170
  %5843 = vmatprep.subr.mxu0 0.0
  %5844 = vmatpush1.msra.mxu0 %v169
  %5845 = vmatprep.subr.mxu0 0.0
  %5846 = vmatpush1.msra.mxu0 %v168
  %5847 = vmatprep.subr.mxu0 0.0
  %5848 = vmatpush1.msra.mxu0 %v167
  %5849 = vmatprep.subr.mxu0 0.0
  %5850 = vmatpush1.msra.mxu0 %v166
  %5851 = vmatprep.subr.mxu0 0.0
  %5852 = vmatpush1.msra.mxu0 %v165
  %5853 = vmatprep.subr.mxu0 0.0
  %5854 = vmatpush1.msra.mxu0 %v164
  %5855 = vmatprep.subr.mxu0 0.0
  %5856 = vmatpush1.msra.mxu0 %v163
  %5857 = vmatprep.subr.mxu0 0.0
  %5858 = vmatpush1.msra.mxu0 %v162
  %5859 = vmatprep.subr.mxu0 0.0
  %5860 = vmatpush1.msra.mxu0 %v161
  %5861 = vmatprep.subr.mxu0 0.0
  %5862 = vmatpush2.msra.mxu0 0.0
  %5863 = vmatprep.subr.mxu0 0.0
  %5864 = vmatpush2.msra.mxu0 0.0
  %5865 = vmatprep.subr.mxu0 0.0
  %5866 = vmatpush2.msra.mxu0 0.0
  %5867 = vmatprep.subr.mxu0 0.0
  %5868 = vmatpush2.msra.mxu0 0.0
  %5869 = vmatprep.subr.mxu0 0.0
  %5870 = vmatpush2.msra.mxu0 0.0
  %5871 = vmatprep.subr.mxu0 0.0
  %5872 = vmatpush2.msra.mxu0 0.0
  %5873 = vmatprep.subr.mxu0 0.0
  %5874 = vmatpush2.msra.mxu0 0.0
  %5875 = vmatprep.subr.mxu0 0.0
  %5876 = vmatpush2.msra.mxu0 0.0
  %5877 = vmatprep.subr.mxu0 0.0
  %5878 = vmatpush2.msra.mxu0 0.0
  %5879 = vmatprep.subr.mxu0 0.0
  %5880 = vmatpush2.msra.mxu0 0.0
  %5881 = vmatprep.subr.mxu0 0.0
  %5882 = vmatpush2.msra.mxu0 0.0
  %5883 = vmatprep.subr.mxu0 0.0
  %5884 = vmatpush2.msra.mxu0 0.0
  %5885 = vmatprep.subr.mxu0 0.0
  %5886 = vmatpush2.msra.mxu0 0.0
  %5887 = vmatprep.subr.mxu0 0.0
  %5888 = vmatpush2.msra.mxu0 0.0
  %5889 = vmatprep.subr.mxu0 0.0
  %5890 = vmatpush2.msra.mxu0 0.0
  %5891 = vmatprep.subr.mxu0 0.0
  %5892 = vmatpush2.msra.mxu0 0.0
  %5893 = vmatprep.mubr.f32.mxu0 0.0
  %5894 = vmatmul.mubr.f32.gmra.mxu0 %v5828
  %v5895 = vpop.f32.mrf.mxu0
  %v5896 = vadd.f32 %v945, %v5895
  %v5897 = vpop.f32.mrf.mxu0
  %5898 = vdwg.mxu0
  %v5899 = vsel %vm1165, %v5748, 0.0
  %v5900 = vrot.slane %v5899, 4
  %v5901 = vadd.f32 %v5899, %v5900
  %v5902 = vrot.slane %v5901, 2
  %v5903 = vadd.f32 %v5901, %v5902
  %v5904 = vrot.slane %v5903, 1
  %v5905 = vadd.f32 %v5903, %v5904
  %v5906 = vadd.f32 %v5905, 0.0
  %v5907 = vsel %vm1165, %v5822, 0.0
  %v5908 = vrot.slane %v5907, 4
  %v5909 = vadd.f32 %v5907, %v5908
  %v5910 = vrot.slane %v5909, 2
  %v5911 = vadd.f32 %v5909, %v5910
  %v5912 = vrot.slane %v5911, 1
  %v5913 = vadd.f32 %v5911, %v5912
  %v5914 = vadd.f32 %v5906, %v5913
  %v5915 = vsel %vm1165, %v5896, 0.0
  %v5916 = vrot.slane %v5915, 4
  %v5917 = vadd.f32 %v5915, %v5916
  %v5918 = vrot.slane %v5917, 2
  %v5919 = vadd.f32 %v5917, %v5918
  %v5920 = vrot.slane %v5919, 1
  %v5921 = vadd.f32 %v5919, %v5920
  %v5922 = vadd.f32 %v5914, %v5921
  %v5923 = vmul.f32 %v5922, %v890
  %v5924 = vsub.f32 %v5748, %v5923
  %v5925 = vmul.f32 %v5924, %v5924
  %v5926 = vsel %vm1165, %v5925, 0.0
  %v5927 = vrot.slane %v5926, 4
  %v5928 = vadd.f32 %v5926, %v5927
  %v5929 = vrot.slane %v5928, 2
  %v5930 = vadd.f32 %v5928, %v5929
  %v5931 = vrot.slane %v5930, 1
  %v5932 = vadd.f32 %v5930, %v5931
  %v5933 = vadd.f32 %v5932, 0.0
  %v5934 = vsub.f32 %v5822, %v5923
  %v5935 = vmul.f32 %v5934, %v5934
  %v5936 = vsel %vm1165, %v5935, 0.0
  %v5937 = vrot.slane %v5936, 4
  %v5938 = vadd.f32 %v5936, %v5937
  %v5939 = vrot.slane %v5938, 2
  %v5940 = vadd.f32 %v5938, %v5939
  %v5941 = vrot.slane %v5940, 1
  %v5942 = vadd.f32 %v5940, %v5941
  %v5943 = vadd.f32 %v5933, %v5942
  %v5944 = vsub.f32 %v5896, %v5923
  %v5945 = vmul.f32 %v5944, %v5944
  %v5946 = vsel %vm1165, %v5945, 0.0
  %v5947 = vrot.slane %v5946, 4
  %v5948 = vadd.f32 %v5946, %v5947
  %v5949 = vrot.slane %v5948, 2
  %v5950 = vadd.f32 %v5948, %v5949
  %v5951 = vrot.slane %v5950, 1
  %v5952 = vadd.f32 %v5950, %v5951
  %v5953 = vadd.f32 %v5943, %v5952
  %v5954 = vmul.f32 %v5953, %v890
  %v5955 = vadd.f32 %v5954, 1e-05
  %v5956 = vrsqrt.pop %v5955
  %v5957 = vmul.f32 %v5924, %v5956
  %v5958 = vmul.f32 %v5957, %v1229
  %v5959 = vadd.f32 %v5958, %v1236
  %v5960 = vmax.f32 %v5959, 0.0
  %v5961 = vsel %vm1165, %v5960, -inf
  %v5962 = vrot.slane %v5961, 4
  %v5963 = vmax.f32 %v5961, %v5962
  %v5964 = vrot.slane %v5963, 2
  %v5965 = vmax.f32 %v5963, %v5964
  %v5966 = vrot.slane %v5965, 1
  %v5967 = vmax.f32 %v5965, %v5966
  %5968 = vst.msk [vmem:[#allocation2 + $0x3] sm:$0x1] %vm1247, %v5967
  %v5969 = vmul.f32 %v5934, %v5956
  %v5970 = vmul.f32 %v5969, %v1229
  %v5971 = vadd.f32 %v5970, %v1236
  %v5972 = vmax.f32 %v5971, 0.0
  %v5973 = vsel %vm1165, %v5972, -inf
  %v5974 = vrot.slane %v5973, 4
  %v5975 = vmax.f32 %v5973, %v5974
  %v5976 = vrot.slane %v5975, 2
  %v5977 = vmax.f32 %v5975, %v5976
  %v5978 = vrot.slane %v5977, 1
  %v5979 = vmax.f32 %v5977, %v5978
  %5980 = vst.msk [vmem:[#allocation2 + $0x4] sm:$0x1] %vm1247, %v5979
  %v5981 = vmul.f32 %v5944, %v5956
  %v5982 = vmul.f32 %v5981, %v1229
  %v5983 = vadd.f32 %v5982, %v1236
  %v5984 = vmax.f32 %v5983, 0.0
  %v5985 = vsel %vm1165, %v5984, -inf
  %v5986 = vrot.slane %v5985, 4
  %v5987 = vmax.f32 %v5985, %v5986
  %v5988 = vrot.slane %v5987, 2
  %v5989 = vmax.f32 %v5987, %v5988
  %v5990 = vrot.slane %v5989, 1
  %v5991 = vmax.f32 %v5989, %v5990
  %5992 = vst.msk [vmem:[#allocation2 + $0x5] sm:$0x1] %vm1247, %v5991
  %v5993 = vld [vmem:[#allocation2] sm:$0x3f]
  %v5995 = vsel %vm2002, %v5993, 0
  %5997 = vmatprep.subr.mxu0 0.0
  %5998 = vmatpush1.msra.mxu0 0.0
  %5999 = vmatprep.subr.mxu0 0.0
  %6000 = vmatpush1.msra.mxu0 0.0
  %6001 = vmatprep.subr.mxu0 0.0
  %6002 = vmatpush1.msra.mxu0 0.0
  %6003 = vmatprep.subr.mxu0 0.0
  %6004 = vmatpush1.msra.mxu0 0.0
  %6005 = vmatprep.subr.mxu0 0.0
  %6006 = vmatpush1.msra.mxu0 0.0
  %6007 = vmatprep.subr.mxu0 0.0
  %6008 = vmatpush1.msra.mxu0 0.0
  %6009 = vmatprep.subr.mxu0 0.0
  %6010 = vmatpush1.msra.mxu0 0.0
  %6011 = vmatprep.subr.mxu0 0.0
  %6012 = vmatpush1.msra.mxu0 0.0
  %6013 = vmatprep.subr.mxu0 0.0
  %6014 = vmatpush1.msra.mxu0 %v191
  %6015 = vmatprep.subr.mxu0 0.0
  %6016 = vmatpush1.msra.mxu0 %v190
  %6017 = vmatprep.subr.mxu0 0.0
  %6018 = vmatpush1.msra.mxu0 %v189
  %6019 = vmatprep.subr.mxu0 0.0
  %6020 = vmatpush1.msra.mxu0 %v188
  %6021 = vmatprep.subr.mxu0 0.0
  %6022 = vmatpush1.msra.mxu0 %v187
  %6023 = vmatprep.subr.mxu0 0.0
  %6024 = vmatpush1.msra.mxu0 %v186
  %6025 = vmatprep.subr.mxu0 0.0
  %6026 = vmatpush1.msra.mxu0 %v185
  %6027 = vmatprep.subr.mxu0 0.0
  %6028 = vmatpush1.msra.mxu0 %v184
  %6029 = vmatprep.subr.mxu0 0.0
  %6030 = vmatpush2.msra.mxu0 0.0
  %6031 = vmatprep.subr.mxu0 0.0
  %6032 = vmatpush2.msra.mxu0 0.0
  %6033 = vmatprep.subr.mxu0 0.0
  %6034 = vmatpush2.msra.mxu0 0.0
  %6035 = vmatprep.subr.mxu0 0.0
  %6036 = vmatpush2.msra.mxu0 0.0
  %6037 = vmatprep.subr.mxu0 0.0
  %6038 = vmatpush2.msra.mxu0 0.0
  %6039 = vmatprep.subr.mxu0 0.0
  %6040 = vmatpush2.msra.mxu0 0.0
  %6041 = vmatprep.subr.mxu0 0.0
  %6042 = vmatpush2.msra.mxu0 0.0
  %6043 = vmatprep.subr.mxu0 0.0
  %6044 = vmatpush2.msra.mxu0 0.0
  %6045 = vmatprep.subr.mxu0 0.0
  %6046 = vmatpush2.msra.mxu0 0.0
  %6047 = vmatprep.subr.mxu0 0.0
  %6048 = vmatpush2.msra.mxu0 0.0
  %6049 = vmatprep.subr.mxu0 0.0
  %6050 = vmatpush2.msra.mxu0 0.0
  %6051 = vmatprep.subr.mxu0 0.0
  %6052 = vmatpush2.msra.mxu0 0.0
  %6053 = vmatprep.subr.mxu0 0.0
  %6054 = vmatpush2.msra.mxu0 0.0
  %6055 = vmatprep.subr.mxu0 0.0
  %6056 = vmatpush2.msra.mxu0 0.0
  %6057 = vmatprep.subr.mxu0 0.0
  %6058 = vmatpush2.msra.mxu0 0.0
  %6059 = vmatprep.subr.mxu0 0.0
  %6060 = vmatpush2.msra.mxu0 0.0
  %6061 = vmatprep.mubr.f32.mxu0 0.0
  %6062 = vmatmul.mubr.f32.gmra.mxu0 %v5995
  %v6063 = vpop.f32.mrf.mxu0
  %v6064 = vadd.f32 0.0, %v6063
  %v6065 = vpop.f32.mrf.mxu0
  %6066 = vdwg.mxu0
  %6067 = vmatprep.subr.mxu0 0.0
  %6068 = vmatpush1.msra.mxu0 0.0
  %6069 = vmatprep.subr.mxu0 0.0
  %6070 = vmatpush1.msra.mxu0 0.0
  %6071 = vmatprep.subr.mxu0 0.0
  %6072 = vmatpush1.msra.mxu0 0.0
  %6073 = vmatprep.subr.mxu0 0.0
  %6074 = vmatpush1.msra.mxu0 0.0
  %6075 = vmatprep.subr.mxu0 0.0
  %6076 = vmatpush1.msra.mxu0 0.0
  %6077 = vmatprep.subr.mxu0 0.0
  %6078 = vmatpush1.msra.mxu0 0.0
  %6079 = vmatprep.subr.mxu0 0.0
  %6080 = vmatpush1.msra.mxu0 0.0
  %6081 = vmatprep.subr.mxu0 0.0
  %6082 = vmatpush1.msra.mxu0 0.0
  %6083 = vmatprep.subr.mxu0 0.0
  %6084 = vmatpush1.msra.mxu0 0.0
  %6085 = vmatprep.subr.mxu0 0.0
  %6086 = vmatpush1.msra.mxu0 0.0
  %6087 = vmatprep.subr.mxu0 0.0
  %6088 = vmatpush1.msra.mxu0 0.0
  %6089 = vmatprep.subr.mxu0 0.0
  %6090 = vmatpush1.msra.mxu0 0.0
  %6091 = vmatprep.subr.mxu0 0.0
  %6092 = vmatpush1.msra.mxu0 %v183
  %6093 = vmatprep.subr.mxu0 0.0
  %6094 = vmatpush1.msra.mxu0 %v182
  %6095 = vmatprep.subr.mxu0 0.0
  %6096 = vmatpush1.msra.mxu0 %v181
  %6097 = vmatprep.subr.mxu0 0.0
  %6098 = vmatpush1.msra.mxu0 %v180
  %6099 = vmatprep.subr.mxu0 0.0
  %6100 = vmatpush2.msra.mxu0 0.0
  %6101 = vmatprep.subr.mxu0 0.0
  %6102 = vmatpush2.msra.mxu0 0.0
  %6103 = vmatprep.subr.mxu0 0.0
  %6104 = vmatpush2.msra.mxu0 0.0
  %6105 = vmatprep.subr.mxu0 0.0
  %6106 = vmatpush2.msra.mxu0 0.0
  %6107 = vmatprep.subr.mxu0 0.0
  %6108 = vmatpush2.msra.mxu0 0.0
  %6109 = vmatprep.subr.mxu0 0.0
  %6110 = vmatpush2.msra.mxu0 0.0
  %6111 = vmatprep.subr.mxu0 0.0
  %6112 = vmatpush2.msra.mxu0 0.0
  %6113 = vmatprep.subr.mxu0 0.0
  %6114 = vmatpush2.msra.mxu0 0.0
  %6115 = vmatprep.subr.mxu0 0.0
  %6116 = vmatpush2.msra.mxu0 0.0
  %6117 = vmatprep.subr.mxu0 0.0
  %6118 = vmatpush2.msra.mxu0 0.0
  %6119 = vmatprep.subr.mxu0 0.0
  %6120 = vmatpush2.msra.mxu0 0.0
  %6121 = vmatprep.subr.mxu0 0.0
  %6122 = vmatpush2.msra.mxu0 0.0
  %6123 = vmatprep.subr.mxu0 0.0
  %6124 = vmatpush2.msra.mxu0 0.0
  %6125 = vmatprep.subr.mxu0 0.0
  %6126 = vmatpush2.msra.mxu0 0.0
  %6127 = vmatprep.subr.mxu0 0.0
  %6128 = vmatpush2.msra.mxu0 0.0
  %6129 = vmatprep.subr.mxu0 0.0
  %6130 = vmatpush2.msra.mxu0 0.0
  %6131 = vmatprep.mubr.f32.mxu0 0.0
  %6132 = vmatmul.mubr.f32.gmra.mxu0 %v4472
  %v6133 = vpop.f32.mrf.mxu0
  %v6134 = vadd.f32 %v6064, %v6133
  %v6135 = vpop.f32.mrf.mxu0
  %6136 = vdwg.mxu0
  %v6137 = vadd.f32 %v6134, %v2150
  %v6138 = vsel %vm2153, %v6137, 0.0
  %v6139 = vrot.slane %v6138, 4
  %v6140 = vadd.f32 %v6138, %v6139
  %v6141 = vrot.slane %v6140, 2
  %v6142 = vadd.f32 %v6140, %v6141
  %v6143 = vrot.slane %v6142, 1
  %v6144 = vadd.f32 %v6142, %v6143
  %v6145 = vmul.f32 %v6144, %v2161
  %v6146 = vsub.f32 %v6137, %v6145
  %v6147 = vmul.f32 %v6146, %v6146
  %v6148 = vsel %vm2153, %v6147, 0.0
  %v6149 = vrot.slane %v6148, 4
  %v6150 = vadd.f32 %v6148, %v6149
  %v6151 = vrot.slane %v6150, 2
  %v6152 = vadd.f32 %v6150, %v6151
  %v6153 = vrot.slane %v6152, 1
  %v6154 = vadd.f32 %v6152, %v6153
  %v6155 = vmul.f32 %v6154, %v2161
  %v6156 = vadd.f32 %v6155, 1e-05
  %v6157 = vrsqrt.pop %v6156
  %v6158 = vmul.f32 %v6146, %v6157
  %v6159 = vmul.f32 %v6158, %v2180
  %v6160 = vadd.f32 %v6159, %v2187
  %v6161 = vmax.f32 %v6160, 0.0
  %v6163 = vsel %vm2002, %v6161, 0
  %6165 = vmatprep.subr.mxu0 0.0
  %6166 = vmatpush1.msra.mxu0 0.0
  %6167 = vmatprep.subr.mxu0 0.0
  %6168 = vmatpush1.msra.mxu0 0.0
  %6169 = vmatprep.subr.mxu0 0.0
  %6170 = vmatpush1.msra.mxu0 0.0
  %6171 = vmatprep.subr.mxu0 0.0
  %6172 = vmatpush1.msra.mxu0 0.0
  %6173 = vmatprep.subr.mxu0 0.0
  %6174 = vmatpush1.msra.mxu0 0.0
  %6175 = vmatprep.subr.mxu0 0.0
  %6176 = vmatpush1.msra.mxu0 0.0
  %6177 = vmatprep.subr.mxu0 0.0
  %6178 = vmatpush1.msra.mxu0 0.0
  %6179 = vmatprep.subr.mxu0 0.0
  %6180 = vmatpush1.msra.mxu0 0.0
  %6181 = vmatprep.subr.mxu0 0.0
  %6182 = vmatpush1.msra.mxu0 %v202
  %6183 = vmatprep.subr.mxu0 0.0
  %6184 = vmatpush1.msra.mxu0 %v201
  %6185 = vmatprep.subr.mxu0 0.0
  %6186 = vmatpush1.msra.mxu0 %v200
  %6187 = vmatprep.subr.mxu0 0.0
  %6188 = vmatpush1.msra.mxu0 %v199
  %6189 = vmatprep.subr.mxu0 0.0
  %6190 = vmatpush1.msra.mxu0 %v198
  %6191 = vmatprep.subr.mxu0 0.0
  %6192 = vmatpush1.msra.mxu0 %v197
  %6193 = vmatprep.subr.mxu0 0.0
  %6194 = vmatpush1.msra.mxu0 %v196
  %6195 = vmatprep.subr.mxu0 0.0
  %6196 = vmatpush1.msra.mxu0 %v195
  %6197 = vmatprep.subr.mxu0 0.0
  %6198 = vmatpush2.msra.mxu0 0.0
  %6199 = vmatprep.subr.mxu0 0.0
  %6200 = vmatpush2.msra.mxu0 0.0
  %6201 = vmatprep.subr.mxu0 0.0
  %6202 = vmatpush2.msra.mxu0 0.0
  %6203 = vmatprep.subr.mxu0 0.0
  %6204 = vmatpush2.msra.mxu0 0.0
  %6205 = vmatprep.subr.mxu0 0.0
  %6206 = vmatpush2.msra.mxu0 0.0
  %6207 = vmatprep.subr.mxu0 0.0
  %6208 = vmatpush2.msra.mxu0 0.0
  %6209 = vmatprep.subr.mxu0 0.0
  %6210 = vmatpush2.msra.mxu0 0.0
  %6211 = vmatprep.subr.mxu0 0.0
  %6212 = vmatpush2.msra.mxu0 0.0
  %6213 = vmatprep.subr.mxu0 0.0
  %6214 = vmatpush2.msra.mxu0 0.0
  %6215 = vmatprep.subr.mxu0 0.0
  %6216 = vmatpush2.msra.mxu0 0.0
  %6217 = vmatprep.subr.mxu0 0.0
  %6218 = vmatpush2.msra.mxu0 0.0
  %6219 = vmatprep.subr.mxu0 0.0
  %6220 = vmatpush2.msra.mxu0 0.0
  %6221 = vmatprep.subr.mxu0 0.0
  %6222 = vmatpush2.msra.mxu0 0.0
  %6223 = vmatprep.subr.mxu0 0.0
  %6224 = vmatpush2.msra.mxu0 0.0
  %6225 = vmatprep.subr.mxu0 0.0
  %6226 = vmatpush2.msra.mxu0 0.0
  %6227 = vmatprep.subr.mxu0 0.0
  %6228 = vmatpush2.msra.mxu0 0.0
  %6229 = vmatprep.mubr.f32.mxu0 0.0
  %6230 = vmatmul.mubr.f32.gmra.mxu0 %v6163
  %v6231 = vpop.f32.mrf.mxu0
  %v6232 = vadd.f32 %v2195, %v6231
  %v6233 = vpop.f32.mrf.mxu0
  %6234 = vdwg.mxu0
  %v6235 = vsel %vm2270, %v6232, 0.0
  %v6236 = vrot.slane %v6235, 4
  %v6237 = vadd.f32 %v6235, %v6236
  %v6238 = vrot.slane %v6237, 2
  %v6239 = vadd.f32 %v6237, %v6238
  %v6240 = vrot.slane %v6239, 1
  %v6241 = vadd.f32 %v6239, %v6240
  %v6242 = vmul.f32 %v6241, %v2161
  %v6243 = vsub.f32 %v6232, %v6242
  %v6244 = vmul.f32 %v6243, %v6243
  %v6245 = vsel %vm2270, %v6244, 0.0
  %v6246 = vrot.slane %v6245, 4
  %v6247 = vadd.f32 %v6245, %v6246
  %v6248 = vrot.slane %v6247, 2
  %v6249 = vadd.f32 %v6247, %v6248
  %v6250 = vrot.slane %v6249, 1
  %v6251 = vadd.f32 %v6249, %v6250
  %v6252 = vmul.f32 %v6251, %v2161
  %v6253 = vadd.f32 %v6252, 1e-05
  %v6254 = vrsqrt.pop %v6253
  %v6255 = vmul.f32 %v6243, %v6254
  %v6256 = vmul.f32 %v6255, %v2296
  %v6257 = vadd.f32 %v6256, %v2303
  %v6258 = vmax.f32 %v6257, 0.0
  %s6259 = scalar_lea.vmem %s63, 16
  %6260 = vst.msk [vmem:[%s6259] sm:$0x3f] %vm2320, %v4541
  %6261 = vst.msk [vmem:[%s65] sm:$0x3f] %vm2270, %v6258
  // Predicated region
  $region126: #{decoder_multi_forward.1} parent=0 // pred_check
    _
  $region127: #{decoder_multi_forward.1} parent=0 // pred_check_branch
    %6263 = sbr.rel (0) target = $region129
  $region128: #{decoder_multi_forward.1} parent=0 // pred_region
    _
  $region129: #{decoder_multi_forward.1} parent=0 // pred_fallthru
    _
  // Predicated region
  $region130: #{decoder_multi_forward.1} parent=0 // pred_check
    _
  $region131: #{decoder_multi_forward.1} parent=0 // pred_check_branch
    %6265 = sbr.rel (0) target = $region133
  $region132: #{decoder_multi_forward.1} parent=0 // pred_region
    _
  $region133: #{decoder_multi_forward.1} parent=0 // pred_fallthru
    _
  // Predicated region
  $region134: #{decoder_multi_forward.1} parent=0 // pred_check
    _
  $region135: #{decoder_multi_forward.1} parent=0 // pred_check_branch
    %6267 = sbr.rel (0) target = $region137
  $region136: #{decoder_multi_forward.1} parent=0 // pred_region
    _
  $region137: #{decoder_multi_forward.1} parent=0 // pred_fallthru
    _
  // Predicated region
  $region138: #{decoder_multi_forward.1} parent=0 // pred_check
    _
  $region139: #{decoder_multi_forward.1} parent=0 // pred_check_branch
    %6269 = sbr.rel (0) target = $region141
  $region140: #{decoder_multi_forward.1} parent=0 // pred_region
    _
  $region141: #{decoder_multi_forward.1} parent=0 // pred_fallthru
    _

</llo_original>
